<compile_context>
chip_gen: v7x
topology: tpu7x:2x2x1
jax: 0.10.0
libtpu: 0.0.40
codegen_flags: <defaults>
</compile_context>

<pallas_src>
import functools

import jax
import jax.numpy as jnp
from jax.experimental import pallas as pl
from jax.experimental.pallas import tpu as pltpu

EPS = 1e-5          # PyTorch BatchNorm1d default eps
CPAD = 128          # every channel dim is zero-padded to 128 lanes
_MM_DTYPE = jnp.bfloat16

# (mode, bn_index) for the 8 conv layers, in forward order.
_LAYER_CFG = (
    ("bn_relu", 0),   # Conv1d(1,16)   + BN(16) + ReLU
    ("bn_relu", 1),   # Conv1d(16,32)  + BN(32) + ReLU
    ("relu", None),   # Conv1d(32,64)  + ReLU
    ("relu", None),   # Conv1d(64,128) + ReLU
    ("relu", None),   # ConvT(128,64)  + ReLU
    ("relu_bn", 2),   # ConvT(64,32)   + ReLU + BN(32)
    ("relu_bn", 3),   # ConvT(32,16)   + ReLU + BN(16)
    ("tanh", None),   # ConvT(16,1)    + Tanh
)
_OUT_PADS = (0, 0, 1, 1)   # output_padding of the 4 ConvTranspose1d layers


# ---------------------------------------------------------------------------
# In-kernel helpers
# ---------------------------------------------------------------------------
def _selection_matrix(batch, n_out, n_in, coef_r, coef_c, const, dtype):
    """Block-diagonal 0/1 matrix S of shape (batch*n_out, batch*n_in).

    S[b*n_out + i, b*n_in + l] = 1  iff  coef_r*i + coef_c*l == const
    (with 0 <= i < n_out, 0 <= l < n_in).  Built purely from iota + integer
    compares, so a strided/dilated conv tap becomes a plain MXU matmul S @ x.
    The selection matmul is exact in bf16 (entries are 0/1, <=1 hit per row).
    """
    rows, cols = batch * n_out, batch * n_in
    r = jax.lax.broadcasted_iota(jnp.int32, (rows, cols), 0)
    c = jax.lax.broadcasted_iota(jnp.int32, (rows, cols), 1)
    hit = None
    for b in range(batch):
        rl = r - b * n_out
        cl = c - b * n_in
        ok = ((rl >= 0) & (rl < n_out) & (cl >= 0) & (cl < n_in)
              & (coef_r * rl + coef_c * cl == const))
        hit = ok if hit is None else (hit | ok)
    return jnp.where(hit, 1.0, 0.0).astype(dtype)


# ---------------------------------------------------------------------------
# The single fused kernel
# ---------------------------------------------------------------------------
def _autoenc_kernel(x_ref, w_ref, b_ref, g_ref, bb_ref, enc_ref, dec_ref,
                    *, batch, enc_lens, dec_lens, layer_cfg, mm_dtype):
    f32 = jnp.float32

    def conv_block(x_lo, li, l_in, l_out, transpose):
        """y = sum_t (S_t @ x) @ W_t   (bf16 MXU matmuls, f32 accumulation)."""
        acc = None
        for t in range(3):
            if transpose:
                # ConvT(k=3, s=2, p=1): out[j] += x[(j+1-t)/2] @ W_t  <=>  2l - j == 1 - t
                sel = _selection_matrix(batch, l_out, l_in, -1, 2, 1 - t, mm_dtype)
            else:
                # Conv (k=3, s=2, p=1): out[i] += x[2i+t-1] @ W_t     <=>  l - 2i == t - 1
                sel = _selection_matrix(batch, l_out, l_in, -2, 1, t - 1, mm_dtype)
            xt = jnp.dot(sel, x_lo, preferred_element_type=f32)      # exact row select
            contrib = jnp.dot(xt.astype(mm_dtype), w_ref[li * 3 + t],
                              preferred_element_type=f32)
            acc = contrib if acc is None else acc + contrib
        return acc

    def batchnorm(z, bn_idx):
        # nn.BatchNorm1d training-mode: stats over (batch*length), biased var.
        mu = jnp.mean(z, axis=0, keepdims=True)
        var = jnp.mean(jnp.square(z - mu), axis=0, keepdims=True)
        scale = g_ref[bn_idx] * jax.lax.rsqrt(var + EPS)             # gamma folded in
        return z * scale + (bb_ref[bn_idx] - mu * scale)

    # ------------------------------ encoder ------------------------------
    h_lo = x_ref[...].astype(mm_dtype)                               # (B*L0, 128)
    h_f32 = None
    for li in range(4):
        mode, bn_idx = layer_cfg[li]
        y = conv_block(h_lo, li, enc_lens[li], enc_lens[li + 1], transpose=False)
        if mode == "bn_relu":
            # per-channel conv bias is cancelled exactly by BN mean subtraction
            y = jnp.maximum(batchnorm(y, bn_idx), 0.0)
        else:                                                        # "relu"
            y = jnp.maximum(y + b_ref[li], 0.0)
        h_f32 = y
        h_lo = y.astype(mm_dtype)

    # ---------- MaxPool1d(full encoded length, indices) + MaxUnpool1d ----------
    l_enc = enc_lens[4]
    rows = batch * l_enc
    row_id = jax.lax.broadcasted_iota(jnp.int32, (rows, CPAD), 0)
    enc_rows = jax.lax.broadcasted_iota(jnp.int32, (batch, CPAD), 0)
    unpooled = jnp.zeros((rows, CPAD), f32)
    encoded = jnp.zeros((batch, CPAD), f32)
    for b in range(batch):
        in_b = (row_id >= b * l_enc) & (row_id < (b + 1) * l_enc)
        xb = jnp.where(in_b, h_f32, -jnp.inf)
        m_b = jnp.max(xb, axis=0, keepdims=True)                     # (1, 128)
        idx_b = jnp.min(jnp.where(xb == m_b, row_id, rows),
                        axis=0, keepdims=True)                       # first argmax
        unpooled = unpooled + jnp.where(row_id == idx_b, m_b, 0.0)
        encoded = encoded + jnp.where(enc_rows == b, m_b, 0.0)
    enc_ref[...] = encoded                                           # (B, 128)

    # ------------------------------ decoder ------------------------------
    h_lo = unpooled.astype(mm_dtype)
    y = None
    for k in range(4):
        li = 4 + k
        mode, bn_idx = layer_cfg[li]
        y = conv_block(h_lo, li, dec_lens[k], dec_lens[k + 1], transpose=True)
        y = y + b_ref[li]
        if mode == "relu":
            y = jnp.maximum(y, 0.0)
        elif mode == "relu_bn":
            y = batchnorm(jnp.maximum(y, 0.0), bn_idx)
        else:                                                        # "tanh"
            y = jnp.tanh(y)
        h_lo = y.astype(mm_dtype)

    dec_ref[...] = y                                                 # (B*L0, 128), lane-dense


# ---------------------------------------------------------------------------
# pallas_call wrapper
# ---------------------------------------------------------------------------
def _full_spec(shape):
    nd = len(shape)
    return pl.BlockSpec(shape, lambda *_: (0,) * nd)


def _autoencoder_pallas(x_pad, w_all, b_all, g_all, bb_all, *,
                        batch, enc_lens, dec_lens):
    rows_in = batch * enc_lens[0]
    kernel = functools.partial(
        _autoenc_kernel, batch=batch, enc_lens=tuple(enc_lens),
        dec_lens=tuple(dec_lens), layer_cfg=_LAYER_CFG, mm_dtype=_MM_DTYPE)
    return pl.pallas_call(
        kernel,
        grid=(1,),
        out_shape=(jax.ShapeDtypeStruct((batch, CPAD), jnp.float32),
                   jax.ShapeDtypeStruct((rows_in, CPAD), jnp.float32)),
        in_specs=[_full_spec(x_pad.shape), _full_spec(w_all.shape),
                  _full_spec(b_all.shape), _full_spec(g_all.shape),
                  _full_spec(bb_all.shape)],
        out_specs=(_full_spec((batch, CPAD)), _full_spec((rows_in, CPAD))),
        compiler_params=pltpu.CompilerParams(dimension_semantics=("arbitrary",)),
    )(x_pad, w_all, b_all, g_all, bb_all)


# ---------------------------------------------------------------------------
# Parameter packing (plain JAX, trace-time)
# ---------------------------------------------------------------------------
def _pack_params(p):
    def pad_tap(mat):
        ci, co = mat.shape
        return jnp.zeros((CPAD, CPAD), jnp.float32).at[:ci, :co].set(mat)

    def pad_vec(v):
        return jnp.zeros((CPAD,), jnp.float32).at[:v.shape[0]].set(v)

    taps, biases = [], []
    # encoder Conv1d weights: (C_out, C_in, K) -> tap_t = W[:, :, t].T  (C_in, C_out)
    for wk, bk in (("ew1", "eb1"), ("ew2", "eb2"), ("ew3", "eb3"), ("ew4", "eb4")):
        w = p[wk]
        taps.extend(pad_tap(w[:, :, t].T) for t in range(3))
        biases.append(pad_vec(p[bk]))
    # decoder ConvTranspose1d weights: (C_in, C_out, K) -> tap_t = W[:, :, t]
    for wk, bk in (("dw1", "db1"), ("dw2", "db2"), ("dw3", "db3"), ("dw4", "db4")):
        w = p[wk]
        taps.extend(pad_tap(w[:, :, t]) for t in range(3))
        biases.append(pad_vec(p[bk]))

    w_all = jnp.stack(taps).astype(_MM_DTYPE)                    # (24, 128, 128) bf16
    b_all = jnp.stack(biases)[:, None, :]                        # (8, 1, 128) f32
    g_all = jnp.stack([pad_vec(p[n + "_g"])
                       for n in ("ebn1", "ebn2", "dbn2", "dbn3")])[:, None, :]
    bb_all = jnp.stack([pad_vec(p[n + "_b"])
                        for n in ("ebn1", "ebn2", "dbn2", "dbn3")])[:, None, :]
    return w_all, b_all, g_all, bb_all


def init_params(seed=0):
    key = jax.random.PRNGKey(seed)
    ks = jax.random.split(key, 8)

    def _wb(k, w_shape, c_out, fan_in):
        kw, kb = jax.random.split(k)
        bound = 1.0 / (fan_in ** 0.5)
        w = jax.random.uniform(kw, w_shape, jnp.float32, -bound, bound)
        b = jax.random.uniform(kb, (c_out,), jnp.float32, -bound, bound)
        return w, b

    p = {}
    # encoder Conv1d weights: (C_out, C_in, K)
    p["ew1"], p["eb1"] = _wb(ks[0], (16, 1, 3), 16, 1 * 3)
    p["ew2"], p["eb2"] = _wb(ks[1], (32, 16, 3), 32, 16 * 3)
    p["ew3"], p["eb3"] = _wb(ks[2], (64, 32, 3), 64, 32 * 3)
    p["ew4"], p["eb4"] = _wb(ks[3], (128, 64, 3), 128, 64 * 3)
    # decoder ConvTranspose1d weights: (C_in, C_out, K)
    p["dw1"], p["db1"] = _wb(ks[4], (128, 64, 3), 64, 64 * 3)
    p["dw2"], p["db2"] = _wb(ks[5], (64, 32, 3), 32, 32 * 3)
    p["dw3"], p["db3"] = _wb(ks[6], (32, 16, 3), 16, 16 * 3)
    p["dw4"], p["db4"] = _wb(ks[7], (16, 1, 3), 1, 1 * 3)
    # BatchNorm affine params (PyTorch default init: weight=1, bias=0)
    for name, c in [("ebn1", 16), ("ebn2", 32), ("dbn2", 32), ("dbn3", 16)]:
        p[name + "_g"] = jnp.ones((c,), jnp.float32)
        p[name + "_b"] = jnp.zeros((c,), jnp.float32)
    return p


# ---------------------------------------------------------------------------
# Forward
# ---------------------------------------------------------------------------
@jax.jit
def autoencoder_forward(x_ncw, p):
    B, _, L = x_ncw.shape
    # static length bookkeeping: enc L -> (L-1)//2 + 1 four times; dec 2L-1+op
    enc_lens = [L]
    for _ in range(4):
        enc_lens.append((enc_lens[-1] - 1) // 2 + 1)
    dec_lens = [enc_lens[-1]]
    for op in _OUT_PADS:
        dec_lens.append(2 * dec_lens[-1] - 1 + op)
    assert dec_lens[-1] == L, (enc_lens, dec_lens)

    # NCW -> channels-last, zero-padded to 128 channels, rows = batch*length
    x_blc = jnp.transpose(x_ncw, (0, 2, 1)).astype(jnp.float32)       # (B, L, 1)
    x_pad = jnp.zeros((B, L, CPAD), jnp.float32).at[:, :, :1].set(x_blc)
    x_pad = x_pad.reshape(B * L, CPAD)

    w_all, b_all, g_all, bb_all = _pack_params(p)

    enc_out, dec_out = _autoencoder_pallas(
        x_pad, w_all, b_all, g_all, bb_all,
        batch=B, enc_lens=enc_lens, dec_lens=dec_lens)

    encoded = enc_out                                                 # (B, 128)  == encoded.squeeze(dim=2)
    decoded = dec_out[:, 0].reshape(B, 1, L)                          # back to NCW (B, 1, L)
    return encoded, decoded


if __name__ == "__main__":
    # L=100 -> encoder lengths 100->50->25->13->7 -> pool(7) -> decoder 7->13->25->50->100
    B, L = 2, 100
    key = jax.random.PRNGKey(0)
    x = jax.random.normal(key, (B, 1, L), jnp.float32)    # PyTorch NCW input
    params = init_params(0)

    encoded, decoded = autoencoder_forward(x, params)
    jax.block_until_ready((encoded, decoded))

    assert encoded.shape == (B, 128), encoded.shape
    assert decoded.shape == (B, 1, L), decoded.shape
    assert bool(jnp.all(jnp.isfinite(encoded))) and bool(jnp.all(jnp.isfinite(decoded)))
    print("KERNEL_OK")
</pallas_src>

<mosaic_0001>
module attributes {stable_mosaic.version = 11 : i64} {
  func.func @_autoenc_kernel(%arg0: i32, %arg1: memref<200x128xf32, #tpu.memory_space<vmem>>, %arg2: memref<24x128x128xbf16, #tpu.memory_space<vmem>>, %arg3: memref<8x1x128xf32, #tpu.memory_space<vmem>>, %arg4: memref<4x1x128xf32, #tpu.memory_space<vmem>>, %arg5: memref<4x1x128xf32, #tpu.memory_space<vmem>>, %arg6: memref<2x128xf32, #tpu.memory_space<vmem>>, %arg7: memref<200x128xf32, #tpu.memory_space<vmem>>) attributes {dimension_semantics = [#tpu.dimension_semantics<arbitrary>], iteration_bounds = array<i64: 1>, scalar_prefetch = 0 : i64, scratch_operands = 0 : i64, tpu.core_type = #tpu.core_type<tc>, window_params = [{pipeline_mode = #tpu.pipeline_mode<synchronous>, transform_indices = @transform_0, window_bounds = array<i64: 200, 128>}, {pipeline_mode = #tpu.pipeline_mode<synchronous>, transform_indices = @transform_1, window_bounds = array<i64: 24, 128, 128>}, {pipeline_mode = #tpu.pipeline_mode<synchronous>, transform_indices = @transform_2, window_bounds = array<i64: 8, 1, 128>}, {pipeline_mode = #tpu.pipeline_mode<synchronous>, transform_indices = @transform_3, window_bounds = array<i64: 4, 1, 128>}, {pipeline_mode = #tpu.pipeline_mode<synchronous>, transform_indices = @transform_4, window_bounds = array<i64: 4, 1, 128>}, {pipeline_mode = #tpu.pipeline_mode<synchronous>, transform_indices = @transform_5, window_bounds = array<i64: 2, 128>}, {pipeline_mode = #tpu.pipeline_mode<synchronous>, transform_indices = @transform_6, window_bounds = array<i64: 200, 128>}]} {
    %c0 = arith.constant 0 : index
    %c0_0 = arith.constant 0 : index
    %0 = vector.load %arg1[%c0, %c0_0] : memref<200x128xf32, #tpu.memory_space<vmem>>, vector<200x128xf32>
    %1 = arith.truncf %0 : vector<200x128xf32> to vector<200x128xbf16>
    %2 = tpu.iota {dimensions = array<i32: 0>} : vector<100x200xi32>
    %3 = tpu.iota {dimensions = array<i32: 1>} : vector<100x200xi32>
    %c0_i32 = arith.constant 0 : i32
    %4 = vector.broadcast %c0_i32 : i32 to vector<100x200xi32>
    %5 = arith.subi %2, %4 : vector<100x200xi32>
    %c0_i32_1 = arith.constant 0 : i32
    %6 = vector.broadcast %c0_i32_1 : i32 to vector<100x200xi32>
    %7 = arith.subi %3, %6 : vector<100x200xi32>
    %c0_i32_2 = arith.constant 0 : i32
    %8 = vector.broadcast %c0_i32_2 : i32 to vector<100x200xi32>
    %9 = arith.cmpi sge, %5, %8 : vector<100x200xi32>
    %c50_i32 = arith.constant 50 : i32
    %10 = vector.broadcast %c50_i32 : i32 to vector<100x200xi32>
    %11 = arith.cmpi slt, %5, %10 : vector<100x200xi32>
    %12 = arith.andi %9, %11 : vector<100x200xi1>
    %c0_i32_3 = arith.constant 0 : i32
    %13 = vector.broadcast %c0_i32_3 : i32 to vector<100x200xi32>
    %14 = arith.cmpi sge, %7, %13 : vector<100x200xi32>
    %15 = arith.andi %12, %14 : vector<100x200xi1>
    %c100_i32 = arith.constant 100 : i32
    %16 = vector.broadcast %c100_i32 : i32 to vector<100x200xi32>
    %17 = arith.cmpi slt, %7, %16 : vector<100x200xi32>
    %18 = arith.andi %15, %17 : vector<100x200xi1>
    %c-2_i32 = arith.constant -2 : i32
    %19 = vector.broadcast %c-2_i32 : i32 to vector<100x200xi32>
    %20 = arith.muli %19, %5 : vector<100x200xi32>
    %c1_i32 = arith.constant 1 : i32
    %21 = vector.broadcast %c1_i32 : i32 to vector<100x200xi32>
    %22 = arith.muli %21, %7 : vector<100x200xi32>
    %23 = arith.addi %20, %22 : vector<100x200xi32>
    %c-1_i32 = arith.constant -1 : i32
    %24 = vector.broadcast %c-1_i32 : i32 to vector<100x200xi32>
    %25 = arith.cmpi eq, %23, %24 : vector<100x200xi32>
    %26 = arith.andi %18, %25 : vector<100x200xi1>
    %c50_i32_4 = arith.constant 50 : i32
    %27 = vector.broadcast %c50_i32_4 : i32 to vector<100x200xi32>
    %28 = arith.subi %2, %27 : vector<100x200xi32>
    %c100_i32_5 = arith.constant 100 : i32
    %29 = vector.broadcast %c100_i32_5 : i32 to vector<100x200xi32>
    %30 = arith.subi %3, %29 : vector<100x200xi32>
    %c0_i32_6 = arith.constant 0 : i32
    %31 = vector.broadcast %c0_i32_6 : i32 to vector<100x200xi32>
    %32 = arith.cmpi sge, %28, %31 : vector<100x200xi32>
    %c50_i32_7 = arith.constant 50 : i32
    %33 = vector.broadcast %c50_i32_7 : i32 to vector<100x200xi32>
    %34 = arith.cmpi slt, %28, %33 : vector<100x200xi32>
    %35 = arith.andi %32, %34 : vector<100x200xi1>
    %c0_i32_8 = arith.constant 0 : i32
    %36 = vector.broadcast %c0_i32_8 : i32 to vector<100x200xi32>
    %37 = arith.cmpi sge, %30, %36 : vector<100x200xi32>
    %38 = arith.andi %35, %37 : vector<100x200xi1>
    %c100_i32_9 = arith.constant 100 : i32
    %39 = vector.broadcast %c100_i32_9 : i32 to vector<100x200xi32>
    %40 = arith.cmpi slt, %30, %39 : vector<100x200xi32>
    %41 = arith.andi %38, %40 : vector<100x200xi1>
    %c-2_i32_10 = arith.constant -2 : i32
    %42 = vector.broadcast %c-2_i32_10 : i32 to vector<100x200xi32>
    %43 = arith.muli %42, %28 : vector<100x200xi32>
    %c1_i32_11 = arith.constant 1 : i32
    %44 = vector.broadcast %c1_i32_11 : i32 to vector<100x200xi32>
    %45 = arith.muli %44, %30 : vector<100x200xi32>
    %46 = arith.addi %43, %45 : vector<100x200xi32>
    %c-1_i32_12 = arith.constant -1 : i32
    %47 = vector.broadcast %c-1_i32_12 : i32 to vector<100x200xi32>
    %48 = arith.cmpi eq, %46, %47 : vector<100x200xi32>
    %49 = arith.andi %41, %48 : vector<100x200xi1>
    %50 = arith.ori %26, %49 : vector<100x200xi1>
    %cst = arith.constant 1.000000e+00 : f32
    %cst_13 = arith.constant 0.000000e+00 : f32
    %51 = vector.broadcast %cst : f32 to vector<100x200xf32>
    %52 = vector.broadcast %cst_13 : f32 to vector<100x200xf32>
    %53 = arith.select %50, %51, %52 : vector<100x200xi1>, vector<100x200xf32>
    %54 = arith.truncf %53 : vector<100x200xf32> to vector<100x200xbf16>
    %cst_14 = arith.constant dense<0.000000e+00> : vector<100x128xf32>
    %55 = tpu.matmul %54, %1, %cst_14 {dimension_numbers = #tpu.dot_dimension_numbers<[1], [0], [0], [1], [0, 0, 1, 1], [], []>} : vector<100x200xbf16>, vector<200x128xbf16>, vector<100x128xf32> -> vector<100x128xf32>
    %56 = arith.truncf %55 : vector<100x128xf32> to vector<100x128xbf16>
    %c0_15 = arith.constant 0 : index
    %c0_16 = arith.constant 0 : index
    %c0_17 = arith.constant 0 : index
    %57 = vector.load %arg2[%c0_15, %c0_16, %c0_17] : memref<24x128x128xbf16, #tpu.memory_space<vmem>>, vector<1x128x128xbf16>
    %58 = vector.shape_cast %57 : vector<1x128x128xbf16> to vector<128x128xbf16>
    %cst_18 = arith.constant dense<0.000000e+00> : vector<100x128xf32>
    %59 = tpu.matmul %56, %58, %cst_18 {dimension_numbers = #tpu.dot_dimension_numbers<[1], [0], [0], [1], [0, 0, 1, 1], [], []>} : vector<100x128xbf16>, vector<128x128xbf16>, vector<100x128xf32> -> vector<100x128xf32>
    %60 = tpu.iota {dimensions = array<i32: 0>} : vector<100x200xi32>
    %61 = tpu.iota {dimensions = array<i32: 1>} : vector<100x200xi32>
    %c0_i32_19 = arith.constant 0 : i32
    %62 = vector.broadcast %c0_i32_19 : i32 to vector<100x200xi32>
    %63 = arith.subi %60, %62 : vector<100x200xi32>
    %c0_i32_20 = arith.constant 0 : i32
    %64 = vector.broadcast %c0_i32_20 : i32 to vector<100x200xi32>
    %65 = arith.subi %61, %64 : vector<100x200xi32>
    %c0_i32_21 = arith.constant 0 : i32
    %66 = vector.broadcast %c0_i32_21 : i32 to vector<100x200xi32>
    %67 = arith.cmpi sge, %63, %66 : vector<100x200xi32>
    %c50_i32_22 = arith.constant 50 : i32
    %68 = vector.broadcast %c50_i32_22 : i32 to vector<100x200xi32>
    %69 = arith.cmpi slt, %63, %68 : vector<100x200xi32>
    %70 = arith.andi %67, %69 : vector<100x200xi1>
    %c0_i32_23 = arith.constant 0 : i32
    %71 = vector.broadcast %c0_i32_23 : i32 to vector<100x200xi32>
    %72 = arith.cmpi sge, %65, %71 : vector<100x200xi32>
    %73 = arith.andi %70, %72 : vector<100x200xi1>
    %c100_i32_24 = arith.constant 100 : i32
    %74 = vector.broadcast %c100_i32_24 : i32 to vector<100x200xi32>
    %75 = arith.cmpi slt, %65, %74 : vector<100x200xi32>
    %76 = arith.andi %73, %75 : vector<100x200xi1>
    %c-2_i32_25 = arith.constant -2 : i32
    %77 = vector.broadcast %c-2_i32_25 : i32 to vector<100x200xi32>
    %78 = arith.muli %77, %63 : vector<100x200xi32>
    %c1_i32_26 = arith.constant 1 : i32
    %79 = vector.broadcast %c1_i32_26 : i32 to vector<100x200xi32>
    %80 = arith.muli %79, %65 : vector<100x200xi32>
    %81 = arith.addi %78, %80 : vector<100x200xi32>
    %c0_i32_27 = arith.constant 0 : i32
    %82 = vector.broadcast %c0_i32_27 : i32 to vector<100x200xi32>
    %83 = arith.cmpi eq, %81, %82 : vector<100x200xi32>
    %84 = arith.andi %76, %83 : vector<100x200xi1>
    %c50_i32_28 = arith.constant 50 : i32
    %85 = vector.broadcast %c50_i32_28 : i32 to vector<100x200xi32>
    %86 = arith.subi %60, %85 : vector<100x200xi32>
    %c100_i32_29 = arith.constant 100 : i32
    %87 = vector.broadcast %c100_i32_29 : i32 to vector<100x200xi32>
    %88 = arith.subi %61, %87 : vector<100x200xi32>
    %c0_i32_30 = arith.constant 0 : i32
    %89 = vector.broadcast %c0_i32_30 : i32 to vector<100x200xi32>
    %90 = arith.cmpi sge, %86, %89 : vector<100x200xi32>
    %c50_i32_31 = arith.constant 50 : i32
    %91 = vector.broadcast %c50_i32_31 : i32 to vector<100x200xi32>
    %92 = arith.cmpi slt, %86, %91 : vector<100x200xi32>
    %93 = arith.andi %90, %92 : vector<100x200xi1>
    %c0_i32_32 = arith.constant 0 : i32
    %94 = vector.broadcast %c0_i32_32 : i32 to vector<100x200xi32>
    %95 = arith.cmpi sge, %88, %94 : vector<100x200xi32>
    %96 = arith.andi %93, %95 : vector<100x200xi1>
    %c100_i32_33 = arith.constant 100 : i32
    %97 = vector.broadcast %c100_i32_33 : i32 to vector<100x200xi32>
    %98 = arith.cmpi slt, %88, %97 : vector<100x200xi32>
    %99 = arith.andi %96, %98 : vector<100x200xi1>
    %c-2_i32_34 = arith.constant -2 : i32
    %100 = vector.broadcast %c-2_i32_34 : i32 to vector<100x200xi32>
    %101 = arith.muli %100, %86 : vector<100x200xi32>
    %c1_i32_35 = arith.constant 1 : i32
    %102 = vector.broadcast %c1_i32_35 : i32 to vector<100x200xi32>
    %103 = arith.muli %102, %88 : vector<100x200xi32>
    %104 = arith.addi %101, %103 : vector<100x200xi32>
    %c0_i32_36 = arith.constant 0 : i32
    %105 = vector.broadcast %c0_i32_36 : i32 to vector<100x200xi32>
    %106 = arith.cmpi eq, %104, %105 : vector<100x200xi32>
    %107 = arith.andi %99, %106 : vector<100x200xi1>
    %108 = arith.ori %84, %107 : vector<100x200xi1>
    %cst_37 = arith.constant 1.000000e+00 : f32
    %cst_38 = arith.constant 0.000000e+00 : f32
    %109 = vector.broadcast %cst_37 : f32 to vector<100x200xf32>
    %110 = vector.broadcast %cst_38 : f32 to vector<100x200xf32>
    %111 = arith.select %108, %109, %110 : vector<100x200xi1>, vector<100x200xf32>
    %112 = arith.truncf %111 : vector<100x200xf32> to vector<100x200xbf16>
    %cst_39 = arith.constant dense<0.000000e+00> : vector<100x128xf32>
    %113 = tpu.matmul %112, %1, %cst_39 {dimension_numbers = #tpu.dot_dimension_numbers<[1], [0], [0], [1], [0, 0, 1, 1], [], []>} : vector<100x200xbf16>, vector<200x128xbf16>, vector<100x128xf32> -> vector<100x128xf32>
    %114 = arith.truncf %113 : vector<100x128xf32> to vector<100x128xbf16>
    %c1 = arith.constant 1 : index
    %c0_40 = arith.constant 0 : index
    %c0_41 = arith.constant 0 : index
    %115 = vector.load %arg2[%c1, %c0_40, %c0_41] : memref<24x128x128xbf16, #tpu.memory_space<vmem>>, vector<1x128x128xbf16>
    %116 = vector.shape_cast %115 : vector<1x128x128xbf16> to vector<128x128xbf16>
    %cst_42 = arith.constant dense<0.000000e+00> : vector<100x128xf32>
    %117 = tpu.matmul %114, %116, %cst_42 {dimension_numbers = #tpu.dot_dimension_numbers<[1], [0], [0], [1], [0, 0, 1, 1], [], []>} : vector<100x128xbf16>, vector<128x128xbf16>, vector<100x128xf32> -> vector<100x128xf32>
    %118 = arith.addf %59, %117 : vector<100x128xf32>
    %119 = tpu.iota {dimensions = array<i32: 0>} : vector<100x200xi32>
    %120 = tpu.iota {dimensions = array<i32: 1>} : vector<100x200xi32>
    %c0_i32_43 = arith.constant 0 : i32
    %121 = vector.broadcast %c0_i32_43 : i32 to vector<100x200xi32>
    %122 = arith.subi %119, %121 : vector<100x200xi32>
    %c0_i32_44 = arith.constant 0 : i32
    %123 = vector.broadcast %c0_i32_44 : i32 to vector<100x200xi32>
    %124 = arith.subi %120, %123 : vector<100x200xi32>
    %c0_i32_45 = arith.constant 0 : i32
    %125 = vector.broadcast %c0_i32_45 : i32 to vector<100x200xi32>
    %126 = arith.cmpi sge, %122, %125 : vector<100x200xi32>
    %c50_i32_46 = arith.constant 50 : i32
    %127 = vector.broadcast %c50_i32_46 : i32 to vector<100x200xi32>
    %128 = arith.cmpi slt, %122, %127 : vector<100x200xi32>
    %129 = arith.andi %126, %128 : vector<100x200xi1>
    %c0_i32_47 = arith.constant 0 : i32
    %130 = vector.broadcast %c0_i32_47 : i32 to vector<100x200xi32>
    %131 = arith.cmpi sge, %124, %130 : vector<100x200xi32>
    %132 = arith.andi %129, %131 : vector<100x200xi1>
    %c100_i32_48 = arith.constant 100 : i32
    %133 = vector.broadcast %c100_i32_48 : i32 to vector<100x200xi32>
    %134 = arith.cmpi slt, %124, %133 : vector<100x200xi32>
    %135 = arith.andi %132, %134 : vector<100x200xi1>
    %c-2_i32_49 = arith.constant -2 : i32
    %136 = vector.broadcast %c-2_i32_49 : i32 to vector<100x200xi32>
    %137 = arith.muli %136, %122 : vector<100x200xi32>
    %c1_i32_50 = arith.constant 1 : i32
    %138 = vector.broadcast %c1_i32_50 : i32 to vector<100x200xi32>
    %139 = arith.muli %138, %124 : vector<100x200xi32>
    %140 = arith.addi %137, %139 : vector<100x200xi32>
    %c1_i32_51 = arith.constant 1 : i32
    %141 = vector.broadcast %c1_i32_51 : i32 to vector<100x200xi32>
    %142 = arith.cmpi eq, %140, %141 : vector<100x200xi32>
    %143 = arith.andi %135, %142 : vector<100x200xi1>
    %c50_i32_52 = arith.constant 50 : i32
    %144 = vector.broadcast %c50_i32_52 : i32 to vector<100x200xi32>
    %145 = arith.subi %119, %144 : vector<100x200xi32>
    %c100_i32_53 = arith.constant 100 : i32
    %146 = vector.broadcast %c100_i32_53 : i32 to vector<100x200xi32>
    %147 = arith.subi %120, %146 : vector<100x200xi32>
    %c0_i32_54 = arith.constant 0 : i32
    %148 = vector.broadcast %c0_i32_54 : i32 to vector<100x200xi32>
    %149 = arith.cmpi sge, %145, %148 : vector<100x200xi32>
    %c50_i32_55 = arith.constant 50 : i32
    %150 = vector.broadcast %c50_i32_55 : i32 to vector<100x200xi32>
    %151 = arith.cmpi slt, %145, %150 : vector<100x200xi32>
    %152 = arith.andi %149, %151 : vector<100x200xi1>
    %c0_i32_56 = arith.constant 0 : i32
    %153 = vector.broadcast %c0_i32_56 : i32 to vector<100x200xi32>
    %154 = arith.cmpi sge, %147, %153 : vector<100x200xi32>
    %155 = arith.andi %152, %154 : vector<100x200xi1>
    %c100_i32_57 = arith.constant 100 : i32
    %156 = vector.broadcast %c100_i32_57 : i32 to vector<100x200xi32>
    %157 = arith.cmpi slt, %147, %156 : vector<100x200xi32>
    %158 = arith.andi %155, %157 : vector<100x200xi1>
    %c-2_i32_58 = arith.constant -2 : i32
    %159 = vector.broadcast %c-2_i32_58 : i32 to vector<100x200xi32>
    %160 = arith.muli %159, %145 : vector<100x200xi32>
    %c1_i32_59 = arith.constant 1 : i32
    %161 = vector.broadcast %c1_i32_59 : i32 to vector<100x200xi32>
    %162 = arith.muli %161, %147 : vector<100x200xi32>
    %163 = arith.addi %160, %162 : vector<100x200xi32>
    %c1_i32_60 = arith.constant 1 : i32
    %164 = vector.broadcast %c1_i32_60 : i32 to vector<100x200xi32>
    %165 = arith.cmpi eq, %163, %164 : vector<100x200xi32>
    %166 = arith.andi %158, %165 : vector<100x200xi1>
    %167 = arith.ori %143, %166 : vector<100x200xi1>
    %cst_61 = arith.constant 1.000000e+00 : f32
    %cst_62 = arith.constant 0.000000e+00 : f32
    %168 = vector.broadcast %cst_61 : f32 to vector<100x200xf32>
    %169 = vector.broadcast %cst_62 : f32 to vector<100x200xf32>
    %170 = arith.select %167, %168, %169 : vector<100x200xi1>, vector<100x200xf32>
    %171 = arith.truncf %170 : vector<100x200xf32> to vector<100x200xbf16>
    %cst_63 = arith.constant dense<0.000000e+00> : vector<100x128xf32>
    %172 = tpu.matmul %171, %1, %cst_63 {dimension_numbers = #tpu.dot_dimension_numbers<[1], [0], [0], [1], [0, 0, 1, 1], [], []>} : vector<100x200xbf16>, vector<200x128xbf16>, vector<100x128xf32> -> vector<100x128xf32>
    %173 = arith.truncf %172 : vector<100x128xf32> to vector<100x128xbf16>
    %c2 = arith.constant 2 : index
    %c0_64 = arith.constant 0 : index
    %c0_65 = arith.constant 0 : index
    %174 = vector.load %arg2[%c2, %c0_64, %c0_65] : memref<24x128x128xbf16, #tpu.memory_space<vmem>>, vector<1x128x128xbf16>
    %175 = vector.shape_cast %174 : vector<1x128x128xbf16> to vector<128x128xbf16>
    %cst_66 = arith.constant dense<0.000000e+00> : vector<100x128xf32>
    %176 = tpu.matmul %173, %175, %cst_66 {dimension_numbers = #tpu.dot_dimension_numbers<[1], [0], [0], [1], [0, 0, 1, 1], [], []>} : vector<100x128xbf16>, vector<128x128xbf16>, vector<100x128xf32> -> vector<100x128xf32>
    %177 = arith.addf %118, %176 : vector<100x128xf32>
    %cst_67 = arith.constant dense<0.000000e+00> : vector<128xf32>
    %178 = vector.multi_reduction <add>, %177, %cst_67 [0] : vector<100x128xf32> to vector<128xf32>
    %179 = vector.shape_cast %178 : vector<128xf32> to vector<1x128xf32>
    %cst_68 = arith.constant 1.000000e+02 : f32
    %180 = vector.broadcast %cst_68 : f32 to vector<1x128xf32>
    %181 = arith.divf %179, %180 : vector<1x128xf32>
    %182 = vector.broadcast %181 : vector<1x128xf32> to vector<100x128xf32>
    %183 = arith.subf %177, %182 : vector<100x128xf32>
    %184 = arith.mulf %183, %183 : vector<100x128xf32>
    %cst_69 = arith.constant dense<0.000000e+00> : vector<128xf32>
    %185 = vector.multi_reduction <add>, %184, %cst_69 [0] : vector<100x128xf32> to vector<128xf32>
    %186 = vector.shape_cast %185 : vector<128xf32> to vector<1x128xf32>
    %cst_70 = arith.constant 1.000000e+02 : f32
    %187 = vector.broadcast %cst_70 : f32 to vector<1x128xf32>
    %188 = arith.divf %186, %187 : vector<1x128xf32>
    %c0_71 = arith.constant 0 : index
    %c0_72 = arith.constant 0 : index
    %c0_73 = arith.constant 0 : index
    %189 = vector.load %arg4[%c0_71, %c0_72, %c0_73] : memref<4x1x128xf32, #tpu.memory_space<vmem>>, vector<1x1x128xf32>
    %190 = vector.shape_cast %189 : vector<1x1x128xf32> to vector<1x128xf32>
    %cst_74 = arith.constant 9.99999974E-6 : f32
    %191 = vector.broadcast %cst_74 : f32 to vector<1x128xf32>
    %192 = arith.addf %188, %191 : vector<1x128xf32>
    %193 = math.rsqrt %192 : vector<1x128xf32>
    %194 = arith.mulf %190, %193 : vector<1x128xf32>
    %195 = vector.broadcast %194 : vector<1x128xf32> to vector<100x128xf32>
    %196 = arith.mulf %177, %195 : vector<100x128xf32>
    %c0_75 = arith.constant 0 : index
    %c0_76 = arith.constant 0 : index
    %c0_77 = arith.constant 0 : index
    %197 = vector.load %arg5[%c0_75, %c0_76, %c0_77] : memref<4x1x128xf32, #tpu.memory_space<vmem>>, vector<1x1x128xf32>
    %198 = vector.shape_cast %197 : vector<1x1x128xf32> to vector<1x128xf32>
    %199 = arith.mulf %181, %194 : vector<1x128xf32>
    %200 = arith.subf %198, %199 : vector<1x128xf32>
    %201 = vector.broadcast %200 : vector<1x128xf32> to vector<100x128xf32>
    %202 = arith.addf %196, %201 : vector<100x128xf32>
    %cst_78 = arith.constant 0.000000e+00 : f32
    %203 = vector.broadcast %cst_78 : f32 to vector<100x128xf32>
    %204 = arith.maximumf %202, %203 : vector<100x128xf32>
    %205 = arith.truncf %204 : vector<100x128xf32> to vector<100x128xbf16>
    %206 = tpu.iota {dimensions = array<i32: 0>} : vector<50x100xi32>
    %207 = tpu.iota {dimensions = array<i32: 1>} : vector<50x100xi32>
    %c0_i32_79 = arith.constant 0 : i32
    %208 = vector.broadcast %c0_i32_79 : i32 to vector<50x100xi32>
    %209 = arith.subi %206, %208 : vector<50x100xi32>
    %c0_i32_80 = arith.constant 0 : i32
    %210 = vector.broadcast %c0_i32_80 : i32 to vector<50x100xi32>
    %211 = arith.subi %207, %210 : vector<50x100xi32>
    %c0_i32_81 = arith.constant 0 : i32
    %212 = vector.broadcast %c0_i32_81 : i32 to vector<50x100xi32>
    %213 = arith.cmpi sge, %209, %212 : vector<50x100xi32>
    %c25_i32 = arith.constant 25 : i32
    %214 = vector.broadcast %c25_i32 : i32 to vector<50x100xi32>
    %215 = arith.cmpi slt, %209, %214 : vector<50x100xi32>
    %216 = arith.andi %213, %215 : vector<50x100xi1>
    %c0_i32_82 = arith.constant 0 : i32
    %217 = vector.broadcast %c0_i32_82 : i32 to vector<50x100xi32>
    %218 = arith.cmpi sge, %211, %217 : vector<50x100xi32>
    %219 = arith.andi %216, %218 : vector<50x100xi1>
    %c50_i32_83 = arith.constant 50 : i32
    %220 = vector.broadcast %c50_i32_83 : i32 to vector<50x100xi32>
    %221 = arith.cmpi slt, %211, %220 : vector<50x100xi32>
    %222 = arith.andi %219, %221 : vector<50x100xi1>
    %c-2_i32_84 = arith.constant -2 : i32
    %223 = vector.broadcast %c-2_i32_84 : i32 to vector<50x100xi32>
    %224 = arith.muli %223, %209 : vector<50x100xi32>
    %c1_i32_85 = arith.constant 1 : i32
    %225 = vector.broadcast %c1_i32_85 : i32 to vector<50x100xi32>
    %226 = arith.muli %225, %211 : vector<50x100xi32>
    %227 = arith.addi %224, %226 : vector<50x100xi32>
    %c-1_i32_86 = arith.constant -1 : i32
    %228 = vector.broadcast %c-1_i32_86 : i32 to vector<50x100xi32>
    %229 = arith.cmpi eq, %227, %228 : vector<50x100xi32>
    %230 = arith.andi %222, %229 : vector<50x100xi1>
    %c25_i32_87 = arith.constant 25 : i32
    %231 = vector.broadcast %c25_i32_87 : i32 to vector<50x100xi32>
    %232 = arith.subi %206, %231 : vector<50x100xi32>
    %c50_i32_88 = arith.constant 50 : i32
    %233 = vector.broadcast %c50_i32_88 : i32 to vector<50x100xi32>
    %234 = arith.subi %207, %233 : vector<50x100xi32>
    %c0_i32_89 = arith.constant 0 : i32
    %235 = vector.broadcast %c0_i32_89 : i32 to vector<50x100xi32>
    %236 = arith.cmpi sge, %232, %235 : vector<50x100xi32>
    %c25_i32_90 = arith.constant 25 : i32
    %237 = vector.broadcast %c25_i32_90 : i32 to vector<50x100xi32>
    %238 = arith.cmpi slt, %232, %237 : vector<50x100xi32>
    %239 = arith.andi %236, %238 : vector<50x100xi1>
    %c0_i32_91 = arith.constant 0 : i32
    %240 = vector.broadcast %c0_i32_91 : i32 to vector<50x100xi32>
    %241 = arith.cmpi sge, %234, %240 : vector<50x100xi32>
    %242 = arith.andi %239, %241 : vector<50x100xi1>
    %c50_i32_92 = arith.constant 50 : i32
    %243 = vector.broadcast %c50_i32_92 : i32 to vector<50x100xi32>
    %244 = arith.cmpi slt, %234, %243 : vector<50x100xi32>
    %245 = arith.andi %242, %244 : vector<50x100xi1>
    %c-2_i32_93 = arith.constant -2 : i32
    %246 = vector.broadcast %c-2_i32_93 : i32 to vector<50x100xi32>
    %247 = arith.muli %246, %232 : vector<50x100xi32>
    %c1_i32_94 = arith.constant 1 : i32
    %248 = vector.broadcast %c1_i32_94 : i32 to vector<50x100xi32>
    %249 = arith.muli %248, %234 : vector<50x100xi32>
    %250 = arith.addi %247, %249 : vector<50x100xi32>
    %c-1_i32_95 = arith.constant -1 : i32
    %251 = vector.broadcast %c-1_i32_95 : i32 to vector<50x100xi32>
    %252 = arith.cmpi eq, %250, %251 : vector<50x100xi32>
    %253 = arith.andi %245, %252 : vector<50x100xi1>
    %254 = arith.ori %230, %253 : vector<50x100xi1>
    %cst_96 = arith.constant 1.000000e+00 : f32
    %cst_97 = arith.constant 0.000000e+00 : f32
    %255 = vector.broadcast %cst_96 : f32 to vector<50x100xf32>
    %256 = vector.broadcast %cst_97 : f32 to vector<50x100xf32>
    %257 = arith.select %254, %255, %256 : vector<50x100xi1>, vector<50x100xf32>
    %258 = arith.truncf %257 : vector<50x100xf32> to vector<50x100xbf16>
    %cst_98 = arith.constant dense<0.000000e+00> : vector<50x128xf32>
    %259 = tpu.matmul %258, %205, %cst_98 {dimension_numbers = #tpu.dot_dimension_numbers<[1], [0], [0], [1], [0, 0, 1, 1], [], []>} : vector<50x100xbf16>, vector<100x128xbf16>, vector<50x128xf32> -> vector<50x128xf32>
    %260 = arith.truncf %259 : vector<50x128xf32> to vector<50x128xbf16>
    %c3 = arith.constant 3 : index
    %c0_99 = arith.constant 0 : index
    %c0_100 = arith.constant 0 : index
    %261 = vector.load %arg2[%c3, %c0_99, %c0_100] : memref<24x128x128xbf16, #tpu.memory_space<vmem>>, vector<1x128x128xbf16>
    %262 = vector.shape_cast %261 : vector<1x128x128xbf16> to vector<128x128xbf16>
    %cst_101 = arith.constant dense<0.000000e+00> : vector<50x128xf32>
    %263 = tpu.matmul %260, %262, %cst_101 {dimension_numbers = #tpu.dot_dimension_numbers<[1], [0], [0], [1], [0, 0, 1, 1], [], []>} : vector<50x128xbf16>, vector<128x128xbf16>, vector<50x128xf32> -> vector<50x128xf32>
    %264 = tpu.iota {dimensions = array<i32: 0>} : vector<50x100xi32>
    %265 = tpu.iota {dimensions = array<i32: 1>} : vector<50x100xi32>
    %c0_i32_102 = arith.constant 0 : i32
    %266 = vector.broadcast %c0_i32_102 : i32 to vector<50x100xi32>
    %267 = arith.subi %264, %266 : vector<50x100xi32>
    %c0_i32_103 = arith.constant 0 : i32
    %268 = vector.broadcast %c0_i32_103 : i32 to vector<50x100xi32>
    %269 = arith.subi %265, %268 : vector<50x100xi32>
    %c0_i32_104 = arith.constant 0 : i32
    %270 = vector.broadcast %c0_i32_104 : i32 to vector<50x100xi32>
    %271 = arith.cmpi sge, %267, %270 : vector<50x100xi32>
    %c25_i32_105 = arith.constant 25 : i32
    %272 = vector.broadcast %c25_i32_105 : i32 to vector<50x100xi32>
    %273 = arith.cmpi slt, %267, %272 : vector<50x100xi32>
    %274 = arith.andi %271, %273 : vector<50x100xi1>
    %c0_i32_106 = arith.constant 0 : i32
    %275 = vector.broadcast %c0_i32_106 : i32 to vector<50x100xi32>
    %276 = arith.cmpi sge, %269, %275 : vector<50x100xi32>
    %277 = arith.andi %274, %276 : vector<50x100xi1>
    %c50_i32_107 = arith.constant 50 : i32
    %278 = vector.broadcast %c50_i32_107 : i32 to vector<50x100xi32>
    %279 = arith.cmpi slt, %269, %278 : vector<50x100xi32>
    %280 = arith.andi %277, %279 : vector<50x100xi1>
    %c-2_i32_108 = arith.constant -2 : i32
    %281 = vector.broadcast %c-2_i32_108 : i32 to vector<50x100xi32>
    %282 = arith.muli %281, %267 : vector<50x100xi32>
    %c1_i32_109 = arith.constant 1 : i32
    %283 = vector.broadcast %c1_i32_109 : i32 to vector<50x100xi32>
    %284 = arith.muli %283, %269 : vector<50x100xi32>
    %285 = arith.addi %282, %284 : vector<50x100xi32>
    %c0_i32_110 = arith.constant 0 : i32
    %286 = vector.broadcast %c0_i32_110 : i32 to vector<50x100xi32>
    %287 = arith.cmpi eq, %285, %286 : vector<50x100xi32>
    %288 = arith.andi %280, %287 : vector<50x100xi1>
    %c25_i32_111 = arith.constant 25 : i32
    %289 = vector.broadcast %c25_i32_111 : i32 to vector<50x100xi32>
    %290 = arith.subi %264, %289 : vector<50x100xi32>
    %c50_i32_112 = arith.constant 50 : i32
    %291 = vector.broadcast %c50_i32_112 : i32 to vector<50x100xi32>
    %292 = arith.subi %265, %291 : vector<50x100xi32>
    %c0_i32_113 = arith.constant 0 : i32
    %293 = vector.broadcast %c0_i32_113 : i32 to vector<50x100xi32>
    %294 = arith.cmpi sge, %290, %293 : vector<50x100xi32>
    %c25_i32_114 = arith.constant 25 : i32
    %295 = vector.broadcast %c25_i32_114 : i32 to vector<50x100xi32>
    %296 = arith.cmpi slt, %290, %295 : vector<50x100xi32>
    %297 = arith.andi %294, %296 : vector<50x100xi1>
    %c0_i32_115 = arith.constant 0 : i32
    %298 = vector.broadcast %c0_i32_115 : i32 to vector<50x100xi32>
    %299 = arith.cmpi sge, %292, %298 : vector<50x100xi32>
    %300 = arith.andi %297, %299 : vector<50x100xi1>
    %c50_i32_116 = arith.constant 50 : i32
    %301 = vector.broadcast %c50_i32_116 : i32 to vector<50x100xi32>
    %302 = arith.cmpi slt, %292, %301 : vector<50x100xi32>
    %303 = arith.andi %300, %302 : vector<50x100xi1>
    %c-2_i32_117 = arith.constant -2 : i32
    %304 = vector.broadcast %c-2_i32_117 : i32 to vector<50x100xi32>
    %305 = arith.muli %304, %290 : vector<50x100xi32>
    %c1_i32_118 = arith.constant 1 : i32
    %306 = vector.broadcast %c1_i32_118 : i32 to vector<50x100xi32>
    %307 = arith.muli %306, %292 : vector<50x100xi32>
    %308 = arith.addi %305, %307 : vector<50x100xi32>
    %c0_i32_119 = arith.constant 0 : i32
    %309 = vector.broadcast %c0_i32_119 : i32 to vector<50x100xi32>
    %310 = arith.cmpi eq, %308, %309 : vector<50x100xi32>
    %311 = arith.andi %303, %310 : vector<50x100xi1>
    %312 = arith.ori %288, %311 : vector<50x100xi1>
    %cst_120 = arith.constant 1.000000e+00 : f32
    %cst_121 = arith.constant 0.000000e+00 : f32
    %313 = vector.broadcast %cst_120 : f32 to vector<50x100xf32>
    %314 = vector.broadcast %cst_121 : f32 to vector<50x100xf32>
    %315 = arith.select %312, %313, %314 : vector<50x100xi1>, vector<50x100xf32>
    %316 = arith.truncf %315 : vector<50x100xf32> to vector<50x100xbf16>
    %cst_122 = arith.constant dense<0.000000e+00> : vector<50x128xf32>
    %317 = tpu.matmul %316, %205, %cst_122 {dimension_numbers = #tpu.dot_dimension_numbers<[1], [0], [0], [1], [0, 0, 1, 1], [], []>} : vector<50x100xbf16>, vector<100x128xbf16>, vector<50x128xf32> -> vector<50x128xf32>
    %318 = arith.truncf %317 : vector<50x128xf32> to vector<50x128xbf16>
    %c4 = arith.constant 4 : index
    %c0_123 = arith.constant 0 : index
    %c0_124 = arith.constant 0 : index
    %319 = vector.load %arg2[%c4, %c0_123, %c0_124] : memref<24x128x128xbf16, #tpu.memory_space<vmem>>, vector<1x128x128xbf16>
    %320 = vector.shape_cast %319 : vector<1x128x128xbf16> to vector<128x128xbf16>
    %cst_125 = arith.constant dense<0.000000e+00> : vector<50x128xf32>
    %321 = tpu.matmul %318, %320, %cst_125 {dimension_numbers = #tpu.dot_dimension_numbers<[1], [0], [0], [1], [0, 0, 1, 1], [], []>} : vector<50x128xbf16>, vector<128x128xbf16>, vector<50x128xf32> -> vector<50x128xf32>
    %322 = arith.addf %263, %321 : vector<50x128xf32>
    %323 = tpu.iota {dimensions = array<i32: 0>} : vector<50x100xi32>
    %324 = tpu.iota {dimensions = array<i32: 1>} : vector<50x100xi32>
    %c0_i32_126 = arith.constant 0 : i32
    %325 = vector.broadcast %c0_i32_126 : i32 to vector<50x100xi32>
    %326 = arith.subi %323, %325 : vector<50x100xi32>
    %c0_i32_127 = arith.constant 0 : i32
    %327 = vector.broadcast %c0_i32_127 : i32 to vector<50x100xi32>
    %328 = arith.subi %324, %327 : vector<50x100xi32>
    %c0_i32_128 = arith.constant 0 : i32
    %329 = vector.broadcast %c0_i32_128 : i32 to vector<50x100xi32>
    %330 = arith.cmpi sge, %326, %329 : vector<50x100xi32>
    %c25_i32_129 = arith.constant 25 : i32
    %331 = vector.broadcast %c25_i32_129 : i32 to vector<50x100xi32>
    %332 = arith.cmpi slt, %326, %331 : vector<50x100xi32>
    %333 = arith.andi %330, %332 : vector<50x100xi1>
    %c0_i32_130 = arith.constant 0 : i32
    %334 = vector.broadcast %c0_i32_130 : i32 to vector<50x100xi32>
    %335 = arith.cmpi sge, %328, %334 : vector<50x100xi32>
    %336 = arith.andi %333, %335 : vector<50x100xi1>
    %c50_i32_131 = arith.constant 50 : i32
    %337 = vector.broadcast %c50_i32_131 : i32 to vector<50x100xi32>
    %338 = arith.cmpi slt, %328, %337 : vector<50x100xi32>
    %339 = arith.andi %336, %338 : vector<50x100xi1>
    %c-2_i32_132 = arith.constant -2 : i32
    %340 = vector.broadcast %c-2_i32_132 : i32 to vector<50x100xi32>
    %341 = arith.muli %340, %326 : vector<50x100xi32>
    %c1_i32_133 = arith.constant 1 : i32
    %342 = vector.broadcast %c1_i32_133 : i32 to vector<50x100xi32>
    %343 = arith.muli %342, %328 : vector<50x100xi32>
    %344 = arith.addi %341, %343 : vector<50x100xi32>
    %c1_i32_134 = arith.constant 1 : i32
    %345 = vector.broadcast %c1_i32_134 : i32 to vector<50x100xi32>
    %346 = arith.cmpi eq, %344, %345 : vector<50x100xi32>
    %347 = arith.andi %339, %346 : vector<50x100xi1>
    %c25_i32_135 = arith.constant 25 : i32
    %348 = vector.broadcast %c25_i32_135 : i32 to vector<50x100xi32>
    %349 = arith.subi %323, %348 : vector<50x100xi32>
    %c50_i32_136 = arith.constant 50 : i32
    %350 = vector.broadcast %c50_i32_136 : i32 to vector<50x100xi32>
    %351 = arith.subi %324, %350 : vector<50x100xi32>
    %c0_i32_137 = arith.constant 0 : i32
    %352 = vector.broadcast %c0_i32_137 : i32 to vector<50x100xi32>
    %353 = arith.cmpi sge, %349, %352 : vector<50x100xi32>
    %c25_i32_138 = arith.constant 25 : i32
    %354 = vector.broadcast %c25_i32_138 : i32 to vector<50x100xi32>
    %355 = arith.cmpi slt, %349, %354 : vector<50x100xi32>
    %356 = arith.andi %353, %355 : vector<50x100xi1>
    %c0_i32_139 = arith.constant 0 : i32
    %357 = vector.broadcast %c0_i32_139 : i32 to vector<50x100xi32>
    %358 = arith.cmpi sge, %351, %357 : vector<50x100xi32>
    %359 = arith.andi %356, %358 : vector<50x100xi1>
    %c50_i32_140 = arith.constant 50 : i32
    %360 = vector.broadcast %c50_i32_140 : i32 to vector<50x100xi32>
    %361 = arith.cmpi slt, %351, %360 : vector<50x100xi32>
    %362 = arith.andi %359, %361 : vector<50x100xi1>
    %c-2_i32_141 = arith.constant -2 : i32
    %363 = vector.broadcast %c-2_i32_141 : i32 to vector<50x100xi32>
    %364 = arith.muli %363, %349 : vector<50x100xi32>
    %c1_i32_142 = arith.constant 1 : i32
    %365 = vector.broadcast %c1_i32_142 : i32 to vector<50x100xi32>
    %366 = arith.muli %365, %351 : vector<50x100xi32>
    %367 = arith.addi %364, %366 : vector<50x100xi32>
    %c1_i32_143 = arith.constant 1 : i32
    %368 = vector.broadcast %c1_i32_143 : i32 to vector<50x100xi32>
    %369 = arith.cmpi eq, %367, %368 : vector<50x100xi32>
    %370 = arith.andi %362, %369 : vector<50x100xi1>
    %371 = arith.ori %347, %370 : vector<50x100xi1>
    %cst_144 = arith.constant 1.000000e+00 : f32
    %cst_145 = arith.constant 0.000000e+00 : f32
    %372 = vector.broadcast %cst_144 : f32 to vector<50x100xf32>
    %373 = vector.broadcast %cst_145 : f32 to vector<50x100xf32>
    %374 = arith.select %371, %372, %373 : vector<50x100xi1>, vector<50x100xf32>
    %375 = arith.truncf %374 : vector<50x100xf32> to vector<50x100xbf16>
    %cst_146 = arith.constant dense<0.000000e+00> : vector<50x128xf32>
    %376 = tpu.matmul %375, %205, %cst_146 {dimension_numbers = #tpu.dot_dimension_numbers<[1], [0], [0], [1], [0, 0, 1, 1], [], []>} : vector<50x100xbf16>, vector<100x128xbf16>, vector<50x128xf32> -> vector<50x128xf32>
    %377 = arith.truncf %376 : vector<50x128xf32> to vector<50x128xbf16>
    %c5 = arith.constant 5 : index
    %c0_147 = arith.constant 0 : index
    %c0_148 = arith.constant 0 : index
    %378 = vector.load %arg2[%c5, %c0_147, %c0_148] : memref<24x128x128xbf16, #tpu.memory_space<vmem>>, vector<1x128x128xbf16>
    %379 = vector.shape_cast %378 : vector<1x128x128xbf16> to vector<128x128xbf16>
    %cst_149 = arith.constant dense<0.000000e+00> : vector<50x128xf32>
    %380 = tpu.matmul %377, %379, %cst_149 {dimension_numbers = #tpu.dot_dimension_numbers<[1], [0], [0], [1], [0, 0, 1, 1], [], []>} : vector<50x128xbf16>, vector<128x128xbf16>, vector<50x128xf32> -> vector<50x128xf32>
    %381 = arith.addf %322, %380 : vector<50x128xf32>
    %cst_150 = arith.constant dense<0.000000e+00> : vector<128xf32>
    %382 = vector.multi_reduction <add>, %381, %cst_150 [0] : vector<50x128xf32> to vector<128xf32>
    %383 = vector.shape_cast %382 : vector<128xf32> to vector<1x128xf32>
    %cst_151 = arith.constant 5.000000e+01 : f32
    %384 = vector.broadcast %cst_151 : f32 to vector<1x128xf32>
    %385 = arith.divf %383, %384 : vector<1x128xf32>
    %386 = vector.broadcast %385 : vector<1x128xf32> to vector<50x128xf32>
    %387 = arith.subf %381, %386 : vector<50x128xf32>
    %388 = arith.mulf %387, %387 : vector<50x128xf32>
    %cst_152 = arith.constant dense<0.000000e+00> : vector<128xf32>
    %389 = vector.multi_reduction <add>, %388, %cst_152 [0] : vector<50x128xf32> to vector<128xf32>
    %390 = vector.shape_cast %389 : vector<128xf32> to vector<1x128xf32>
    %cst_153 = arith.constant 5.000000e+01 : f32
    %391 = vector.broadcast %cst_153 : f32 to vector<1x128xf32>
    %392 = arith.divf %390, %391 : vector<1x128xf32>
    %c1_154 = arith.constant 1 : index
    %c0_155 = arith.constant 0 : index
    %c0_156 = arith.constant 0 : index
    %393 = vector.load %arg4[%c1_154, %c0_155, %c0_156] : memref<4x1x128xf32, #tpu.memory_space<vmem>>, vector<1x1x128xf32>
    %394 = vector.shape_cast %393 : vector<1x1x128xf32> to vector<1x128xf32>
    %cst_157 = arith.constant 9.99999974E-6 : f32
    %395 = vector.broadcast %cst_157 : f32 to vector<1x128xf32>
    %396 = arith.addf %392, %395 : vector<1x128xf32>
    %397 = math.rsqrt %396 : vector<1x128xf32>
    %398 = arith.mulf %394, %397 : vector<1x128xf32>
    %399 = vector.broadcast %398 : vector<1x128xf32> to vector<50x128xf32>
    %400 = arith.mulf %381, %399 : vector<50x128xf32>
    %c1_158 = arith.constant 1 : index
    %c0_159 = arith.constant 0 : index
    %c0_160 = arith.constant 0 : index
    %401 = vector.load %arg5[%c1_158, %c0_159, %c0_160] : memref<4x1x128xf32, #tpu.memory_space<vmem>>, vector<1x1x128xf32>
    %402 = vector.shape_cast %401 : vector<1x1x128xf32> to vector<1x128xf32>
    %403 = arith.mulf %385, %398 : vector<1x128xf32>
    %404 = arith.subf %402, %403 : vector<1x128xf32>
    %405 = vector.broadcast %404 : vector<1x128xf32> to vector<50x128xf32>
    %406 = arith.addf %400, %405 : vector<50x128xf32>
    %cst_161 = arith.constant 0.000000e+00 : f32
    %407 = vector.broadcast %cst_161 : f32 to vector<50x128xf32>
    %408 = arith.maximumf %406, %407 : vector<50x128xf32>
    %409 = arith.truncf %408 : vector<50x128xf32> to vector<50x128xbf16>
    %410 = tpu.iota {dimensions = array<i32: 0>} : vector<26x50xi32>
    %411 = tpu.iota {dimensions = array<i32: 1>} : vector<26x50xi32>
    %c0_i32_162 = arith.constant 0 : i32
    %412 = vector.broadcast %c0_i32_162 : i32 to vector<26x50xi32>
    %413 = arith.subi %410, %412 : vector<26x50xi32>
    %c0_i32_163 = arith.constant 0 : i32
    %414 = vector.broadcast %c0_i32_163 : i32 to vector<26x50xi32>
    %415 = arith.subi %411, %414 : vector<26x50xi32>
    %c0_i32_164 = arith.constant 0 : i32
    %416 = vector.broadcast %c0_i32_164 : i32 to vector<26x50xi32>
    %417 = arith.cmpi sge, %413, %416 : vector<26x50xi32>
    %c13_i32 = arith.constant 13 : i32
    %418 = vector.broadcast %c13_i32 : i32 to vector<26x50xi32>
    %419 = arith.cmpi slt, %413, %418 : vector<26x50xi32>
    %420 = arith.andi %417, %419 : vector<26x50xi1>
    %c0_i32_165 = arith.constant 0 : i32
    %421 = vector.broadcast %c0_i32_165 : i32 to vector<26x50xi32>
    %422 = arith.cmpi sge, %415, %421 : vector<26x50xi32>
    %423 = arith.andi %420, %422 : vector<26x50xi1>
    %c25_i32_166 = arith.constant 25 : i32
    %424 = vector.broadcast %c25_i32_166 : i32 to vector<26x50xi32>
    %425 = arith.cmpi slt, %415, %424 : vector<26x50xi32>
    %426 = arith.andi %423, %425 : vector<26x50xi1>
    %c-2_i32_167 = arith.constant -2 : i32
    %427 = vector.broadcast %c-2_i32_167 : i32 to vector<26x50xi32>
    %428 = arith.muli %427, %413 : vector<26x50xi32>
    %c1_i32_168 = arith.constant 1 : i32
    %429 = vector.broadcast %c1_i32_168 : i32 to vector<26x50xi32>
    %430 = arith.muli %429, %415 : vector<26x50xi32>
    %431 = arith.addi %428, %430 : vector<26x50xi32>
    %c-1_i32_169 = arith.constant -1 : i32
    %432 = vector.broadcast %c-1_i32_169 : i32 to vector<26x50xi32>
    %433 = arith.cmpi eq, %431, %432 : vector<26x50xi32>
    %434 = arith.andi %426, %433 : vector<26x50xi1>
    %c13_i32_170 = arith.constant 13 : i32
    %435 = vector.broadcast %c13_i32_170 : i32 to vector<26x50xi32>
    %436 = arith.subi %410, %435 : vector<26x50xi32>
    %c25_i32_171 = arith.constant 25 : i32
    %437 = vector.broadcast %c25_i32_171 : i32 to vector<26x50xi32>
    %438 = arith.subi %411, %437 : vector<26x50xi32>
    %c0_i32_172 = arith.constant 0 : i32
    %439 = vector.broadcast %c0_i32_172 : i32 to vector<26x50xi32>
    %440 = arith.cmpi sge, %436, %439 : vector<26x50xi32>
    %c13_i32_173 = arith.constant 13 : i32
    %441 = vector.broadcast %c13_i32_173 : i32 to vector<26x50xi32>
    %442 = arith.cmpi slt, %436, %441 : vector<26x50xi32>
    %443 = arith.andi %440, %442 : vector<26x50xi1>
    %c0_i32_174 = arith.constant 0 : i32
    %444 = vector.broadcast %c0_i32_174 : i32 to vector<26x50xi32>
    %445 = arith.cmpi sge, %438, %444 : vector<26x50xi32>
    %446 = arith.andi %443, %445 : vector<26x50xi1>
    %c25_i32_175 = arith.constant 25 : i32
    %447 = vector.broadcast %c25_i32_175 : i32 to vector<26x50xi32>
    %448 = arith.cmpi slt, %438, %447 : vector<26x50xi32>
    %449 = arith.andi %446, %448 : vector<26x50xi1>
    %c-2_i32_176 = arith.constant -2 : i32
    %450 = vector.broadcast %c-2_i32_176 : i32 to vector<26x50xi32>
    %451 = arith.muli %450, %436 : vector<26x50xi32>
    %c1_i32_177 = arith.constant 1 : i32
    %452 = vector.broadcast %c1_i32_177 : i32 to vector<26x50xi32>
    %453 = arith.muli %452, %438 : vector<26x50xi32>
    %454 = arith.addi %451, %453 : vector<26x50xi32>
    %c-1_i32_178 = arith.constant -1 : i32
    %455 = vector.broadcast %c-1_i32_178 : i32 to vector<26x50xi32>
    %456 = arith.cmpi eq, %454, %455 : vector<26x50xi32>
    %457 = arith.andi %449, %456 : vector<26x50xi1>
    %458 = arith.ori %434, %457 : vector<26x50xi1>
    %cst_179 = arith.constant 1.000000e+00 : f32
    %cst_180 = arith.constant 0.000000e+00 : f32
    %459 = vector.broadcast %cst_179 : f32 to vector<26x50xf32>
    %460 = vector.broadcast %cst_180 : f32 to vector<26x50xf32>
    %461 = arith.select %458, %459, %460 : vector<26x50xi1>, vector<26x50xf32>
    %462 = arith.truncf %461 : vector<26x50xf32> to vector<26x50xbf16>
    %cst_181 = arith.constant dense<0.000000e+00> : vector<26x128xf32>
    %463 = tpu.matmul %462, %409, %cst_181 {dimension_numbers = #tpu.dot_dimension_numbers<[1], [0], [0], [1], [0, 0, 1, 1], [], []>} : vector<26x50xbf16>, vector<50x128xbf16>, vector<26x128xf32> -> vector<26x128xf32>
    %464 = arith.truncf %463 : vector<26x128xf32> to vector<26x128xbf16>
    %c6 = arith.constant 6 : index
    %c0_182 = arith.constant 0 : index
    %c0_183 = arith.constant 0 : index
    %465 = vector.load %arg2[%c6, %c0_182, %c0_183] : memref<24x128x128xbf16, #tpu.memory_space<vmem>>, vector<1x128x128xbf16>
    %466 = vector.shape_cast %465 : vector<1x128x128xbf16> to vector<128x128xbf16>
    %cst_184 = arith.constant dense<0.000000e+00> : vector<26x128xf32>
    %467 = tpu.matmul %464, %466, %cst_184 {dimension_numbers = #tpu.dot_dimension_numbers<[1], [0], [0], [1], [0, 0, 1, 1], [], []>} : vector<26x128xbf16>, vector<128x128xbf16>, vector<26x128xf32> -> vector<26x128xf32>
    %468 = tpu.iota {dimensions = array<i32: 0>} : vector<26x50xi32>
    %469 = tpu.iota {dimensions = array<i32: 1>} : vector<26x50xi32>
    %c0_i32_185 = arith.constant 0 : i32
    %470 = vector.broadcast %c0_i32_185 : i32 to vector<26x50xi32>
    %471 = arith.subi %468, %470 : vector<26x50xi32>
    %c0_i32_186 = arith.constant 0 : i32
    %472 = vector.broadcast %c0_i32_186 : i32 to vector<26x50xi32>
    %473 = arith.subi %469, %472 : vector<26x50xi32>
    %c0_i32_187 = arith.constant 0 : i32
    %474 = vector.broadcast %c0_i32_187 : i32 to vector<26x50xi32>
    %475 = arith.cmpi sge, %471, %474 : vector<26x50xi32>
    %c13_i32_188 = arith.constant 13 : i32
    %476 = vector.broadcast %c13_i32_188 : i32 to vector<26x50xi32>
    %477 = arith.cmpi slt, %471, %476 : vector<26x50xi32>
    %478 = arith.andi %475, %477 : vector<26x50xi1>
    %c0_i32_189 = arith.constant 0 : i32
    %479 = vector.broadcast %c0_i32_189 : i32 to vector<26x50xi32>
    %480 = arith.cmpi sge, %473, %479 : vector<26x50xi32>
    %481 = arith.andi %478, %480 : vector<26x50xi1>
    %c25_i32_190 = arith.constant 25 : i32
    %482 = vector.broadcast %c25_i32_190 : i32 to vector<26x50xi32>
    %483 = arith.cmpi slt, %473, %482 : vector<26x50xi32>
    %484 = arith.andi %481, %483 : vector<26x50xi1>
    %c-2_i32_191 = arith.constant -2 : i32
    %485 = vector.broadcast %c-2_i32_191 : i32 to vector<26x50xi32>
    %486 = arith.muli %485, %471 : vector<26x50xi32>
    %c1_i32_192 = arith.constant 1 : i32
    %487 = vector.broadcast %c1_i32_192 : i32 to vector<26x50xi32>
    %488 = arith.muli %487, %473 : vector<26x50xi32>
    %489 = arith.addi %486, %488 : vector<26x50xi32>
    %c0_i32_193 = arith.constant 0 : i32
    %490 = vector.broadcast %c0_i32_193 : i32 to vector<26x50xi32>
    %491 = arith.cmpi eq, %489, %490 : vector<26x50xi32>
    %492 = arith.andi %484, %491 : vector<26x50xi1>
    %c13_i32_194 = arith.constant 13 : i32
    %493 = vector.broadcast %c13_i32_194 : i32 to vector<26x50xi32>
    %494 = arith.subi %468, %493 : vector<26x50xi32>
    %c25_i32_195 = arith.constant 25 : i32
    %495 = vector.broadcast %c25_i32_195 : i32 to vector<26x50xi32>
    %496 = arith.subi %469, %495 : vector<26x50xi32>
    %c0_i32_196 = arith.constant 0 : i32
    %497 = vector.broadcast %c0_i32_196 : i32 to vector<26x50xi32>
    %498 = arith.cmpi sge, %494, %497 : vector<26x50xi32>
    %c13_i32_197 = arith.constant 13 : i32
    %499 = vector.broadcast %c13_i32_197 : i32 to vector<26x50xi32>
    %500 = arith.cmpi slt, %494, %499 : vector<26x50xi32>
    %501 = arith.andi %498, %500 : vector<26x50xi1>
    %c0_i32_198 = arith.constant 0 : i32
    %502 = vector.broadcast %c0_i32_198 : i32 to vector<26x50xi32>
    %503 = arith.cmpi sge, %496, %502 : vector<26x50xi32>
    %504 = arith.andi %501, %503 : vector<26x50xi1>
    %c25_i32_199 = arith.constant 25 : i32
    %505 = vector.broadcast %c25_i32_199 : i32 to vector<26x50xi32>
    %506 = arith.cmpi slt, %496, %505 : vector<26x50xi32>
    %507 = arith.andi %504, %506 : vector<26x50xi1>
    %c-2_i32_200 = arith.constant -2 : i32
    %508 = vector.broadcast %c-2_i32_200 : i32 to vector<26x50xi32>
    %509 = arith.muli %508, %494 : vector<26x50xi32>
    %c1_i32_201 = arith.constant 1 : i32
    %510 = vector.broadcast %c1_i32_201 : i32 to vector<26x50xi32>
    %511 = arith.muli %510, %496 : vector<26x50xi32>
    %512 = arith.addi %509, %511 : vector<26x50xi32>
    %c0_i32_202 = arith.constant 0 : i32
    %513 = vector.broadcast %c0_i32_202 : i32 to vector<26x50xi32>
    %514 = arith.cmpi eq, %512, %513 : vector<26x50xi32>
    %515 = arith.andi %507, %514 : vector<26x50xi1>
    %516 = arith.ori %492, %515 : vector<26x50xi1>
    %cst_203 = arith.constant 1.000000e+00 : f32
    %cst_204 = arith.constant 0.000000e+00 : f32
    %517 = vector.broadcast %cst_203 : f32 to vector<26x50xf32>
    %518 = vector.broadcast %cst_204 : f32 to vector<26x50xf32>
    %519 = arith.select %516, %517, %518 : vector<26x50xi1>, vector<26x50xf32>
    %520 = arith.truncf %519 : vector<26x50xf32> to vector<26x50xbf16>
    %cst_205 = arith.constant dense<0.000000e+00> : vector<26x128xf32>
    %521 = tpu.matmul %520, %409, %cst_205 {dimension_numbers = #tpu.dot_dimension_numbers<[1], [0], [0], [1], [0, 0, 1, 1], [], []>} : vector<26x50xbf16>, vector<50x128xbf16>, vector<26x128xf32> -> vector<26x128xf32>
    %522 = arith.truncf %521 : vector<26x128xf32> to vector<26x128xbf16>
    %c7 = arith.constant 7 : index
    %c0_206 = arith.constant 0 : index
    %c0_207 = arith.constant 0 : index
    %523 = vector.load %arg2[%c7, %c0_206, %c0_207] : memref<24x128x128xbf16, #tpu.memory_space<vmem>>, vector<1x128x128xbf16>
    %524 = vector.shape_cast %523 : vector<1x128x128xbf16> to vector<128x128xbf16>
    %cst_208 = arith.constant dense<0.000000e+00> : vector<26x128xf32>
    %525 = tpu.matmul %522, %524, %cst_208 {dimension_numbers = #tpu.dot_dimension_numbers<[1], [0], [0], [1], [0, 0, 1, 1], [], []>} : vector<26x128xbf16>, vector<128x128xbf16>, vector<26x128xf32> -> vector<26x128xf32>
    %526 = arith.addf %467, %525 : vector<26x128xf32>
    %527 = tpu.iota {dimensions = array<i32: 0>} : vector<26x50xi32>
    %528 = tpu.iota {dimensions = array<i32: 1>} : vector<26x50xi32>
    %c0_i32_209 = arith.constant 0 : i32
    %529 = vector.broadcast %c0_i32_209 : i32 to vector<26x50xi32>
    %530 = arith.subi %527, %529 : vector<26x50xi32>
    %c0_i32_210 = arith.constant 0 : i32
    %531 = vector.broadcast %c0_i32_210 : i32 to vector<26x50xi32>
    %532 = arith.subi %528, %531 : vector<26x50xi32>
    %c0_i32_211 = arith.constant 0 : i32
    %533 = vector.broadcast %c0_i32_211 : i32 to vector<26x50xi32>
    %534 = arith.cmpi sge, %530, %533 : vector<26x50xi32>
    %c13_i32_212 = arith.constant 13 : i32
    %535 = vector.broadcast %c13_i32_212 : i32 to vector<26x50xi32>
    %536 = arith.cmpi slt, %530, %535 : vector<26x50xi32>
    %537 = arith.andi %534, %536 : vector<26x50xi1>
    %c0_i32_213 = arith.constant 0 : i32
    %538 = vector.broadcast %c0_i32_213 : i32 to vector<26x50xi32>
    %539 = arith.cmpi sge, %532, %538 : vector<26x50xi32>
    %540 = arith.andi %537, %539 : vector<26x50xi1>
    %c25_i32_214 = arith.constant 25 : i32
    %541 = vector.broadcast %c25_i32_214 : i32 to vector<26x50xi32>
    %542 = arith.cmpi slt, %532, %541 : vector<26x50xi32>
    %543 = arith.andi %540, %542 : vector<26x50xi1>
    %c-2_i32_215 = arith.constant -2 : i32
    %544 = vector.broadcast %c-2_i32_215 : i32 to vector<26x50xi32>
    %545 = arith.muli %544, %530 : vector<26x50xi32>
    %c1_i32_216 = arith.constant 1 : i32
    %546 = vector.broadcast %c1_i32_216 : i32 to vector<26x50xi32>
    %547 = arith.muli %546, %532 : vector<26x50xi32>
    %548 = arith.addi %545, %547 : vector<26x50xi32>
    %c1_i32_217 = arith.constant 1 : i32
    %549 = vector.broadcast %c1_i32_217 : i32 to vector<26x50xi32>
    %550 = arith.cmpi eq, %548, %549 : vector<26x50xi32>
    %551 = arith.andi %543, %550 : vector<26x50xi1>
    %c13_i32_218 = arith.constant 13 : i32
    %552 = vector.broadcast %c13_i32_218 : i32 to vector<26x50xi32>
    %553 = arith.subi %527, %552 : vector<26x50xi32>
    %c25_i32_219 = arith.constant 25 : i32
    %554 = vector.broadcast %c25_i32_219 : i32 to vector<26x50xi32>
    %555 = arith.subi %528, %554 : vector<26x50xi32>
    %c0_i32_220 = arith.constant 0 : i32
    %556 = vector.broadcast %c0_i32_220 : i32 to vector<26x50xi32>
    %557 = arith.cmpi sge, %553, %556 : vector<26x50xi32>
    %c13_i32_221 = arith.constant 13 : i32
    %558 = vector.broadcast %c13_i32_221 : i32 to vector<26x50xi32>
    %559 = arith.cmpi slt, %553, %558 : vector<26x50xi32>
    %560 = arith.andi %557, %559 : vector<26x50xi1>
    %c0_i32_222 = arith.constant 0 : i32
    %561 = vector.broadcast %c0_i32_222 : i32 to vector<26x50xi32>
    %562 = arith.cmpi sge, %555, %561 : vector<26x50xi32>
    %563 = arith.andi %560, %562 : vector<26x50xi1>
    %c25_i32_223 = arith.constant 25 : i32
    %564 = vector.broadcast %c25_i32_223 : i32 to vector<26x50xi32>
    %565 = arith.cmpi slt, %555, %564 : vector<26x50xi32>
    %566 = arith.andi %563, %565 : vector<26x50xi1>
    %c-2_i32_224 = arith.constant -2 : i32
    %567 = vector.broadcast %c-2_i32_224 : i32 to vector<26x50xi32>
    %568 = arith.muli %567, %553 : vector<26x50xi32>
    %c1_i32_225 = arith.constant 1 : i32
    %569 = vector.broadcast %c1_i32_225 : i32 to vector<26x50xi32>
    %570 = arith.muli %569, %555 : vector<26x50xi32>
    %571 = arith.addi %568, %570 : vector<26x50xi32>
    %c1_i32_226 = arith.constant 1 : i32
    %572 = vector.broadcast %c1_i32_226 : i32 to vector<26x50xi32>
    %573 = arith.cmpi eq, %571, %572 : vector<26x50xi32>
    %574 = arith.andi %566, %573 : vector<26x50xi1>
    %575 = arith.ori %551, %574 : vector<26x50xi1>
    %cst_227 = arith.constant 1.000000e+00 : f32
    %cst_228 = arith.constant 0.000000e+00 : f32
    %576 = vector.broadcast %cst_227 : f32 to vector<26x50xf32>
    %577 = vector.broadcast %cst_228 : f32 to vector<26x50xf32>
    %578 = arith.select %575, %576, %577 : vector<26x50xi1>, vector<26x50xf32>
    %579 = arith.truncf %578 : vector<26x50xf32> to vector<26x50xbf16>
    %cst_229 = arith.constant dense<0.000000e+00> : vector<26x128xf32>
    %580 = tpu.matmul %579, %409, %cst_229 {dimension_numbers = #tpu.dot_dimension_numbers<[1], [0], [0], [1], [0, 0, 1, 1], [], []>} : vector<26x50xbf16>, vector<50x128xbf16>, vector<26x128xf32> -> vector<26x128xf32>
    %581 = arith.truncf %580 : vector<26x128xf32> to vector<26x128xbf16>
    %c8 = arith.constant 8 : index
    %c0_230 = arith.constant 0 : index
    %c0_231 = arith.constant 0 : index
    %582 = vector.load %arg2[%c8, %c0_230, %c0_231] : memref<24x128x128xbf16, #tpu.memory_space<vmem>>, vector<1x128x128xbf16>
    %583 = vector.shape_cast %582 : vector<1x128x128xbf16> to vector<128x128xbf16>
    %cst_232 = arith.constant dense<0.000000e+00> : vector<26x128xf32>
    %584 = tpu.matmul %581, %583, %cst_232 {dimension_numbers = #tpu.dot_dimension_numbers<[1], [0], [0], [1], [0, 0, 1, 1], [], []>} : vector<26x128xbf16>, vector<128x128xbf16>, vector<26x128xf32> -> vector<26x128xf32>
    %585 = arith.addf %526, %584 : vector<26x128xf32>
    %c2_233 = arith.constant 2 : index
    %c0_234 = arith.constant 0 : index
    %c0_235 = arith.constant 0 : index
    %586 = vector.load %arg3[%c2_233, %c0_234, %c0_235] : memref<8x1x128xf32, #tpu.memory_space<vmem>>, vector<1x1x128xf32>
    %587 = vector.shape_cast %586 : vector<1x1x128xf32> to vector<1x128xf32>
    %588 = vector.broadcast %587 : vector<1x128xf32> to vector<26x128xf32>
    %589 = arith.addf %585, %588 : vector<26x128xf32>
    %cst_236 = arith.constant 0.000000e+00 : f32
    %590 = vector.broadcast %cst_236 : f32 to vector<26x128xf32>
    %591 = arith.maximumf %589, %590 : vector<26x128xf32>
    %592 = arith.truncf %591 : vector<26x128xf32> to vector<26x128xbf16>
    %593 = tpu.iota {dimensions = array<i32: 0>} : vector<14x26xi32>
    %594 = tpu.iota {dimensions = array<i32: 1>} : vector<14x26xi32>
    %c0_i32_237 = arith.constant 0 : i32
    %595 = vector.broadcast %c0_i32_237 : i32 to vector<14x26xi32>
    %596 = arith.subi %593, %595 : vector<14x26xi32>
    %c0_i32_238 = arith.constant 0 : i32
    %597 = vector.broadcast %c0_i32_238 : i32 to vector<14x26xi32>
    %598 = arith.subi %594, %597 : vector<14x26xi32>
    %c0_i32_239 = arith.constant 0 : i32
    %599 = vector.broadcast %c0_i32_239 : i32 to vector<14x26xi32>
    %600 = arith.cmpi sge, %596, %599 : vector<14x26xi32>
    %c7_i32 = arith.constant 7 : i32
    %601 = vector.broadcast %c7_i32 : i32 to vector<14x26xi32>
    %602 = arith.cmpi slt, %596, %601 : vector<14x26xi32>
    %603 = arith.andi %600, %602 : vector<14x26xi1>
    %c0_i32_240 = arith.constant 0 : i32
    %604 = vector.broadcast %c0_i32_240 : i32 to vector<14x26xi32>
    %605 = arith.cmpi sge, %598, %604 : vector<14x26xi32>
    %606 = arith.andi %603, %605 : vector<14x26xi1>
    %c13_i32_241 = arith.constant 13 : i32
    %607 = vector.broadcast %c13_i32_241 : i32 to vector<14x26xi32>
    %608 = arith.cmpi slt, %598, %607 : vector<14x26xi32>
    %609 = arith.andi %606, %608 : vector<14x26xi1>
    %c-2_i32_242 = arith.constant -2 : i32
    %610 = vector.broadcast %c-2_i32_242 : i32 to vector<14x26xi32>
    %611 = arith.muli %610, %596 : vector<14x26xi32>
    %c1_i32_243 = arith.constant 1 : i32
    %612 = vector.broadcast %c1_i32_243 : i32 to vector<14x26xi32>
    %613 = arith.muli %612, %598 : vector<14x26xi32>
    %614 = arith.addi %611, %613 : vector<14x26xi32>
    %c-1_i32_244 = arith.constant -1 : i32
    %615 = vector.broadcast %c-1_i32_244 : i32 to vector<14x26xi32>
    %616 = arith.cmpi eq, %614, %615 : vector<14x26xi32>
    %617 = arith.andi %609, %616 : vector<14x26xi1>
    %c7_i32_245 = arith.constant 7 : i32
    %618 = vector.broadcast %c7_i32_245 : i32 to vector<14x26xi32>
    %619 = arith.subi %593, %618 : vector<14x26xi32>
    %c13_i32_246 = arith.constant 13 : i32
    %620 = vector.broadcast %c13_i32_246 : i32 to vector<14x26xi32>
    %621 = arith.subi %594, %620 : vector<14x26xi32>
    %c0_i32_247 = arith.constant 0 : i32
    %622 = vector.broadcast %c0_i32_247 : i32 to vector<14x26xi32>
    %623 = arith.cmpi sge, %619, %622 : vector<14x26xi32>
    %c7_i32_248 = arith.constant 7 : i32
    %624 = vector.broadcast %c7_i32_248 : i32 to vector<14x26xi32>
    %625 = arith.cmpi slt, %619, %624 : vector<14x26xi32>
    %626 = arith.andi %623, %625 : vector<14x26xi1>
    %c0_i32_249 = arith.constant 0 : i32
    %627 = vector.broadcast %c0_i32_249 : i32 to vector<14x26xi32>
    %628 = arith.cmpi sge, %621, %627 : vector<14x26xi32>
    %629 = arith.andi %626, %628 : vector<14x26xi1>
    %c13_i32_250 = arith.constant 13 : i32
    %630 = vector.broadcast %c13_i32_250 : i32 to vector<14x26xi32>
    %631 = arith.cmpi slt, %621, %630 : vector<14x26xi32>
    %632 = arith.andi %629, %631 : vector<14x26xi1>
    %c-2_i32_251 = arith.constant -2 : i32
    %633 = vector.broadcast %c-2_i32_251 : i32 to vector<14x26xi32>
    %634 = arith.muli %633, %619 : vector<14x26xi32>
    %c1_i32_252 = arith.constant 1 : i32
    %635 = vector.broadcast %c1_i32_252 : i32 to vector<14x26xi32>
    %636 = arith.muli %635, %621 : vector<14x26xi32>
    %637 = arith.addi %634, %636 : vector<14x26xi32>
    %c-1_i32_253 = arith.constant -1 : i32
    %638 = vector.broadcast %c-1_i32_253 : i32 to vector<14x26xi32>
    %639 = arith.cmpi eq, %637, %638 : vector<14x26xi32>
    %640 = arith.andi %632, %639 : vector<14x26xi1>
    %641 = arith.ori %617, %640 : vector<14x26xi1>
    %cst_254 = arith.constant 1.000000e+00 : f32
    %cst_255 = arith.constant 0.000000e+00 : f32
    %642 = vector.broadcast %cst_254 : f32 to vector<14x26xf32>
    %643 = vector.broadcast %cst_255 : f32 to vector<14x26xf32>
    %644 = arith.select %641, %642, %643 : vector<14x26xi1>, vector<14x26xf32>
    %645 = arith.truncf %644 : vector<14x26xf32> to vector<14x26xbf16>
    %cst_256 = arith.constant dense<0.000000e+00> : vector<14x128xf32>
    %646 = tpu.matmul %645, %592, %cst_256 {dimension_numbers = #tpu.dot_dimension_numbers<[1], [0], [0], [1], [0, 0, 1, 1], [], []>} : vector<14x26xbf16>, vector<26x128xbf16>, vector<14x128xf32> -> vector<14x128xf32>
    %647 = arith.truncf %646 : vector<14x128xf32> to vector<14x128xbf16>
    %c9 = arith.constant 9 : index
    %c0_257 = arith.constant 0 : index
    %c0_258 = arith.constant 0 : index
    %648 = vector.load %arg2[%c9, %c0_257, %c0_258] : memref<24x128x128xbf16, #tpu.memory_space<vmem>>, vector<1x128x128xbf16>
    %649 = vector.shape_cast %648 : vector<1x128x128xbf16> to vector<128x128xbf16>
    %cst_259 = arith.constant dense<0.000000e+00> : vector<14x128xf32>
    %650 = tpu.matmul %647, %649, %cst_259 {dimension_numbers = #tpu.dot_dimension_numbers<[1], [0], [0], [1], [0, 0, 1, 1], [], []>} : vector<14x128xbf16>, vector<128x128xbf16>, vector<14x128xf32> -> vector<14x128xf32>
    %651 = tpu.iota {dimensions = array<i32: 0>} : vector<14x26xi32>
    %652 = tpu.iota {dimensions = array<i32: 1>} : vector<14x26xi32>
    %c0_i32_260 = arith.constant 0 : i32
    %653 = vector.broadcast %c0_i32_260 : i32 to vector<14x26xi32>
    %654 = arith.subi %651, %653 : vector<14x26xi32>
    %c0_i32_261 = arith.constant 0 : i32
    %655 = vector.broadcast %c0_i32_261 : i32 to vector<14x26xi32>
    %656 = arith.subi %652, %655 : vector<14x26xi32>
    %c0_i32_262 = arith.constant 0 : i32
    %657 = vector.broadcast %c0_i32_262 : i32 to vector<14x26xi32>
    %658 = arith.cmpi sge, %654, %657 : vector<14x26xi32>
    %c7_i32_263 = arith.constant 7 : i32
    %659 = vector.broadcast %c7_i32_263 : i32 to vector<14x26xi32>
    %660 = arith.cmpi slt, %654, %659 : vector<14x26xi32>
    %661 = arith.andi %658, %660 : vector<14x26xi1>
    %c0_i32_264 = arith.constant 0 : i32
    %662 = vector.broadcast %c0_i32_264 : i32 to vector<14x26xi32>
    %663 = arith.cmpi sge, %656, %662 : vector<14x26xi32>
    %664 = arith.andi %661, %663 : vector<14x26xi1>
    %c13_i32_265 = arith.constant 13 : i32
    %665 = vector.broadcast %c13_i32_265 : i32 to vector<14x26xi32>
    %666 = arith.cmpi slt, %656, %665 : vector<14x26xi32>
    %667 = arith.andi %664, %666 : vector<14x26xi1>
    %c-2_i32_266 = arith.constant -2 : i32
    %668 = vector.broadcast %c-2_i32_266 : i32 to vector<14x26xi32>
    %669 = arith.muli %668, %654 : vector<14x26xi32>
    %c1_i32_267 = arith.constant 1 : i32
    %670 = vector.broadcast %c1_i32_267 : i32 to vector<14x26xi32>
    %671 = arith.muli %670, %656 : vector<14x26xi32>
    %672 = arith.addi %669, %671 : vector<14x26xi32>
    %c0_i32_268 = arith.constant 0 : i32
    %673 = vector.broadcast %c0_i32_268 : i32 to vector<14x26xi32>
    %674 = arith.cmpi eq, %672, %673 : vector<14x26xi32>
    %675 = arith.andi %667, %674 : vector<14x26xi1>
    %c7_i32_269 = arith.constant 7 : i32
    %676 = vector.broadcast %c7_i32_269 : i32 to vector<14x26xi32>
    %677 = arith.subi %651, %676 : vector<14x26xi32>
    %c13_i32_270 = arith.constant 13 : i32
    %678 = vector.broadcast %c13_i32_270 : i32 to vector<14x26xi32>
    %679 = arith.subi %652, %678 : vector<14x26xi32>
    %c0_i32_271 = arith.constant 0 : i32
    %680 = vector.broadcast %c0_i32_271 : i32 to vector<14x26xi32>
    %681 = arith.cmpi sge, %677, %680 : vector<14x26xi32>
    %c7_i32_272 = arith.constant 7 : i32
    %682 = vector.broadcast %c7_i32_272 : i32 to vector<14x26xi32>
    %683 = arith.cmpi slt, %677, %682 : vector<14x26xi32>
    %684 = arith.andi %681, %683 : vector<14x26xi1>
    %c0_i32_273 = arith.constant 0 : i32
    %685 = vector.broadcast %c0_i32_273 : i32 to vector<14x26xi32>
    %686 = arith.cmpi sge, %679, %685 : vector<14x26xi32>
    %687 = arith.andi %684, %686 : vector<14x26xi1>
    %c13_i32_274 = arith.constant 13 : i32
    %688 = vector.broadcast %c13_i32_274 : i32 to vector<14x26xi32>
    %689 = arith.cmpi slt, %679, %688 : vector<14x26xi32>
    %690 = arith.andi %687, %689 : vector<14x26xi1>
    %c-2_i32_275 = arith.constant -2 : i32
    %691 = vector.broadcast %c-2_i32_275 : i32 to vector<14x26xi32>
    %692 = arith.muli %691, %677 : vector<14x26xi32>
    %c1_i32_276 = arith.constant 1 : i32
    %693 = vector.broadcast %c1_i32_276 : i32 to vector<14x26xi32>
    %694 = arith.muli %693, %679 : vector<14x26xi32>
    %695 = arith.addi %692, %694 : vector<14x26xi32>
    %c0_i32_277 = arith.constant 0 : i32
    %696 = vector.broadcast %c0_i32_277 : i32 to vector<14x26xi32>
    %697 = arith.cmpi eq, %695, %696 : vector<14x26xi32>
    %698 = arith.andi %690, %697 : vector<14x26xi1>
    %699 = arith.ori %675, %698 : vector<14x26xi1>
    %cst_278 = arith.constant 1.000000e+00 : f32
    %cst_279 = arith.constant 0.000000e+00 : f32
    %700 = vector.broadcast %cst_278 : f32 to vector<14x26xf32>
    %701 = vector.broadcast %cst_279 : f32 to vector<14x26xf32>
    %702 = arith.select %699, %700, %701 : vector<14x26xi1>, vector<14x26xf32>
    %703 = arith.truncf %702 : vector<14x26xf32> to vector<14x26xbf16>
    %cst_280 = arith.constant dense<0.000000e+00> : vector<14x128xf32>
    %704 = tpu.matmul %703, %592, %cst_280 {dimension_numbers = #tpu.dot_dimension_numbers<[1], [0], [0], [1], [0, 0, 1, 1], [], []>} : vector<14x26xbf16>, vector<26x128xbf16>, vector<14x128xf32> -> vector<14x128xf32>
    %705 = arith.truncf %704 : vector<14x128xf32> to vector<14x128xbf16>
    %c10 = arith.constant 10 : index
    %c0_281 = arith.constant 0 : index
    %c0_282 = arith.constant 0 : index
    %706 = vector.load %arg2[%c10, %c0_281, %c0_282] : memref<24x128x128xbf16, #tpu.memory_space<vmem>>, vector<1x128x128xbf16>
    %707 = vector.shape_cast %706 : vector<1x128x128xbf16> to vector<128x128xbf16>
    %cst_283 = arith.constant dense<0.000000e+00> : vector<14x128xf32>
    %708 = tpu.matmul %705, %707, %cst_283 {dimension_numbers = #tpu.dot_dimension_numbers<[1], [0], [0], [1], [0, 0, 1, 1], [], []>} : vector<14x128xbf16>, vector<128x128xbf16>, vector<14x128xf32> -> vector<14x128xf32>
    %709 = arith.addf %650, %708 : vector<14x128xf32>
    %710 = tpu.iota {dimensions = array<i32: 0>} : vector<14x26xi32>
    %711 = tpu.iota {dimensions = array<i32: 1>} : vector<14x26xi32>
    %c0_i32_284 = arith.constant 0 : i32
    %712 = vector.broadcast %c0_i32_284 : i32 to vector<14x26xi32>
    %713 = arith.subi %710, %712 : vector<14x26xi32>
    %c0_i32_285 = arith.constant 0 : i32
    %714 = vector.broadcast %c0_i32_285 : i32 to vector<14x26xi32>
    %715 = arith.subi %711, %714 : vector<14x26xi32>
    %c0_i32_286 = arith.constant 0 : i32
    %716 = vector.broadcast %c0_i32_286 : i32 to vector<14x26xi32>
    %717 = arith.cmpi sge, %713, %716 : vector<14x26xi32>
    %c7_i32_287 = arith.constant 7 : i32
    %718 = vector.broadcast %c7_i32_287 : i32 to vector<14x26xi32>
    %719 = arith.cmpi slt, %713, %718 : vector<14x26xi32>
    %720 = arith.andi %717, %719 : vector<14x26xi1>
    %c0_i32_288 = arith.constant 0 : i32
    %721 = vector.broadcast %c0_i32_288 : i32 to vector<14x26xi32>
    %722 = arith.cmpi sge, %715, %721 : vector<14x26xi32>
    %723 = arith.andi %720, %722 : vector<14x26xi1>
    %c13_i32_289 = arith.constant 13 : i32
    %724 = vector.broadcast %c13_i32_289 : i32 to vector<14x26xi32>
    %725 = arith.cmpi slt, %715, %724 : vector<14x26xi32>
    %726 = arith.andi %723, %725 : vector<14x26xi1>
    %c-2_i32_290 = arith.constant -2 : i32
    %727 = vector.broadcast %c-2_i32_290 : i32 to vector<14x26xi32>
    %728 = arith.muli %727, %713 : vector<14x26xi32>
    %c1_i32_291 = arith.constant 1 : i32
    %729 = vector.broadcast %c1_i32_291 : i32 to vector<14x26xi32>
    %730 = arith.muli %729, %715 : vector<14x26xi32>
    %731 = arith.addi %728, %730 : vector<14x26xi32>
    %c1_i32_292 = arith.constant 1 : i32
    %732 = vector.broadcast %c1_i32_292 : i32 to vector<14x26xi32>
    %733 = arith.cmpi eq, %731, %732 : vector<14x26xi32>
    %734 = arith.andi %726, %733 : vector<14x26xi1>
    %c7_i32_293 = arith.constant 7 : i32
    %735 = vector.broadcast %c7_i32_293 : i32 to vector<14x26xi32>
    %736 = arith.subi %710, %735 : vector<14x26xi32>
    %c13_i32_294 = arith.constant 13 : i32
    %737 = vector.broadcast %c13_i32_294 : i32 to vector<14x26xi32>
    %738 = arith.subi %711, %737 : vector<14x26xi32>
    %c0_i32_295 = arith.constant 0 : i32
    %739 = vector.broadcast %c0_i32_295 : i32 to vector<14x26xi32>
    %740 = arith.cmpi sge, %736, %739 : vector<14x26xi32>
    %c7_i32_296 = arith.constant 7 : i32
    %741 = vector.broadcast %c7_i32_296 : i32 to vector<14x26xi32>
    %742 = arith.cmpi slt, %736, %741 : vector<14x26xi32>
    %743 = arith.andi %740, %742 : vector<14x26xi1>
    %c0_i32_297 = arith.constant 0 : i32
    %744 = vector.broadcast %c0_i32_297 : i32 to vector<14x26xi32>
    %745 = arith.cmpi sge, %738, %744 : vector<14x26xi32>
    %746 = arith.andi %743, %745 : vector<14x26xi1>
    %c13_i32_298 = arith.constant 13 : i32
    %747 = vector.broadcast %c13_i32_298 : i32 to vector<14x26xi32>
    %748 = arith.cmpi slt, %738, %747 : vector<14x26xi32>
    %749 = arith.andi %746, %748 : vector<14x26xi1>
    %c-2_i32_299 = arith.constant -2 : i32
    %750 = vector.broadcast %c-2_i32_299 : i32 to vector<14x26xi32>
    %751 = arith.muli %750, %736 : vector<14x26xi32>
    %c1_i32_300 = arith.constant 1 : i32
    %752 = vector.broadcast %c1_i32_300 : i32 to vector<14x26xi32>
    %753 = arith.muli %752, %738 : vector<14x26xi32>
    %754 = arith.addi %751, %753 : vector<14x26xi32>
    %c1_i32_301 = arith.constant 1 : i32
    %755 = vector.broadcast %c1_i32_301 : i32 to vector<14x26xi32>
    %756 = arith.cmpi eq, %754, %755 : vector<14x26xi32>
    %757 = arith.andi %749, %756 : vector<14x26xi1>
    %758 = arith.ori %734, %757 : vector<14x26xi1>
    %cst_302 = arith.constant 1.000000e+00 : f32
    %cst_303 = arith.constant 0.000000e+00 : f32
    %759 = vector.broadcast %cst_302 : f32 to vector<14x26xf32>
    %760 = vector.broadcast %cst_303 : f32 to vector<14x26xf32>
    %761 = arith.select %758, %759, %760 : vector<14x26xi1>, vector<14x26xf32>
    %762 = arith.truncf %761 : vector<14x26xf32> to vector<14x26xbf16>
    %cst_304 = arith.constant dense<0.000000e+00> : vector<14x128xf32>
    %763 = tpu.matmul %762, %592, %cst_304 {dimension_numbers = #tpu.dot_dimension_numbers<[1], [0], [0], [1], [0, 0, 1, 1], [], []>} : vector<14x26xbf16>, vector<26x128xbf16>, vector<14x128xf32> -> vector<14x128xf32>
    %764 = arith.truncf %763 : vector<14x128xf32> to vector<14x128xbf16>
    %c11 = arith.constant 11 : index
    %c0_305 = arith.constant 0 : index
    %c0_306 = arith.constant 0 : index
    %765 = vector.load %arg2[%c11, %c0_305, %c0_306] : memref<24x128x128xbf16, #tpu.memory_space<vmem>>, vector<1x128x128xbf16>
    %766 = vector.shape_cast %765 : vector<1x128x128xbf16> to vector<128x128xbf16>
    %cst_307 = arith.constant dense<0.000000e+00> : vector<14x128xf32>
    %767 = tpu.matmul %764, %766, %cst_307 {dimension_numbers = #tpu.dot_dimension_numbers<[1], [0], [0], [1], [0, 0, 1, 1], [], []>} : vector<14x128xbf16>, vector<128x128xbf16>, vector<14x128xf32> -> vector<14x128xf32>
    %768 = arith.addf %709, %767 : vector<14x128xf32>
    %c3_308 = arith.constant 3 : index
    %c0_309 = arith.constant 0 : index
    %c0_310 = arith.constant 0 : index
    %769 = vector.load %arg3[%c3_308, %c0_309, %c0_310] : memref<8x1x128xf32, #tpu.memory_space<vmem>>, vector<1x1x128xf32>
    %770 = vector.shape_cast %769 : vector<1x1x128xf32> to vector<1x128xf32>
    %771 = vector.broadcast %770 : vector<1x128xf32> to vector<14x128xf32>
    %772 = arith.addf %768, %771 : vector<14x128xf32>
    %cst_311 = arith.constant 0.000000e+00 : f32
    %773 = vector.broadcast %cst_311 : f32 to vector<14x128xf32>
    %774 = arith.maximumf %772, %773 : vector<14x128xf32>
    %775 = tpu.iota {dimensions = array<i32: 0>} : vector<14x128xi32>
    %776 = tpu.iota {dimensions = array<i32: 0>} : vector<2x128xi32>
    %cst_312 = arith.constant 0.000000e+00 : f32
    %777 = vector.broadcast %cst_312 : f32 to vector<14x128xf32>
    %cst_313 = arith.constant 0.000000e+00 : f32
    %778 = vector.broadcast %cst_313 : f32 to vector<2x128xf32>
    %c0_i32_314 = arith.constant 0 : i32
    %779 = vector.broadcast %c0_i32_314 : i32 to vector<14x128xi32>
    %780 = arith.cmpi sge, %775, %779 : vector<14x128xi32>
    %c7_i32_315 = arith.constant 7 : i32
    %781 = vector.broadcast %c7_i32_315 : i32 to vector<14x128xi32>
    %782 = arith.cmpi slt, %775, %781 : vector<14x128xi32>
    %783 = arith.andi %780, %782 : vector<14x128xi1>
    %cst_316 = arith.constant 0xFF800000 : f32
    %784 = vector.broadcast %cst_316 : f32 to vector<14x128xf32>
    %785 = arith.select %783, %774, %784 : vector<14x128xi1>, vector<14x128xf32>
    %cst_317 = arith.constant dense<0xFF800000> : vector<128xf32>
    %786 = vector.multi_reduction <maximumf>, %785, %cst_317 [0] : vector<14x128xf32> to vector<128xf32>
    %787 = vector.shape_cast %786 : vector<128xf32> to vector<1x128xf32>
    %788 = vector.broadcast %787 : vector<1x128xf32> to vector<14x128xf32>
    %789 = arith.cmpf oeq, %785, %788 : vector<14x128xf32>
    %c14_i32 = arith.constant 14 : i32
    %790 = vector.broadcast %c14_i32 : i32 to vector<14x128xi32>
    %791 = arith.select %789, %775, %790 : vector<14x128xi1>, vector<14x128xi32>
    %cst_318 = arith.constant dense<2147483647> : vector<128xi32>
    %792 = vector.multi_reduction <minsi>, %791, %cst_318 [0] : vector<14x128xi32> to vector<128xi32>
    %793 = vector.shape_cast %792 : vector<128xi32> to vector<1x128xi32>
    %794 = vector.broadcast %793 : vector<1x128xi32> to vector<14x128xi32>
    %795 = arith.cmpi eq, %775, %794 : vector<14x128xi32>
    %cst_319 = arith.constant 0.000000e+00 : f32
    %796 = vector.shape_cast %787 : vector<1x128xf32> to vector<1x128xf32>
    %797 = vector.broadcast %796 : vector<1x128xf32> to vector<14x128xf32>
    %798 = vector.broadcast %cst_319 : f32 to vector<14x128xf32>
    %799 = arith.select %795, %797, %798 : vector<14x128xi1>, vector<14x128xf32>
    %800 = arith.addf %777, %799 : vector<14x128xf32>
    %c0_i32_320 = arith.constant 0 : i32
    %801 = vector.broadcast %c0_i32_320 : i32 to vector<2x128xi32>
    %802 = arith.cmpi eq, %776, %801 : vector<2x128xi32>
    %cst_321 = arith.constant 0.000000e+00 : f32
    %803 = vector.shape_cast %787 : vector<1x128xf32> to vector<1x128xf32>
    %804 = vector.broadcast %803 : vector<1x128xf32> to vector<2x128xf32>
    %805 = vector.broadcast %cst_321 : f32 to vector<2x128xf32>
    %806 = arith.select %802, %804, %805 : vector<2x128xi1>, vector<2x128xf32>
    %807 = arith.addf %778, %806 : vector<2x128xf32>
    %c7_i32_322 = arith.constant 7 : i32
    %808 = vector.broadcast %c7_i32_322 : i32 to vector<14x128xi32>
    %809 = arith.cmpi sge, %775, %808 : vector<14x128xi32>
    %c14_i32_323 = arith.constant 14 : i32
    %810 = vector.broadcast %c14_i32_323 : i32 to vector<14x128xi32>
    %811 = arith.cmpi slt, %775, %810 : vector<14x128xi32>
    %812 = arith.andi %809, %811 : vector<14x128xi1>
    %cst_324 = arith.constant 0xFF800000 : f32
    %813 = vector.broadcast %cst_324 : f32 to vector<14x128xf32>
    %814 = arith.select %812, %774, %813 : vector<14x128xi1>, vector<14x128xf32>
    %cst_325 = arith.constant dense<0xFF800000> : vector<128xf32>
    %815 = vector.multi_reduction <maximumf>, %814, %cst_325 [0] : vector<14x128xf32> to vector<128xf32>
    %816 = vector.shape_cast %815 : vector<128xf32> to vector<1x128xf32>
    %817 = vector.broadcast %816 : vector<1x128xf32> to vector<14x128xf32>
    %818 = arith.cmpf oeq, %814, %817 : vector<14x128xf32>
    %c14_i32_326 = arith.constant 14 : i32
    %819 = vector.broadcast %c14_i32_326 : i32 to vector<14x128xi32>
    %820 = arith.select %818, %775, %819 : vector<14x128xi1>, vector<14x128xi32>
    %cst_327 = arith.constant dense<2147483647> : vector<128xi32>
    %821 = vector.multi_reduction <minsi>, %820, %cst_327 [0] : vector<14x128xi32> to vector<128xi32>
    %822 = vector.shape_cast %821 : vector<128xi32> to vector<1x128xi32>
    %823 = vector.broadcast %822 : vector<1x128xi32> to vector<14x128xi32>
    %824 = arith.cmpi eq, %775, %823 : vector<14x128xi32>
    %cst_328 = arith.constant 0.000000e+00 : f32
    %825 = vector.shape_cast %816 : vector<1x128xf32> to vector<1x128xf32>
    %826 = vector.broadcast %825 : vector<1x128xf32> to vector<14x128xf32>
    %827 = vector.broadcast %cst_328 : f32 to vector<14x128xf32>
    %828 = arith.select %824, %826, %827 : vector<14x128xi1>, vector<14x128xf32>
    %829 = arith.addf %800, %828 : vector<14x128xf32>
    %c1_i32_329 = arith.constant 1 : i32
    %830 = vector.broadcast %c1_i32_329 : i32 to vector<2x128xi32>
    %831 = arith.cmpi eq, %776, %830 : vector<2x128xi32>
    %cst_330 = arith.constant 0.000000e+00 : f32
    %832 = vector.shape_cast %816 : vector<1x128xf32> to vector<1x128xf32>
    %833 = vector.broadcast %832 : vector<1x128xf32> to vector<2x128xf32>
    %834 = vector.broadcast %cst_330 : f32 to vector<2x128xf32>
    %835 = arith.select %831, %833, %834 : vector<2x128xi1>, vector<2x128xf32>
    %836 = arith.addf %807, %835 : vector<2x128xf32>
    %c0_331 = arith.constant 0 : index
    %c0_332 = arith.constant 0 : index
    %837 = vector.load %arg6[%c0_331, %c0_332] : memref<2x128xf32, #tpu.memory_space<vmem>>, vector<2x128xf32>
    tpu.vector_store %arg6[%c0_331, %c0_332], %836 {strides = array<i32>} : memref<2x128xf32, #tpu.memory_space<vmem>>, vector<2x128xf32>,
    %838 = arith.truncf %829 : vector<14x128xf32> to vector<14x128xbf16>
    %839 = tpu.iota {dimensions = array<i32: 0>} : vector<26x14xi32>
    %840 = tpu.iota {dimensions = array<i32: 1>} : vector<26x14xi32>
    %c0_i32_333 = arith.constant 0 : i32
    %841 = vector.broadcast %c0_i32_333 : i32 to vector<26x14xi32>
    %842 = arith.subi %839, %841 : vector<26x14xi32>
    %c0_i32_334 = arith.constant 0 : i32
    %843 = vector.broadcast %c0_i32_334 : i32 to vector<26x14xi32>
    %844 = arith.subi %840, %843 : vector<26x14xi32>
    %c0_i32_335 = arith.constant 0 : i32
    %845 = vector.broadcast %c0_i32_335 : i32 to vector<26x14xi32>
    %846 = arith.cmpi sge, %842, %845 : vector<26x14xi32>
    %c13_i32_336 = arith.constant 13 : i32
    %847 = vector.broadcast %c13_i32_336 : i32 to vector<26x14xi32>
    %848 = arith.cmpi slt, %842, %847 : vector<26x14xi32>
    %849 = arith.andi %846, %848 : vector<26x14xi1>
    %c0_i32_337 = arith.constant 0 : i32
    %850 = vector.broadcast %c0_i32_337 : i32 to vector<26x14xi32>
    %851 = arith.cmpi sge, %844, %850 : vector<26x14xi32>
    %852 = arith.andi %849, %851 : vector<26x14xi1>
    %c7_i32_338 = arith.constant 7 : i32
    %853 = vector.broadcast %c7_i32_338 : i32 to vector<26x14xi32>
    %854 = arith.cmpi slt, %844, %853 : vector<26x14xi32>
    %855 = arith.andi %852, %854 : vector<26x14xi1>
    %c-1_i32_339 = arith.constant -1 : i32
    %856 = vector.broadcast %c-1_i32_339 : i32 to vector<26x14xi32>
    %857 = arith.muli %856, %842 : vector<26x14xi32>
    %c2_i32 = arith.constant 2 : i32
    %858 = vector.broadcast %c2_i32 : i32 to vector<26x14xi32>
    %859 = arith.muli %858, %844 : vector<26x14xi32>
    %860 = arith.addi %857, %859 : vector<26x14xi32>
    %c1_i32_340 = arith.constant 1 : i32
    %861 = vector.broadcast %c1_i32_340 : i32 to vector<26x14xi32>
    %862 = arith.cmpi eq, %860, %861 : vector<26x14xi32>
    %863 = arith.andi %855, %862 : vector<26x14xi1>
    %c13_i32_341 = arith.constant 13 : i32
    %864 = vector.broadcast %c13_i32_341 : i32 to vector<26x14xi32>
    %865 = arith.subi %839, %864 : vector<26x14xi32>
    %c7_i32_342 = arith.constant 7 : i32
    %866 = vector.broadcast %c7_i32_342 : i32 to vector<26x14xi32>
    %867 = arith.subi %840, %866 : vector<26x14xi32>
    %c0_i32_343 = arith.constant 0 : i32
    %868 = vector.broadcast %c0_i32_343 : i32 to vector<26x14xi32>
    %869 = arith.cmpi sge, %865, %868 : vector<26x14xi32>
    %c13_i32_344 = arith.constant 13 : i32
    %870 = vector.broadcast %c13_i32_344 : i32 to vector<26x14xi32>
    %871 = arith.cmpi slt, %865, %870 : vector<26x14xi32>
    %872 = arith.andi %869, %871 : vector<26x14xi1>
    %c0_i32_345 = arith.constant 0 : i32
    %873 = vector.broadcast %c0_i32_345 : i32 to vector<26x14xi32>
    %874 = arith.cmpi sge, %867, %873 : vector<26x14xi32>
    %875 = arith.andi %872, %874 : vector<26x14xi1>
    %c7_i32_346 = arith.constant 7 : i32
    %876 = vector.broadcast %c7_i32_346 : i32 to vector<26x14xi32>
    %877 = arith.cmpi slt, %867, %876 : vector<26x14xi32>
    %878 = arith.andi %875, %877 : vector<26x14xi1>
    %c-1_i32_347 = arith.constant -1 : i32
    %879 = vector.broadcast %c-1_i32_347 : i32 to vector<26x14xi32>
    %880 = arith.muli %879, %865 : vector<26x14xi32>
    %c2_i32_348 = arith.constant 2 : i32
    %881 = vector.broadcast %c2_i32_348 : i32 to vector<26x14xi32>
    %882 = arith.muli %881, %867 : vector<26x14xi32>
    %883 = arith.addi %880, %882 : vector<26x14xi32>
    %c1_i32_349 = arith.constant 1 : i32
    %884 = vector.broadcast %c1_i32_349 : i32 to vector<26x14xi32>
    %885 = arith.cmpi eq, %883, %884 : vector<26x14xi32>
    %886 = arith.andi %878, %885 : vector<26x14xi1>
    %887 = arith.ori %863, %886 : vector<26x14xi1>
    %cst_350 = arith.constant 1.000000e+00 : f32
    %cst_351 = arith.constant 0.000000e+00 : f32
    %888 = vector.broadcast %cst_350 : f32 to vector<26x14xf32>
    %889 = vector.broadcast %cst_351 : f32 to vector<26x14xf32>
    %890 = arith.select %887, %888, %889 : vector<26x14xi1>, vector<26x14xf32>
    %891 = arith.truncf %890 : vector<26x14xf32> to vector<26x14xbf16>
    %cst_352 = arith.constant dense<0.000000e+00> : vector<26x128xf32>
    %892 = tpu.matmul %891, %838, %cst_352 {dimension_numbers = #tpu.dot_dimension_numbers<[1], [0], [0], [1], [0, 0, 1, 1], [], []>} : vector<26x14xbf16>, vector<14x128xbf16>, vector<26x128xf32> -> vector<26x128xf32>
    %893 = arith.truncf %892 : vector<26x128xf32> to vector<26x128xbf16>
    %c12 = arith.constant 12 : index
    %c0_353 = arith.constant 0 : index
    %c0_354 = arith.constant 0 : index
    %894 = vector.load %arg2[%c12, %c0_353, %c0_354] : memref<24x128x128xbf16, #tpu.memory_space<vmem>>, vector<1x128x128xbf16>
    %895 = vector.shape_cast %894 : vector<1x128x128xbf16> to vector<128x128xbf16>
    %cst_355 = arith.constant dense<0.000000e+00> : vector<26x128xf32>
    %896 = tpu.matmul %893, %895, %cst_355 {dimension_numbers = #tpu.dot_dimension_numbers<[1], [0], [0], [1], [0, 0, 1, 1], [], []>} : vector<26x128xbf16>, vector<128x128xbf16>, vector<26x128xf32> -> vector<26x128xf32>
    %897 = tpu.iota {dimensions = array<i32: 0>} : vector<26x14xi32>
    %898 = tpu.iota {dimensions = array<i32: 1>} : vector<26x14xi32>
    %c0_i32_356 = arith.constant 0 : i32
    %899 = vector.broadcast %c0_i32_356 : i32 to vector<26x14xi32>
    %900 = arith.subi %897, %899 : vector<26x14xi32>
    %c0_i32_357 = arith.constant 0 : i32
    %901 = vector.broadcast %c0_i32_357 : i32 to vector<26x14xi32>
    %902 = arith.subi %898, %901 : vector<26x14xi32>
    %c0_i32_358 = arith.constant 0 : i32
    %903 = vector.broadcast %c0_i32_358 : i32 to vector<26x14xi32>
    %904 = arith.cmpi sge, %900, %903 : vector<26x14xi32>
    %c13_i32_359 = arith.constant 13 : i32
    %905 = vector.broadcast %c13_i32_359 : i32 to vector<26x14xi32>
    %906 = arith.cmpi slt, %900, %905 : vector<26x14xi32>
    %907 = arith.andi %904, %906 : vector<26x14xi1>
    %c0_i32_360 = arith.constant 0 : i32
    %908 = vector.broadcast %c0_i32_360 : i32 to vector<26x14xi32>
    %909 = arith.cmpi sge, %902, %908 : vector<26x14xi32>
    %910 = arith.andi %907, %909 : vector<26x14xi1>
    %c7_i32_361 = arith.constant 7 : i32
    %911 = vector.broadcast %c7_i32_361 : i32 to vector<26x14xi32>
    %912 = arith.cmpi slt, %902, %911 : vector<26x14xi32>
    %913 = arith.andi %910, %912 : vector<26x14xi1>
    %c-1_i32_362 = arith.constant -1 : i32
    %914 = vector.broadcast %c-1_i32_362 : i32 to vector<26x14xi32>
    %915 = arith.muli %914, %900 : vector<26x14xi32>
    %c2_i32_363 = arith.constant 2 : i32
    %916 = vector.broadcast %c2_i32_363 : i32 to vector<26x14xi32>
    %917 = arith.muli %916, %902 : vector<26x14xi32>
    %918 = arith.addi %915, %917 : vector<26x14xi32>
    %c0_i32_364 = arith.constant 0 : i32
    %919 = vector.broadcast %c0_i32_364 : i32 to vector<26x14xi32>
    %920 = arith.cmpi eq, %918, %919 : vector<26x14xi32>
    %921 = arith.andi %913, %920 : vector<26x14xi1>
    %c13_i32_365 = arith.constant 13 : i32
    %922 = vector.broadcast %c13_i32_365 : i32 to vector<26x14xi32>
    %923 = arith.subi %897, %922 : vector<26x14xi32>
    %c7_i32_366 = arith.constant 7 : i32
    %924 = vector.broadcast %c7_i32_366 : i32 to vector<26x14xi32>
    %925 = arith.subi %898, %924 : vector<26x14xi32>
    %c0_i32_367 = arith.constant 0 : i32
    %926 = vector.broadcast %c0_i32_367 : i32 to vector<26x14xi32>
    %927 = arith.cmpi sge, %923, %926 : vector<26x14xi32>
    %c13_i32_368 = arith.constant 13 : i32
    %928 = vector.broadcast %c13_i32_368 : i32 to vector<26x14xi32>
    %929 = arith.cmpi slt, %923, %928 : vector<26x14xi32>
    %930 = arith.andi %927, %929 : vector<26x14xi1>
    %c0_i32_369 = arith.constant 0 : i32
    %931 = vector.broadcast %c0_i32_369 : i32 to vector<26x14xi32>
    %932 = arith.cmpi sge, %925, %931 : vector<26x14xi32>
    %933 = arith.andi %930, %932 : vector<26x14xi1>
    %c7_i32_370 = arith.constant 7 : i32
    %934 = vector.broadcast %c7_i32_370 : i32 to vector<26x14xi32>
    %935 = arith.cmpi slt, %925, %934 : vector<26x14xi32>
    %936 = arith.andi %933, %935 : vector<26x14xi1>
    %c-1_i32_371 = arith.constant -1 : i32
    %937 = vector.broadcast %c-1_i32_371 : i32 to vector<26x14xi32>
    %938 = arith.muli %937, %923 : vector<26x14xi32>
    %c2_i32_372 = arith.constant 2 : i32
    %939 = vector.broadcast %c2_i32_372 : i32 to vector<26x14xi32>
    %940 = arith.muli %939, %925 : vector<26x14xi32>
    %941 = arith.addi %938, %940 : vector<26x14xi32>
    %c0_i32_373 = arith.constant 0 : i32
    %942 = vector.broadcast %c0_i32_373 : i32 to vector<26x14xi32>
    %943 = arith.cmpi eq, %941, %942 : vector<26x14xi32>
    %944 = arith.andi %936, %943 : vector<26x14xi1>
    %945 = arith.ori %921, %944 : vector<26x14xi1>
    %cst_374 = arith.constant 1.000000e+00 : f32
    %cst_375 = arith.constant 0.000000e+00 : f32
    %946 = vector.broadcast %cst_374 : f32 to vector<26x14xf32>
    %947 = vector.broadcast %cst_375 : f32 to vector<26x14xf32>
    %948 = arith.select %945, %946, %947 : vector<26x14xi1>, vector<26x14xf32>
    %949 = arith.truncf %948 : vector<26x14xf32> to vector<26x14xbf16>
    %cst_376 = arith.constant dense<0.000000e+00> : vector<26x128xf32>
    %950 = tpu.matmul %949, %838, %cst_376 {dimension_numbers = #tpu.dot_dimension_numbers<[1], [0], [0], [1], [0, 0, 1, 1], [], []>} : vector<26x14xbf16>, vector<14x128xbf16>, vector<26x128xf32> -> vector<26x128xf32>
    %951 = arith.truncf %950 : vector<26x128xf32> to vector<26x128xbf16>
    %c13 = arith.constant 13 : index
    %c0_377 = arith.constant 0 : index
    %c0_378 = arith.constant 0 : index
    %952 = vector.load %arg2[%c13, %c0_377, %c0_378] : memref<24x128x128xbf16, #tpu.memory_space<vmem>>, vector<1x128x128xbf16>
    %953 = vector.shape_cast %952 : vector<1x128x128xbf16> to vector<128x128xbf16>
    %cst_379 = arith.constant dense<0.000000e+00> : vector<26x128xf32>
    %954 = tpu.matmul %951, %953, %cst_379 {dimension_numbers = #tpu.dot_dimension_numbers<[1], [0], [0], [1], [0, 0, 1, 1], [], []>} : vector<26x128xbf16>, vector<128x128xbf16>, vector<26x128xf32> -> vector<26x128xf32>
    %955 = arith.addf %896, %954 : vector<26x128xf32>
    %956 = tpu.iota {dimensions = array<i32: 0>} : vector<26x14xi32>
    %957 = tpu.iota {dimensions = array<i32: 1>} : vector<26x14xi32>
    %c0_i32_380 = arith.constant 0 : i32
    %958 = vector.broadcast %c0_i32_380 : i32 to vector<26x14xi32>
    %959 = arith.subi %956, %958 : vector<26x14xi32>
    %c0_i32_381 = arith.constant 0 : i32
    %960 = vector.broadcast %c0_i32_381 : i32 to vector<26x14xi32>
    %961 = arith.subi %957, %960 : vector<26x14xi32>
    %c0_i32_382 = arith.constant 0 : i32
    %962 = vector.broadcast %c0_i32_382 : i32 to vector<26x14xi32>
    %963 = arith.cmpi sge, %959, %962 : vector<26x14xi32>
    %c13_i32_383 = arith.constant 13 : i32
    %964 = vector.broadcast %c13_i32_383 : i32 to vector<26x14xi32>
    %965 = arith.cmpi slt, %959, %964 : vector<26x14xi32>
    %966 = arith.andi %963, %965 : vector<26x14xi1>
    %c0_i32_384 = arith.constant 0 : i32
    %967 = vector.broadcast %c0_i32_384 : i32 to vector<26x14xi32>
    %968 = arith.cmpi sge, %961, %967 : vector<26x14xi32>
    %969 = arith.andi %966, %968 : vector<26x14xi1>
    %c7_i32_385 = arith.constant 7 : i32
    %970 = vector.broadcast %c7_i32_385 : i32 to vector<26x14xi32>
    %971 = arith.cmpi slt, %961, %970 : vector<26x14xi32>
    %972 = arith.andi %969, %971 : vector<26x14xi1>
    %c-1_i32_386 = arith.constant -1 : i32
    %973 = vector.broadcast %c-1_i32_386 : i32 to vector<26x14xi32>
    %974 = arith.muli %973, %959 : vector<26x14xi32>
    %c2_i32_387 = arith.constant 2 : i32
    %975 = vector.broadcast %c2_i32_387 : i32 to vector<26x14xi32>
    %976 = arith.muli %975, %961 : vector<26x14xi32>
    %977 = arith.addi %974, %976 : vector<26x14xi32>
    %c-1_i32_388 = arith.constant -1 : i32
    %978 = vector.broadcast %c-1_i32_388 : i32 to vector<26x14xi32>
    %979 = arith.cmpi eq, %977, %978 : vector<26x14xi32>
    %980 = arith.andi %972, %979 : vector<26x14xi1>
    %c13_i32_389 = arith.constant 13 : i32
    %981 = vector.broadcast %c13_i32_389 : i32 to vector<26x14xi32>
    %982 = arith.subi %956, %981 : vector<26x14xi32>
    %c7_i32_390 = arith.constant 7 : i32
    %983 = vector.broadcast %c7_i32_390 : i32 to vector<26x14xi32>
    %984 = arith.subi %957, %983 : vector<26x14xi32>
    %c0_i32_391 = arith.constant 0 : i32
    %985 = vector.broadcast %c0_i32_391 : i32 to vector<26x14xi32>
    %986 = arith.cmpi sge, %982, %985 : vector<26x14xi32>
    %c13_i32_392 = arith.constant 13 : i32
    %987 = vector.broadcast %c13_i32_392 : i32 to vector<26x14xi32>
    %988 = arith.cmpi slt, %982, %987 : vector<26x14xi32>
    %989 = arith.andi %986, %988 : vector<26x14xi1>
    %c0_i32_393 = arith.constant 0 : i32
    %990 = vector.broadcast %c0_i32_393 : i32 to vector<26x14xi32>
    %991 = arith.cmpi sge, %984, %990 : vector<26x14xi32>
    %992 = arith.andi %989, %991 : vector<26x14xi1>
    %c7_i32_394 = arith.constant 7 : i32
    %993 = vector.broadcast %c7_i32_394 : i32 to vector<26x14xi32>
    %994 = arith.cmpi slt, %984, %993 : vector<26x14xi32>
    %995 = arith.andi %992, %994 : vector<26x14xi1>
    %c-1_i32_395 = arith.constant -1 : i32
    %996 = vector.broadcast %c-1_i32_395 : i32 to vector<26x14xi32>
    %997 = arith.muli %996, %982 : vector<26x14xi32>
    %c2_i32_396 = arith.constant 2 : i32
    %998 = vector.broadcast %c2_i32_396 : i32 to vector<26x14xi32>
    %999 = arith.muli %998, %984 : vector<26x14xi32>
    %1000 = arith.addi %997, %999 : vector<26x14xi32>
    %c-1_i32_397 = arith.constant -1 : i32
    %1001 = vector.broadcast %c-1_i32_397 : i32 to vector<26x14xi32>
    %1002 = arith.cmpi eq, %1000, %1001 : vector<26x14xi32>
    %1003 = arith.andi %995, %1002 : vector<26x14xi1>
    %1004 = arith.ori %980, %1003 : vector<26x14xi1>
    %cst_398 = arith.constant 1.000000e+00 : f32
    %cst_399 = arith.constant 0.000000e+00 : f32
    %1005 = vector.broadcast %cst_398 : f32 to vector<26x14xf32>
    %1006 = vector.broadcast %cst_399 : f32 to vector<26x14xf32>
    %1007 = arith.select %1004, %1005, %1006 : vector<26x14xi1>, vector<26x14xf32>
    %1008 = arith.truncf %1007 : vector<26x14xf32> to vector<26x14xbf16>
    %cst_400 = arith.constant dense<0.000000e+00> : vector<26x128xf32>
    %1009 = tpu.matmul %1008, %838, %cst_400 {dimension_numbers = #tpu.dot_dimension_numbers<[1], [0], [0], [1], [0, 0, 1, 1], [], []>} : vector<26x14xbf16>, vector<14x128xbf16>, vector<26x128xf32> -> vector<26x128xf32>
    %1010 = arith.truncf %1009 : vector<26x128xf32> to vector<26x128xbf16>
    %c14 = arith.constant 14 : index
    %c0_401 = arith.constant 0 : index
    %c0_402 = arith.constant 0 : index
    %1011 = vector.load %arg2[%c14, %c0_401, %c0_402] : memref<24x128x128xbf16, #tpu.memory_space<vmem>>, vector<1x128x128xbf16>
    %1012 = vector.shape_cast %1011 : vector<1x128x128xbf16> to vector<128x128xbf16>
    %cst_403 = arith.constant dense<0.000000e+00> : vector<26x128xf32>
    %1013 = tpu.matmul %1010, %1012, %cst_403 {dimension_numbers = #tpu.dot_dimension_numbers<[1], [0], [0], [1], [0, 0, 1, 1], [], []>} : vector<26x128xbf16>, vector<128x128xbf16>, vector<26x128xf32> -> vector<26x128xf32>
    %1014 = arith.addf %955, %1013 : vector<26x128xf32>
    %c4_404 = arith.constant 4 : index
    %c0_405 = arith.constant 0 : index
    %c0_406 = arith.constant 0 : index
    %1015 = vector.load %arg3[%c4_404, %c0_405, %c0_406] : memref<8x1x128xf32, #tpu.memory_space<vmem>>, vector<1x1x128xf32>
    %1016 = vector.shape_cast %1015 : vector<1x1x128xf32> to vector<1x128xf32>
    %1017 = vector.broadcast %1016 : vector<1x128xf32> to vector<26x128xf32>
    %1018 = arith.addf %1014, %1017 : vector<26x128xf32>
    %cst_407 = arith.constant 0.000000e+00 : f32
    %1019 = vector.broadcast %cst_407 : f32 to vector<26x128xf32>
    %1020 = arith.maximumf %1018, %1019 : vector<26x128xf32>
    %1021 = arith.truncf %1020 : vector<26x128xf32> to vector<26x128xbf16>
    %1022 = tpu.iota {dimensions = array<i32: 0>} : vector<50x26xi32>
    %1023 = tpu.iota {dimensions = array<i32: 1>} : vector<50x26xi32>
    %c0_i32_408 = arith.constant 0 : i32
    %1024 = vector.broadcast %c0_i32_408 : i32 to vector<50x26xi32>
    %1025 = arith.subi %1022, %1024 : vector<50x26xi32>
    %c0_i32_409 = arith.constant 0 : i32
    %1026 = vector.broadcast %c0_i32_409 : i32 to vector<50x26xi32>
    %1027 = arith.subi %1023, %1026 : vector<50x26xi32>
    %c0_i32_410 = arith.constant 0 : i32
    %1028 = vector.broadcast %c0_i32_410 : i32 to vector<50x26xi32>
    %1029 = arith.cmpi sge, %1025, %1028 : vector<50x26xi32>
    %c25_i32_411 = arith.constant 25 : i32
    %1030 = vector.broadcast %c25_i32_411 : i32 to vector<50x26xi32>
    %1031 = arith.cmpi slt, %1025, %1030 : vector<50x26xi32>
    %1032 = arith.andi %1029, %1031 : vector<50x26xi1>
    %c0_i32_412 = arith.constant 0 : i32
    %1033 = vector.broadcast %c0_i32_412 : i32 to vector<50x26xi32>
    %1034 = arith.cmpi sge, %1027, %1033 : vector<50x26xi32>
    %1035 = arith.andi %1032, %1034 : vector<50x26xi1>
    %c13_i32_413 = arith.constant 13 : i32
    %1036 = vector.broadcast %c13_i32_413 : i32 to vector<50x26xi32>
    %1037 = arith.cmpi slt, %1027, %1036 : vector<50x26xi32>
    %1038 = arith.andi %1035, %1037 : vector<50x26xi1>
    %c-1_i32_414 = arith.constant -1 : i32
    %1039 = vector.broadcast %c-1_i32_414 : i32 to vector<50x26xi32>
    %1040 = arith.muli %1039, %1025 : vector<50x26xi32>
    %c2_i32_415 = arith.constant 2 : i32
    %1041 = vector.broadcast %c2_i32_415 : i32 to vector<50x26xi32>
    %1042 = arith.muli %1041, %1027 : vector<50x26xi32>
    %1043 = arith.addi %1040, %1042 : vector<50x26xi32>
    %c1_i32_416 = arith.constant 1 : i32
    %1044 = vector.broadcast %c1_i32_416 : i32 to vector<50x26xi32>
    %1045 = arith.cmpi eq, %1043, %1044 : vector<50x26xi32>
    %1046 = arith.andi %1038, %1045 : vector<50x26xi1>
    %c25_i32_417 = arith.constant 25 : i32
    %1047 = vector.broadcast %c25_i32_417 : i32 to vector<50x26xi32>
    %1048 = arith.subi %1022, %1047 : vector<50x26xi32>
    %c13_i32_418 = arith.constant 13 : i32
    %1049 = vector.broadcast %c13_i32_418 : i32 to vector<50x26xi32>
    %1050 = arith.subi %1023, %1049 : vector<50x26xi32>
    %c0_i32_419 = arith.constant 0 : i32
    %1051 = vector.broadcast %c0_i32_419 : i32 to vector<50x26xi32>
    %1052 = arith.cmpi sge, %1048, %1051 : vector<50x26xi32>
    %c25_i32_420 = arith.constant 25 : i32
    %1053 = vector.broadcast %c25_i32_420 : i32 to vector<50x26xi32>
    %1054 = arith.cmpi slt, %1048, %1053 : vector<50x26xi32>
    %1055 = arith.andi %1052, %1054 : vector<50x26xi1>
    %c0_i32_421 = arith.constant 0 : i32
    %1056 = vector.broadcast %c0_i32_421 : i32 to vector<50x26xi32>
    %1057 = arith.cmpi sge, %1050, %1056 : vector<50x26xi32>
    %1058 = arith.andi %1055, %1057 : vector<50x26xi1>
    %c13_i32_422 = arith.constant 13 : i32
    %1059 = vector.broadcast %c13_i32_422 : i32 to vector<50x26xi32>
    %1060 = arith.cmpi slt, %1050, %1059 : vector<50x26xi32>
    %1061 = arith.andi %1058, %1060 : vector<50x26xi1>
    %c-1_i32_423 = arith.constant -1 : i32
    %1062 = vector.broadcast %c-1_i32_423 : i32 to vector<50x26xi32>
    %1063 = arith.muli %1062, %1048 : vector<50x26xi32>
    %c2_i32_424 = arith.constant 2 : i32
    %1064 = vector.broadcast %c2_i32_424 : i32 to vector<50x26xi32>
    %1065 = arith.muli %1064, %1050 : vector<50x26xi32>
    %1066 = arith.addi %1063, %1065 : vector<50x26xi32>
    %c1_i32_425 = arith.constant 1 : i32
    %1067 = vector.broadcast %c1_i32_425 : i32 to vector<50x26xi32>
    %1068 = arith.cmpi eq, %1066, %1067 : vector<50x26xi32>
    %1069 = arith.andi %1061, %1068 : vector<50x26xi1>
    %1070 = arith.ori %1046, %1069 : vector<50x26xi1>
    %cst_426 = arith.constant 1.000000e+00 : f32
    %cst_427 = arith.constant 0.000000e+00 : f32
    %1071 = vector.broadcast %cst_426 : f32 to vector<50x26xf32>
    %1072 = vector.broadcast %cst_427 : f32 to vector<50x26xf32>
    %1073 = arith.select %1070, %1071, %1072 : vector<50x26xi1>, vector<50x26xf32>
    %1074 = arith.truncf %1073 : vector<50x26xf32> to vector<50x26xbf16>
    %cst_428 = arith.constant dense<0.000000e+00> : vector<50x128xf32>
    %1075 = tpu.matmul %1074, %1021, %cst_428 {dimension_numbers = #tpu.dot_dimension_numbers<[1], [0], [0], [1], [0, 0, 1, 1], [], []>} : vector<50x26xbf16>, vector<26x128xbf16>, vector<50x128xf32> -> vector<50x128xf32>
    %1076 = arith.truncf %1075 : vector<50x128xf32> to vector<50x128xbf16>
    %c15 = arith.constant 15 : index
    %c0_429 = arith.constant 0 : index
    %c0_430 = arith.constant 0 : index
    %1077 = vector.load %arg2[%c15, %c0_429, %c0_430] : memref<24x128x128xbf16, #tpu.memory_space<vmem>>, vector<1x128x128xbf16>
    %1078 = vector.shape_cast %1077 : vector<1x128x128xbf16> to vector<128x128xbf16>
    %cst_431 = arith.constant dense<0.000000e+00> : vector<50x128xf32>
    %1079 = tpu.matmul %1076, %1078, %cst_431 {dimension_numbers = #tpu.dot_dimension_numbers<[1], [0], [0], [1], [0, 0, 1, 1], [], []>} : vector<50x128xbf16>, vector<128x128xbf16>, vector<50x128xf32> -> vector<50x128xf32>
    %1080 = tpu.iota {dimensions = array<i32: 0>} : vector<50x26xi32>
    %1081 = tpu.iota {dimensions = array<i32: 1>} : vector<50x26xi32>
    %c0_i32_432 = arith.constant 0 : i32
    %1082 = vector.broadcast %c0_i32_432 : i32 to vector<50x26xi32>
    %1083 = arith.subi %1080, %1082 : vector<50x26xi32>
    %c0_i32_433 = arith.constant 0 : i32
    %1084 = vector.broadcast %c0_i32_433 : i32 to vector<50x26xi32>
    %1085 = arith.subi %1081, %1084 : vector<50x26xi32>
    %c0_i32_434 = arith.constant 0 : i32
    %1086 = vector.broadcast %c0_i32_434 : i32 to vector<50x26xi32>
    %1087 = arith.cmpi sge, %1083, %1086 : vector<50x26xi32>
    %c25_i32_435 = arith.constant 25 : i32
    %1088 = vector.broadcast %c25_i32_435 : i32 to vector<50x26xi32>
    %1089 = arith.cmpi slt, %1083, %1088 : vector<50x26xi32>
    %1090 = arith.andi %1087, %1089 : vector<50x26xi1>
    %c0_i32_436 = arith.constant 0 : i32
    %1091 = vector.broadcast %c0_i32_436 : i32 to vector<50x26xi32>
    %1092 = arith.cmpi sge, %1085, %1091 : vector<50x26xi32>
    %1093 = arith.andi %1090, %1092 : vector<50x26xi1>
    %c13_i32_437 = arith.constant 13 : i32
    %1094 = vector.broadcast %c13_i32_437 : i32 to vector<50x26xi32>
    %1095 = arith.cmpi slt, %1085, %1094 : vector<50x26xi32>
    %1096 = arith.andi %1093, %1095 : vector<50x26xi1>
    %c-1_i32_438 = arith.constant -1 : i32
    %1097 = vector.broadcast %c-1_i32_438 : i32 to vector<50x26xi32>
    %1098 = arith.muli %1097, %1083 : vector<50x26xi32>
    %c2_i32_439 = arith.constant 2 : i32
    %1099 = vector.broadcast %c2_i32_439 : i32 to vector<50x26xi32>
    %1100 = arith.muli %1099, %1085 : vector<50x26xi32>
    %1101 = arith.addi %1098, %1100 : vector<50x26xi32>
    %c0_i32_440 = arith.constant 0 : i32
    %1102 = vector.broadcast %c0_i32_440 : i32 to vector<50x26xi32>
    %1103 = arith.cmpi eq, %1101, %1102 : vector<50x26xi32>
    %1104 = arith.andi %1096, %1103 : vector<50x26xi1>
    %c25_i32_441 = arith.constant 25 : i32
    %1105 = vector.broadcast %c25_i32_441 : i32 to vector<50x26xi32>
    %1106 = arith.subi %1080, %1105 : vector<50x26xi32>
    %c13_i32_442 = arith.constant 13 : i32
    %1107 = vector.broadcast %c13_i32_442 : i32 to vector<50x26xi32>
    %1108 = arith.subi %1081, %1107 : vector<50x26xi32>
    %c0_i32_443 = arith.constant 0 : i32
    %1109 = vector.broadcast %c0_i32_443 : i32 to vector<50x26xi32>
    %1110 = arith.cmpi sge, %1106, %1109 : vector<50x26xi32>
    %c25_i32_444 = arith.constant 25 : i32
    %1111 = vector.broadcast %c25_i32_444 : i32 to vector<50x26xi32>
    %1112 = arith.cmpi slt, %1106, %1111 : vector<50x26xi32>
    %1113 = arith.andi %1110, %1112 : vector<50x26xi1>
    %c0_i32_445 = arith.constant 0 : i32
    %1114 = vector.broadcast %c0_i32_445 : i32 to vector<50x26xi32>
    %1115 = arith.cmpi sge, %1108, %1114 : vector<50x26xi32>
    %1116 = arith.andi %1113, %1115 : vector<50x26xi1>
    %c13_i32_446 = arith.constant 13 : i32
    %1117 = vector.broadcast %c13_i32_446 : i32 to vector<50x26xi32>
    %1118 = arith.cmpi slt, %1108, %1117 : vector<50x26xi32>
    %1119 = arith.andi %1116, %1118 : vector<50x26xi1>
    %c-1_i32_447 = arith.constant -1 : i32
    %1120 = vector.broadcast %c-1_i32_447 : i32 to vector<50x26xi32>
    %1121 = arith.muli %1120, %1106 : vector<50x26xi32>
    %c2_i32_448 = arith.constant 2 : i32
    %1122 = vector.broadcast %c2_i32_448 : i32 to vector<50x26xi32>
    %1123 = arith.muli %1122, %1108 : vector<50x26xi32>
    %1124 = arith.addi %1121, %1123 : vector<50x26xi32>
    %c0_i32_449 = arith.constant 0 : i32
    %1125 = vector.broadcast %c0_i32_449 : i32 to vector<50x26xi32>
    %1126 = arith.cmpi eq, %1124, %1125 : vector<50x26xi32>
    %1127 = arith.andi %1119, %1126 : vector<50x26xi1>
    %1128 = arith.ori %1104, %1127 : vector<50x26xi1>
    %cst_450 = arith.constant 1.000000e+00 : f32
    %cst_451 = arith.constant 0.000000e+00 : f32
    %1129 = vector.broadcast %cst_450 : f32 to vector<50x26xf32>
    %1130 = vector.broadcast %cst_451 : f32 to vector<50x26xf32>
    %1131 = arith.select %1128, %1129, %1130 : vector<50x26xi1>, vector<50x26xf32>
    %1132 = arith.truncf %1131 : vector<50x26xf32> to vector<50x26xbf16>
    %cst_452 = arith.constant dense<0.000000e+00> : vector<50x128xf32>
    %1133 = tpu.matmul %1132, %1021, %cst_452 {dimension_numbers = #tpu.dot_dimension_numbers<[1], [0], [0], [1], [0, 0, 1, 1], [], []>} : vector<50x26xbf16>, vector<26x128xbf16>, vector<50x128xf32> -> vector<50x128xf32>
    %1134 = arith.truncf %1133 : vector<50x128xf32> to vector<50x128xbf16>
    %c16 = arith.constant 16 : index
    %c0_453 = arith.constant 0 : index
    %c0_454 = arith.constant 0 : index
    %1135 = vector.load %arg2[%c16, %c0_453, %c0_454] : memref<24x128x128xbf16, #tpu.memory_space<vmem>>, vector<1x128x128xbf16>
    %1136 = vector.shape_cast %1135 : vector<1x128x128xbf16> to vector<128x128xbf16>
    %cst_455 = arith.constant dense<0.000000e+00> : vector<50x128xf32>
    %1137 = tpu.matmul %1134, %1136, %cst_455 {dimension_numbers = #tpu.dot_dimension_numbers<[1], [0], [0], [1], [0, 0, 1, 1], [], []>} : vector<50x128xbf16>, vector<128x128xbf16>, vector<50x128xf32> -> vector<50x128xf32>
    %1138 = arith.addf %1079, %1137 : vector<50x128xf32>
    %1139 = tpu.iota {dimensions = array<i32: 0>} : vector<50x26xi32>
    %1140 = tpu.iota {dimensions = array<i32: 1>} : vector<50x26xi32>
    %c0_i32_456 = arith.constant 0 : i32
    %1141 = vector.broadcast %c0_i32_456 : i32 to vector<50x26xi32>
    %1142 = arith.subi %1139, %1141 : vector<50x26xi32>
    %c0_i32_457 = arith.constant 0 : i32
    %1143 = vector.broadcast %c0_i32_457 : i32 to vector<50x26xi32>
    %1144 = arith.subi %1140, %1143 : vector<50x26xi32>
    %c0_i32_458 = arith.constant 0 : i32
    %1145 = vector.broadcast %c0_i32_458 : i32 to vector<50x26xi32>
    %1146 = arith.cmpi sge, %1142, %1145 : vector<50x26xi32>
    %c25_i32_459 = arith.constant 25 : i32
    %1147 = vector.broadcast %c25_i32_459 : i32 to vector<50x26xi32>
    %1148 = arith.cmpi slt, %1142, %1147 : vector<50x26xi32>
    %1149 = arith.andi %1146, %1148 : vector<50x26xi1>
    %c0_i32_460 = arith.constant 0 : i32
    %1150 = vector.broadcast %c0_i32_460 : i32 to vector<50x26xi32>
    %1151 = arith.cmpi sge, %1144, %1150 : vector<50x26xi32>
    %1152 = arith.andi %1149, %1151 : vector<50x26xi1>
    %c13_i32_461 = arith.constant 13 : i32
    %1153 = vector.broadcast %c13_i32_461 : i32 to vector<50x26xi32>
    %1154 = arith.cmpi slt, %1144, %1153 : vector<50x26xi32>
    %1155 = arith.andi %1152, %1154 : vector<50x26xi1>
    %c-1_i32_462 = arith.constant -1 : i32
    %1156 = vector.broadcast %c-1_i32_462 : i32 to vector<50x26xi32>
    %1157 = arith.muli %1156, %1142 : vector<50x26xi32>
    %c2_i32_463 = arith.constant 2 : i32
    %1158 = vector.broadcast %c2_i32_463 : i32 to vector<50x26xi32>
    %1159 = arith.muli %1158, %1144 : vector<50x26xi32>
    %1160 = arith.addi %1157, %1159 : vector<50x26xi32>
    %c-1_i32_464 = arith.constant -1 : i32
    %1161 = vector.broadcast %c-1_i32_464 : i32 to vector<50x26xi32>
    %1162 = arith.cmpi eq, %1160, %1161 : vector<50x26xi32>
    %1163 = arith.andi %1155, %1162 : vector<50x26xi1>
    %c25_i32_465 = arith.constant 25 : i32
    %1164 = vector.broadcast %c25_i32_465 : i32 to vector<50x26xi32>
    %1165 = arith.subi %1139, %1164 : vector<50x26xi32>
    %c13_i32_466 = arith.constant 13 : i32
    %1166 = vector.broadcast %c13_i32_466 : i32 to vector<50x26xi32>
    %1167 = arith.subi %1140, %1166 : vector<50x26xi32>
    %c0_i32_467 = arith.constant 0 : i32
    %1168 = vector.broadcast %c0_i32_467 : i32 to vector<50x26xi32>
    %1169 = arith.cmpi sge, %1165, %1168 : vector<50x26xi32>
    %c25_i32_468 = arith.constant 25 : i32
    %1170 = vector.broadcast %c25_i32_468 : i32 to vector<50x26xi32>
    %1171 = arith.cmpi slt, %1165, %1170 : vector<50x26xi32>
    %1172 = arith.andi %1169, %1171 : vector<50x26xi1>
    %c0_i32_469 = arith.constant 0 : i32
    %1173 = vector.broadcast %c0_i32_469 : i32 to vector<50x26xi32>
    %1174 = arith.cmpi sge, %1167, %1173 : vector<50x26xi32>
    %1175 = arith.andi %1172, %1174 : vector<50x26xi1>
    %c13_i32_470 = arith.constant 13 : i32
    %1176 = vector.broadcast %c13_i32_470 : i32 to vector<50x26xi32>
    %1177 = arith.cmpi slt, %1167, %1176 : vector<50x26xi32>
    %1178 = arith.andi %1175, %1177 : vector<50x26xi1>
    %c-1_i32_471 = arith.constant -1 : i32
    %1179 = vector.broadcast %c-1_i32_471 : i32 to vector<50x26xi32>
    %1180 = arith.muli %1179, %1165 : vector<50x26xi32>
    %c2_i32_472 = arith.constant 2 : i32
    %1181 = vector.broadcast %c2_i32_472 : i32 to vector<50x26xi32>
    %1182 = arith.muli %1181, %1167 : vector<50x26xi32>
    %1183 = arith.addi %1180, %1182 : vector<50x26xi32>
    %c-1_i32_473 = arith.constant -1 : i32
    %1184 = vector.broadcast %c-1_i32_473 : i32 to vector<50x26xi32>
    %1185 = arith.cmpi eq, %1183, %1184 : vector<50x26xi32>
    %1186 = arith.andi %1178, %1185 : vector<50x26xi1>
    %1187 = arith.ori %1163, %1186 : vector<50x26xi1>
    %cst_474 = arith.constant 1.000000e+00 : f32
    %cst_475 = arith.constant 0.000000e+00 : f32
    %1188 = vector.broadcast %cst_474 : f32 to vector<50x26xf32>
    %1189 = vector.broadcast %cst_475 : f32 to vector<50x26xf32>
    %1190 = arith.select %1187, %1188, %1189 : vector<50x26xi1>, vector<50x26xf32>
    %1191 = arith.truncf %1190 : vector<50x26xf32> to vector<50x26xbf16>
    %cst_476 = arith.constant dense<0.000000e+00> : vector<50x128xf32>
    %1192 = tpu.matmul %1191, %1021, %cst_476 {dimension_numbers = #tpu.dot_dimension_numbers<[1], [0], [0], [1], [0, 0, 1, 1], [], []>} : vector<50x26xbf16>, vector<26x128xbf16>, vector<50x128xf32> -> vector<50x128xf32>
    %1193 = arith.truncf %1192 : vector<50x128xf32> to vector<50x128xbf16>
    %c17 = arith.constant 17 : index
    %c0_477 = arith.constant 0 : index
    %c0_478 = arith.constant 0 : index
    %1194 = vector.load %arg2[%c17, %c0_477, %c0_478] : memref<24x128x128xbf16, #tpu.memory_space<vmem>>, vector<1x128x128xbf16>
    %1195 = vector.shape_cast %1194 : vector<1x128x128xbf16> to vector<128x128xbf16>
    %cst_479 = arith.constant dense<0.000000e+00> : vector<50x128xf32>
    %1196 = tpu.matmul %1193, %1195, %cst_479 {dimension_numbers = #tpu.dot_dimension_numbers<[1], [0], [0], [1], [0, 0, 1, 1], [], []>} : vector<50x128xbf16>, vector<128x128xbf16>, vector<50x128xf32> -> vector<50x128xf32>
    %1197 = arith.addf %1138, %1196 : vector<50x128xf32>
    %c5_480 = arith.constant 5 : index
    %c0_481 = arith.constant 0 : index
    %c0_482 = arith.constant 0 : index
    %1198 = vector.load %arg3[%c5_480, %c0_481, %c0_482] : memref<8x1x128xf32, #tpu.memory_space<vmem>>, vector<1x1x128xf32>
    %1199 = vector.shape_cast %1198 : vector<1x1x128xf32> to vector<1x128xf32>
    %1200 = vector.broadcast %1199 : vector<1x128xf32> to vector<50x128xf32>
    %1201 = arith.addf %1197, %1200 : vector<50x128xf32>
    %cst_483 = arith.constant 0.000000e+00 : f32
    %1202 = vector.broadcast %cst_483 : f32 to vector<50x128xf32>
    %1203 = arith.maximumf %1201, %1202 : vector<50x128xf32>
    %cst_484 = arith.constant dense<0.000000e+00> : vector<128xf32>
    %1204 = vector.multi_reduction <add>, %1203, %cst_484 [0] : vector<50x128xf32> to vector<128xf32>
    %1205 = vector.shape_cast %1204 : vector<128xf32> to vector<1x128xf32>
    %cst_485 = arith.constant 5.000000e+01 : f32
    %1206 = vector.broadcast %cst_485 : f32 to vector<1x128xf32>
    %1207 = arith.divf %1205, %1206 : vector<1x128xf32>
    %1208 = vector.broadcast %1207 : vector<1x128xf32> to vector<50x128xf32>
    %1209 = arith.subf %1203, %1208 : vector<50x128xf32>
    %1210 = arith.mulf %1209, %1209 : vector<50x128xf32>
    %cst_486 = arith.constant dense<0.000000e+00> : vector<128xf32>
    %1211 = vector.multi_reduction <add>, %1210, %cst_486 [0] : vector<50x128xf32> to vector<128xf32>
    %1212 = vector.shape_cast %1211 : vector<128xf32> to vector<1x128xf32>
    %cst_487 = arith.constant 5.000000e+01 : f32
    %1213 = vector.broadcast %cst_487 : f32 to vector<1x128xf32>
    %1214 = arith.divf %1212, %1213 : vector<1x128xf32>
    %c2_488 = arith.constant 2 : index
    %c0_489 = arith.constant 0 : index
    %c0_490 = arith.constant 0 : index
    %1215 = vector.load %arg4[%c2_488, %c0_489, %c0_490] : memref<4x1x128xf32, #tpu.memory_space<vmem>>, vector<1x1x128xf32>
    %1216 = vector.shape_cast %1215 : vector<1x1x128xf32> to vector<1x128xf32>
    %cst_491 = arith.constant 9.99999974E-6 : f32
    %1217 = vector.broadcast %cst_491 : f32 to vector<1x128xf32>
    %1218 = arith.addf %1214, %1217 : vector<1x128xf32>
    %1219 = math.rsqrt %1218 : vector<1x128xf32>
    %1220 = arith.mulf %1216, %1219 : vector<1x128xf32>
    %1221 = vector.broadcast %1220 : vector<1x128xf32> to vector<50x128xf32>
    %1222 = arith.mulf %1203, %1221 : vector<50x128xf32>
    %c2_492 = arith.constant 2 : index
    %c0_493 = arith.constant 0 : index
    %c0_494 = arith.constant 0 : index
    %1223 = vector.load %arg5[%c2_492, %c0_493, %c0_494] : memref<4x1x128xf32, #tpu.memory_space<vmem>>, vector<1x1x128xf32>
    %1224 = vector.shape_cast %1223 : vector<1x1x128xf32> to vector<1x128xf32>
    %1225 = arith.mulf %1207, %1220 : vector<1x128xf32>
    %1226 = arith.subf %1224, %1225 : vector<1x128xf32>
    %1227 = vector.broadcast %1226 : vector<1x128xf32> to vector<50x128xf32>
    %1228 = arith.addf %1222, %1227 : vector<50x128xf32>
    %1229 = arith.truncf %1228 : vector<50x128xf32> to vector<50x128xbf16>
    %1230 = tpu.iota {dimensions = array<i32: 0>} : vector<100x50xi32>
    %1231 = tpu.iota {dimensions = array<i32: 1>} : vector<100x50xi32>
    %c0_i32_495 = arith.constant 0 : i32
    %1232 = vector.broadcast %c0_i32_495 : i32 to vector<100x50xi32>
    %1233 = arith.subi %1230, %1232 : vector<100x50xi32>
    %c0_i32_496 = arith.constant 0 : i32
    %1234 = vector.broadcast %c0_i32_496 : i32 to vector<100x50xi32>
    %1235 = arith.subi %1231, %1234 : vector<100x50xi32>
    %c0_i32_497 = arith.constant 0 : i32
    %1236 = vector.broadcast %c0_i32_497 : i32 to vector<100x50xi32>
    %1237 = arith.cmpi sge, %1233, %1236 : vector<100x50xi32>
    %c50_i32_498 = arith.constant 50 : i32
    %1238 = vector.broadcast %c50_i32_498 : i32 to vector<100x50xi32>
    %1239 = arith.cmpi slt, %1233, %1238 : vector<100x50xi32>
    %1240 = arith.andi %1237, %1239 : vector<100x50xi1>
    %c0_i32_499 = arith.constant 0 : i32
    %1241 = vector.broadcast %c0_i32_499 : i32 to vector<100x50xi32>
    %1242 = arith.cmpi sge, %1235, %1241 : vector<100x50xi32>
    %1243 = arith.andi %1240, %1242 : vector<100x50xi1>
    %c25_i32_500 = arith.constant 25 : i32
    %1244 = vector.broadcast %c25_i32_500 : i32 to vector<100x50xi32>
    %1245 = arith.cmpi slt, %1235, %1244 : vector<100x50xi32>
    %1246 = arith.andi %1243, %1245 : vector<100x50xi1>
    %c-1_i32_501 = arith.constant -1 : i32
    %1247 = vector.broadcast %c-1_i32_501 : i32 to vector<100x50xi32>
    %1248 = arith.muli %1247, %1233 : vector<100x50xi32>
    %c2_i32_502 = arith.constant 2 : i32
    %1249 = vector.broadcast %c2_i32_502 : i32 to vector<100x50xi32>
    %1250 = arith.muli %1249, %1235 : vector<100x50xi32>
    %1251 = arith.addi %1248, %1250 : vector<100x50xi32>
    %c1_i32_503 = arith.constant 1 : i32
    %1252 = vector.broadcast %c1_i32_503 : i32 to vector<100x50xi32>
    %1253 = arith.cmpi eq, %1251, %1252 : vector<100x50xi32>
    %1254 = arith.andi %1246, %1253 : vector<100x50xi1>
    %c50_i32_504 = arith.constant 50 : i32
    %1255 = vector.broadcast %c50_i32_504 : i32 to vector<100x50xi32>
    %1256 = arith.subi %1230, %1255 : vector<100x50xi32>
    %c25_i32_505 = arith.constant 25 : i32
    %1257 = vector.broadcast %c25_i32_505 : i32 to vector<100x50xi32>
    %1258 = arith.subi %1231, %1257 : vector<100x50xi32>
    %c0_i32_506 = arith.constant 0 : i32
    %1259 = vector.broadcast %c0_i32_506 : i32 to vector<100x50xi32>
    %1260 = arith.cmpi sge, %1256, %1259 : vector<100x50xi32>
    %c50_i32_507 = arith.constant 50 : i32
    %1261 = vector.broadcast %c50_i32_507 : i32 to vector<100x50xi32>
    %1262 = arith.cmpi slt, %1256, %1261 : vector<100x50xi32>
    %1263 = arith.andi %1260, %1262 : vector<100x50xi1>
    %c0_i32_508 = arith.constant 0 : i32
    %1264 = vector.broadcast %c0_i32_508 : i32 to vector<100x50xi32>
    %1265 = arith.cmpi sge, %1258, %1264 : vector<100x50xi32>
    %1266 = arith.andi %1263, %1265 : vector<100x50xi1>
    %c25_i32_509 = arith.constant 25 : i32
    %1267 = vector.broadcast %c25_i32_509 : i32 to vector<100x50xi32>
    %1268 = arith.cmpi slt, %1258, %1267 : vector<100x50xi32>
    %1269 = arith.andi %1266, %1268 : vector<100x50xi1>
    %c-1_i32_510 = arith.constant -1 : i32
    %1270 = vector.broadcast %c-1_i32_510 : i32 to vector<100x50xi32>
    %1271 = arith.muli %1270, %1256 : vector<100x50xi32>
    %c2_i32_511 = arith.constant 2 : i32
    %1272 = vector.broadcast %c2_i32_511 : i32 to vector<100x50xi32>
    %1273 = arith.muli %1272, %1258 : vector<100x50xi32>
    %1274 = arith.addi %1271, %1273 : vector<100x50xi32>
    %c1_i32_512 = arith.constant 1 : i32
    %1275 = vector.broadcast %c1_i32_512 : i32 to vector<100x50xi32>
    %1276 = arith.cmpi eq, %1274, %1275 : vector<100x50xi32>
    %1277 = arith.andi %1269, %1276 : vector<100x50xi1>
    %1278 = arith.ori %1254, %1277 : vector<100x50xi1>
    %cst_513 = arith.constant 1.000000e+00 : f32
    %cst_514 = arith.constant 0.000000e+00 : f32
    %1279 = vector.broadcast %cst_513 : f32 to vector<100x50xf32>
    %1280 = vector.broadcast %cst_514 : f32 to vector<100x50xf32>
    %1281 = arith.select %1278, %1279, %1280 : vector<100x50xi1>, vector<100x50xf32>
    %1282 = arith.truncf %1281 : vector<100x50xf32> to vector<100x50xbf16>
    %cst_515 = arith.constant dense<0.000000e+00> : vector<100x128xf32>
    %1283 = tpu.matmul %1282, %1229, %cst_515 {dimension_numbers = #tpu.dot_dimension_numbers<[1], [0], [0], [1], [0, 0, 1, 1], [], []>} : vector<100x50xbf16>, vector<50x128xbf16>, vector<100x128xf32> -> vector<100x128xf32>
    %1284 = arith.truncf %1283 : vector<100x128xf32> to vector<100x128xbf16>
    %c18 = arith.constant 18 : index
    %c0_516 = arith.constant 0 : index
    %c0_517 = arith.constant 0 : index
    %1285 = vector.load %arg2[%c18, %c0_516, %c0_517] : memref<24x128x128xbf16, #tpu.memory_space<vmem>>, vector<1x128x128xbf16>
    %1286 = vector.shape_cast %1285 : vector<1x128x128xbf16> to vector<128x128xbf16>
    %cst_518 = arith.constant dense<0.000000e+00> : vector<100x128xf32>
    %1287 = tpu.matmul %1284, %1286, %cst_518 {dimension_numbers = #tpu.dot_dimension_numbers<[1], [0], [0], [1], [0, 0, 1, 1], [], []>} : vector<100x128xbf16>, vector<128x128xbf16>, vector<100x128xf32> -> vector<100x128xf32>
    %1288 = tpu.iota {dimensions = array<i32: 0>} : vector<100x50xi32>
    %1289 = tpu.iota {dimensions = array<i32: 1>} : vector<100x50xi32>
    %c0_i32_519 = arith.constant 0 : i32
    %1290 = vector.broadcast %c0_i32_519 : i32 to vector<100x50xi32>
    %1291 = arith.subi %1288, %1290 : vector<100x50xi32>
    %c0_i32_520 = arith.constant 0 : i32
    %1292 = vector.broadcast %c0_i32_520 : i32 to vector<100x50xi32>
    %1293 = arith.subi %1289, %1292 : vector<100x50xi32>
    %c0_i32_521 = arith.constant 0 : i32
    %1294 = vector.broadcast %c0_i32_521 : i32 to vector<100x50xi32>
    %1295 = arith.cmpi sge, %1291, %1294 : vector<100x50xi32>
    %c50_i32_522 = arith.constant 50 : i32
    %1296 = vector.broadcast %c50_i32_522 : i32 to vector<100x50xi32>
    %1297 = arith.cmpi slt, %1291, %1296 : vector<100x50xi32>
    %1298 = arith.andi %1295, %1297 : vector<100x50xi1>
    %c0_i32_523 = arith.constant 0 : i32
    %1299 = vector.broadcast %c0_i32_523 : i32 to vector<100x50xi32>
    %1300 = arith.cmpi sge, %1293, %1299 : vector<100x50xi32>
    %1301 = arith.andi %1298, %1300 : vector<100x50xi1>
    %c25_i32_524 = arith.constant 25 : i32
    %1302 = vector.broadcast %c25_i32_524 : i32 to vector<100x50xi32>
    %1303 = arith.cmpi slt, %1293, %1302 : vector<100x50xi32>
    %1304 = arith.andi %1301, %1303 : vector<100x50xi1>
    %c-1_i32_525 = arith.constant -1 : i32
    %1305 = vector.broadcast %c-1_i32_525 : i32 to vector<100x50xi32>
    %1306 = arith.muli %1305, %1291 : vector<100x50xi32>
    %c2_i32_526 = arith.constant 2 : i32
    %1307 = vector.broadcast %c2_i32_526 : i32 to vector<100x50xi32>
    %1308 = arith.muli %1307, %1293 : vector<100x50xi32>
    %1309 = arith.addi %1306, %1308 : vector<100x50xi32>
    %c0_i32_527 = arith.constant 0 : i32
    %1310 = vector.broadcast %c0_i32_527 : i32 to vector<100x50xi32>
    %1311 = arith.cmpi eq, %1309, %1310 : vector<100x50xi32>
    %1312 = arith.andi %1304, %1311 : vector<100x50xi1>
    %c50_i32_528 = arith.constant 50 : i32
    %1313 = vector.broadcast %c50_i32_528 : i32 to vector<100x50xi32>
    %1314 = arith.subi %1288, %1313 : vector<100x50xi32>
    %c25_i32_529 = arith.constant 25 : i32
    %1315 = vector.broadcast %c25_i32_529 : i32 to vector<100x50xi32>
    %1316 = arith.subi %1289, %1315 : vector<100x50xi32>
    %c0_i32_530 = arith.constant 0 : i32
    %1317 = vector.broadcast %c0_i32_530 : i32 to vector<100x50xi32>
    %1318 = arith.cmpi sge, %1314, %1317 : vector<100x50xi32>
    %c50_i32_531 = arith.constant 50 : i32
    %1319 = vector.broadcast %c50_i32_531 : i32 to vector<100x50xi32>
    %1320 = arith.cmpi slt, %1314, %1319 : vector<100x50xi32>
    %1321 = arith.andi %1318, %1320 : vector<100x50xi1>
    %c0_i32_532 = arith.constant 0 : i32
    %1322 = vector.broadcast %c0_i32_532 : i32 to vector<100x50xi32>
    %1323 = arith.cmpi sge, %1316, %1322 : vector<100x50xi32>
    %1324 = arith.andi %1321, %1323 : vector<100x50xi1>
    %c25_i32_533 = arith.constant 25 : i32
    %1325 = vector.broadcast %c25_i32_533 : i32 to vector<100x50xi32>
    %1326 = arith.cmpi slt, %1316, %1325 : vector<100x50xi32>
    %1327 = arith.andi %1324, %1326 : vector<100x50xi1>
    %c-1_i32_534 = arith.constant -1 : i32
    %1328 = vector.broadcast %c-1_i32_534 : i32 to vector<100x50xi32>
    %1329 = arith.muli %1328, %1314 : vector<100x50xi32>
    %c2_i32_535 = arith.constant 2 : i32
    %1330 = vector.broadcast %c2_i32_535 : i32 to vector<100x50xi32>
    %1331 = arith.muli %1330, %1316 : vector<100x50xi32>
    %1332 = arith.addi %1329, %1331 : vector<100x50xi32>
    %c0_i32_536 = arith.constant 0 : i32
    %1333 = vector.broadcast %c0_i32_536 : i32 to vector<100x50xi32>
    %1334 = arith.cmpi eq, %1332, %1333 : vector<100x50xi32>
    %1335 = arith.andi %1327, %1334 : vector<100x50xi1>
    %1336 = arith.ori %1312, %1335 : vector<100x50xi1>
    %cst_537 = arith.constant 1.000000e+00 : f32
    %cst_538 = arith.constant 0.000000e+00 : f32
    %1337 = vector.broadcast %cst_537 : f32 to vector<100x50xf32>
    %1338 = vector.broadcast %cst_538 : f32 to vector<100x50xf32>
    %1339 = arith.select %1336, %1337, %1338 : vector<100x50xi1>, vector<100x50xf32>
    %1340 = arith.truncf %1339 : vector<100x50xf32> to vector<100x50xbf16>
    %cst_539 = arith.constant dense<0.000000e+00> : vector<100x128xf32>
    %1341 = tpu.matmul %1340, %1229, %cst_539 {dimension_numbers = #tpu.dot_dimension_numbers<[1], [0], [0], [1], [0, 0, 1, 1], [], []>} : vector<100x50xbf16>, vector<50x128xbf16>, vector<100x128xf32> -> vector<100x128xf32>
    %1342 = arith.truncf %1341 : vector<100x128xf32> to vector<100x128xbf16>
    %c19 = arith.constant 19 : index
    %c0_540 = arith.constant 0 : index
    %c0_541 = arith.constant 0 : index
    %1343 = vector.load %arg2[%c19, %c0_540, %c0_541] : memref<24x128x128xbf16, #tpu.memory_space<vmem>>, vector<1x128x128xbf16>
    %1344 = vector.shape_cast %1343 : vector<1x128x128xbf16> to vector<128x128xbf16>
    %cst_542 = arith.constant dense<0.000000e+00> : vector<100x128xf32>
    %1345 = tpu.matmul %1342, %1344, %cst_542 {dimension_numbers = #tpu.dot_dimension_numbers<[1], [0], [0], [1], [0, 0, 1, 1], [], []>} : vector<100x128xbf16>, vector<128x128xbf16>, vector<100x128xf32> -> vector<100x128xf32>
    %1346 = arith.addf %1287, %1345 : vector<100x128xf32>
    %1347 = tpu.iota {dimensions = array<i32: 0>} : vector<100x50xi32>
    %1348 = tpu.iota {dimensions = array<i32: 1>} : vector<100x50xi32>
    %c0_i32_543 = arith.constant 0 : i32
    %1349 = vector.broadcast %c0_i32_543 : i32 to vector<100x50xi32>
    %1350 = arith.subi %1347, %1349 : vector<100x50xi32>
    %c0_i32_544 = arith.constant 0 : i32
    %1351 = vector.broadcast %c0_i32_544 : i32 to vector<100x50xi32>
    %1352 = arith.subi %1348, %1351 : vector<100x50xi32>
    %c0_i32_545 = arith.constant 0 : i32
    %1353 = vector.broadcast %c0_i32_545 : i32 to vector<100x50xi32>
    %1354 = arith.cmpi sge, %1350, %1353 : vector<100x50xi32>
    %c50_i32_546 = arith.constant 50 : i32
    %1355 = vector.broadcast %c50_i32_546 : i32 to vector<100x50xi32>
    %1356 = arith.cmpi slt, %1350, %1355 : vector<100x50xi32>
    %1357 = arith.andi %1354, %1356 : vector<100x50xi1>
    %c0_i32_547 = arith.constant 0 : i32
    %1358 = vector.broadcast %c0_i32_547 : i32 to vector<100x50xi32>
    %1359 = arith.cmpi sge, %1352, %1358 : vector<100x50xi32>
    %1360 = arith.andi %1357, %1359 : vector<100x50xi1>
    %c25_i32_548 = arith.constant 25 : i32
    %1361 = vector.broadcast %c25_i32_548 : i32 to vector<100x50xi32>
    %1362 = arith.cmpi slt, %1352, %1361 : vector<100x50xi32>
    %1363 = arith.andi %1360, %1362 : vector<100x50xi1>
    %c-1_i32_549 = arith.constant -1 : i32
    %1364 = vector.broadcast %c-1_i32_549 : i32 to vector<100x50xi32>
    %1365 = arith.muli %1364, %1350 : vector<100x50xi32>
    %c2_i32_550 = arith.constant 2 : i32
    %1366 = vector.broadcast %c2_i32_550 : i32 to vector<100x50xi32>
    %1367 = arith.muli %1366, %1352 : vector<100x50xi32>
    %1368 = arith.addi %1365, %1367 : vector<100x50xi32>
    %c-1_i32_551 = arith.constant -1 : i32
    %1369 = vector.broadcast %c-1_i32_551 : i32 to vector<100x50xi32>
    %1370 = arith.cmpi eq, %1368, %1369 : vector<100x50xi32>
    %1371 = arith.andi %1363, %1370 : vector<100x50xi1>
    %c50_i32_552 = arith.constant 50 : i32
    %1372 = vector.broadcast %c50_i32_552 : i32 to vector<100x50xi32>
    %1373 = arith.subi %1347, %1372 : vector<100x50xi32>
    %c25_i32_553 = arith.constant 25 : i32
    %1374 = vector.broadcast %c25_i32_553 : i32 to vector<100x50xi32>
    %1375 = arith.subi %1348, %1374 : vector<100x50xi32>
    %c0_i32_554 = arith.constant 0 : i32
    %1376 = vector.broadcast %c0_i32_554 : i32 to vector<100x50xi32>
    %1377 = arith.cmpi sge, %1373, %1376 : vector<100x50xi32>
    %c50_i32_555 = arith.constant 50 : i32
    %1378 = vector.broadcast %c50_i32_555 : i32 to vector<100x50xi32>
    %1379 = arith.cmpi slt, %1373, %1378 : vector<100x50xi32>
    %1380 = arith.andi %1377, %1379 : vector<100x50xi1>
    %c0_i32_556 = arith.constant 0 : i32
    %1381 = vector.broadcast %c0_i32_556 : i32 to vector<100x50xi32>
    %1382 = arith.cmpi sge, %1375, %1381 : vector<100x50xi32>
    %1383 = arith.andi %1380, %1382 : vector<100x50xi1>
    %c25_i32_557 = arith.constant 25 : i32
    %1384 = vector.broadcast %c25_i32_557 : i32 to vector<100x50xi32>
    %1385 = arith.cmpi slt, %1375, %1384 : vector<100x50xi32>
    %1386 = arith.andi %1383, %1385 : vector<100x50xi1>
    %c-1_i32_558 = arith.constant -1 : i32
    %1387 = vector.broadcast %c-1_i32_558 : i32 to vector<100x50xi32>
    %1388 = arith.muli %1387, %1373 : vector<100x50xi32>
    %c2_i32_559 = arith.constant 2 : i32
    %1389 = vector.broadcast %c2_i32_559 : i32 to vector<100x50xi32>
    %1390 = arith.muli %1389, %1375 : vector<100x50xi32>
    %1391 = arith.addi %1388, %1390 : vector<100x50xi32>
    %c-1_i32_560 = arith.constant -1 : i32
    %1392 = vector.broadcast %c-1_i32_560 : i32 to vector<100x50xi32>
    %1393 = arith.cmpi eq, %1391, %1392 : vector<100x50xi32>
    %1394 = arith.andi %1386, %1393 : vector<100x50xi1>
    %1395 = arith.ori %1371, %1394 : vector<100x50xi1>
    %cst_561 = arith.constant 1.000000e+00 : f32
    %cst_562 = arith.constant 0.000000e+00 : f32
    %1396 = vector.broadcast %cst_561 : f32 to vector<100x50xf32>
    %1397 = vector.broadcast %cst_562 : f32 to vector<100x50xf32>
    %1398 = arith.select %1395, %1396, %1397 : vector<100x50xi1>, vector<100x50xf32>
    %1399 = arith.truncf %1398 : vector<100x50xf32> to vector<100x50xbf16>
    %cst_563 = arith.constant dense<0.000000e+00> : vector<100x128xf32>
    %1400 = tpu.matmul %1399, %1229, %cst_563 {dimension_numbers = #tpu.dot_dimension_numbers<[1], [0], [0], [1], [0, 0, 1, 1], [], []>} : vector<100x50xbf16>, vector<50x128xbf16>, vector<100x128xf32> -> vector<100x128xf32>
    %1401 = arith.truncf %1400 : vector<100x128xf32> to vector<100x128xbf16>
    %c20 = arith.constant 20 : index
    %c0_564 = arith.constant 0 : index
    %c0_565 = arith.constant 0 : index
    %1402 = vector.load %arg2[%c20, %c0_564, %c0_565] : memref<24x128x128xbf16, #tpu.memory_space<vmem>>, vector<1x128x128xbf16>
    %1403 = vector.shape_cast %1402 : vector<1x128x128xbf16> to vector<128x128xbf16>
    %cst_566 = arith.constant dense<0.000000e+00> : vector<100x128xf32>
    %1404 = tpu.matmul %1401, %1403, %cst_566 {dimension_numbers = #tpu.dot_dimension_numbers<[1], [0], [0], [1], [0, 0, 1, 1], [], []>} : vector<100x128xbf16>, vector<128x128xbf16>, vector<100x128xf32> -> vector<100x128xf32>
    %1405 = arith.addf %1346, %1404 : vector<100x128xf32>
    %c6_567 = arith.constant 6 : index
    %c0_568 = arith.constant 0 : index
    %c0_569 = arith.constant 0 : index
    %1406 = vector.load %arg3[%c6_567, %c0_568, %c0_569] : memref<8x1x128xf32, #tpu.memory_space<vmem>>, vector<1x1x128xf32>
    %1407 = vector.shape_cast %1406 : vector<1x1x128xf32> to vector<1x128xf32>
    %1408 = vector.broadcast %1407 : vector<1x128xf32> to vector<100x128xf32>
    %1409 = arith.addf %1405, %1408 : vector<100x128xf32>
    %cst_570 = arith.constant 0.000000e+00 : f32
    %1410 = vector.broadcast %cst_570 : f32 to vector<100x128xf32>
    %1411 = arith.maximumf %1409, %1410 : vector<100x128xf32>
    %cst_571 = arith.constant dense<0.000000e+00> : vector<128xf32>
    %1412 = vector.multi_reduction <add>, %1411, %cst_571 [0] : vector<100x128xf32> to vector<128xf32>
    %1413 = vector.shape_cast %1412 : vector<128xf32> to vector<1x128xf32>
    %cst_572 = arith.constant 1.000000e+02 : f32
    %1414 = vector.broadcast %cst_572 : f32 to vector<1x128xf32>
    %1415 = arith.divf %1413, %1414 : vector<1x128xf32>
    %1416 = vector.broadcast %1415 : vector<1x128xf32> to vector<100x128xf32>
    %1417 = arith.subf %1411, %1416 : vector<100x128xf32>
    %1418 = arith.mulf %1417, %1417 : vector<100x128xf32>
    %cst_573 = arith.constant dense<0.000000e+00> : vector<128xf32>
    %1419 = vector.multi_reduction <add>, %1418, %cst_573 [0] : vector<100x128xf32> to vector<128xf32>
    %1420 = vector.shape_cast %1419 : vector<128xf32> to vector<1x128xf32>
    %cst_574 = arith.constant 1.000000e+02 : f32
    %1421 = vector.broadcast %cst_574 : f32 to vector<1x128xf32>
    %1422 = arith.divf %1420, %1421 : vector<1x128xf32>
    %c3_575 = arith.constant 3 : index
    %c0_576 = arith.constant 0 : index
    %c0_577 = arith.constant 0 : index
    %1423 = vector.load %arg4[%c3_575, %c0_576, %c0_577] : memref<4x1x128xf32, #tpu.memory_space<vmem>>, vector<1x1x128xf32>
    %1424 = vector.shape_cast %1423 : vector<1x1x128xf32> to vector<1x128xf32>
    %cst_578 = arith.constant 9.99999974E-6 : f32
    %1425 = vector.broadcast %cst_578 : f32 to vector<1x128xf32>
    %1426 = arith.addf %1422, %1425 : vector<1x128xf32>
    %1427 = math.rsqrt %1426 : vector<1x128xf32>
    %1428 = arith.mulf %1424, %1427 : vector<1x128xf32>
    %1429 = vector.broadcast %1428 : vector<1x128xf32> to vector<100x128xf32>
    %1430 = arith.mulf %1411, %1429 : vector<100x128xf32>
    %c3_579 = arith.constant 3 : index
    %c0_580 = arith.constant 0 : index
    %c0_581 = arith.constant 0 : index
    %1431 = vector.load %arg5[%c3_579, %c0_580, %c0_581] : memref<4x1x128xf32, #tpu.memory_space<vmem>>, vector<1x1x128xf32>
    %1432 = vector.shape_cast %1431 : vector<1x1x128xf32> to vector<1x128xf32>
    %1433 = arith.mulf %1415, %1428 : vector<1x128xf32>
    %1434 = arith.subf %1432, %1433 : vector<1x128xf32>
    %1435 = vector.broadcast %1434 : vector<1x128xf32> to vector<100x128xf32>
    %1436 = arith.addf %1430, %1435 : vector<100x128xf32>
    %1437 = arith.truncf %1436 : vector<100x128xf32> to vector<100x128xbf16>
    %1438 = tpu.iota {dimensions = array<i32: 0>} : vector<200x100xi32>
    %1439 = tpu.iota {dimensions = array<i32: 1>} : vector<200x100xi32>
    %c0_i32_582 = arith.constant 0 : i32
    %1440 = vector.broadcast %c0_i32_582 : i32 to vector<200x100xi32>
    %1441 = arith.subi %1438, %1440 : vector<200x100xi32>
    %c0_i32_583 = arith.constant 0 : i32
    %1442 = vector.broadcast %c0_i32_583 : i32 to vector<200x100xi32>
    %1443 = arith.subi %1439, %1442 : vector<200x100xi32>
    %c0_i32_584 = arith.constant 0 : i32
    %1444 = vector.broadcast %c0_i32_584 : i32 to vector<200x100xi32>
    %1445 = arith.cmpi sge, %1441, %1444 : vector<200x100xi32>
    %c100_i32_585 = arith.constant 100 : i32
    %1446 = vector.broadcast %c100_i32_585 : i32 to vector<200x100xi32>
    %1447 = arith.cmpi slt, %1441, %1446 : vector<200x100xi32>
    %1448 = arith.andi %1445, %1447 : vector<200x100xi1>
    %c0_i32_586 = arith.constant 0 : i32
    %1449 = vector.broadcast %c0_i32_586 : i32 to vector<200x100xi32>
    %1450 = arith.cmpi sge, %1443, %1449 : vector<200x100xi32>
    %1451 = arith.andi %1448, %1450 : vector<200x100xi1>
    %c50_i32_587 = arith.constant 50 : i32
    %1452 = vector.broadcast %c50_i32_587 : i32 to vector<200x100xi32>
    %1453 = arith.cmpi slt, %1443, %1452 : vector<200x100xi32>
    %1454 = arith.andi %1451, %1453 : vector<200x100xi1>
    %c-1_i32_588 = arith.constant -1 : i32
    %1455 = vector.broadcast %c-1_i32_588 : i32 to vector<200x100xi32>
    %1456 = arith.muli %1455, %1441 : vector<200x100xi32>
    %c2_i32_589 = arith.constant 2 : i32
    %1457 = vector.broadcast %c2_i32_589 : i32 to vector<200x100xi32>
    %1458 = arith.muli %1457, %1443 : vector<200x100xi32>
    %1459 = arith.addi %1456, %1458 : vector<200x100xi32>
    %c1_i32_590 = arith.constant 1 : i32
    %1460 = vector.broadcast %c1_i32_590 : i32 to vector<200x100xi32>
    %1461 = arith.cmpi eq, %1459, %1460 : vector<200x100xi32>
    %1462 = arith.andi %1454, %1461 : vector<200x100xi1>
    %c100_i32_591 = arith.constant 100 : i32
    %1463 = vector.broadcast %c100_i32_591 : i32 to vector<200x100xi32>
    %1464 = arith.subi %1438, %1463 : vector<200x100xi32>
    %c50_i32_592 = arith.constant 50 : i32
    %1465 = vector.broadcast %c50_i32_592 : i32 to vector<200x100xi32>
    %1466 = arith.subi %1439, %1465 : vector<200x100xi32>
    %c0_i32_593 = arith.constant 0 : i32
    %1467 = vector.broadcast %c0_i32_593 : i32 to vector<200x100xi32>
    %1468 = arith.cmpi sge, %1464, %1467 : vector<200x100xi32>
    %c100_i32_594 = arith.constant 100 : i32
    %1469 = vector.broadcast %c100_i32_594 : i32 to vector<200x100xi32>
    %1470 = arith.cmpi slt, %1464, %1469 : vector<200x100xi32>
    %1471 = arith.andi %1468, %1470 : vector<200x100xi1>
    %c0_i32_595 = arith.constant 0 : i32
    %1472 = vector.broadcast %c0_i32_595 : i32 to vector<200x100xi32>
    %1473 = arith.cmpi sge, %1466, %1472 : vector<200x100xi32>
    %1474 = arith.andi %1471, %1473 : vector<200x100xi1>
    %c50_i32_596 = arith.constant 50 : i32
    %1475 = vector.broadcast %c50_i32_596 : i32 to vector<200x100xi32>
    %1476 = arith.cmpi slt, %1466, %1475 : vector<200x100xi32>
    %1477 = arith.andi %1474, %1476 : vector<200x100xi1>
    %c-1_i32_597 = arith.constant -1 : i32
    %1478 = vector.broadcast %c-1_i32_597 : i32 to vector<200x100xi32>
    %1479 = arith.muli %1478, %1464 : vector<200x100xi32>
    %c2_i32_598 = arith.constant 2 : i32
    %1480 = vector.broadcast %c2_i32_598 : i32 to vector<200x100xi32>
    %1481 = arith.muli %1480, %1466 : vector<200x100xi32>
    %1482 = arith.addi %1479, %1481 : vector<200x100xi32>
    %c1_i32_599 = arith.constant 1 : i32
    %1483 = vector.broadcast %c1_i32_599 : i32 to vector<200x100xi32>
    %1484 = arith.cmpi eq, %1482, %1483 : vector<200x100xi32>
    %1485 = arith.andi %1477, %1484 : vector<200x100xi1>
    %1486 = arith.ori %1462, %1485 : vector<200x100xi1>
    %cst_600 = arith.constant 1.000000e+00 : f32
    %cst_601 = arith.constant 0.000000e+00 : f32
    %1487 = vector.broadcast %cst_600 : f32 to vector<200x100xf32>
    %1488 = vector.broadcast %cst_601 : f32 to vector<200x100xf32>
    %1489 = arith.select %1486, %1487, %1488 : vector<200x100xi1>, vector<200x100xf32>
    %1490 = arith.truncf %1489 : vector<200x100xf32> to vector<200x100xbf16>
    %cst_602 = arith.constant dense<0.000000e+00> : vector<200x128xf32>
    %1491 = tpu.matmul %1490, %1437, %cst_602 {dimension_numbers = #tpu.dot_dimension_numbers<[1], [0], [0], [1], [0, 0, 1, 1], [], []>} : vector<200x100xbf16>, vector<100x128xbf16>, vector<200x128xf32> -> vector<200x128xf32>
    %1492 = arith.truncf %1491 : vector<200x128xf32> to vector<200x128xbf16>
    %c21 = arith.constant 21 : index
    %c0_603 = arith.constant 0 : index
    %c0_604 = arith.constant 0 : index
    %1493 = vector.load %arg2[%c21, %c0_603, %c0_604] : memref<24x128x128xbf16, #tpu.memory_space<vmem>>, vector<1x128x128xbf16>
    %1494 = vector.shape_cast %1493 : vector<1x128x128xbf16> to vector<128x128xbf16>
    %cst_605 = arith.constant dense<0.000000e+00> : vector<200x128xf32>
    %1495 = tpu.matmul %1492, %1494, %cst_605 {dimension_numbers = #tpu.dot_dimension_numbers<[1], [0], [0], [1], [0, 0, 1, 1], [], []>} : vector<200x128xbf16>, vector<128x128xbf16>, vector<200x128xf32> -> vector<200x128xf32>
    %1496 = tpu.iota {dimensions = array<i32: 0>} : vector<200x100xi32>
    %1497 = tpu.iota {dimensions = array<i32: 1>} : vector<200x100xi32>
    %c0_i32_606 = arith.constant 0 : i32
    %1498 = vector.broadcast %c0_i32_606 : i32 to vector<200x100xi32>
    %1499 = arith.subi %1496, %1498 : vector<200x100xi32>
    %c0_i32_607 = arith.constant 0 : i32
    %1500 = vector.broadcast %c0_i32_607 : i32 to vector<200x100xi32>
    %1501 = arith.subi %1497, %1500 : vector<200x100xi32>
    %c0_i32_608 = arith.constant 0 : i32
    %1502 = vector.broadcast %c0_i32_608 : i32 to vector<200x100xi32>
    %1503 = arith.cmpi sge, %1499, %1502 : vector<200x100xi32>
    %c100_i32_609 = arith.constant 100 : i32
    %1504 = vector.broadcast %c100_i32_609 : i32 to vector<200x100xi32>
    %1505 = arith.cmpi slt, %1499, %1504 : vector<200x100xi32>
    %1506 = arith.andi %1503, %1505 : vector<200x100xi1>
    %c0_i32_610 = arith.constant 0 : i32
    %1507 = vector.broadcast %c0_i32_610 : i32 to vector<200x100xi32>
    %1508 = arith.cmpi sge, %1501, %1507 : vector<200x100xi32>
    %1509 = arith.andi %1506, %1508 : vector<200x100xi1>
    %c50_i32_611 = arith.constant 50 : i32
    %1510 = vector.broadcast %c50_i32_611 : i32 to vector<200x100xi32>
    %1511 = arith.cmpi slt, %1501, %1510 : vector<200x100xi32>
    %1512 = arith.andi %1509, %1511 : vector<200x100xi1>
    %c-1_i32_612 = arith.constant -1 : i32
    %1513 = vector.broadcast %c-1_i32_612 : i32 to vector<200x100xi32>
    %1514 = arith.muli %1513, %1499 : vector<200x100xi32>
    %c2_i32_613 = arith.constant 2 : i32
    %1515 = vector.broadcast %c2_i32_613 : i32 to vector<200x100xi32>
    %1516 = arith.muli %1515, %1501 : vector<200x100xi32>
    %1517 = arith.addi %1514, %1516 : vector<200x100xi32>
    %c0_i32_614 = arith.constant 0 : i32
    %1518 = vector.broadcast %c0_i32_614 : i32 to vector<200x100xi32>
    %1519 = arith.cmpi eq, %1517, %1518 : vector<200x100xi32>
    %1520 = arith.andi %1512, %1519 : vector<200x100xi1>
    %c100_i32_615 = arith.constant 100 : i32
    %1521 = vector.broadcast %c100_i32_615 : i32 to vector<200x100xi32>
    %1522 = arith.subi %1496, %1521 : vector<200x100xi32>
    %c50_i32_616 = arith.constant 50 : i32
    %1523 = vector.broadcast %c50_i32_616 : i32 to vector<200x100xi32>
    %1524 = arith.subi %1497, %1523 : vector<200x100xi32>
    %c0_i32_617 = arith.constant 0 : i32
    %1525 = vector.broadcast %c0_i32_617 : i32 to vector<200x100xi32>
    %1526 = arith.cmpi sge, %1522, %1525 : vector<200x100xi32>
    %c100_i32_618 = arith.constant 100 : i32
    %1527 = vector.broadcast %c100_i32_618 : i32 to vector<200x100xi32>
    %1528 = arith.cmpi slt, %1522, %1527 : vector<200x100xi32>
    %1529 = arith.andi %1526, %1528 : vector<200x100xi1>
    %c0_i32_619 = arith.constant 0 : i32
    %1530 = vector.broadcast %c0_i32_619 : i32 to vector<200x100xi32>
    %1531 = arith.cmpi sge, %1524, %1530 : vector<200x100xi32>
    %1532 = arith.andi %1529, %1531 : vector<200x100xi1>
    %c50_i32_620 = arith.constant 50 : i32
    %1533 = vector.broadcast %c50_i32_620 : i32 to vector<200x100xi32>
    %1534 = arith.cmpi slt, %1524, %1533 : vector<200x100xi32>
    %1535 = arith.andi %1532, %1534 : vector<200x100xi1>
    %c-1_i32_621 = arith.constant -1 : i32
    %1536 = vector.broadcast %c-1_i32_621 : i32 to vector<200x100xi32>
    %1537 = arith.muli %1536, %1522 : vector<200x100xi32>
    %c2_i32_622 = arith.constant 2 : i32
    %1538 = vector.broadcast %c2_i32_622 : i32 to vector<200x100xi32>
    %1539 = arith.muli %1538, %1524 : vector<200x100xi32>
    %1540 = arith.addi %1537, %1539 : vector<200x100xi32>
    %c0_i32_623 = arith.constant 0 : i32
    %1541 = vector.broadcast %c0_i32_623 : i32 to vector<200x100xi32>
    %1542 = arith.cmpi eq, %1540, %1541 : vector<200x100xi32>
    %1543 = arith.andi %1535, %1542 : vector<200x100xi1>
    %1544 = arith.ori %1520, %1543 : vector<200x100xi1>
    %cst_624 = arith.constant 1.000000e+00 : f32
    %cst_625 = arith.constant 0.000000e+00 : f32
    %1545 = vector.broadcast %cst_624 : f32 to vector<200x100xf32>
    %1546 = vector.broadcast %cst_625 : f32 to vector<200x100xf32>
    %1547 = arith.select %1544, %1545, %1546 : vector<200x100xi1>, vector<200x100xf32>
    %1548 = arith.truncf %1547 : vector<200x100xf32> to vector<200x100xbf16>
    %cst_626 = arith.constant dense<0.000000e+00> : vector<200x128xf32>
    %1549 = tpu.matmul %1548, %1437, %cst_626 {dimension_numbers = #tpu.dot_dimension_numbers<[1], [0], [0], [1], [0, 0, 1, 1], [], []>} : vector<200x100xbf16>, vector<100x128xbf16>, vector<200x128xf32> -> vector<200x128xf32>
    %1550 = arith.truncf %1549 : vector<200x128xf32> to vector<200x128xbf16>
    %c22 = arith.constant 22 : index
    %c0_627 = arith.constant 0 : index
    %c0_628 = arith.constant 0 : index
    %1551 = vector.load %arg2[%c22, %c0_627, %c0_628] : memref<24x128x128xbf16, #tpu.memory_space<vmem>>, vector<1x128x128xbf16>
    %1552 = vector.shape_cast %1551 : vector<1x128x128xbf16> to vector<128x128xbf16>
    %cst_629 = arith.constant dense<0.000000e+00> : vector<200x128xf32>
    %1553 = tpu.matmul %1550, %1552, %cst_629 {dimension_numbers = #tpu.dot_dimension_numbers<[1], [0], [0], [1], [0, 0, 1, 1], [], []>} : vector<200x128xbf16>, vector<128x128xbf16>, vector<200x128xf32> -> vector<200x128xf32>
    %1554 = arith.addf %1495, %1553 : vector<200x128xf32>
    %1555 = tpu.iota {dimensions = array<i32: 0>} : vector<200x100xi32>
    %1556 = tpu.iota {dimensions = array<i32: 1>} : vector<200x100xi32>
    %c0_i32_630 = arith.constant 0 : i32
    %1557 = vector.broadcast %c0_i32_630 : i32 to vector<200x100xi32>
    %1558 = arith.subi %1555, %1557 : vector<200x100xi32>
    %c0_i32_631 = arith.constant 0 : i32
    %1559 = vector.broadcast %c0_i32_631 : i32 to vector<200x100xi32>
    %1560 = arith.subi %1556, %1559 : vector<200x100xi32>
    %c0_i32_632 = arith.constant 0 : i32
    %1561 = vector.broadcast %c0_i32_632 : i32 to vector<200x100xi32>
    %1562 = arith.cmpi sge, %1558, %1561 : vector<200x100xi32>
    %c100_i32_633 = arith.constant 100 : i32
    %1563 = vector.broadcast %c100_i32_633 : i32 to vector<200x100xi32>
    %1564 = arith.cmpi slt, %1558, %1563 : vector<200x100xi32>
    %1565 = arith.andi %1562, %1564 : vector<200x100xi1>
    %c0_i32_634 = arith.constant 0 : i32
    %1566 = vector.broadcast %c0_i32_634 : i32 to vector<200x100xi32>
    %1567 = arith.cmpi sge, %1560, %1566 : vector<200x100xi32>
    %1568 = arith.andi %1565, %1567 : vector<200x100xi1>
    %c50_i32_635 = arith.constant 50 : i32
    %1569 = vector.broadcast %c50_i32_635 : i32 to vector<200x100xi32>
    %1570 = arith.cmpi slt, %1560, %1569 : vector<200x100xi32>
    %1571 = arith.andi %1568, %1570 : vector<200x100xi1>
    %c-1_i32_636 = arith.constant -1 : i32
    %1572 = vector.broadcast %c-1_i32_636 : i32 to vector<200x100xi32>
    %1573 = arith.muli %1572, %1558 : vector<200x100xi32>
    %c2_i32_637 = arith.constant 2 : i32
    %1574 = vector.broadcast %c2_i32_637 : i32 to vector<200x100xi32>
    %1575 = arith.muli %1574, %1560 : vector<200x100xi32>
    %1576 = arith.addi %1573, %1575 : vector<200x100xi32>
    %c-1_i32_638 = arith.constant -1 : i32
    %1577 = vector.broadcast %c-1_i32_638 : i32 to vector<200x100xi32>
    %1578 = arith.cmpi eq, %1576, %1577 : vector<200x100xi32>
    %1579 = arith.andi %1571, %1578 : vector<200x100xi1>
    %c100_i32_639 = arith.constant 100 : i32
    %1580 = vector.broadcast %c100_i32_639 : i32 to vector<200x100xi32>
    %1581 = arith.subi %1555, %1580 : vector<200x100xi32>
    %c50_i32_640 = arith.constant 50 : i32
    %1582 = vector.broadcast %c50_i32_640 : i32 to vector<200x100xi32>
    %1583 = arith.subi %1556, %1582 : vector<200x100xi32>
    %c0_i32_641 = arith.constant 0 : i32
    %1584 = vector.broadcast %c0_i32_641 : i32 to vector<200x100xi32>
    %1585 = arith.cmpi sge, %1581, %1584 : vector<200x100xi32>
    %c100_i32_642 = arith.constant 100 : i32
    %1586 = vector.broadcast %c100_i32_642 : i32 to vector<200x100xi32>
    %1587 = arith.cmpi slt, %1581, %1586 : vector<200x100xi32>
    %1588 = arith.andi %1585, %1587 : vector<200x100xi1>
    %c0_i32_643 = arith.constant 0 : i32
    %1589 = vector.broadcast %c0_i32_643 : i32 to vector<200x100xi32>
    %1590 = arith.cmpi sge, %1583, %1589 : vector<200x100xi32>
    %1591 = arith.andi %1588, %1590 : vector<200x100xi1>
    %c50_i32_644 = arith.constant 50 : i32
    %1592 = vector.broadcast %c50_i32_644 : i32 to vector<200x100xi32>
    %1593 = arith.cmpi slt, %1583, %1592 : vector<200x100xi32>
    %1594 = arith.andi %1591, %1593 : vector<200x100xi1>
    %c-1_i32_645 = arith.constant -1 : i32
    %1595 = vector.broadcast %c-1_i32_645 : i32 to vector<200x100xi32>
    %1596 = arith.muli %1595, %1581 : vector<200x100xi32>
    %c2_i32_646 = arith.constant 2 : i32
    %1597 = vector.broadcast %c2_i32_646 : i32 to vector<200x100xi32>
    %1598 = arith.muli %1597, %1583 : vector<200x100xi32>
    %1599 = arith.addi %1596, %1598 : vector<200x100xi32>
    %c-1_i32_647 = arith.constant -1 : i32
    %1600 = vector.broadcast %c-1_i32_647 : i32 to vector<200x100xi32>
    %1601 = arith.cmpi eq, %1599, %1600 : vector<200x100xi32>
    %1602 = arith.andi %1594, %1601 : vector<200x100xi1>
    %1603 = arith.ori %1579, %1602 : vector<200x100xi1>
    %cst_648 = arith.constant 1.000000e+00 : f32
    %cst_649 = arith.constant 0.000000e+00 : f32
    %1604 = vector.broadcast %cst_648 : f32 to vector<200x100xf32>
    %1605 = vector.broadcast %cst_649 : f32 to vector<200x100xf32>
    %1606 = arith.select %1603, %1604, %1605 : vector<200x100xi1>, vector<200x100xf32>
    %1607 = arith.truncf %1606 : vector<200x100xf32> to vector<200x100xbf16>
    %cst_650 = arith.constant dense<0.000000e+00> : vector<200x128xf32>
    %1608 = tpu.matmul %1607, %1437, %cst_650 {dimension_numbers = #tpu.dot_dimension_numbers<[1], [0], [0], [1], [0, 0, 1, 1], [], []>} : vector<200x100xbf16>, vector<100x128xbf16>, vector<200x128xf32> -> vector<200x128xf32>
    %1609 = arith.truncf %1608 : vector<200x128xf32> to vector<200x128xbf16>
    %c23 = arith.constant 23 : index
    %c0_651 = arith.constant 0 : index
    %c0_652 = arith.constant 0 : index
    %1610 = vector.load %arg2[%c23, %c0_651, %c0_652] : memref<24x128x128xbf16, #tpu.memory_space<vmem>>, vector<1x128x128xbf16>
    %1611 = vector.shape_cast %1610 : vector<1x128x128xbf16> to vector<128x128xbf16>
    %cst_653 = arith.constant dense<0.000000e+00> : vector<200x128xf32>
    %1612 = tpu.matmul %1609, %1611, %cst_653 {dimension_numbers = #tpu.dot_dimension_numbers<[1], [0], [0], [1], [0, 0, 1, 1], [], []>} : vector<200x128xbf16>, vector<128x128xbf16>, vector<200x128xf32> -> vector<200x128xf32>
    %1613 = arith.addf %1554, %1612 : vector<200x128xf32>
    %c7_654 = arith.constant 7 : index
    %c0_655 = arith.constant 0 : index
    %c0_656 = arith.constant 0 : index
    %1614 = vector.load %arg3[%c7_654, %c0_655, %c0_656] : memref<8x1x128xf32, #tpu.memory_space<vmem>>, vector<1x1x128xf32>
    %1615 = vector.shape_cast %1614 : vector<1x1x128xf32> to vector<1x128xf32>
    %1616 = vector.broadcast %1615 : vector<1x128xf32> to vector<200x128xf32>
    %1617 = arith.addf %1613, %1616 : vector<200x128xf32>
    %1618 = math.tanh %1617 : vector<200x128xf32>
    %c0_657 = arith.constant 0 : index
    %c0_658 = arith.constant 0 : index
    %1619 = vector.load %arg7[%c0_657, %c0_658] : memref<200x128xf32, #tpu.memory_space<vmem>>, vector<200x128xf32>
    tpu.vector_store %arg7[%c0_657, %c0_658], %1618 {strides = array<i32>} : memref<200x128xf32, #tpu.memory_space<vmem>>, vector<200x128xf32>,
    return
  }
  func.func @transform_0(%arg0: i32) -> (i32, i32) {
    %c0_i32 = arith.constant 0 : i32
    %c0_i32_0 = arith.constant 0 : i32
    %c0_i32_1 = arith.constant 0 : i32
    return %c0_i32, %c0_i32_0 : i32, i32
  }
  func.func @transform_1(%arg0: i32) -> (i32, i32, i32) {
    %c0_i32 = arith.constant 0 : i32
    %c0_i32_0 = arith.constant 0 : i32
    %c0_i32_1 = arith.constant 0 : i32
    %c0_i32_2 = arith.constant 0 : i32
    return %c0_i32, %c0_i32_0, %c0_i32_1 : i32, i32, i32
  }
  func.func @transform_2(%arg0: i32) -> (i32, i32, i32) {
    %c0_i32 = arith.constant 0 : i32
    %c0_i32_0 = arith.constant 0 : i32
    %c0_i32_1 = arith.constant 0 : i32
    %c0_i32_2 = arith.constant 0 : i32
    return %c0_i32, %c0_i32_0, %c0_i32_1 : i32, i32, i32
  }
  func.func @transform_3(%arg0: i32) -> (i32, i32, i32) {
    %c0_i32 = arith.constant 0 : i32
    %c0_i32_0 = arith.constant 0 : i32
    %c0_i32_1 = arith.constant 0 : i32
    %c0_i32_2 = arith.constant 0 : i32
    return %c0_i32, %c0_i32_0, %c0_i32_1 : i32, i32, i32
  }
  func.func @transform_4(%arg0: i32) -> (i32, i32, i32) {
    %c0_i32 = arith.constant 0 : i32
    %c0_i32_0 = arith.constant 0 : i32
    %c0_i32_1 = arith.constant 0 : i32
    %c0_i32_2 = arith.constant 0 : i32
    return %c0_i32, %c0_i32_0, %c0_i32_1 : i32, i32, i32
  }
  func.func @transform_5(%arg0: i32) -> (i32, i32) {
    %c0_i32 = arith.constant 0 : i32
    %c0_i32_0 = arith.constant 0 : i32
    %c0_i32_1 = arith.constant 0 : i32
    return %c0_i32, %c0_i32_0 : i32, i32
  }
  func.func @transform_6(%arg0: i32) -> (i32, i32) {
    %c0_i32 = arith.constant 0 : i32
    %c0_i32_0 = arith.constant 0 : i32
    %c0_i32_1 = arith.constant 0 : i32
    return %c0_i32, %c0_i32_0 : i32, i32
  }
}

</mosaic_0001>

<llo_original>
// kernel: squeeze.49
$region0: #{squeeze.49}
  %s0 = inlined_call_operand.vmem [shape: f32[200], index: 0, kind: input, shape index: {}]
  %s1 = inlined_call_operand.hbm [shape: f32[2,1,100], index: 1, kind: output, shape index: {}]
  $region1: #{squeeze.49} parent=0
    #allocation0 [shape = 'u8[1024]{0}', space=vmem, size = 0x400, scoped, tag = 'operand span for operand 1']
    #allocation1 [shape = 's32[1]{0}', space=sflag, size = 0x4, scoped, tag = 'scoped memory for squeeze.49']
    #allocation2 [shape = 'u8[4096]{0}', space=vmem, size = 0x1000, scoped, tag = 'scoped mem for output reshape']
    #allocation3 [shape = 'u8[4096]{0}', space=vmem, size = 0x1000, scoped, tag = 'scoped mem for input reshape']
    %2 = vsyncpa [#allocation1], 0
    %s4 = sshllo.u32 0, 2
    %v5 = vld [vmem:[%s0] sm:%s4]
    %6 = vst [vmem:[#allocation3] sm:%s4] %v5
    %v7 = vld [vmem:[#allocation3] sm:$0x1]
    %vm8 = vcmask 818176
    %9 = vst.msk [vmem:[#allocation2] sm:$0x1] %vm8, %v7
    %v10 = vld [vmem:[#allocation3] sm:$0x1]
    %s11 = scalar_lea.vmem [#allocation3], 1
    %v12 = vld [vmem:[%s11] sm:$0x1]
    %vm13 = vcmask 818176
    %v14 = vsel %vm13, %v12, %v10
    %15 = vrot.lane.b32.xlu0 %v14, 28
    %v16 = vpop.permute.xlu0 %15
    %vm17 = vcmask 228352
    %s18 = scalar_lea.vmem [#allocation2], 1
    %19 = vst.msk [vmem:[%s18] sm:$0x1] %vm17, %v16
    %vm20 = vcmask 818400
    %s21 = scalar_lea.vmem [#allocation2], 1
    %22 = vst.msk [vmem:[%s21] sm:$0x1] %vm20, %v16
    %s24 = sshllo.u32 0, 2
    %v26 = vld [vmem:[#allocation2] sm:%s24]
    %s27 = sshllo.u32 0, 2
    %28 = vst [vmem:[#allocation0] sm:%s27] %v26
    %s30 = ssub.s32 32, 32
    %31 = vsyncadd [#allocation1], %s30
    %s33 = sshll.u32 [#allocation0], 4
    %s34 = int_to_ptr.vmem [resolvable:$true] %s33
    %36 = dma.vmem_to_hbm [thread:$0]  %s34, 32, %s1, [#allocation1]
    %37 = dma.done [#allocation1], 32
    %38 = vsyncpa [#allocation1], 1

// kernel: autoencoder_forward.1
$region0: #{autoencoder_forward.1}
  #allocation0 [shape = 'u32[]', space=smem, size = 0x4, offset = 0x4, fixed_abs, tag = 'smem constant byte address 0x4 - core index']
  #allocation1 [shape = 'u32[144,128]{1,0:T(1,128)}', space=vmem, size = 0x12000, scoped, tag = 'internal scratch']
  %s0 = inlined_call_operand.vmem [shape: f32[200,128], index: 0, kind: input, shape index: {}]
  %s1 = inlined_call_operand.vmem [shape: bf16[24,128,128], index: 1, kind: input, shape index: {}]
  %s2 = inlined_call_operand.vmem [shape: f32[8,1,128], index: 2, kind: input, shape index: {}]
  %s3 = inlined_call_operand.vmem [shape: f32[4,1,128], index: 3, kind: input, shape index: {}]
  %s4 = inlined_call_operand.vmem [shape: f32[4,1,128], index: 4, kind: input, shape index: {}]
  %s5 = inlined_call_operand.hbm [shape: f32[2,128], index: 5, kind: output, shape index: {0}]
  %s6 = inlined_call_operand.vmem [shape: f32[200,128], index: 6, kind: output, shape index: {1}]
  %7 = xla_tuple %s5, %s6
  %s8 = sld [smem:[#allocation0]]
  $region38: #{autoencoder_forward.1} parent=0
    _
  %s10 = ssub.s32 1, %s8
  %s11 = scalar_select 0, %s10, %s8
  $region1: #{autoencoder_forward.1} parent=0
    #allocation2 [shape = 'u8[1024]{0}', space=vmem, size = 0x400, scoped, tag = 'output window, operand 0, single buffered']
    #allocation3 [shape = 's32[1]{0}', space=sflag, size = 0x4, scoped, tag = 'scoped memory for autoencoder_forward.1']
    %12 = vsyncpa [#allocation3], 0
    // Predicated region
    $region2: #{autoencoder_forward.1} parent=1 // pred_check
      _
    $region3: #{autoencoder_forward.1} parent=1 // pred_check_branch
      %14 = sbr.rel (0) target = $region5
    $region4: #{autoencoder_forward.1} parent=1 // pred_region
      _
    $region5: #{autoencoder_forward.1} parent=1 // pred_fallthru
      _
    // Predicated region
    $region6: #{autoencoder_forward.1} parent=1 // pred_check
      _
    $region7: #{autoencoder_forward.1} parent=1 // pred_check_branch
      %16 = sbr.rel (0) target = $region9
    $region8: #{autoencoder_forward.1} parent=1 // pred_region
      _
    $region9: #{autoencoder_forward.1} parent=1 // pred_fallthru
      _
    // Predicated region
    $region10: #{autoencoder_forward.1} parent=1 // pred_check
      _
    $region11: #{autoencoder_forward.1} parent=1 // pred_check_branch
      %18 = sbr.rel (0) target = $region13
    $region12: #{autoencoder_forward.1} parent=1 // pred_region
      _
    $region13: #{autoencoder_forward.1} parent=1 // pred_fallthru
      _
    // Predicated region
    $region14: #{autoencoder_forward.1} parent=1 // pred_check
      _
    $region15: #{autoencoder_forward.1} parent=1 // pred_check_branch
      %20 = sbr.rel (0) target = $region17
    $region16: #{autoencoder_forward.1} parent=1 // pred_region
      _
    $region17: #{autoencoder_forward.1} parent=1 // pred_fallthru
      _
    // Predicated region
    $region18: #{autoencoder_forward.1} parent=1 // pred_check
      _
    $region19: #{autoencoder_forward.1} parent=1 // pred_check_branch
      %22 = sbr.rel (0) target = $region21
    $region20: #{autoencoder_forward.1} parent=1 // pred_region
      _
    $region21: #{autoencoder_forward.1} parent=1 // pred_fallthru
      _
    %v24 = vld [vmem:[%s0] sm:$0xff]
    %v25 = vld [vmem:[%s0 + $0x8] sm:$0xff]
    %v26 = vld [vmem:[%s0 + $0x10] sm:$0xff]
    %v27 = vld [vmem:[%s0 + $0x18] sm:$0xff]
    %v28 = vld [vmem:[%s0 + $0x20] sm:$0xff]
    %v29 = vld [vmem:[%s0 + $0x28] sm:$0xff]
    %v30 = vld [vmem:[%s0 + $0x30] sm:$0xff]
    %v31 = vld [vmem:[%s0 + $0x38] sm:$0xff]
    %v32 = vld [vmem:[%s0 + $0x40] sm:$0xff]
    %v33 = vld [vmem:[%s0 + $0x48] sm:$0xff]
    %v34 = vld [vmem:[%s0 + $0x50] sm:$0xff]
    %v35 = vld [vmem:[%s0 + $0x58] sm:$0xff]
    %v36 = vld [vmem:[%s0 + $0x60] sm:$0xff]
    %v37 = vld [vmem:[%s0 + $0x68] sm:$0xff]
    %v38 = vld [vmem:[%s0 + $0x70] sm:$0xff]
    %v39 = vld [vmem:[%s0 + $0x78] sm:$0xff]
    %v40 = vld [vmem:[%s0 + $0x80] sm:$0xff]
    %v41 = vld [vmem:[%s0 + $0x88] sm:$0xff]
    %v42 = vld [vmem:[%s0 + $0x90] sm:$0xff]
    %v43 = vld [vmem:[%s0 + $0x98] sm:$0xff]
    %v44 = vld [vmem:[%s0 + $0xa0] sm:$0xff]
    %v45 = vld [vmem:[%s0 + $0xa8] sm:$0xff]
    %v46 = vld [vmem:[%s0 + $0xb0] sm:$0xff]
    %v47 = vld [vmem:[%s0 + $0xb8] sm:$0xff]
    %v48 = vld [vmem:[%s0 + $0xc0] sm:$0xff]
    %v49 = vpack.c.bf16 %v25, %v24
    %v50 = vpack.c.bf16 %v27, %v26
    %v51 = vpack.c.bf16 %v29, %v28
    %v52 = vpack.c.bf16 %v31, %v30
    %v53 = vpack.c.bf16 %v33, %v32
    %v54 = vpack.c.bf16 %v35, %v34
    %v55 = vpack.c.bf16 %v37, %v36
    %v56 = vpack.c.bf16 %v39, %v38
    %v57 = vpack.c.bf16 %v41, %v40
    %v58 = vpack.c.bf16 %v43, %v42
    %v59 = vpack.c.bf16 %v45, %v44
    %v60 = vpack.c.bf16 %v47, %v46
    %v61 = vpack.c.bf16 %v48, %v48
    %v62 = vlaneseq
    %v63 = vshrl.u32 %v62, 7
    %v64 = vadd.s32 %v63, 8
    %v65 = vadd.s32 %v63, 16
    %v66 = vadd.s32 %v63, 24
    %v67 = vadd.s32 %v63, 32
    %v68 = vadd.s32 %v63, 40
    %v69 = vadd.s32 %v63, 48
    %v70 = vadd.s32 %v63, 56
    %v71 = vadd.s32 %v63, 64
    %v72 = vadd.s32 %v63, 72
    %v73 = vadd.s32 %v63, 80
    %v74 = vadd.s32 %v63, 88
    %v75 = vadd.s32 %v63, 96
    %v76 = vlaneseq
    %v77 = vand.u32 %v76, 127
    %v78 = vadd.s32 %v77, 128
    %vm79 = vcmp.ge.s32.totalorder %v63, 0
    %vm80 = vcmp.ge.s32.totalorder %v64, 0
    %vm81 = vcmp.ge.s32.totalorder %v65, 0
    %vm82 = vcmp.ge.s32.totalorder %v66, 0
    %vm83 = vcmp.ge.s32.totalorder %v67, 0
    %vm84 = vcmp.ge.s32.totalorder %v68, 0
    %vm85 = vcmp.ge.s32.totalorder %v69, 0
    %vm86 = vcmp.ge.s32.totalorder %v70, 0
    %vm87 = vcmp.ge.s32.totalorder %v71, 0
    %vm88 = vcmp.ge.s32.totalorder %v72, 0
    %vm89 = vcmp.ge.s32.totalorder %v73, 0
    %vm90 = vcmp.ge.s32.totalorder %v74, 0
    %vm91 = vcmp.ge.s32.totalorder %v75, 0
    %vm92 = vcmp.lt.s32.totalorder %v63, 50
    %vm93 = vcmp.lt.s32.totalorder %v64, 50
    %vm94 = vcmp.lt.s32.totalorder %v65, 50
    %vm95 = vcmp.lt.s32.totalorder %v66, 50
    %vm96 = vcmp.lt.s32.totalorder %v67, 50
    %vm97 = vcmp.lt.s32.totalorder %v68, 50
    %vm98 = vcmp.lt.s32.totalorder %v69, 50
    %vm99 = vcmp.lt.s32.totalorder %v70, 50
    %vm100 = vcmp.lt.s32.totalorder %v71, 50
    %vm101 = vcmp.lt.s32.totalorder %v72, 50
    %vm102 = vcmp.lt.s32.totalorder %v73, 50
    %vm103 = vcmp.lt.s32.totalorder %v74, 50
    %vm104 = vcmp.lt.s32.totalorder %v75, 50
    %vm105 = vmand %vm79, %vm92
    %vm106 = vmand %vm80, %vm93
    %vm107 = vmand %vm81, %vm94
    %vm108 = vmand %vm82, %vm95
    %vm109 = vmand %vm83, %vm96
    %vm110 = vmand %vm84, %vm97
    %vm111 = vmand %vm85, %vm98
    %vm112 = vmand %vm86, %vm99
    %vm113 = vmand %vm87, %vm100
    %vm114 = vmand %vm88, %vm101
    %vm115 = vmand %vm89, %vm102
    %vm116 = vmand %vm90, %vm103
    %vm117 = vmand %vm91, %vm104
    %vm118 = vcmp.ge.s32.totalorder %v77, 0
    %vm119 = vcmp.ge.s32.totalorder %v78, 0
    %vm120 = vmand %vm105, %vm118
    %vm121 = vmand %vm105, %vm119
    %vm122 = vmand %vm106, %vm118
    %vm123 = vmand %vm106, %vm119
    %vm124 = vmand %vm107, %vm118
    %vm125 = vmand %vm107, %vm119
    %vm126 = vmand %vm108, %vm118
    %vm127 = vmand %vm108, %vm119
    %vm128 = vmand %vm109, %vm118
    %vm129 = vmand %vm109, %vm119
    %vm130 = vmand %vm110, %vm118
    %vm131 = vmand %vm110, %vm119
    %vm132 = vmand %vm111, %vm118
    %vm133 = vmand %vm111, %vm119
    %vm134 = vmand %vm112, %vm118
    %vm135 = vmand %vm112, %vm119
    %vm136 = vmand %vm113, %vm118
    %vm137 = vmand %vm113, %vm119
    %vm138 = vmand %vm114, %vm118
    %vm139 = vmand %vm114, %vm119
    %vm140 = vmand %vm115, %vm118
    %vm141 = vmand %vm115, %vm119
    %vm142 = vmand %vm116, %vm118
    %vm143 = vmand %vm116, %vm119
    %vm144 = vmand %vm117, %vm118
    %vm145 = vmand %vm117, %vm119
    %vm146 = vcmp.lt.s32.totalorder %v77, 100
    %vm147 = vcmp.lt.s32.totalorder %v78, 100
    %vm148 = vmand %vm120, %vm146
    %vm149 = vmand %vm121, %vm147
    %vm150 = vmand %vm122, %vm146
    %vm151 = vmand %vm123, %vm147
    %vm152 = vmand %vm124, %vm146
    %vm153 = vmand %vm125, %vm147
    %vm154 = vmand %vm126, %vm146
    %vm155 = vmand %vm127, %vm147
    %vm156 = vmand %vm128, %vm146
    %vm157 = vmand %vm129, %vm147
    %vm158 = vmand %vm130, %vm146
    %vm159 = vmand %vm131, %vm147
    %vm160 = vmand %vm132, %vm146
    %vm161 = vmand %vm133, %vm147
    %vm162 = vmand %vm134, %vm146
    %vm163 = vmand %vm135, %vm147
    %vm164 = vmand %vm136, %vm146
    %vm165 = vmand %vm137, %vm147
    %vm166 = vmand %vm138, %vm146
    %vm167 = vmand %vm139, %vm147
    %vm168 = vmand %vm140, %vm146
    %vm169 = vmand %vm141, %vm147
    %vm170 = vmand %vm142, %vm146
    %vm171 = vmand %vm143, %vm147
    %vm172 = vmand %vm144, %vm146
    %vm173 = vmand %vm145, %vm147
    %v174 = vmul.u32 %v63, 4294967294
    %v175 = vmul.u32 %v64, 4294967294
    %v176 = vmul.u32 %v65, 4294967294
    %v177 = vmul.u32 %v66, 4294967294
    %v178 = vmul.u32 %v67, 4294967294
    %v179 = vmul.u32 %v68, 4294967294
    %v180 = vmul.u32 %v69, 4294967294
    %v181 = vmul.u32 %v70, 4294967294
    %v182 = vmul.u32 %v71, 4294967294
    %v183 = vmul.u32 %v72, 4294967294
    %v184 = vmul.u32 %v73, 4294967294
    %v185 = vmul.u32 %v74, 4294967294
    %v186 = vmul.u32 %v75, 4294967294
    %v187 = vadd.s32 %v174, %v77
    %v188 = vadd.s32 %v174, %v78
    %v189 = vadd.s32 %v175, %v77
    %v190 = vadd.s32 %v175, %v78
    %v191 = vadd.s32 %v176, %v77
    %v192 = vadd.s32 %v176, %v78
    %v193 = vadd.s32 %v177, %v77
    %v194 = vadd.s32 %v177, %v78
    %v195 = vadd.s32 %v178, %v77
    %v196 = vadd.s32 %v178, %v78
    %v197 = vadd.s32 %v179, %v77
    %v198 = vadd.s32 %v179, %v78
    %v199 = vadd.s32 %v180, %v77
    %v200 = vadd.s32 %v180, %v78
    %v201 = vadd.s32 %v181, %v77
    %v202 = vadd.s32 %v181, %v78
    %v203 = vadd.s32 %v182, %v77
    %v204 = vadd.s32 %v182, %v78
    %v205 = vadd.s32 %v183, %v77
    %v206 = vadd.s32 %v183, %v78
    %v207 = vadd.s32 %v184, %v77
    %v208 = vadd.s32 %v184, %v78
    %v209 = vadd.s32 %v185, %v77
    %v210 = vadd.s32 %v185, %v78
    %v211 = vadd.s32 %v186, %v77
    %v212 = vadd.s32 %v186, %v78
    %vm213 = vcmp.eq.s32.totalorder %v187, 4294967295
    %vm214 = vcmp.eq.s32.totalorder %v188, 4294967295
    %vm215 = vcmp.eq.s32.totalorder %v189, 4294967295
    %vm216 = vcmp.eq.s32.totalorder %v190, 4294967295
    %vm217 = vcmp.eq.s32.totalorder %v191, 4294967295
    %vm218 = vcmp.eq.s32.totalorder %v192, 4294967295
    %vm219 = vcmp.eq.s32.totalorder %v193, 4294967295
    %vm220 = vcmp.eq.s32.totalorder %v194, 4294967295
    %vm221 = vcmp.eq.s32.totalorder %v195, 4294967295
    %vm222 = vcmp.eq.s32.totalorder %v196, 4294967295
    %vm223 = vcmp.eq.s32.totalorder %v197, 4294967295
    %vm224 = vcmp.eq.s32.totalorder %v198, 4294967295
    %vm225 = vcmp.eq.s32.totalorder %v199, 4294967295
    %vm226 = vcmp.eq.s32.totalorder %v200, 4294967295
    %vm227 = vcmp.eq.s32.totalorder %v201, 4294967295
    %vm228 = vcmp.eq.s32.totalorder %v202, 4294967295
    %vm229 = vcmp.eq.s32.totalorder %v203, 4294967295
    %vm230 = vcmp.eq.s32.totalorder %v204, 4294967295
    %vm231 = vcmp.eq.s32.totalorder %v205, 4294967295
    %vm232 = vcmp.eq.s32.totalorder %v206, 4294967295
    %vm233 = vcmp.eq.s32.totalorder %v207, 4294967295
    %vm234 = vcmp.eq.s32.totalorder %v208, 4294967295
    %vm235 = vcmp.eq.s32.totalorder %v209, 4294967295
    %vm236 = vcmp.eq.s32.totalorder %v210, 4294967295
    %vm237 = vcmp.eq.s32.totalorder %v211, 4294967295
    %vm238 = vcmp.eq.s32.totalorder %v212, 4294967295
    %vm239 = vmand %vm148, %vm213
    %vm240 = vmand %vm149, %vm214
    %vm241 = vmand %vm150, %vm215
    %vm242 = vmand %vm151, %vm216
    %vm243 = vmand %vm152, %vm217
    %vm244 = vmand %vm153, %vm218
    %vm245 = vmand %vm154, %vm219
    %vm246 = vmand %vm155, %vm220
    %vm247 = vmand %vm156, %vm221
    %vm248 = vmand %vm157, %vm222
    %vm249 = vmand %vm158, %vm223
    %vm250 = vmand %vm159, %vm224
    %vm251 = vmand %vm160, %vm225
    %vm252 = vmand %vm161, %vm226
    %vm253 = vmand %vm162, %vm227
    %vm254 = vmand %vm163, %vm228
    %vm255 = vmand %vm164, %vm229
    %vm256 = vmand %vm165, %vm230
    %vm257 = vmand %vm166, %vm231
    %vm258 = vmand %vm167, %vm232
    %vm259 = vmand %vm168, %vm233
    %vm260 = vmand %vm169, %vm234
    %vm261 = vmand %vm170, %vm235
    %vm262 = vmand %vm171, %vm236
    %vm263 = vmand %vm172, %vm237
    %vm264 = vmand %vm173, %vm238
    %v265 = vsub.s32 %v63, 50
    %v266 = vsub.s32 %v64, 50
    %v267 = vsub.s32 %v65, 50
    %v268 = vsub.s32 %v66, 50
    %v269 = vsub.s32 %v67, 50
    %v270 = vsub.s32 %v68, 50
    %v271 = vsub.s32 %v69, 50
    %v272 = vsub.s32 %v70, 50
    %v273 = vsub.s32 %v71, 50
    %v274 = vsub.s32 %v72, 50
    %v275 = vsub.s32 %v73, 50
    %v276 = vsub.s32 %v74, 50
    %v277 = vsub.s32 %v75, 50
    %v278 = vsub.s32 %v77, 100
    %v279 = vsub.s32 %v78, 100
    %vm280 = vcmp.ge.s32.totalorder %v265, 0
    %vm281 = vcmp.ge.s32.totalorder %v266, 0
    %vm282 = vcmp.ge.s32.totalorder %v267, 0
    %vm283 = vcmp.ge.s32.totalorder %v268, 0
    %vm284 = vcmp.ge.s32.totalorder %v269, 0
    %vm285 = vcmp.ge.s32.totalorder %v270, 0
    %vm286 = vcmp.ge.s32.totalorder %v271, 0
    %vm287 = vcmp.ge.s32.totalorder %v272, 0
    %vm288 = vcmp.ge.s32.totalorder %v273, 0
    %vm289 = vcmp.ge.s32.totalorder %v274, 0
    %vm290 = vcmp.ge.s32.totalorder %v275, 0
    %vm291 = vcmp.ge.s32.totalorder %v276, 0
    %vm292 = vcmp.ge.s32.totalorder %v277, 0
    %vm293 = vcmp.lt.s32.totalorder %v265, 50
    %vm294 = vcmp.lt.s32.totalorder %v266, 50
    %vm295 = vcmp.lt.s32.totalorder %v267, 50
    %vm296 = vcmp.lt.s32.totalorder %v268, 50
    %vm297 = vcmp.lt.s32.totalorder %v269, 50
    %vm298 = vcmp.lt.s32.totalorder %v270, 50
    %vm299 = vcmp.lt.s32.totalorder %v271, 50
    %vm300 = vcmp.lt.s32.totalorder %v272, 50
    %vm301 = vcmp.lt.s32.totalorder %v273, 50
    %vm302 = vcmp.lt.s32.totalorder %v274, 50
    %vm303 = vcmp.lt.s32.totalorder %v275, 50
    %vm304 = vcmp.lt.s32.totalorder %v276, 50
    %vm305 = vcmp.lt.s32.totalorder %v277, 50
    %vm306 = vmand %vm280, %vm293
    %vm307 = vmand %vm281, %vm294
    %vm308 = vmand %vm282, %vm295
    %vm309 = vmand %vm283, %vm296
    %vm310 = vmand %vm284, %vm297
    %vm311 = vmand %vm285, %vm298
    %vm312 = vmand %vm286, %vm299
    %vm313 = vmand %vm287, %vm300
    %vm314 = vmand %vm288, %vm301
    %vm315 = vmand %vm289, %vm302
    %vm316 = vmand %vm290, %vm303
    %vm317 = vmand %vm291, %vm304
    %vm318 = vmand %vm292, %vm305
    %vm319 = vcmp.ge.s32.totalorder %v278, 0
    %vm320 = vcmp.ge.s32.totalorder %v279, 0
    %vm321 = vmand %vm306, %vm319
    %vm322 = vmand %vm306, %vm320
    %vm323 = vmand %vm307, %vm319
    %vm324 = vmand %vm307, %vm320
    %vm325 = vmand %vm308, %vm319
    %vm326 = vmand %vm308, %vm320
    %vm327 = vmand %vm309, %vm319
    %vm328 = vmand %vm309, %vm320
    %vm329 = vmand %vm310, %vm319
    %vm330 = vmand %vm310, %vm320
    %vm331 = vmand %vm311, %vm319
    %vm332 = vmand %vm311, %vm320
    %vm333 = vmand %vm312, %vm319
    %vm334 = vmand %vm312, %vm320
    %vm335 = vmand %vm313, %vm319
    %vm336 = vmand %vm313, %vm320
    %vm337 = vmand %vm314, %vm319
    %vm338 = vmand %vm314, %vm320
    %vm339 = vmand %vm315, %vm319
    %vm340 = vmand %vm315, %vm320
    %vm341 = vmand %vm316, %vm319
    %vm342 = vmand %vm316, %vm320
    %vm343 = vmand %vm317, %vm319
    %vm344 = vmand %vm317, %vm320
    %vm345 = vmand %vm318, %vm319
    %vm346 = vmand %vm318, %vm320
    %vm347 = vcmp.lt.s32.totalorder %v278, 100
    %vm348 = vcmp.lt.s32.totalorder %v279, 100
    %vm349 = vmand %vm321, %vm347
    %vm350 = vmand %vm322, %vm348
    %vm351 = vmand %vm323, %vm347
    %vm352 = vmand %vm324, %vm348
    %vm353 = vmand %vm325, %vm347
    %vm354 = vmand %vm326, %vm348
    %vm355 = vmand %vm327, %vm347
    %vm356 = vmand %vm328, %vm348
    %vm357 = vmand %vm329, %vm347
    %vm358 = vmand %vm330, %vm348
    %vm359 = vmand %vm331, %vm347
    %vm360 = vmand %vm332, %vm348
    %vm361 = vmand %vm333, %vm347
    %vm362 = vmand %vm334, %vm348
    %vm363 = vmand %vm335, %vm347
    %vm364 = vmand %vm336, %vm348
    %vm365 = vmand %vm337, %vm347
    %vm366 = vmand %vm338, %vm348
    %vm367 = vmand %vm339, %vm347
    %vm368 = vmand %vm340, %vm348
    %vm369 = vmand %vm341, %vm347
    %vm370 = vmand %vm342, %vm348
    %vm371 = vmand %vm343, %vm347
    %vm372 = vmand %vm344, %vm348
    %vm373 = vmand %vm345, %vm347
    %vm374 = vmand %vm346, %vm348
    %v375 = vmul.u32 %v265, 4294967294
    %v376 = vmul.u32 %v266, 4294967294
    %v377 = vmul.u32 %v267, 4294967294
    %v378 = vmul.u32 %v268, 4294967294
    %v379 = vmul.u32 %v269, 4294967294
    %v380 = vmul.u32 %v270, 4294967294
    %v381 = vmul.u32 %v271, 4294967294
    %v382 = vmul.u32 %v272, 4294967294
    %v383 = vmul.u32 %v273, 4294967294
    %v384 = vmul.u32 %v274, 4294967294
    %v385 = vmul.u32 %v275, 4294967294
    %v386 = vmul.u32 %v276, 4294967294
    %v387 = vmul.u32 %v277, 4294967294
    %v388 = vadd.s32 %v375, %v278
    %v389 = vadd.s32 %v375, %v279
    %v390 = vadd.s32 %v376, %v278
    %v391 = vadd.s32 %v376, %v279
    %v392 = vadd.s32 %v377, %v278
    %v393 = vadd.s32 %v377, %v279
    %v394 = vadd.s32 %v378, %v278
    %v395 = vadd.s32 %v378, %v279
    %v396 = vadd.s32 %v379, %v278
    %v397 = vadd.s32 %v379, %v279
    %v398 = vadd.s32 %v380, %v278
    %v399 = vadd.s32 %v380, %v279
    %v400 = vadd.s32 %v381, %v278
    %v401 = vadd.s32 %v381, %v279
    %v402 = vadd.s32 %v382, %v278
    %v403 = vadd.s32 %v382, %v279
    %v404 = vadd.s32 %v383, %v278
    %v405 = vadd.s32 %v383, %v279
    %v406 = vadd.s32 %v384, %v278
    %v407 = vadd.s32 %v384, %v279
    %v408 = vadd.s32 %v385, %v278
    %v409 = vadd.s32 %v385, %v279
    %v410 = vadd.s32 %v386, %v278
    %v411 = vadd.s32 %v386, %v279
    %v412 = vadd.s32 %v387, %v278
    %v413 = vadd.s32 %v387, %v279
    %vm414 = vcmp.eq.s32.totalorder %v388, 4294967295
    %vm415 = vcmp.eq.s32.totalorder %v389, 4294967295
    %vm416 = vcmp.eq.s32.totalorder %v390, 4294967295
    %vm417 = vcmp.eq.s32.totalorder %v391, 4294967295
    %vm418 = vcmp.eq.s32.totalorder %v392, 4294967295
    %vm419 = vcmp.eq.s32.totalorder %v393, 4294967295
    %vm420 = vcmp.eq.s32.totalorder %v394, 4294967295
    %vm421 = vcmp.eq.s32.totalorder %v395, 4294967295
    %vm422 = vcmp.eq.s32.totalorder %v396, 4294967295
    %vm423 = vcmp.eq.s32.totalorder %v397, 4294967295
    %vm424 = vcmp.eq.s32.totalorder %v398, 4294967295
    %vm425 = vcmp.eq.s32.totalorder %v399, 4294967295
    %vm426 = vcmp.eq.s32.totalorder %v400, 4294967295
    %vm427 = vcmp.eq.s32.totalorder %v401, 4294967295
    %vm428 = vcmp.eq.s32.totalorder %v402, 4294967295
    %vm429 = vcmp.eq.s32.totalorder %v403, 4294967295
    %vm430 = vcmp.eq.s32.totalorder %v404, 4294967295
    %vm431 = vcmp.eq.s32.totalorder %v405, 4294967295
    %vm432 = vcmp.eq.s32.totalorder %v406, 4294967295
    %vm433 = vcmp.eq.s32.totalorder %v407, 4294967295
    %vm434 = vcmp.eq.s32.totalorder %v408, 4294967295
    %vm435 = vcmp.eq.s32.totalorder %v409, 4294967295
    %vm436 = vcmp.eq.s32.totalorder %v410, 4294967295
    %vm437 = vcmp.eq.s32.totalorder %v411, 4294967295
    %vm438 = vcmp.eq.s32.totalorder %v412, 4294967295
    %vm439 = vcmp.eq.s32.totalorder %v413, 4294967295
    %vm440 = vmand %vm349, %vm414
    %vm441 = vmand %vm350, %vm415
    %vm442 = vmand %vm351, %vm416
    %vm443 = vmand %vm352, %vm417
    %vm444 = vmand %vm353, %vm418
    %vm445 = vmand %vm354, %vm419
    %vm446 = vmand %vm355, %vm420
    %vm447 = vmand %vm356, %vm421
    %vm448 = vmand %vm357, %vm422
    %vm449 = vmand %vm358, %vm423
    %vm450 = vmand %vm359, %vm424
    %vm451 = vmand %vm360, %vm425
    %vm452 = vmand %vm361, %vm426
    %vm453 = vmand %vm362, %vm427
    %vm454 = vmand %vm363, %vm428
    %vm455 = vmand %vm364, %vm429
    %vm456 = vmand %vm365, %vm430
    %vm457 = vmand %vm366, %vm431
    %vm458 = vmand %vm367, %vm432
    %vm459 = vmand %vm368, %vm433
    %vm460 = vmand %vm369, %vm434
    %vm461 = vmand %vm370, %vm435
    %vm462 = vmand %vm371, %vm436
    %vm463 = vmand %vm372, %vm437
    %vm464 = vmand %vm373, %vm438
    %vm465 = vmand %vm374, %vm439
    %vm466 = vmor %vm239, %vm440
    %vm467 = vmor %vm240, %vm441
    %vm468 = vmor %vm241, %vm442
    %vm469 = vmor %vm242, %vm443
    %vm470 = vmor %vm243, %vm444
    %vm471 = vmor %vm244, %vm445
    %vm472 = vmor %vm245, %vm446
    %vm473 = vmor %vm246, %vm447
    %vm474 = vmor %vm247, %vm448
    %vm475 = vmor %vm248, %vm449
    %vm476 = vmor %vm249, %vm450
    %vm477 = vmor %vm250, %vm451
    %vm478 = vmor %vm251, %vm452
    %vm479 = vmor %vm252, %vm453
    %vm480 = vmor %vm253, %vm454
    %vm481 = vmor %vm254, %vm455
    %vm482 = vmor %vm255, %vm456
    %vm483 = vmor %vm256, %vm457
    %vm484 = vmor %vm257, %vm458
    %vm485 = vmor %vm258, %vm459
    %vm486 = vmor %vm259, %vm460
    %vm487 = vmor %vm260, %vm461
    %vm488 = vmor %vm261, %vm462
    %vm489 = vmor %vm262, %vm463
    %vm490 = vmor %vm263, %vm464
    %vm491 = vmor %vm264, %vm465
    %v492 = vsel %vm466, 1.0, 0.0
    %v493 = vsel %vm467, 1.0, 0.0
    %v494 = vsel %vm468, 1.0, 0.0
    %v495 = vsel %vm469, 1.0, 0.0
    %v496 = vsel %vm470, 1.0, 0.0
    %v497 = vsel %vm471, 1.0, 0.0
    %v498 = vsel %vm472, 1.0, 0.0
    %v499 = vsel %vm473, 1.0, 0.0
    %v500 = vsel %vm474, 1.0, 0.0
    %v501 = vsel %vm475, 1.0, 0.0
    %v502 = vsel %vm476, 1.0, 0.0
    %v503 = vsel %vm477, 1.0, 0.0
    %v504 = vsel %vm478, 1.0, 0.0
    %v505 = vsel %vm479, 1.0, 0.0
    %v506 = vsel %vm480, 1.0, 0.0
    %v507 = vsel %vm481, 1.0, 0.0
    %v508 = vsel %vm482, 1.0, 0.0
    %v509 = vsel %vm483, 1.0, 0.0
    %v510 = vsel %vm484, 1.0, 0.0
    %v511 = vsel %vm485, 1.0, 0.0
    %v512 = vsel %vm486, 1.0, 0.0
    %v513 = vsel %vm487, 1.0, 0.0
    %v514 = vsel %vm488, 1.0, 0.0
    %v515 = vsel %vm489, 1.0, 0.0
    %v516 = vsel %vm490, 1.0, 0.0
    %v517 = vsel %vm491, 1.0, 0.0
    %v518 = vpack.c.bf16 %v494, %v492
    %v519 = vpack.c.bf16 %v495, %v493
    %v520 = vpack.c.bf16 %v498, %v496
    %v521 = vpack.c.bf16 %v499, %v497
    %v522 = vpack.c.bf16 %v502, %v500
    %v523 = vpack.c.bf16 %v503, %v501
    %v524 = vpack.c.bf16 %v506, %v504
    %v525 = vpack.c.bf16 %v507, %v505
    %v526 = vpack.c.bf16 %v510, %v508
    %v527 = vpack.c.bf16 %v511, %v509
    %v528 = vpack.c.bf16 %v514, %v512
    %v529 = vpack.c.bf16 %v515, %v513
    %v530 = vpack.c.bf16 %v516, %v516
    %v531 = vpack.c.bf16 %v517, %v517
    %vm532 = vcmask 588800
    %v534 = vsel %vm532, %v519, 0
    %v537 = vsel %vm532, %v521, 0
    %v540 = vsel %vm532, %v523, 0
    %v543 = vsel %vm532, %v525, 0
    %v546 = vsel %vm532, %v527, 0
    %v549 = vsel %vm532, %v529, 0
    %v552 = vsel %vm532, %v531, 0
    %vm554 = vcmask 1043456
    %v556 = vsel %vm554, %v61, 0
    %558 = vmatprep.subr.bf16.mxu0 0
    %559 = vmatpush1.bf16.msra.mxu0 %v49
    %560 = vmatprep.subr.bf16.mxu0 0
    %561 = vmatpush1.bf16.msra.mxu0 %v50
    %562 = vmatprep.subr.bf16.mxu0 0
    %563 = vmatpush1.bf16.msra.mxu0 %v51
    %564 = vmatprep.subr.bf16.mxu0 0
    %565 = vmatpush1.bf16.msra.mxu0 %v52
    %566 = vmatprep.subr.bf16.mxu0 0
    %567 = vmatpush1.bf16.msra.mxu0 %v53
    %568 = vmatprep.subr.bf16.mxu0 0
    %569 = vmatpush1.bf16.msra.mxu0 %v54
    %570 = vmatprep.subr.bf16.mxu0 0
    %571 = vmatpush1.bf16.msra.mxu0 %v55
    %572 = vmatprep.subr.bf16.mxu0 0
    %573 = vmatpush1.bf16.msra.mxu0 %v56
    %574 = vmatprep.subr.bf16.mxu0 0
    %575 = vmatpush1.bf16.msra.mxu0 %v57
    %576 = vmatprep.subr.bf16.mxu0 0
    %577 = vmatpush1.bf16.msra.mxu0 %v58
    %578 = vmatprep.subr.bf16.mxu0 0
    %579 = vmatpush1.bf16.msra.mxu0 %v59
    %580 = vmatprep.subr.bf16.mxu0 0
    %581 = vmatpush1.bf16.msra.mxu0 %v60
    %582 = vmatprep.subr.bf16.mxu0 0
    %583 = vmatpush1.bf16.msra.mxu0 %v556
    %584 = vmatprep.subr.bf16.mxu0 0
    %585 = vmatpush1.bf16.msra.mxu0 0
    %586 = vmatprep.subr.bf16.mxu0 0
    %587 = vmatpush1.bf16.msra.mxu0 0
    %588 = vmatprep.subr.bf16.mxu0 0
    %589 = vmatpush1.bf16.msra.mxu0 0
    %590 = vmatprep.mubr.bf16.mxu0 %v534
    %591 = vmatmul.mubr.bf16.gmra.mrb[0].mxu0 %v518
    %v592 = vpop.f32.mrb[0].mxu0
    %v593 = vadd.f32 0.0, %v592
    %v594 = vpop.f32.mrb[0].mxu0
    %v595 = vpop.f32.mrb[0].mxu0
    %v596 = vadd.f32 0.0, %v595
    %v597 = vpop.f32.mrb[0].mxu0
    %598 = vmatprep.mubr.bf16.mxu0 %v537
    %599 = vmatmul.mubr.bf16.gmra.mrb[0].mxu0 %v520
    %v600 = vpop.f32.mrb[0].mxu0
    %v601 = vadd.f32 0.0, %v600
    %v602 = vpop.f32.mrb[0].mxu0
    %v603 = vpop.f32.mrb[0].mxu0
    %v604 = vadd.f32 0.0, %v603
    %v605 = vpop.f32.mrb[0].mxu0
    %606 = vmatprep.mubr.bf16.mxu0 %v540
    %607 = vmatmul.mubr.bf16.gmra.mrb[0].mxu0 %v522
    %v608 = vpop.f32.mrb[0].mxu0
    %v609 = vadd.f32 0.0, %v608
    %v610 = vpop.f32.mrb[0].mxu0
    %v611 = vpop.f32.mrb[0].mxu0
    %v612 = vadd.f32 0.0, %v611
    %v613 = vpop.f32.mrb[0].mxu0
    %614 = vmatprep.mubr.bf16.mxu0 %v543
    %615 = vmatmul.mubr.bf16.gmra.mrb[0].mxu0 %v524
    %v616 = vpop.f32.mrb[0].mxu0
    %v617 = vadd.f32 0.0, %v616
    %v618 = vpop.f32.mrb[0].mxu0
    %v619 = vpop.f32.mrb[0].mxu0
    %v620 = vadd.f32 0.0, %v619
    %v621 = vpop.f32.mrb[0].mxu0
    %622 = vmatprep.mubr.bf16.mxu0 %v546
    %623 = vmatmul.mubr.bf16.gmra.mrb[0].mxu0 %v526
    %v624 = vpop.f32.mrb[0].mxu0
    %v625 = vadd.f32 0.0, %v624
    %v626 = vpop.f32.mrb[0].mxu0
    %v627 = vpop.f32.mrb[0].mxu0
    %v628 = vadd.f32 0.0, %v627
    %v629 = vpop.f32.mrb[0].mxu0
    %630 = vmatprep.mubr.bf16.mxu0 %v549
    %631 = vmatmul.mubr.bf16.gmra.mrb[0].mxu0 %v528
    %v632 = vpop.f32.mrb[0].mxu0
    %v633 = vadd.f32 0.0, %v632
    %v634 = vpop.f32.mrb[0].mxu0
    %v635 = vpop.f32.mrb[0].mxu0
    %v636 = vadd.f32 0.0, %v635
    %v637 = vpop.f32.mrb[0].mxu0
    %638 = vmatprep.mubr.bf16.mxu0 %v552
    %639 = vmatmul.mubr.bf16.gmra.mrb[0].mxu0 %v530
    %v640 = vpop.f32.mrb[0].mxu0
    %v641 = vadd.f32 0.0, %v640
    %v642 = vpop.f32.mrb[0].mxu0
    %v643 = vpop.f32.mrb[0].mxu0
    %v644 = vpop.f32.mrb[0].mxu0
    %645 = vdwg.mxu0
    %v646 = vpack.c.bf16 %v596, %v593
    %v647 = vpack.c.bf16 %v604, %v601
    %v648 = vpack.c.bf16 %v612, %v609
    %v649 = vpack.c.bf16 %v620, %v617
    %v650 = vpack.c.bf16 %v628, %v625
    %v651 = vpack.c.bf16 %v636, %v633
    %v652 = vpack.c.bf16 %v641, %v641
    %v653 = vld [vmem:[%s1] sm:$0xf]
    %v654 = vld [vmem:[%s1 + $0x4] sm:$0xf]
    %v655 = vld [vmem:[%s1 + $0x8] sm:$0xf]
    %v656 = vld [vmem:[%s1 + $0xc] sm:$0xf]
    %v657 = vld [vmem:[%s1 + $0x10] sm:$0xf]
    %v658 = vld [vmem:[%s1 + $0x14] sm:$0xf]
    %v659 = vld [vmem:[%s1 + $0x18] sm:$0xf]
    %v660 = vld [vmem:[%s1 + $0x1c] sm:$0xf]
    %v661 = vld [vmem:[%s1 + $0x20] sm:$0xf]
    %v662 = vld [vmem:[%s1 + $0x24] sm:$0xf]
    %v663 = vld [vmem:[%s1 + $0x28] sm:$0xf]
    %v664 = vld [vmem:[%s1 + $0x2c] sm:$0xf]
    %v665 = vld [vmem:[%s1 + $0x30] sm:$0xf]
    %v666 = vld [vmem:[%s1 + $0x34] sm:$0xf]
    %v667 = vld [vmem:[%s1 + $0x38] sm:$0xf]
    %v668 = vld [vmem:[%s1 + $0x3c] sm:$0xf]
    %vm669 = vcmp.eq.s32.totalorder %v187, 0
    %vm670 = vcmp.eq.s32.totalorder %v188, 0
    %vm671 = vcmp.eq.s32.totalorder %v189, 0
    %vm672 = vcmp.eq.s32.totalorder %v190, 0
    %vm673 = vcmp.eq.s32.totalorder %v191, 0
    %vm674 = vcmp.eq.s32.totalorder %v192, 0
    %vm675 = vcmp.eq.s32.totalorder %v193, 0
    %vm676 = vcmp.eq.s32.totalorder %v194, 0
    %vm677 = vcmp.eq.s32.totalorder %v195, 0
    %vm678 = vcmp.eq.s32.totalorder %v196, 0
    %vm679 = vcmp.eq.s32.totalorder %v197, 0
    %vm680 = vcmp.eq.s32.totalorder %v198, 0
    %vm681 = vcmp.eq.s32.totalorder %v199, 0
    %vm682 = vcmp.eq.s32.totalorder %v200, 0
    %vm683 = vcmp.eq.s32.totalorder %v201, 0
    %vm684 = vcmp.eq.s32.totalorder %v202, 0
    %vm685 = vcmp.eq.s32.totalorder %v203, 0
    %vm686 = vcmp.eq.s32.totalorder %v204, 0
    %vm687 = vcmp.eq.s32.totalorder %v205, 0
    %vm688 = vcmp.eq.s32.totalorder %v206, 0
    %vm689 = vcmp.eq.s32.totalorder %v207, 0
    %vm690 = vcmp.eq.s32.totalorder %v208, 0
    %vm691 = vcmp.eq.s32.totalorder %v209, 0
    %vm692 = vcmp.eq.s32.totalorder %v210, 0
    %vm693 = vcmp.eq.s32.totalorder %v211, 0
    %vm694 = vcmp.eq.s32.totalorder %v212, 0
    %vm695 = vmand %vm148, %vm669
    %vm696 = vmand %vm149, %vm670
    %vm697 = vmand %vm150, %vm671
    %vm698 = vmand %vm151, %vm672
    %vm699 = vmand %vm152, %vm673
    %vm700 = vmand %vm153, %vm674
    %vm701 = vmand %vm154, %vm675
    %vm702 = vmand %vm155, %vm676
    %vm703 = vmand %vm156, %vm677
    %vm704 = vmand %vm157, %vm678
    %vm705 = vmand %vm158, %vm679
    %vm706 = vmand %vm159, %vm680
    %vm707 = vmand %vm160, %vm681
    %vm708 = vmand %vm161, %vm682
    %vm709 = vmand %vm162, %vm683
    %vm710 = vmand %vm163, %vm684
    %vm711 = vmand %vm164, %vm685
    %vm712 = vmand %vm165, %vm686
    %vm713 = vmand %vm166, %vm687
    %vm714 = vmand %vm167, %vm688
    %vm715 = vmand %vm168, %vm689
    %vm716 = vmand %vm169, %vm690
    %vm717 = vmand %vm170, %vm691
    %vm718 = vmand %vm171, %vm692
    %vm719 = vmand %vm172, %vm693
    %vm720 = vmand %vm173, %vm694
    %vm721 = vcmp.eq.s32.totalorder %v388, 0
    %vm722 = vcmp.eq.s32.totalorder %v389, 0
    %vm723 = vcmp.eq.s32.totalorder %v390, 0
    %vm724 = vcmp.eq.s32.totalorder %v391, 0
    %vm725 = vcmp.eq.s32.totalorder %v392, 0
    %vm726 = vcmp.eq.s32.totalorder %v393, 0
    %vm727 = vcmp.eq.s32.totalorder %v394, 0
    %vm728 = vcmp.eq.s32.totalorder %v395, 0
    %vm729 = vcmp.eq.s32.totalorder %v396, 0
    %vm730 = vcmp.eq.s32.totalorder %v397, 0
    %vm731 = vcmp.eq.s32.totalorder %v398, 0
    %vm732 = vcmp.eq.s32.totalorder %v399, 0
    %vm733 = vcmp.eq.s32.totalorder %v400, 0
    %vm734 = vcmp.eq.s32.totalorder %v401, 0
    %vm735 = vcmp.eq.s32.totalorder %v402, 0
    %vm736 = vcmp.eq.s32.totalorder %v403, 0
    %vm737 = vcmp.eq.s32.totalorder %v404, 0
    %vm738 = vcmp.eq.s32.totalorder %v405, 0
    %vm739 = vcmp.eq.s32.totalorder %v406, 0
    %vm740 = vcmp.eq.s32.totalorder %v407, 0
    %vm741 = vcmp.eq.s32.totalorder %v408, 0
    %vm742 = vcmp.eq.s32.totalorder %v409, 0
    %vm743 = vcmp.eq.s32.totalorder %v410, 0
    %vm744 = vcmp.eq.s32.totalorder %v411, 0
    %vm745 = vcmp.eq.s32.totalorder %v412, 0
    %vm746 = vcmp.eq.s32.totalorder %v413, 0
    %vm747 = vmand %vm349, %vm721
    %vm748 = vmand %vm350, %vm722
    %vm749 = vmand %vm351, %vm723
    %vm750 = vmand %vm352, %vm724
    %vm751 = vmand %vm353, %vm725
    %vm752 = vmand %vm354, %vm726
    %vm753 = vmand %vm355, %vm727
    %vm754 = vmand %vm356, %vm728
    %vm755 = vmand %vm357, %vm729
    %vm756 = vmand %vm358, %vm730
    %vm757 = vmand %vm359, %vm731
    %vm758 = vmand %vm360, %vm732
    %vm759 = vmand %vm361, %vm733
    %vm760 = vmand %vm362, %vm734
    %vm761 = vmand %vm363, %vm735
    %vm762 = vmand %vm364, %vm736
    %vm763 = vmand %vm365, %vm737
    %vm764 = vmand %vm366, %vm738
    %vm765 = vmand %vm367, %vm739
    %vm766 = vmand %vm368, %vm740
    %vm767 = vmand %vm369, %vm741
    %vm768 = vmand %vm370, %vm742
    %vm769 = vmand %vm371, %vm743
    %vm770 = vmand %vm372, %vm744
    %vm771 = vmand %vm373, %vm745
    %vm772 = vmand %vm374, %vm746
    %vm773 = vmor %vm695, %vm747
    %vm774 = vmor %vm696, %vm748
    %vm775 = vmor %vm697, %vm749
    %vm776 = vmor %vm698, %vm750
    %vm777 = vmor %vm699, %vm751
    %vm778 = vmor %vm700, %vm752
    %vm779 = vmor %vm701, %vm753
    %vm780 = vmor %vm702, %vm754
    %vm781 = vmor %vm703, %vm755
    %vm782 = vmor %vm704, %vm756
    %vm783 = vmor %vm705, %vm757
    %vm784 = vmor %vm706, %vm758
    %vm785 = vmor %vm707, %vm759
    %vm786 = vmor %vm708, %vm760
    %vm787 = vmor %vm709, %vm761
    %vm788 = vmor %vm710, %vm762
    %vm789 = vmor %vm711, %vm763
    %vm790 = vmor %vm712, %vm764
    %vm791 = vmor %vm713, %vm765
    %vm792 = vmor %vm714, %vm766
    %vm793 = vmor %vm715, %vm767
    %vm794 = vmor %vm716, %vm768
    %vm795 = vmor %vm717, %vm769
    %vm796 = vmor %vm718, %vm770
    %vm797 = vmor %vm719, %vm771
    %vm798 = vmor %vm720, %vm772
    %v799 = vsel %vm773, 1.0, 0.0
    %v800 = vsel %vm774, 1.0, 0.0
    %v801 = vsel %vm775, 1.0, 0.0
    %v802 = vsel %vm776, 1.0, 0.0
    %v803 = vsel %vm777, 1.0, 0.0
    %v804 = vsel %vm778, 1.0, 0.0
    %v805 = vsel %vm779, 1.0, 0.0
    %v806 = vsel %vm780, 1.0, 0.0
    %v807 = vsel %vm781, 1.0, 0.0
    %v808 = vsel %vm782, 1.0, 0.0
    %v809 = vsel %vm783, 1.0, 0.0
    %v810 = vsel %vm784, 1.0, 0.0
    %v811 = vsel %vm785, 1.0, 0.0
    %v812 = vsel %vm786, 1.0, 0.0
    %v813 = vsel %vm787, 1.0, 0.0
    %v814 = vsel %vm788, 1.0, 0.0
    %v815 = vsel %vm789, 1.0, 0.0
    %v816 = vsel %vm790, 1.0, 0.0
    %v817 = vsel %vm791, 1.0, 0.0
    %v818 = vsel %vm792, 1.0, 0.0
    %v819 = vsel %vm793, 1.0, 0.0
    %v820 = vsel %vm794, 1.0, 0.0
    %v821 = vsel %vm795, 1.0, 0.0
    %v822 = vsel %vm796, 1.0, 0.0
    %v823 = vsel %vm797, 1.0, 0.0
    %v824 = vsel %vm798, 1.0, 0.0
    %v825 = vpack.c.bf16 %v801, %v799
    %v826 = vpack.c.bf16 %v802, %v800
    %v827 = vpack.c.bf16 %v805, %v803
    %v828 = vpack.c.bf16 %v806, %v804
    %v829 = vpack.c.bf16 %v809, %v807
    %v830 = vpack.c.bf16 %v810, %v808
    %v831 = vpack.c.bf16 %v813, %v811
    %v832 = vpack.c.bf16 %v814, %v812
    %v833 = vpack.c.bf16 %v817, %v815
    %v834 = vpack.c.bf16 %v818, %v816
    %v835 = vpack.c.bf16 %v821, %v819
    %v836 = vpack.c.bf16 %v822, %v820
    %v837 = vpack.c.bf16 %v823, %v823
    %v838 = vpack.c.bf16 %v824, %v824
    %v840 = vsel %vm532, %v826, 0
    %v843 = vsel %vm532, %v828, 0
    %v846 = vsel %vm532, %v830, 0
    %v849 = vsel %vm532, %v832, 0
    %v852 = vsel %vm532, %v834, 0
    %v855 = vsel %vm532, %v836, 0
    %v858 = vsel %vm532, %v838, 0
    %860 = vmatprep.subr.bf16.mxu0 0
    %861 = vmatpush1.bf16.msra.mxu0 %v49
    %862 = vmatprep.subr.bf16.mxu0 0
    %863 = vmatpush1.bf16.msra.mxu0 %v50
    %864 = vmatprep.subr.bf16.mxu0 0
    %865 = vmatpush1.bf16.msra.mxu0 %v51
    %866 = vmatprep.subr.bf16.mxu0 0
    %867 = vmatpush1.bf16.msra.mxu0 %v52
    %868 = vmatprep.subr.bf16.mxu0 0
    %869 = vmatpush1.bf16.msra.mxu0 %v53
    %870 = vmatprep.subr.bf16.mxu0 0
    %871 = vmatpush1.bf16.msra.mxu0 %v54
    %872 = vmatprep.subr.bf16.mxu0 0
    %873 = vmatpush1.bf16.msra.mxu0 %v55
    %874 = vmatprep.subr.bf16.mxu0 0
    %875 = vmatpush1.bf16.msra.mxu0 %v56
    %876 = vmatprep.subr.bf16.mxu0 0
    %877 = vmatpush1.bf16.msra.mxu0 %v57
    %878 = vmatprep.subr.bf16.mxu0 0
    %879 = vmatpush1.bf16.msra.mxu0 %v58
    %880 = vmatprep.subr.bf16.mxu0 0
    %881 = vmatpush1.bf16.msra.mxu0 %v59
    %882 = vmatprep.subr.bf16.mxu0 0
    %883 = vmatpush1.bf16.msra.mxu0 %v60
    %884 = vmatprep.subr.bf16.mxu0 0
    %885 = vmatpush1.bf16.msra.mxu0 %v556
    %886 = vmatprep.subr.bf16.mxu0 0
    %887 = vmatpush1.bf16.msra.mxu0 0
    %888 = vmatprep.subr.bf16.mxu0 0
    %889 = vmatpush1.bf16.msra.mxu0 0
    %890 = vmatprep.subr.bf16.mxu0 0
    %891 = vmatpush1.bf16.msra.mxu0 0
    %892 = vmatprep.mubr.bf16.mxu0 %v840
    %893 = vmatmul.mubr.bf16.gmra.mrb[0].mxu0 %v825
    %v894 = vpop.f32.mrb[0].mxu0
    %v895 = vadd.f32 0.0, %v894
    %v896 = vpop.f32.mrb[0].mxu0
    %v897 = vpop.f32.mrb[0].mxu0
    %v898 = vadd.f32 0.0, %v897
    %v899 = vpop.f32.mrb[0].mxu0
    %900 = vmatprep.mubr.bf16.mxu0 %v843
    %901 = vmatmul.mubr.bf16.gmra.mrb[0].mxu0 %v827
    %v902 = vpop.f32.mrb[0].mxu0
    %v903 = vadd.f32 0.0, %v902
    %v904 = vpop.f32.mrb[0].mxu0
    %v905 = vpop.f32.mrb[0].mxu0
    %v906 = vadd.f32 0.0, %v905
    %v907 = vpop.f32.mrb[0].mxu0
    %908 = vmatprep.mubr.bf16.mxu0 %v846
    %909 = vmatmul.mubr.bf16.gmra.mrb[0].mxu0 %v829
    %v910 = vpop.f32.mrb[0].mxu0
    %v911 = vadd.f32 0.0, %v910
    %v912 = vpop.f32.mrb[0].mxu0
    %v913 = vpop.f32.mrb[0].mxu0
    %v914 = vadd.f32 0.0, %v913
    %v915 = vpop.f32.mrb[0].mxu0
    %916 = vmatprep.mubr.bf16.mxu0 %v849
    %917 = vmatmul.mubr.bf16.gmra.mrb[0].mxu0 %v831
    %v918 = vpop.f32.mrb[0].mxu0
    %v919 = vadd.f32 0.0, %v918
    %v920 = vpop.f32.mrb[0].mxu0
    %v921 = vpop.f32.mrb[0].mxu0
    %v922 = vadd.f32 0.0, %v921
    %v923 = vpop.f32.mrb[0].mxu0
    %924 = vmatprep.mubr.bf16.mxu0 %v852
    %925 = vmatmul.mubr.bf16.gmra.mrb[0].mxu0 %v833
    %v926 = vpop.f32.mrb[0].mxu0
    %v927 = vadd.f32 0.0, %v926
    %v928 = vpop.f32.mrb[0].mxu0
    %v929 = vpop.f32.mrb[0].mxu0
    %v930 = vadd.f32 0.0, %v929
    %v931 = vpop.f32.mrb[0].mxu0
    %932 = vmatprep.mubr.bf16.mxu0 %v855
    %933 = vmatmul.mubr.bf16.gmra.mrb[0].mxu0 %v835
    %v934 = vpop.f32.mrb[0].mxu0
    %v935 = vadd.f32 0.0, %v934
    %v936 = vpop.f32.mrb[0].mxu0
    %v937 = vpop.f32.mrb[0].mxu0
    %v938 = vadd.f32 0.0, %v937
    %v939 = vpop.f32.mrb[0].mxu0
    %940 = vmatprep.mubr.bf16.mxu0 %v858
    %941 = vmatmul.mubr.bf16.gmra.mrb[0].mxu0 %v837
    %v942 = vpop.f32.mrb[0].mxu0
    %v943 = vadd.f32 0.0, %v942
    %v944 = vpop.f32.mrb[0].mxu0
    %v945 = vpop.f32.mrb[0].mxu0
    %v946 = vpop.f32.mrb[0].mxu0
    %947 = vdwg.mxu0
    %v948 = vpack.c.bf16 %v898, %v895
    %v949 = vpack.c.bf16 %v906, %v903
    %v950 = vpack.c.bf16 %v914, %v911
    %v951 = vpack.c.bf16 %v922, %v919
    %v952 = vpack.c.bf16 %v930, %v927
    %v953 = vpack.c.bf16 %v938, %v935
    %v954 = vpack.c.bf16 %v943, %v943
    %s955 = scalar_lea.vmem %s1, 64
    %v956 = vld [vmem:[%s955] sm:$0xf]
    %v957 = vld [vmem:[%s955 + $0x4] sm:$0xf]
    %v958 = vld [vmem:[%s955 + $0x8] sm:$0xf]
    %v959 = vld [vmem:[%s955 + $0xc] sm:$0xf]
    %v960 = vld [vmem:[%s955 + $0x10] sm:$0xf]
    %v961 = vld [vmem:[%s955 + $0x14] sm:$0xf]
    %v962 = vld [vmem:[%s955 + $0x18] sm:$0xf]
    %v963 = vld [vmem:[%s955 + $0x1c] sm:$0xf]
    %v964 = vld [vmem:[%s955 + $0x20] sm:$0xf]
    %v965 = vld [vmem:[%s955 + $0x24] sm:$0xf]
    %v966 = vld [vmem:[%s955 + $0x28] sm:$0xf]
    %v967 = vld [vmem:[%s955 + $0x2c] sm:$0xf]
    %v968 = vld [vmem:[%s955 + $0x30] sm:$0xf]
    %v969 = vld [vmem:[%s955 + $0x34] sm:$0xf]
    %v970 = vld [vmem:[%s955 + $0x38] sm:$0xf]
    %v971 = vld [vmem:[%s955 + $0x3c] sm:$0xf]
    %v988 = vunpack.c.l.b16 %v956
    %v989 = vunpack.c.l.b16 %v957
    %v990 = vunpack.c.l.b16 %v958
    %v991 = vunpack.c.l.b16 %v959
    %v992 = vunpack.c.l.b16 %v960
    %v993 = vunpack.c.l.b16 %v961
    %v994 = vunpack.c.l.b16 %v962
    %v995 = vunpack.c.l.b16 %v963
    %v996 = vunpack.c.l.b16 %v964
    %v997 = vunpack.c.l.b16 %v965
    %v998 = vunpack.c.l.b16 %v966
    %v999 = vunpack.c.l.b16 %v967
    %v1000 = vunpack.c.l.b16 %v968
    %v1001 = vunpack.c.l.b16 %v969
    %v1002 = vunpack.c.l.b16 %v970
    %v1003 = vunpack.c.l.b16 %v971
    %v1004 = vpack.c.b16 %v989, %v988
    %v1005 = vpack.c.b16 %v991, %v990
    %v1006 = vpack.c.b16 %v993, %v992
    %v1007 = vpack.c.b16 %v995, %v994
    %v1008 = vpack.c.b16 %v997, %v996
    %v1009 = vpack.c.b16 %v999, %v998
    %v1010 = vpack.c.b16 %v1001, %v1000
    %v1011 = vpack.c.b16 %v1003, %v1002
    %1020 = vmatprep.subr.bf16.mxu0 0
    %1021 = vmatpush1.bf16.msra.mxu0 %v1004
    %1022 = vmatprep.subr.bf16.mxu0 0
    %1023 = vmatpush1.bf16.msra.mxu0 %v1005
    %1024 = vmatprep.subr.bf16.mxu0 0
    %1025 = vmatpush1.bf16.msra.mxu0 %v1006
    %1026 = vmatprep.subr.bf16.mxu0 0
    %1027 = vmatpush1.bf16.msra.mxu0 %v1007
    %1028 = vmatprep.subr.bf16.mxu0 0
    %1029 = vmatpush1.bf16.msra.mxu0 %v1008
    %1030 = vmatprep.subr.bf16.mxu0 0
    %1031 = vmatpush1.bf16.msra.mxu0 %v1009
    %1032 = vmatprep.subr.bf16.mxu0 0
    %1033 = vmatpush1.bf16.msra.mxu0 %v1010
    %1034 = vmatprep.subr.bf16.mxu0 0
    %1035 = vmatpush1.bf16.msra.mxu0 %v1011
    %1036 = vmatprep.subr.bf16.mxu0 0
    %1037 = vmatpush1.bf16.msra.mxu0 0
    %1038 = vmatprep.subr.bf16.mxu0 0
    %1039 = vmatpush1.bf16.msra.mxu0 0
    %1040 = vmatprep.subr.bf16.mxu0 0
    %1041 = vmatpush1.bf16.msra.mxu0 0
    %1042 = vmatprep.subr.bf16.mxu0 0
    %1043 = vmatpush1.bf16.msra.mxu0 0
    %1044 = vmatprep.subr.bf16.mxu0 0
    %1045 = vmatpush1.bf16.msra.mxu0 0
    %1046 = vmatprep.subr.bf16.mxu0 0
    %1047 = vmatpush1.bf16.msra.mxu0 0
    %1048 = vmatprep.subr.bf16.mxu0 0
    %1049 = vmatpush1.bf16.msra.mxu0 0
    %1050 = vmatprep.subr.bf16.mxu0 0
    %1051 = vmatpush1.bf16.msra.mxu0 0
    %1052 = vmatprep.mubr.bf16.mxu0 0
    %1053 = vmatmul.mubr.bf16.gmra.mrb[0].mxu0 %v948
    %v1054 = vpop.f32.mrb[0].mxu0
    %v1055 = vadd.f32 0.0, %v1054
    %v1056 = vpop.f32.mrb[0].mxu0
    %v1057 = vpop.f32.mrb[0].mxu0
    %v1058 = vadd.f32 0.0, %v1057
    %v1059 = vpop.f32.mrb[0].mxu0
    %1060 = vmatprep.mubr.bf16.mxu0 0
    %1061 = vmatmul.mubr.bf16.gmra.mrb[0].mxu0 %v949
    %v1062 = vpop.f32.mrb[0].mxu0
    %v1063 = vadd.f32 0.0, %v1062
    %v1064 = vpop.f32.mrb[0].mxu0
    %v1065 = vpop.f32.mrb[0].mxu0
    %v1066 = vadd.f32 0.0, %v1065
    %v1067 = vpop.f32.mrb[0].mxu0
    %1068 = vmatprep.mubr.bf16.mxu0 0
    %1069 = vmatmul.mubr.bf16.gmra.mrb[0].mxu0 %v950
    %v1070 = vpop.f32.mrb[0].mxu0
    %v1071 = vadd.f32 0.0, %v1070
    %v1072 = vpop.f32.mrb[0].mxu0
    %v1073 = vpop.f32.mrb[0].mxu0
    %v1074 = vadd.f32 0.0, %v1073
    %v1075 = vpop.f32.mrb[0].mxu0
    %1076 = vmatprep.mubr.bf16.mxu0 0
    %1077 = vmatmul.mubr.bf16.gmra.mrb[0].mxu0 %v951
    %v1078 = vpop.f32.mrb[0].mxu0
    %v1079 = vadd.f32 0.0, %v1078
    %v1080 = vpop.f32.mrb[0].mxu0
    %v1081 = vpop.f32.mrb[0].mxu0
    %v1082 = vadd.f32 0.0, %v1081
    %v1083 = vpop.f32.mrb[0].mxu0
    %1084 = vmatprep.mubr.bf16.mxu0 0
    %1085 = vmatmul.mubr.bf16.gmra.mrb[0].mxu0 %v952
    %v1086 = vpop.f32.mrb[0].mxu0
    %v1087 = vadd.f32 0.0, %v1086
    %v1088 = vpop.f32.mrb[0].mxu0
    %v1089 = vpop.f32.mrb[0].mxu0
    %v1090 = vadd.f32 0.0, %v1089
    %v1091 = vpop.f32.mrb[0].mxu0
    %1092 = vmatprep.mubr.bf16.mxu0 0
    %1093 = vmatmul.mubr.bf16.gmra.mrb[0].mxu0 %v953
    %v1094 = vpop.f32.mrb[0].mxu0
    %v1095 = vadd.f32 0.0, %v1094
    %v1096 = vpop.f32.mrb[0].mxu0
    %v1097 = vpop.f32.mrb[0].mxu0
    %v1098 = vadd.f32 0.0, %v1097
    %v1099 = vpop.f32.mrb[0].mxu0
    %1100 = vmatprep.mubr.bf16.mxu0 0
    %1101 = vmatmul.mubr.bf16.gmra.mrb[0].mxu0 %v954
    %v1102 = vpop.f32.mrb[0].mxu0
    %v1103 = vadd.f32 0.0, %v1102
    %v1104 = vpop.f32.mrb[0].mxu0
    %v1105 = vpop.f32.mrb[0].mxu0
    %v1106 = vpop.f32.mrb[0].mxu0
    %1107 = vdwg.mxu0
    %v1124 = vunpack.c.l.b16 %v653
    %v1125 = vunpack.c.l.b16 %v654
    %v1126 = vunpack.c.l.b16 %v655
    %v1127 = vunpack.c.l.b16 %v656
    %v1128 = vunpack.c.l.b16 %v657
    %v1129 = vunpack.c.l.b16 %v658
    %v1130 = vunpack.c.l.b16 %v659
    %v1131 = vunpack.c.l.b16 %v660
    %v1132 = vunpack.c.l.b16 %v661
    %v1133 = vunpack.c.l.b16 %v662
    %v1134 = vunpack.c.l.b16 %v663
    %v1135 = vunpack.c.l.b16 %v664
    %v1136 = vunpack.c.l.b16 %v665
    %v1137 = vunpack.c.l.b16 %v666
    %v1138 = vunpack.c.l.b16 %v667
    %v1139 = vunpack.c.l.b16 %v668
    %v1140 = vpack.c.b16 %v1125, %v1124
    %v1141 = vpack.c.b16 %v1127, %v1126
    %v1142 = vpack.c.b16 %v1129, %v1128
    %v1143 = vpack.c.b16 %v1131, %v1130
    %v1144 = vpack.c.b16 %v1133, %v1132
    %v1145 = vpack.c.b16 %v1135, %v1134
    %v1146 = vpack.c.b16 %v1137, %v1136
    %v1147 = vpack.c.b16 %v1139, %v1138
    %1156 = vmatprep.subr.bf16.mxu0 0
    %1157 = vmatpush1.bf16.msra.mxu0 %v1140
    %1158 = vmatprep.subr.bf16.mxu0 0
    %1159 = vmatpush1.bf16.msra.mxu0 %v1141
    %1160 = vmatprep.subr.bf16.mxu0 0
    %1161 = vmatpush1.bf16.msra.mxu0 %v1142
    %1162 = vmatprep.subr.bf16.mxu0 0
    %1163 = vmatpush1.bf16.msra.mxu0 %v1143
    %1164 = vmatprep.subr.bf16.mxu0 0
    %1165 = vmatpush1.bf16.msra.mxu0 %v1144
    %1166 = vmatprep.subr.bf16.mxu0 0
    %1167 = vmatpush1.bf16.msra.mxu0 %v1145
    %1168 = vmatprep.subr.bf16.mxu0 0
    %1169 = vmatpush1.bf16.msra.mxu0 %v1146
    %1170 = vmatprep.subr.bf16.mxu0 0
    %1171 = vmatpush1.bf16.msra.mxu0 %v1147
    %1172 = vmatprep.subr.bf16.mxu0 0
    %1173 = vmatpush1.bf16.msra.mxu0 0
    %1174 = vmatprep.subr.bf16.mxu0 0
    %1175 = vmatpush1.bf16.msra.mxu0 0
    %1176 = vmatprep.subr.bf16.mxu0 0
    %1177 = vmatpush1.bf16.msra.mxu0 0
    %1178 = vmatprep.subr.bf16.mxu0 0
    %1179 = vmatpush1.bf16.msra.mxu0 0
    %1180 = vmatprep.subr.bf16.mxu0 0
    %1181 = vmatpush1.bf16.msra.mxu0 0
    %1182 = vmatprep.subr.bf16.mxu0 0
    %1183 = vmatpush1.bf16.msra.mxu0 0
    %1184 = vmatprep.subr.bf16.mxu0 0
    %1185 = vmatpush1.bf16.msra.mxu0 0
    %1186 = vmatprep.subr.bf16.mxu0 0
    %1187 = vmatpush1.bf16.msra.mxu0 0
    %1188 = vmatprep.mubr.bf16.mxu0 0
    %1189 = vmatmul.mubr.bf16.gmra.mrb[0].mxu0 %v646
    %v1190 = vpop.f32.mrb[0].mxu0
    %v1191 = vadd.f32 %v1055, %v1190
    %v1192 = vpop.f32.mrb[0].mxu0
    %v1193 = vpop.f32.mrb[0].mxu0
    %v1194 = vadd.f32 %v1058, %v1193
    %v1195 = vpop.f32.mrb[0].mxu0
    %1196 = vmatprep.mubr.bf16.mxu0 0
    %1197 = vmatmul.mubr.bf16.gmra.mrb[0].mxu0 %v647
    %v1198 = vpop.f32.mrb[0].mxu0
    %v1199 = vadd.f32 %v1063, %v1198
    %v1200 = vpop.f32.mrb[0].mxu0
    %v1201 = vpop.f32.mrb[0].mxu0
    %v1202 = vadd.f32 %v1066, %v1201
    %v1203 = vpop.f32.mrb[0].mxu0
    %1204 = vmatprep.mubr.bf16.mxu0 0
    %1205 = vmatmul.mubr.bf16.gmra.mrb[0].mxu0 %v648
    %v1206 = vpop.f32.mrb[0].mxu0
    %v1207 = vadd.f32 %v1071, %v1206
    %v1208 = vpop.f32.mrb[0].mxu0
    %v1209 = vpop.f32.mrb[0].mxu0
    %v1210 = vadd.f32 %v1074, %v1209
    %v1211 = vpop.f32.mrb[0].mxu0
    %1212 = vmatprep.mubr.bf16.mxu0 0
    %1213 = vmatmul.mubr.bf16.gmra.mrb[0].mxu0 %v649
    %v1214 = vpop.f32.mrb[0].mxu0
    %v1215 = vadd.f32 %v1079, %v1214
    %v1216 = vpop.f32.mrb[0].mxu0
    %v1217 = vpop.f32.mrb[0].mxu0
    %v1218 = vadd.f32 %v1082, %v1217
    %v1219 = vpop.f32.mrb[0].mxu0
    %1220 = vmatprep.mubr.bf16.mxu0 0
    %1221 = vmatmul.mubr.bf16.gmra.mrb[0].mxu0 %v650
    %v1222 = vpop.f32.mrb[0].mxu0
    %v1223 = vadd.f32 %v1087, %v1222
    %v1224 = vpop.f32.mrb[0].mxu0
    %v1225 = vpop.f32.mrb[0].mxu0
    %v1226 = vadd.f32 %v1090, %v1225
    %v1227 = vpop.f32.mrb[0].mxu0
    %1228 = vmatprep.mubr.bf16.mxu0 0
    %1229 = vmatmul.mubr.bf16.gmra.mrb[0].mxu0 %v651
    %v1230 = vpop.f32.mrb[0].mxu0
    %v1231 = vadd.f32 %v1095, %v1230
    %v1232 = vpop.f32.mrb[0].mxu0
    %v1233 = vpop.f32.mrb[0].mxu0
    %v1234 = vadd.f32 %v1098, %v1233
    %v1235 = vpop.f32.mrb[0].mxu0
    %1236 = vmatprep.mubr.bf16.mxu0 0
    %1237 = vmatmul.mubr.bf16.gmra.mrb[0].mxu0 %v652
    %v1238 = vpop.f32.mrb[0].mxu0
    %v1239 = vadd.f32 %v1103, %v1238
    %v1240 = vpop.f32.mrb[0].mxu0
    %v1241 = vpop.f32.mrb[0].mxu0
    %v1242 = vpop.f32.mrb[0].mxu0
    %1243 = vdwg.mxu0
    %vm1244 = vcmp.eq.s32.totalorder %v187, 1
    %vm1245 = vcmp.eq.s32.totalorder %v188, 1
    %vm1246 = vcmp.eq.s32.totalorder %v189, 1
    %vm1247 = vcmp.eq.s32.totalorder %v190, 1
    %vm1248 = vcmp.eq.s32.totalorder %v191, 1
    %vm1249 = vcmp.eq.s32.totalorder %v192, 1
    %vm1250 = vcmp.eq.s32.totalorder %v193, 1
    %vm1251 = vcmp.eq.s32.totalorder %v194, 1
    %vm1252 = vcmp.eq.s32.totalorder %v195, 1
    %vm1253 = vcmp.eq.s32.totalorder %v196, 1
    %vm1254 = vcmp.eq.s32.totalorder %v197, 1
    %vm1255 = vcmp.eq.s32.totalorder %v198, 1
    %vm1256 = vcmp.eq.s32.totalorder %v199, 1
    %vm1257 = vcmp.eq.s32.totalorder %v200, 1
    %vm1258 = vcmp.eq.s32.totalorder %v201, 1
    %vm1259 = vcmp.eq.s32.totalorder %v202, 1
    %vm1260 = vcmp.eq.s32.totalorder %v203, 1
    %vm1261 = vcmp.eq.s32.totalorder %v204, 1
    %vm1262 = vcmp.eq.s32.totalorder %v205, 1
    %vm1263 = vcmp.eq.s32.totalorder %v206, 1
    %vm1264 = vcmp.eq.s32.totalorder %v207, 1
    %vm1265 = vcmp.eq.s32.totalorder %v208, 1
    %vm1266 = vcmp.eq.s32.totalorder %v209, 1
    %vm1267 = vcmp.eq.s32.totalorder %v210, 1
    %vm1268 = vcmp.eq.s32.totalorder %v211, 1
    %vm1269 = vcmp.eq.s32.totalorder %v212, 1
    %vm1270 = vmand %vm148, %vm1244
    %vm1271 = vmand %vm149, %vm1245
    %vm1272 = vmand %vm150, %vm1246
    %vm1273 = vmand %vm151, %vm1247
    %vm1274 = vmand %vm152, %vm1248
    %vm1275 = vmand %vm153, %vm1249
    %vm1276 = vmand %vm154, %vm1250
    %vm1277 = vmand %vm155, %vm1251
    %vm1278 = vmand %vm156, %vm1252
    %vm1279 = vmand %vm157, %vm1253
    %vm1280 = vmand %vm158, %vm1254
    %vm1281 = vmand %vm159, %vm1255
    %vm1282 = vmand %vm160, %vm1256
    %vm1283 = vmand %vm161, %vm1257
    %vm1284 = vmand %vm162, %vm1258
    %vm1285 = vmand %vm163, %vm1259
    %vm1286 = vmand %vm164, %vm1260
    %vm1287 = vmand %vm165, %vm1261
    %vm1288 = vmand %vm166, %vm1262
    %vm1289 = vmand %vm167, %vm1263
    %vm1290 = vmand %vm168, %vm1264
    %vm1291 = vmand %vm169, %vm1265
    %vm1292 = vmand %vm170, %vm1266
    %vm1293 = vmand %vm171, %vm1267
    %vm1294 = vmand %vm172, %vm1268
    %vm1295 = vmand %vm173, %vm1269
    %vm1296 = vcmp.eq.s32.totalorder %v388, 1
    %vm1297 = vcmp.eq.s32.totalorder %v389, 1
    %vm1298 = vcmp.eq.s32.totalorder %v390, 1
    %vm1299 = vcmp.eq.s32.totalorder %v391, 1
    %vm1300 = vcmp.eq.s32.totalorder %v392, 1
    %vm1301 = vcmp.eq.s32.totalorder %v393, 1
    %vm1302 = vcmp.eq.s32.totalorder %v394, 1
    %vm1303 = vcmp.eq.s32.totalorder %v395, 1
    %vm1304 = vcmp.eq.s32.totalorder %v396, 1
    %vm1305 = vcmp.eq.s32.totalorder %v397, 1
    %vm1306 = vcmp.eq.s32.totalorder %v398, 1
    %vm1307 = vcmp.eq.s32.totalorder %v399, 1
    %vm1308 = vcmp.eq.s32.totalorder %v400, 1
    %vm1309 = vcmp.eq.s32.totalorder %v401, 1
    %vm1310 = vcmp.eq.s32.totalorder %v402, 1
    %vm1311 = vcmp.eq.s32.totalorder %v403, 1
    %vm1312 = vcmp.eq.s32.totalorder %v404, 1
    %vm1313 = vcmp.eq.s32.totalorder %v405, 1
    %vm1314 = vcmp.eq.s32.totalorder %v406, 1
    %vm1315 = vcmp.eq.s32.totalorder %v407, 1
    %vm1316 = vcmp.eq.s32.totalorder %v408, 1
    %vm1317 = vcmp.eq.s32.totalorder %v409, 1
    %vm1318 = vcmp.eq.s32.totalorder %v410, 1
    %vm1319 = vcmp.eq.s32.totalorder %v411, 1
    %vm1320 = vcmp.eq.s32.totalorder %v412, 1
    %vm1321 = vcmp.eq.s32.totalorder %v413, 1
    %vm1322 = vmand %vm349, %vm1296
    %vm1323 = vmand %vm350, %vm1297
    %vm1324 = vmand %vm351, %vm1298
    %vm1325 = vmand %vm352, %vm1299
    %vm1326 = vmand %vm353, %vm1300
    %vm1327 = vmand %vm354, %vm1301
    %vm1328 = vmand %vm355, %vm1302
    %vm1329 = vmand %vm356, %vm1303
    %vm1330 = vmand %vm357, %vm1304
    %vm1331 = vmand %vm358, %vm1305
    %vm1332 = vmand %vm359, %vm1306
    %vm1333 = vmand %vm360, %vm1307
    %vm1334 = vmand %vm361, %vm1308
    %vm1335 = vmand %vm362, %vm1309
    %vm1336 = vmand %vm363, %vm1310
    %vm1337 = vmand %vm364, %vm1311
    %vm1338 = vmand %vm365, %vm1312
    %vm1339 = vmand %vm366, %vm1313
    %vm1340 = vmand %vm367, %vm1314
    %vm1341 = vmand %vm368, %vm1315
    %vm1342 = vmand %vm369, %vm1316
    %vm1343 = vmand %vm370, %vm1317
    %vm1344 = vmand %vm371, %vm1318
    %vm1345 = vmand %vm372, %vm1319
    %vm1346 = vmand %vm373, %vm1320
    %vm1347 = vmand %vm374, %vm1321
    %vm1348 = vmor %vm1270, %vm1322
    %vm1349 = vmor %vm1271, %vm1323
    %vm1350 = vmor %vm1272, %vm1324
    %vm1351 = vmor %vm1273, %vm1325
    %vm1352 = vmor %vm1274, %vm1326
    %vm1353 = vmor %vm1275, %vm1327
    %vm1354 = vmor %vm1276, %vm1328
    %vm1355 = vmor %vm1277, %vm1329
    %vm1356 = vmor %vm1278, %vm1330
    %vm1357 = vmor %vm1279, %vm1331
    %vm1358 = vmor %vm1280, %vm1332
    %vm1359 = vmor %vm1281, %vm1333
    %vm1360 = vmor %vm1282, %vm1334
    %vm1361 = vmor %vm1283, %vm1335
    %vm1362 = vmor %vm1284, %vm1336
    %vm1363 = vmor %vm1285, %vm1337
    %vm1364 = vmor %vm1286, %vm1338
    %vm1365 = vmor %vm1287, %vm1339
    %vm1366 = vmor %vm1288, %vm1340
    %vm1367 = vmor %vm1289, %vm1341
    %vm1368 = vmor %vm1290, %vm1342
    %vm1369 = vmor %vm1291, %vm1343
    %vm1370 = vmor %vm1292, %vm1344
    %vm1371 = vmor %vm1293, %vm1345
    %vm1372 = vmor %vm1294, %vm1346
    %vm1373 = vmor %vm1295, %vm1347
    %v1374 = vsel %vm1348, 1.0, 0.0
    %v1375 = vsel %vm1349, 1.0, 0.0
    %v1376 = vsel %vm1350, 1.0, 0.0
    %v1377 = vsel %vm1351, 1.0, 0.0
    %v1378 = vsel %vm1352, 1.0, 0.0
    %v1379 = vsel %vm1353, 1.0, 0.0
    %v1380 = vsel %vm1354, 1.0, 0.0
    %v1381 = vsel %vm1355, 1.0, 0.0
    %v1382 = vsel %vm1356, 1.0, 0.0
    %v1383 = vsel %vm1357, 1.0, 0.0
    %v1384 = vsel %vm1358, 1.0, 0.0
    %v1385 = vsel %vm1359, 1.0, 0.0
    %v1386 = vsel %vm1360, 1.0, 0.0
    %v1387 = vsel %vm1361, 1.0, 0.0
    %v1388 = vsel %vm1362, 1.0, 0.0
    %v1389 = vsel %vm1363, 1.0, 0.0
    %v1390 = vsel %vm1364, 1.0, 0.0
    %v1391 = vsel %vm1365, 1.0, 0.0
    %v1392 = vsel %vm1366, 1.0, 0.0
    %v1393 = vsel %vm1367, 1.0, 0.0
    %v1394 = vsel %vm1368, 1.0, 0.0
    %v1395 = vsel %vm1369, 1.0, 0.0
    %v1396 = vsel %vm1370, 1.0, 0.0
    %v1397 = vsel %vm1371, 1.0, 0.0
    %v1398 = vsel %vm1372, 1.0, 0.0
    %v1399 = vsel %vm1373, 1.0, 0.0
    %v1400 = vpack.c.bf16 %v1376, %v1374
    %v1401 = vpack.c.bf16 %v1377, %v1375
    %v1402 = vpack.c.bf16 %v1380, %v1378
    %v1403 = vpack.c.bf16 %v1381, %v1379
    %v1404 = vpack.c.bf16 %v1384, %v1382
    %v1405 = vpack.c.bf16 %v1385, %v1383
    %v1406 = vpack.c.bf16 %v1388, %v1386
    %v1407 = vpack.c.bf16 %v1389, %v1387
    %v1408 = vpack.c.bf16 %v1392, %v1390
    %v1409 = vpack.c.bf16 %v1393, %v1391
    %v1410 = vpack.c.bf16 %v1396, %v1394
    %v1411 = vpack.c.bf16 %v1397, %v1395
    %v1412 = vpack.c.bf16 %v1398, %v1398
    %v1413 = vpack.c.bf16 %v1399, %v1399
    %v1415 = vsel %vm532, %v1401, 0
    %v1418 = vsel %vm532, %v1403, 0
    %v1421 = vsel %vm532, %v1405, 0
    %v1424 = vsel %vm532, %v1407, 0
    %v1427 = vsel %vm532, %v1409, 0
    %v1430 = vsel %vm532, %v1411, 0
    %v1433 = vsel %vm532, %v1413, 0
    %1435 = vmatprep.subr.bf16.mxu0 0
    %1436 = vmatpush1.bf16.msra.mxu0 %v49
    %1437 = vmatprep.subr.bf16.mxu0 0
    %1438 = vmatpush1.bf16.msra.mxu0 %v50
    %1439 = vmatprep.subr.bf16.mxu0 0
    %1440 = vmatpush1.bf16.msra.mxu0 %v51
    %1441 = vmatprep.subr.bf16.mxu0 0
    %1442 = vmatpush1.bf16.msra.mxu0 %v52
    %1443 = vmatprep.subr.bf16.mxu0 0
    %1444 = vmatpush1.bf16.msra.mxu0 %v53
    %1445 = vmatprep.subr.bf16.mxu0 0
    %1446 = vmatpush1.bf16.msra.mxu0 %v54
    %1447 = vmatprep.subr.bf16.mxu0 0
    %1448 = vmatpush1.bf16.msra.mxu0 %v55
    %1449 = vmatprep.subr.bf16.mxu0 0
    %1450 = vmatpush1.bf16.msra.mxu0 %v56
    %1451 = vmatprep.subr.bf16.mxu0 0
    %1452 = vmatpush1.bf16.msra.mxu0 %v57
    %1453 = vmatprep.subr.bf16.mxu0 0
    %1454 = vmatpush1.bf16.msra.mxu0 %v58
    %1455 = vmatprep.subr.bf16.mxu0 0
    %1456 = vmatpush1.bf16.msra.mxu0 %v59
    %1457 = vmatprep.subr.bf16.mxu0 0
    %1458 = vmatpush1.bf16.msra.mxu0 %v60
    %1459 = vmatprep.subr.bf16.mxu0 0
    %1460 = vmatpush1.bf16.msra.mxu0 %v556
    %1461 = vmatprep.subr.bf16.mxu0 0
    %1462 = vmatpush1.bf16.msra.mxu0 0
    %1463 = vmatprep.subr.bf16.mxu0 0
    %1464 = vmatpush1.bf16.msra.mxu0 0
    %1465 = vmatprep.subr.bf16.mxu0 0
    %1466 = vmatpush1.bf16.msra.mxu0 0
    %1467 = vmatprep.mubr.bf16.mxu0 %v1415
    %1468 = vmatmul.mubr.bf16.gmra.mrb[0].mxu0 %v1400
    %v1469 = vpop.f32.mrb[0].mxu0
    %v1470 = vadd.f32 0.0, %v1469
    %v1471 = vpop.f32.mrb[0].mxu0
    %v1472 = vpop.f32.mrb[0].mxu0
    %v1473 = vadd.f32 0.0, %v1472
    %v1474 = vpop.f32.mrb[0].mxu0
    %1475 = vmatprep.mubr.bf16.mxu0 %v1418
    %1476 = vmatmul.mubr.bf16.gmra.mrb[0].mxu0 %v1402
    %v1477 = vpop.f32.mrb[0].mxu0
    %v1478 = vadd.f32 0.0, %v1477
    %v1479 = vpop.f32.mrb[0].mxu0
    %v1480 = vpop.f32.mrb[0].mxu0
    %v1481 = vadd.f32 0.0, %v1480
    %v1482 = vpop.f32.mrb[0].mxu0
    %1483 = vmatprep.mubr.bf16.mxu0 %v1421
    %1484 = vmatmul.mubr.bf16.gmra.mrb[0].mxu0 %v1404
    %v1485 = vpop.f32.mrb[0].mxu0
    %v1486 = vadd.f32 0.0, %v1485
    %v1487 = vpop.f32.mrb[0].mxu0
    %v1488 = vpop.f32.mrb[0].mxu0
    %v1489 = vadd.f32 0.0, %v1488
    %v1490 = vpop.f32.mrb[0].mxu0
    %1491 = vmatprep.mubr.bf16.mxu0 %v1424
    %1492 = vmatmul.mubr.bf16.gmra.mrb[0].mxu0 %v1406
    %v1493 = vpop.f32.mrb[0].mxu0
    %v1494 = vadd.f32 0.0, %v1493
    %v1495 = vpop.f32.mrb[0].mxu0
    %v1496 = vpop.f32.mrb[0].mxu0
    %v1497 = vadd.f32 0.0, %v1496
    %v1498 = vpop.f32.mrb[0].mxu0
    %1499 = vmatprep.mubr.bf16.mxu0 %v1427
    %1500 = vmatmul.mubr.bf16.gmra.mrb[0].mxu0 %v1408
    %v1501 = vpop.f32.mrb[0].mxu0
    %v1502 = vadd.f32 0.0, %v1501
    %v1503 = vpop.f32.mrb[0].mxu0
    %v1504 = vpop.f32.mrb[0].mxu0
    %v1505 = vadd.f32 0.0, %v1504
    %v1506 = vpop.f32.mrb[0].mxu0
    %1507 = vmatprep.mubr.bf16.mxu0 %v1430
    %1508 = vmatmul.mubr.bf16.gmra.mrb[0].mxu0 %v1410
    %v1509 = vpop.f32.mrb[0].mxu0
    %v1510 = vadd.f32 0.0, %v1509
    %v1511 = vpop.f32.mrb[0].mxu0
    %v1512 = vpop.f32.mrb[0].mxu0
    %v1513 = vadd.f32 0.0, %v1512
    %v1514 = vpop.f32.mrb[0].mxu0
    %1515 = vmatprep.mubr.bf16.mxu0 %v1433
    %1516 = vmatmul.mubr.bf16.gmra.mrb[0].mxu0 %v1412
    %v1517 = vpop.f32.mrb[0].mxu0
    %v1518 = vadd.f32 0.0, %v1517
    %v1519 = vpop.f32.mrb[0].mxu0
    %v1520 = vpop.f32.mrb[0].mxu0
    %v1521 = vpop.f32.mrb[0].mxu0
    %1522 = vdwg.mxu0
    %v1523 = vpack.c.bf16 %v1473, %v1470
    %v1524 = vpack.c.bf16 %v1481, %v1478
    %v1525 = vpack.c.bf16 %v1489, %v1486
    %v1526 = vpack.c.bf16 %v1497, %v1494
    %v1527 = vpack.c.bf16 %v1505, %v1502
    %v1528 = vpack.c.bf16 %v1513, %v1510
    %v1529 = vpack.c.bf16 %v1518, %v1518
    %s1530 = scalar_lea.vmem %s1, 128
    %v1531 = vld [vmem:[%s1530] sm:$0xf]
    %v1532 = vld [vmem:[%s1530 + $0x4] sm:$0xf]
    %v1533 = vld [vmem:[%s1530 + $0x8] sm:$0xf]
    %v1534 = vld [vmem:[%s1530 + $0xc] sm:$0xf]
    %v1535 = vld [vmem:[%s1530 + $0x10] sm:$0xf]
    %v1536 = vld [vmem:[%s1530 + $0x14] sm:$0xf]
    %v1537 = vld [vmem:[%s1530 + $0x18] sm:$0xf]
    %v1538 = vld [vmem:[%s1530 + $0x1c] sm:$0xf]
    %v1539 = vld [vmem:[%s1530 + $0x20] sm:$0xf]
    %v1540 = vld [vmem:[%s1530 + $0x24] sm:$0xf]
    %v1541 = vld [vmem:[%s1530 + $0x28] sm:$0xf]
    %v1542 = vld [vmem:[%s1530 + $0x2c] sm:$0xf]
    %v1543 = vld [vmem:[%s1530 + $0x30] sm:$0xf]
    %v1544 = vld [vmem:[%s1530 + $0x34] sm:$0xf]
    %v1545 = vld [vmem:[%s1530 + $0x38] sm:$0xf]
    %v1546 = vld [vmem:[%s1530 + $0x3c] sm:$0xf]
    %v1563 = vunpack.c.l.b16 %v1531
    %v1564 = vunpack.c.l.b16 %v1532
    %v1565 = vunpack.c.l.b16 %v1533
    %v1566 = vunpack.c.l.b16 %v1534
    %v1567 = vunpack.c.l.b16 %v1535
    %v1568 = vunpack.c.l.b16 %v1536
    %v1569 = vunpack.c.l.b16 %v1537
    %v1570 = vunpack.c.l.b16 %v1538
    %v1571 = vunpack.c.l.b16 %v1539
    %v1572 = vunpack.c.l.b16 %v1540
    %v1573 = vunpack.c.l.b16 %v1541
    %v1574 = vunpack.c.l.b16 %v1542
    %v1575 = vunpack.c.l.b16 %v1543
    %v1576 = vunpack.c.l.b16 %v1544
    %v1577 = vunpack.c.l.b16 %v1545
    %v1578 = vunpack.c.l.b16 %v1546
    %v1579 = vpack.c.b16 %v1564, %v1563
    %v1580 = vpack.c.b16 %v1566, %v1565
    %v1581 = vpack.c.b16 %v1568, %v1567
    %v1582 = vpack.c.b16 %v1570, %v1569
    %v1583 = vpack.c.b16 %v1572, %v1571
    %v1584 = vpack.c.b16 %v1574, %v1573
    %v1585 = vpack.c.b16 %v1576, %v1575
    %v1586 = vpack.c.b16 %v1578, %v1577
    %1595 = vmatprep.subr.bf16.mxu0 0
    %1596 = vmatpush1.bf16.msra.mxu0 %v1579
    %1597 = vmatprep.subr.bf16.mxu0 0
    %1598 = vmatpush1.bf16.msra.mxu0 %v1580
    %1599 = vmatprep.subr.bf16.mxu0 0
    %1600 = vmatpush1.bf16.msra.mxu0 %v1581
    %1601 = vmatprep.subr.bf16.mxu0 0
    %1602 = vmatpush1.bf16.msra.mxu0 %v1582
    %1603 = vmatprep.subr.bf16.mxu0 0
    %1604 = vmatpush1.bf16.msra.mxu0 %v1583
    %1605 = vmatprep.subr.bf16.mxu0 0
    %1606 = vmatpush1.bf16.msra.mxu0 %v1584
    %1607 = vmatprep.subr.bf16.mxu0 0
    %1608 = vmatpush1.bf16.msra.mxu0 %v1585
    %1609 = vmatprep.subr.bf16.mxu0 0
    %1610 = vmatpush1.bf16.msra.mxu0 %v1586
    %1611 = vmatprep.subr.bf16.mxu0 0
    %1612 = vmatpush1.bf16.msra.mxu0 0
    %1613 = vmatprep.subr.bf16.mxu0 0
    %1614 = vmatpush1.bf16.msra.mxu0 0
    %1615 = vmatprep.subr.bf16.mxu0 0
    %1616 = vmatpush1.bf16.msra.mxu0 0
    %1617 = vmatprep.subr.bf16.mxu0 0
    %1618 = vmatpush1.bf16.msra.mxu0 0
    %1619 = vmatprep.subr.bf16.mxu0 0
    %1620 = vmatpush1.bf16.msra.mxu0 0
    %1621 = vmatprep.subr.bf16.mxu0 0
    %1622 = vmatpush1.bf16.msra.mxu0 0
    %1623 = vmatprep.subr.bf16.mxu0 0
    %1624 = vmatpush1.bf16.msra.mxu0 0
    %1625 = vmatprep.subr.bf16.mxu0 0
    %1626 = vmatpush1.bf16.msra.mxu0 0
    %1627 = vmatprep.mubr.bf16.mxu0 0
    %1628 = vmatmul.mubr.bf16.gmra.mrb[0].mxu0 %v1523
    %v1629 = vpop.f32.mrb[0].mxu0
    %v1630 = vadd.f32 0.0, %v1629
    %v1631 = vpop.f32.mrb[0].mxu0
    %v1632 = vpop.f32.mrb[0].mxu0
    %v1633 = vadd.f32 0.0, %v1632
    %v1634 = vpop.f32.mrb[0].mxu0
    %1635 = vmatprep.mubr.bf16.mxu0 0
    %1636 = vmatmul.mubr.bf16.gmra.mrb[0].mxu0 %v1524
    %v1637 = vpop.f32.mrb[0].mxu0
    %v1638 = vadd.f32 0.0, %v1637
    %v1639 = vpop.f32.mrb[0].mxu0
    %v1640 = vpop.f32.mrb[0].mxu0
    %v1641 = vadd.f32 0.0, %v1640
    %v1642 = vpop.f32.mrb[0].mxu0
    %1643 = vmatprep.mubr.bf16.mxu0 0
    %1644 = vmatmul.mubr.bf16.gmra.mrb[0].mxu0 %v1525
    %v1645 = vpop.f32.mrb[0].mxu0
    %v1646 = vadd.f32 0.0, %v1645
    %v1647 = vpop.f32.mrb[0].mxu0
    %v1648 = vpop.f32.mrb[0].mxu0
    %v1649 = vadd.f32 0.0, %v1648
    %v1650 = vpop.f32.mrb[0].mxu0
    %1651 = vmatprep.mubr.bf16.mxu0 0
    %1652 = vmatmul.mubr.bf16.gmra.mrb[0].mxu0 %v1526
    %v1653 = vpop.f32.mrb[0].mxu0
    %v1654 = vadd.f32 0.0, %v1653
    %v1655 = vpop.f32.mrb[0].mxu0
    %v1656 = vpop.f32.mrb[0].mxu0
    %v1657 = vadd.f32 0.0, %v1656
    %v1658 = vpop.f32.mrb[0].mxu0
    %1659 = vmatprep.mubr.bf16.mxu0 0
    %1660 = vmatmul.mubr.bf16.gmra.mrb[0].mxu0 %v1527
    %v1661 = vpop.f32.mrb[0].mxu0
    %v1662 = vadd.f32 0.0, %v1661
    %v1663 = vpop.f32.mrb[0].mxu0
    %v1664 = vpop.f32.mrb[0].mxu0
    %v1665 = vadd.f32 0.0, %v1664
    %v1666 = vpop.f32.mrb[0].mxu0
    %1667 = vmatprep.mubr.bf16.mxu0 0
    %1668 = vmatmul.mubr.bf16.gmra.mrb[0].mxu0 %v1528
    %v1669 = vpop.f32.mrb[0].mxu0
    %v1670 = vadd.f32 0.0, %v1669
    %v1671 = vpop.f32.mrb[0].mxu0
    %v1672 = vpop.f32.mrb[0].mxu0
    %v1673 = vadd.f32 0.0, %v1672
    %v1674 = vpop.f32.mrb[0].mxu0
    %1675 = vmatprep.mubr.bf16.mxu0 0
    %1676 = vmatmul.mubr.bf16.gmra.mrb[0].mxu0 %v1529
    %v1677 = vpop.f32.mrb[0].mxu0
    %v1678 = vadd.f32 0.0, %v1677
    %v1679 = vpop.f32.mrb[0].mxu0
    %v1680 = vpop.f32.mrb[0].mxu0
    %v1681 = vpop.f32.mrb[0].mxu0
    %1682 = vdwg.mxu0
    %v1683 = vadd.f32 %v1191, %v1630
    %v1684 = vadd.f32 %v1194, %v1633
    %v1685 = vadd.f32 %v1199, %v1638
    %v1686 = vadd.f32 %v1202, %v1641
    %v1687 = vadd.f32 %v1207, %v1646
    %v1688 = vadd.f32 %v1210, %v1649
    %v1689 = vadd.f32 %v1215, %v1654
    %v1690 = vadd.f32 %v1218, %v1657
    %v1691 = vadd.f32 %v1223, %v1662
    %v1692 = vadd.f32 %v1226, %v1665
    %v1693 = vadd.f32 %v1231, %v1670
    %v1694 = vadd.f32 %v1234, %v1673
    %v1695 = vadd.f32 %v1239, %v1678
    %v1696 = vadd.f32 %v1683, %v1684
    %v1697 = vadd.f32 %v1696, %v1685
    %v1698 = vadd.f32 %v1697, %v1686
    %v1699 = vadd.f32 %v1698, %v1687
    %v1700 = vadd.f32 %v1699, %v1688
    %v1701 = vadd.f32 %v1700, %v1689
    %v1702 = vadd.f32 %v1701, %v1690
    %v1703 = vadd.f32 %v1702, %v1691
    %v1704 = vadd.f32 %v1703, %v1692
    %v1705 = vadd.f32 %v1704, %v1693
    %v1706 = vadd.f32 %v1705, %v1694
    %v1707 = vsel %vm554, %v1695, 0.0
    %v1708 = vadd.f32 %v1706, %v1707
    %v1709 = vrot.slane %v1708, 4
    %v1710 = vadd.f32 %v1708, %v1709
    %v1711 = vrot.slane %v1710, 2
    %v1712 = vadd.f32 %v1710, %v1711
    %v1713 = vrot.slane %v1712, 1
    %v1714 = vadd.f32 %v1712, %v1713
    %v1715 = vrcp.pop 100.0
    %v1716 = vmul.f32 %v1714, %v1715
    %v1717 = vsub.f32 %v1683, %v1716
    %v1718 = vsub.f32 %v1684, %v1716
    %v1719 = vsub.f32 %v1685, %v1716
    %v1720 = vsub.f32 %v1686, %v1716
    %v1721 = vsub.f32 %v1687, %v1716
    %v1722 = vsub.f32 %v1688, %v1716
    %v1723 = vsub.f32 %v1689, %v1716
    %v1724 = vsub.f32 %v1690, %v1716
    %v1725 = vsub.f32 %v1691, %v1716
    %v1726 = vsub.f32 %v1692, %v1716
    %v1727 = vsub.f32 %v1693, %v1716
    %v1728 = vsub.f32 %v1694, %v1716
    %v1729 = vsub.f32 %v1695, %v1716
    %v1730 = vmul.f32 %v1717, %v1717
    %v1731 = vmul.f32 %v1718, %v1718
    %v1732 = vmul.f32 %v1719, %v1719
    %v1733 = vmul.f32 %v1720, %v1720
    %v1734 = vmul.f32 %v1721, %v1721
    %v1735 = vmul.f32 %v1722, %v1722
    %v1736 = vmul.f32 %v1723, %v1723
    %v1737 = vmul.f32 %v1724, %v1724
    %v1738 = vmul.f32 %v1725, %v1725
    %v1739 = vmul.f32 %v1726, %v1726
    %v1740 = vmul.f32 %v1727, %v1727
    %v1741 = vmul.f32 %v1728, %v1728
    %v1742 = vmul.f32 %v1729, %v1729
    %v1743 = vadd.f32 %v1730, %v1731
    %v1744 = vadd.f32 %v1743, %v1732
    %v1745 = vadd.f32 %v1744, %v1733
    %v1746 = vadd.f32 %v1745, %v1734
    %v1747 = vadd.f32 %v1746, %v1735
    %v1748 = vadd.f32 %v1747, %v1736
    %v1749 = vadd.f32 %v1748, %v1737
    %v1750 = vadd.f32 %v1749, %v1738
    %v1751 = vadd.f32 %v1750, %v1739
    %v1752 = vadd.f32 %v1751, %v1740
    %v1753 = vadd.f32 %v1752, %v1741
    %v1754 = vsel %vm554, %v1742, 0.0
    %v1755 = vadd.f32 %v1753, %v1754
    %v1756 = vrot.slane %v1755, 4
    %v1757 = vadd.f32 %v1755, %v1756
    %v1758 = vrot.slane %v1757, 2
    %v1759 = vadd.f32 %v1757, %v1758
    %v1760 = vrot.slane %v1759, 1
    %v1761 = vadd.f32 %v1759, %v1760
    %v1762 = vmul.f32 %v1761, %v1715
    %v1763 = vld [vmem:[%s3] sm:$0x1]
    %v1764 = vadd.f32 %v1762, 1e-05
    %v1765 = vrsqrt.pop %v1764
    %v1766 = vmul.f32 %v1763, %v1765
    %v1768 = vlaneseq
    %v1769 = vshrl.u32 %v1768, 7
    %v1770 = vsub.s32 0, %v1769
    %v1771 = vrot.slane %v1766, %v1770
    %v1773 = vmul.f32 %v1683, %v1771
    %v1774 = vmul.f32 %v1684, %v1771
    %v1775 = vmul.f32 %v1685, %v1771
    %v1776 = vmul.f32 %v1686, %v1771
    %v1777 = vmul.f32 %v1687, %v1771
    %v1778 = vmul.f32 %v1688, %v1771
    %v1779 = vmul.f32 %v1689, %v1771
    %v1780 = vmul.f32 %v1690, %v1771
    %v1781 = vmul.f32 %v1691, %v1771
    %v1782 = vmul.f32 %v1692, %v1771
    %v1783 = vmul.f32 %v1693, %v1771
    %v1784 = vmul.f32 %v1694, %v1771
    %v1785 = vmul.f32 %v1695, %v1771
    %v1786 = vld [vmem:[%s4] sm:$0x1]
    %v1787 = vmul.f32 %v1716, %v1766
    %v1788 = vsub.f32 %v1786, %v1787
    %v1790 = vlaneseq
    %v1791 = vshrl.u32 %v1790, 7
    %v1792 = vsub.s32 0, %v1791
    %v1793 = vrot.slane %v1788, %v1792
    %v1795 = vadd.f32 %v1773, %v1793
    %v1796 = vadd.f32 %v1774, %v1793
    %v1797 = vadd.f32 %v1775, %v1793
    %v1798 = vadd.f32 %v1776, %v1793
    %v1799 = vadd.f32 %v1777, %v1793
    %v1800 = vadd.f32 %v1778, %v1793
    %v1801 = vadd.f32 %v1779, %v1793
    %v1802 = vadd.f32 %v1780, %v1793
    %v1803 = vadd.f32 %v1781, %v1793
    %v1804 = vadd.f32 %v1782, %v1793
    %v1805 = vadd.f32 %v1783, %v1793
    %v1806 = vadd.f32 %v1784, %v1793
    %v1807 = vadd.f32 %v1785, %v1793
    %v1808 = vmax.f32 %v1795, 0.0
    %v1809 = vmax.f32 %v1796, 0.0
    %v1810 = vmax.f32 %v1797, 0.0
    %v1811 = vmax.f32 %v1798, 0.0
    %v1812 = vmax.f32 %v1799, 0.0
    %v1813 = vmax.f32 %v1800, 0.0
    %v1814 = vmax.f32 %v1801, 0.0
    %v1815 = vmax.f32 %v1802, 0.0
    %v1816 = vmax.f32 %v1803, 0.0
    %v1817 = vmax.f32 %v1804, 0.0
    %v1818 = vmax.f32 %v1805, 0.0
    %v1819 = vmax.f32 %v1806, 0.0
    %v1820 = vmax.f32 %v1807, 0.0
    %v1821 = vpack.c.bf16 %v1809, %v1808
    %v1822 = vpack.c.bf16 %v1811, %v1810
    %v1823 = vpack.c.bf16 %v1813, %v1812
    %v1824 = vpack.c.bf16 %v1815, %v1814
    %v1825 = vpack.c.bf16 %v1817, %v1816
    %v1826 = vpack.c.bf16 %v1819, %v1818
    %v1827 = vpack.c.bf16 %v1820, %v1820
    %vm1828 = vcmp.lt.s32.totalorder %v63, 25
    %vm1829 = vcmp.lt.s32.totalorder %v64, 25
    %vm1830 = vcmp.lt.s32.totalorder %v65, 25
    %vm1831 = vcmp.lt.s32.totalorder %v66, 25
    %vm1832 = vcmp.lt.s32.totalorder %v67, 25
    %vm1833 = vcmp.lt.s32.totalorder %v68, 25
    %vm1834 = vcmp.lt.s32.totalorder %v69, 25
    %vm1835 = vmand %vm79, %vm1828
    %vm1836 = vmand %vm80, %vm1829
    %vm1837 = vmand %vm81, %vm1830
    %vm1838 = vmand %vm82, %vm1831
    %vm1839 = vmand %vm83, %vm1832
    %vm1840 = vmand %vm84, %vm1833
    %vm1841 = vmand %vm85, %vm1834
    %vm1842 = vmand %vm1835, %vm118
    %vm1843 = vmand %vm1836, %vm118
    %vm1844 = vmand %vm1837, %vm118
    %vm1845 = vmand %vm1838, %vm118
    %vm1846 = vmand %vm1839, %vm118
    %vm1847 = vmand %vm1840, %vm118
    %vm1848 = vmand %vm1841, %vm118
    %vm1849 = vcmp.lt.s32.totalorder %v77, 50
    %vm1850 = vmand %vm1842, %vm1849
    %vm1851 = vmand %vm1843, %vm1849
    %vm1852 = vmand %vm1844, %vm1849
    %vm1853 = vmand %vm1845, %vm1849
    %vm1854 = vmand %vm1846, %vm1849
    %vm1855 = vmand %vm1847, %vm1849
    %vm1856 = vmand %vm1848, %vm1849
    %vm1857 = vmand %vm1850, %vm213
    %vm1858 = vmand %vm1851, %vm215
    %vm1859 = vmand %vm1852, %vm217
    %vm1860 = vmand %vm1853, %vm219
    %vm1861 = vmand %vm1854, %vm221
    %vm1862 = vmand %vm1855, %vm223
    %vm1863 = vmand %vm1856, %vm225
    %v1864 = vsub.s32 %v63, 25
    %v1865 = vsub.s32 %v64, 25
    %v1866 = vsub.s32 %v65, 25
    %v1867 = vsub.s32 %v66, 25
    %v1868 = vsub.s32 %v67, 25
    %v1869 = vsub.s32 %v68, 25
    %v1870 = vsub.s32 %v69, 25
    %v1871 = vsub.s32 %v77, 50
    %vm1872 = vcmp.ge.s32.totalorder %v1864, 0
    %vm1873 = vcmp.ge.s32.totalorder %v1865, 0
    %vm1874 = vcmp.ge.s32.totalorder %v1866, 0
    %vm1875 = vcmp.ge.s32.totalorder %v1867, 0
    %vm1876 = vcmp.ge.s32.totalorder %v1868, 0
    %vm1877 = vcmp.ge.s32.totalorder %v1869, 0
    %vm1878 = vcmp.ge.s32.totalorder %v1870, 0
    %vm1879 = vcmp.lt.s32.totalorder %v1864, 25
    %vm1880 = vcmp.lt.s32.totalorder %v1865, 25
    %vm1881 = vcmp.lt.s32.totalorder %v1866, 25
    %vm1882 = vcmp.lt.s32.totalorder %v1867, 25
    %vm1883 = vcmp.lt.s32.totalorder %v1868, 25
    %vm1884 = vcmp.lt.s32.totalorder %v1869, 25
    %vm1885 = vcmp.lt.s32.totalorder %v1870, 25
    %vm1886 = vmand %vm1872, %vm1879
    %vm1887 = vmand %vm1873, %vm1880
    %vm1888 = vmand %vm1874, %vm1881
    %vm1889 = vmand %vm1875, %vm1882
    %vm1890 = vmand %vm1876, %vm1883
    %vm1891 = vmand %vm1877, %vm1884
    %vm1892 = vmand %vm1878, %vm1885
    %vm1893 = vcmp.ge.s32.totalorder %v1871, 0
    %vm1894 = vmand %vm1886, %vm1893
    %vm1895 = vmand %vm1887, %vm1893
    %vm1896 = vmand %vm1888, %vm1893
    %vm1897 = vmand %vm1889, %vm1893
    %vm1898 = vmand %vm1890, %vm1893
    %vm1899 = vmand %vm1891, %vm1893
    %vm1900 = vmand %vm1892, %vm1893
    %vm1901 = vcmp.lt.s32.totalorder %v1871, 50
    %vm1902 = vmand %vm1894, %vm1901
    %vm1903 = vmand %vm1895, %vm1901
    %vm1904 = vmand %vm1896, %vm1901
    %vm1905 = vmand %vm1897, %vm1901
    %vm1906 = vmand %vm1898, %vm1901
    %vm1907 = vmand %vm1899, %vm1901
    %vm1908 = vmand %vm1900, %vm1901
    %v1909 = vmul.u32 %v1864, 4294967294
    %v1910 = vmul.u32 %v1865, 4294967294
    %v1911 = vmul.u32 %v1866, 4294967294
    %v1912 = vmul.u32 %v1867, 4294967294
    %v1913 = vmul.u32 %v1868, 4294967294
    %v1914 = vmul.u32 %v1869, 4294967294
    %v1915 = vmul.u32 %v1870, 4294967294
    %v1916 = vadd.s32 %v1909, %v1871
    %v1917 = vadd.s32 %v1910, %v1871
    %v1918 = vadd.s32 %v1911, %v1871
    %v1919 = vadd.s32 %v1912, %v1871
    %v1920 = vadd.s32 %v1913, %v1871
    %v1921 = vadd.s32 %v1914, %v1871
    %v1922 = vadd.s32 %v1915, %v1871
    %vm1923 = vcmp.eq.s32.totalorder %v1916, 4294967295
    %vm1924 = vcmp.eq.s32.totalorder %v1917, 4294967295
    %vm1925 = vcmp.eq.s32.totalorder %v1918, 4294967295
    %vm1926 = vcmp.eq.s32.totalorder %v1919, 4294967295
    %vm1927 = vcmp.eq.s32.totalorder %v1920, 4294967295
    %vm1928 = vcmp.eq.s32.totalorder %v1921, 4294967295
    %vm1929 = vcmp.eq.s32.totalorder %v1922, 4294967295
    %vm1930 = vmand %vm1902, %vm1923
    %vm1931 = vmand %vm1903, %vm1924
    %vm1932 = vmand %vm1904, %vm1925
    %vm1933 = vmand %vm1905, %vm1926
    %vm1934 = vmand %vm1906, %vm1927
    %vm1935 = vmand %vm1907, %vm1928
    %vm1936 = vmand %vm1908, %vm1929
    %vm1937 = vmor %vm1857, %vm1930
    %vm1938 = vmor %vm1858, %vm1931
    %vm1939 = vmor %vm1859, %vm1932
    %vm1940 = vmor %vm1860, %vm1933
    %vm1941 = vmor %vm1861, %vm1934
    %vm1942 = vmor %vm1862, %vm1935
    %vm1943 = vmor %vm1863, %vm1936
    %v1944 = vsel %vm1937, 1.0, 0.0
    %v1945 = vsel %vm1938, 1.0, 0.0
    %v1946 = vsel %vm1939, 1.0, 0.0
    %v1947 = vsel %vm1940, 1.0, 0.0
    %v1948 = vsel %vm1941, 1.0, 0.0
    %v1949 = vsel %vm1942, 1.0, 0.0
    %v1950 = vsel %vm1943, 1.0, 0.0
    %v1951 = vpack.c.bf16 %v1945, %v1944
    %v1952 = vpack.c.bf16 %v1947, %v1946
    %v1953 = vpack.c.bf16 %v1949, %v1948
    %v1954 = vpack.c.bf16 %v1950, %v1950
    %vm1955 = vcmask 818176
    %v1957 = vsel %vm1955, %v1951, 0
    %v1960 = vsel %vm1955, %v1952, 0
    %v1963 = vsel %vm1955, %v1953, 0
    %v1966 = vsel %vm1955, %v1954, 0
    %vm1968 = vcmask 1041408
    %v1970 = vsel %vm1968, %v1827, 0
    %1972 = vmatprep.subr.bf16.mxu0 0
    %1973 = vmatpush1.bf16.msra.mxu0 %v1821
    %1974 = vmatprep.subr.bf16.mxu0 0
    %1975 = vmatpush1.bf16.msra.mxu0 %v1822
    %1976 = vmatprep.subr.bf16.mxu0 0
    %1977 = vmatpush1.bf16.msra.mxu0 %v1823
    %1978 = vmatprep.subr.bf16.mxu0 0
    %1979 = vmatpush1.bf16.msra.mxu0 %v1824
    %1980 = vmatprep.subr.bf16.mxu0 0
    %1981 = vmatpush1.bf16.msra.mxu0 %v1825
    %1982 = vmatprep.subr.bf16.mxu0 0
    %1983 = vmatpush1.bf16.msra.mxu0 %v1826
    %1984 = vmatprep.subr.bf16.mxu0 0
    %1985 = vmatpush1.bf16.msra.mxu0 %v1970
    %1986 = vmatprep.subr.bf16.mxu0 0
    %1987 = vmatpush1.bf16.msra.mxu0 0
    %1988 = vmatprep.subr.bf16.mxu0 0
    %1989 = vmatpush1.bf16.msra.mxu0 0
    %1990 = vmatprep.subr.bf16.mxu0 0
    %1991 = vmatpush1.bf16.msra.mxu0 0
    %1992 = vmatprep.subr.bf16.mxu0 0
    %1993 = vmatpush1.bf16.msra.mxu0 0
    %1994 = vmatprep.subr.bf16.mxu0 0
    %1995 = vmatpush1.bf16.msra.mxu0 0
    %1996 = vmatprep.subr.bf16.mxu0 0
    %1997 = vmatpush1.bf16.msra.mxu0 0
    %1998 = vmatprep.subr.bf16.mxu0 0
    %1999 = vmatpush1.bf16.msra.mxu0 0
    %2000 = vmatprep.subr.bf16.mxu0 0
    %2001 = vmatpush1.bf16.msra.mxu0 0
    %2002 = vmatprep.subr.bf16.mxu0 0
    %2003 = vmatpush1.bf16.msra.mxu0 0
    %2004 = vmatprep.mubr.bf16.mxu0 0
    %2005 = vmatmul.mubr.bf16.gmra.mrb[0].mxu0 %v1957
    %v2006 = vpop.f32.mrb[0].mxu0
    %v2007 = vadd.f32 0.0, %v2006
    %v2008 = vpop.f32.mrb[0].mxu0
    %v2009 = vpop.f32.mrb[0].mxu0
    %v2010 = vadd.f32 0.0, %v2009
    %v2011 = vpop.f32.mrb[0].mxu0
    %2012 = vmatprep.mubr.bf16.mxu0 0
    %2013 = vmatmul.mubr.bf16.gmra.mrb[0].mxu0 %v1960
    %v2014 = vpop.f32.mrb[0].mxu0
    %v2015 = vadd.f32 0.0, %v2014
    %v2016 = vpop.f32.mrb[0].mxu0
    %v2017 = vpop.f32.mrb[0].mxu0
    %v2018 = vadd.f32 0.0, %v2017
    %v2019 = vpop.f32.mrb[0].mxu0
    %2020 = vmatprep.mubr.bf16.mxu0 0
    %2021 = vmatmul.mubr.bf16.gmra.mrb[0].mxu0 %v1963
    %v2022 = vpop.f32.mrb[0].mxu0
    %v2023 = vadd.f32 0.0, %v2022
    %v2024 = vpop.f32.mrb[0].mxu0
    %v2025 = vpop.f32.mrb[0].mxu0
    %v2026 = vadd.f32 0.0, %v2025
    %v2027 = vpop.f32.mrb[0].mxu0
    %2028 = vmatprep.mubr.bf16.mxu0 0
    %2029 = vmatmul.mubr.bf16.gmra.mrb[0].mxu0 %v1966
    %v2030 = vpop.f32.mrb[0].mxu0
    %v2031 = vadd.f32 0.0, %v2030
    %v2032 = vpop.f32.mrb[0].mxu0
    %v2033 = vpop.f32.mrb[0].mxu0
    %v2034 = vpop.f32.mrb[0].mxu0
    %2035 = vdwg.mxu0
    %v2036 = vpack.c.bf16 %v2010, %v2007
    %v2037 = vpack.c.bf16 %v2018, %v2015
    %v2038 = vpack.c.bf16 %v2026, %v2023
    %v2039 = vpack.c.bf16 %v2031, %v2031
    %s2040 = scalar_lea.vmem %s1, 192
    %v2041 = vld [vmem:[%s2040] sm:$0xf]
    %v2042 = vld [vmem:[%s2040 + $0x4] sm:$0xf]
    %v2043 = vld [vmem:[%s2040 + $0x8] sm:$0xf]
    %v2044 = vld [vmem:[%s2040 + $0xc] sm:$0xf]
    %v2045 = vld [vmem:[%s2040 + $0x10] sm:$0xf]
    %v2046 = vld [vmem:[%s2040 + $0x14] sm:$0xf]
    %v2047 = vld [vmem:[%s2040 + $0x18] sm:$0xf]
    %v2048 = vld [vmem:[%s2040 + $0x1c] sm:$0xf]
    %v2049 = vld [vmem:[%s2040 + $0x20] sm:$0xf]
    %v2050 = vld [vmem:[%s2040 + $0x24] sm:$0xf]
    %v2051 = vld [vmem:[%s2040 + $0x28] sm:$0xf]
    %v2052 = vld [vmem:[%s2040 + $0x2c] sm:$0xf]
    %v2053 = vld [vmem:[%s2040 + $0x30] sm:$0xf]
    %v2054 = vld [vmem:[%s2040 + $0x34] sm:$0xf]
    %v2055 = vld [vmem:[%s2040 + $0x38] sm:$0xf]
    %v2056 = vld [vmem:[%s2040 + $0x3c] sm:$0xf]
    %vm2057 = vmand %vm1850, %vm669
    %vm2058 = vmand %vm1851, %vm671
    %vm2059 = vmand %vm1852, %vm673
    %vm2060 = vmand %vm1853, %vm675
    %vm2061 = vmand %vm1854, %vm677
    %vm2062 = vmand %vm1855, %vm679
    %vm2063 = vmand %vm1856, %vm681
    %vm2064 = vcmp.eq.s32.totalorder %v1916, 0
    %vm2065 = vcmp.eq.s32.totalorder %v1917, 0
    %vm2066 = vcmp.eq.s32.totalorder %v1918, 0
    %vm2067 = vcmp.eq.s32.totalorder %v1919, 0
    %vm2068 = vcmp.eq.s32.totalorder %v1920, 0
    %vm2069 = vcmp.eq.s32.totalorder %v1921, 0
    %vm2070 = vcmp.eq.s32.totalorder %v1922, 0
    %vm2071 = vmand %vm1902, %vm2064
    %vm2072 = vmand %vm1903, %vm2065
    %vm2073 = vmand %vm1904, %vm2066
    %vm2074 = vmand %vm1905, %vm2067
    %vm2075 = vmand %vm1906, %vm2068
    %vm2076 = vmand %vm1907, %vm2069
    %vm2077 = vmand %vm1908, %vm2070
    %vm2078 = vmor %vm2057, %vm2071
    %vm2079 = vmor %vm2058, %vm2072
    %vm2080 = vmor %vm2059, %vm2073
    %vm2081 = vmor %vm2060, %vm2074
    %vm2082 = vmor %vm2061, %vm2075
    %vm2083 = vmor %vm2062, %vm2076
    %vm2084 = vmor %vm2063, %vm2077
    %v2085 = vsel %vm2078, 1.0, 0.0
    %v2086 = vsel %vm2079, 1.0, 0.0
    %v2087 = vsel %vm2080, 1.0, 0.0
    %v2088 = vsel %vm2081, 1.0, 0.0
    %v2089 = vsel %vm2082, 1.0, 0.0
    %v2090 = vsel %vm2083, 1.0, 0.0
    %v2091 = vsel %vm2084, 1.0, 0.0
    %v2092 = vpack.c.bf16 %v2086, %v2085
    %v2093 = vpack.c.bf16 %v2088, %v2087
    %v2094 = vpack.c.bf16 %v2090, %v2089
    %v2095 = vpack.c.bf16 %v2091, %v2091
    %v2097 = vsel %vm1955, %v2092, 0
    %v2100 = vsel %vm1955, %v2093, 0
    %v2103 = vsel %vm1955, %v2094, 0
    %v2106 = vsel %vm1955, %v2095, 0
    %2108 = vmatprep.subr.bf16.mxu0 0
    %2109 = vmatpush1.bf16.msra.mxu0 %v1821
    %2110 = vmatprep.subr.bf16.mxu0 0
    %2111 = vmatpush1.bf16.msra.mxu0 %v1822
    %2112 = vmatprep.subr.bf16.mxu0 0
    %2113 = vmatpush1.bf16.msra.mxu0 %v1823
    %2114 = vmatprep.subr.bf16.mxu0 0
    %2115 = vmatpush1.bf16.msra.mxu0 %v1824
    %2116 = vmatprep.subr.bf16.mxu0 0
    %2117 = vmatpush1.bf16.msra.mxu0 %v1825
    %2118 = vmatprep.subr.bf16.mxu0 0
    %2119 = vmatpush1.bf16.msra.mxu0 %v1826
    %2120 = vmatprep.subr.bf16.mxu0 0
    %2121 = vmatpush1.bf16.msra.mxu0 %v1970
    %2122 = vmatprep.subr.bf16.mxu0 0
    %2123 = vmatpush1.bf16.msra.mxu0 0
    %2124 = vmatprep.subr.bf16.mxu0 0
    %2125 = vmatpush1.bf16.msra.mxu0 0
    %2126 = vmatprep.subr.bf16.mxu0 0
    %2127 = vmatpush1.bf16.msra.mxu0 0
    %2128 = vmatprep.subr.bf16.mxu0 0
    %2129 = vmatpush1.bf16.msra.mxu0 0
    %2130 = vmatprep.subr.bf16.mxu0 0
    %2131 = vmatpush1.bf16.msra.mxu0 0
    %2132 = vmatprep.subr.bf16.mxu0 0
    %2133 = vmatpush1.bf16.msra.mxu0 0
    %2134 = vmatprep.subr.bf16.mxu0 0
    %2135 = vmatpush1.bf16.msra.mxu0 0
    %2136 = vmatprep.subr.bf16.mxu0 0
    %2137 = vmatpush1.bf16.msra.mxu0 0
    %2138 = vmatprep.subr.bf16.mxu0 0
    %2139 = vmatpush1.bf16.msra.mxu0 0
    %2140 = vmatprep.mubr.bf16.mxu0 0
    %2141 = vmatmul.mubr.bf16.gmra.mrb[0].mxu0 %v2097
    %v2142 = vpop.f32.mrb[0].mxu0
    %v2143 = vadd.f32 0.0, %v2142
    %v2144 = vpop.f32.mrb[0].mxu0
    %v2145 = vpop.f32.mrb[0].mxu0
    %v2146 = vadd.f32 0.0, %v2145
    %v2147 = vpop.f32.mrb[0].mxu0
    %2148 = vmatprep.mubr.bf16.mxu0 0
    %2149 = vmatmul.mubr.bf16.gmra.mrb[0].mxu0 %v2100
    %v2150 = vpop.f32.mrb[0].mxu0
    %v2151 = vadd.f32 0.0, %v2150
    %v2152 = vpop.f32.mrb[0].mxu0
    %v2153 = vpop.f32.mrb[0].mxu0
    %v2154 = vadd.f32 0.0, %v2153
    %v2155 = vpop.f32.mrb[0].mxu0
    %2156 = vmatprep.mubr.bf16.mxu0 0
    %2157 = vmatmul.mubr.bf16.gmra.mrb[0].mxu0 %v2103
    %v2158 = vpop.f32.mrb[0].mxu0
    %v2159 = vadd.f32 0.0, %v2158
    %v2160 = vpop.f32.mrb[0].mxu0
    %v2161 = vpop.f32.mrb[0].mxu0
    %v2162 = vadd.f32 0.0, %v2161
    %v2163 = vpop.f32.mrb[0].mxu0
    %2164 = vmatprep.mubr.bf16.mxu0 0
    %2165 = vmatmul.mubr.bf16.gmra.mrb[0].mxu0 %v2106
    %v2166 = vpop.f32.mrb[0].mxu0
    %v2167 = vadd.f32 0.0, %v2166
    %v2168 = vpop.f32.mrb[0].mxu0
    %v2169 = vpop.f32.mrb[0].mxu0
    %v2170 = vpop.f32.mrb[0].mxu0
    %2171 = vdwg.mxu0
    %v2172 = vpack.c.bf16 %v2146, %v2143
    %v2173 = vpack.c.bf16 %v2154, %v2151
    %v2174 = vpack.c.bf16 %v2162, %v2159
    %v2175 = vpack.c.bf16 %v2167, %v2167
    %s2176 = scalar_lea.vmem %s1, 256
    %v2177 = vld [vmem:[%s2176] sm:$0xf]
    %v2178 = vld [vmem:[%s2176 + $0x4] sm:$0xf]
    %v2179 = vld [vmem:[%s2176 + $0x8] sm:$0xf]
    %v2180 = vld [vmem:[%s2176 + $0xc] sm:$0xf]
    %v2181 = vld [vmem:[%s2176 + $0x10] sm:$0xf]
    %v2182 = vld [vmem:[%s2176 + $0x14] sm:$0xf]
    %v2183 = vld [vmem:[%s2176 + $0x18] sm:$0xf]
    %v2184 = vld [vmem:[%s2176 + $0x1c] sm:$0xf]
    %v2185 = vld [vmem:[%s2176 + $0x20] sm:$0xf]
    %v2186 = vld [vmem:[%s2176 + $0x24] sm:$0xf]
    %v2187 = vld [vmem:[%s2176 + $0x28] sm:$0xf]
    %v2188 = vld [vmem:[%s2176 + $0x2c] sm:$0xf]
    %v2189 = vld [vmem:[%s2176 + $0x30] sm:$0xf]
    %v2190 = vld [vmem:[%s2176 + $0x34] sm:$0xf]
    %v2191 = vld [vmem:[%s2176 + $0x38] sm:$0xf]
    %v2192 = vld [vmem:[%s2176 + $0x3c] sm:$0xf]
    %v2209 = vunpack.c.l.b16 %v2177
    %v2210 = vunpack.c.l.b16 %v2178
    %v2211 = vunpack.c.l.b16 %v2179
    %v2212 = vunpack.c.l.b16 %v2180
    %v2213 = vunpack.c.l.b16 %v2181
    %v2214 = vunpack.c.l.b16 %v2182
    %v2215 = vunpack.c.l.b16 %v2183
    %v2216 = vunpack.c.l.b16 %v2184
    %v2217 = vunpack.c.l.b16 %v2185
    %v2218 = vunpack.c.l.b16 %v2186
    %v2219 = vunpack.c.l.b16 %v2187
    %v2220 = vunpack.c.l.b16 %v2188
    %v2221 = vunpack.c.l.b16 %v2189
    %v2222 = vunpack.c.l.b16 %v2190
    %v2223 = vunpack.c.l.b16 %v2191
    %v2224 = vunpack.c.l.b16 %v2192
    %v2225 = vpack.c.b16 %v2210, %v2209
    %v2226 = vpack.c.b16 %v2212, %v2211
    %v2227 = vpack.c.b16 %v2214, %v2213
    %v2228 = vpack.c.b16 %v2216, %v2215
    %v2229 = vpack.c.b16 %v2218, %v2217
    %v2230 = vpack.c.b16 %v2220, %v2219
    %v2231 = vpack.c.b16 %v2222, %v2221
    %v2232 = vpack.c.b16 %v2224, %v2223
    %2241 = vmatprep.subr.bf16.mxu0 0
    %2242 = vmatpush1.bf16.msra.mxu0 %v2225
    %2243 = vmatprep.subr.bf16.mxu0 0
    %2244 = vmatpush1.bf16.msra.mxu0 %v2226
    %2245 = vmatprep.subr.bf16.mxu0 0
    %2246 = vmatpush1.bf16.msra.mxu0 %v2227
    %2247 = vmatprep.subr.bf16.mxu0 0
    %2248 = vmatpush1.bf16.msra.mxu0 %v2228
    %2249 = vmatprep.subr.bf16.mxu0 0
    %2250 = vmatpush1.bf16.msra.mxu0 %v2229
    %2251 = vmatprep.subr.bf16.mxu0 0
    %2252 = vmatpush1.bf16.msra.mxu0 %v2230
    %2253 = vmatprep.subr.bf16.mxu0 0
    %2254 = vmatpush1.bf16.msra.mxu0 %v2231
    %2255 = vmatprep.subr.bf16.mxu0 0
    %2256 = vmatpush1.bf16.msra.mxu0 %v2232
    %2257 = vmatprep.subr.bf16.mxu0 0
    %2258 = vmatpush1.bf16.msra.mxu0 0
    %2259 = vmatprep.subr.bf16.mxu0 0
    %2260 = vmatpush1.bf16.msra.mxu0 0
    %2261 = vmatprep.subr.bf16.mxu0 0
    %2262 = vmatpush1.bf16.msra.mxu0 0
    %2263 = vmatprep.subr.bf16.mxu0 0
    %2264 = vmatpush1.bf16.msra.mxu0 0
    %2265 = vmatprep.subr.bf16.mxu0 0
    %2266 = vmatpush1.bf16.msra.mxu0 0
    %2267 = vmatprep.subr.bf16.mxu0 0
    %2268 = vmatpush1.bf16.msra.mxu0 0
    %2269 = vmatprep.subr.bf16.mxu0 0
    %2270 = vmatpush1.bf16.msra.mxu0 0
    %2271 = vmatprep.subr.bf16.mxu0 0
    %2272 = vmatpush1.bf16.msra.mxu0 0
    %2273 = vmatprep.mubr.bf16.mxu0 0
    %2274 = vmatmul.mubr.bf16.gmra.mrb[0].mxu0 %v2172
    %v2275 = vpop.f32.mrb[0].mxu0
    %v2276 = vadd.f32 0.0, %v2275
    %v2277 = vpop.f32.mrb[0].mxu0
    %v2278 = vpop.f32.mrb[0].mxu0
    %v2279 = vadd.f32 0.0, %v2278
    %v2280 = vpop.f32.mrb[0].mxu0
    %2281 = vmatprep.mubr.bf16.mxu0 0
    %2282 = vmatmul.mubr.bf16.gmra.mrb[0].mxu0 %v2173
    %v2283 = vpop.f32.mrb[0].mxu0
    %v2284 = vadd.f32 0.0, %v2283
    %v2285 = vpop.f32.mrb[0].mxu0
    %v2286 = vpop.f32.mrb[0].mxu0
    %v2287 = vadd.f32 0.0, %v2286
    %v2288 = vpop.f32.mrb[0].mxu0
    %2289 = vmatprep.mubr.bf16.mxu0 0
    %2290 = vmatmul.mubr.bf16.gmra.mrb[0].mxu0 %v2174
    %v2291 = vpop.f32.mrb[0].mxu0
    %v2292 = vadd.f32 0.0, %v2291
    %v2293 = vpop.f32.mrb[0].mxu0
    %v2294 = vpop.f32.mrb[0].mxu0
    %v2295 = vadd.f32 0.0, %v2294
    %v2296 = vpop.f32.mrb[0].mxu0
    %2297 = vmatprep.mubr.bf16.mxu0 0
    %2298 = vmatmul.mubr.bf16.gmra.mrb[0].mxu0 %v2175
    %v2299 = vpop.f32.mrb[0].mxu0
    %v2300 = vadd.f32 0.0, %v2299
    %v2301 = vpop.f32.mrb[0].mxu0
    %v2302 = vpop.f32.mrb[0].mxu0
    %v2303 = vpop.f32.mrb[0].mxu0
    %2304 = vdwg.mxu0
    %v2321 = vunpack.c.l.b16 %v2041
    %v2322 = vunpack.c.l.b16 %v2042
    %v2323 = vunpack.c.l.b16 %v2043
    %v2324 = vunpack.c.l.b16 %v2044
    %v2325 = vunpack.c.l.b16 %v2045
    %v2326 = vunpack.c.l.b16 %v2046
    %v2327 = vunpack.c.l.b16 %v2047
    %v2328 = vunpack.c.l.b16 %v2048
    %v2329 = vunpack.c.l.b16 %v2049
    %v2330 = vunpack.c.l.b16 %v2050
    %v2331 = vunpack.c.l.b16 %v2051
    %v2332 = vunpack.c.l.b16 %v2052
    %v2333 = vunpack.c.l.b16 %v2053
    %v2334 = vunpack.c.l.b16 %v2054
    %v2335 = vunpack.c.l.b16 %v2055
    %v2336 = vunpack.c.l.b16 %v2056
    %v2337 = vpack.c.b16 %v2322, %v2321
    %v2338 = vpack.c.b16 %v2324, %v2323
    %v2339 = vpack.c.b16 %v2326, %v2325
    %v2340 = vpack.c.b16 %v2328, %v2327
    %v2341 = vpack.c.b16 %v2330, %v2329
    %v2342 = vpack.c.b16 %v2332, %v2331
    %v2343 = vpack.c.b16 %v2334, %v2333
    %v2344 = vpack.c.b16 %v2336, %v2335
    %2353 = vmatprep.subr.bf16.mxu0 0
    %2354 = vmatpush1.bf16.msra.mxu0 %v2337
    %2355 = vmatprep.subr.bf16.mxu0 0
    %2356 = vmatpush1.bf16.msra.mxu0 %v2338
    %2357 = vmatprep.subr.bf16.mxu0 0
    %2358 = vmatpush1.bf16.msra.mxu0 %v2339
    %2359 = vmatprep.subr.bf16.mxu0 0
    %2360 = vmatpush1.bf16.msra.mxu0 %v2340
    %2361 = vmatprep.subr.bf16.mxu0 0
    %2362 = vmatpush1.bf16.msra.mxu0 %v2341
    %2363 = vmatprep.subr.bf16.mxu0 0
    %2364 = vmatpush1.bf16.msra.mxu0 %v2342
    %2365 = vmatprep.subr.bf16.mxu0 0
    %2366 = vmatpush1.bf16.msra.mxu0 %v2343
    %2367 = vmatprep.subr.bf16.mxu0 0
    %2368 = vmatpush1.bf16.msra.mxu0 %v2344
    %2369 = vmatprep.subr.bf16.mxu0 0
    %2370 = vmatpush1.bf16.msra.mxu0 0
    %2371 = vmatprep.subr.bf16.mxu0 0
    %2372 = vmatpush1.bf16.msra.mxu0 0
    %2373 = vmatprep.subr.bf16.mxu0 0
    %2374 = vmatpush1.bf16.msra.mxu0 0
    %2375 = vmatprep.subr.bf16.mxu0 0
    %2376 = vmatpush1.bf16.msra.mxu0 0
    %2377 = vmatprep.subr.bf16.mxu0 0
    %2378 = vmatpush1.bf16.msra.mxu0 0
    %2379 = vmatprep.subr.bf16.mxu0 0
    %2380 = vmatpush1.bf16.msra.mxu0 0
    %2381 = vmatprep.subr.bf16.mxu0 0
    %2382 = vmatpush1.bf16.msra.mxu0 0
    %2383 = vmatprep.subr.bf16.mxu0 0
    %2384 = vmatpush1.bf16.msra.mxu0 0
    %2385 = vmatprep.mubr.bf16.mxu0 0
    %2386 = vmatmul.mubr.bf16.gmra.mrb[0].mxu0 %v2036
    %v2387 = vpop.f32.mrb[0].mxu0
    %v2388 = vadd.f32 %v2276, %v2387
    %v2389 = vpop.f32.mrb[0].mxu0
    %v2390 = vpop.f32.mrb[0].mxu0
    %v2391 = vadd.f32 %v2279, %v2390
    %v2392 = vpop.f32.mrb[0].mxu0
    %2393 = vmatprep.mubr.bf16.mxu0 0
    %2394 = vmatmul.mubr.bf16.gmra.mrb[0].mxu0 %v2037
    %v2395 = vpop.f32.mrb[0].mxu0
    %v2396 = vadd.f32 %v2284, %v2395
    %v2397 = vpop.f32.mrb[0].mxu0
    %v2398 = vpop.f32.mrb[0].mxu0
    %v2399 = vadd.f32 %v2287, %v2398
    %v2400 = vpop.f32.mrb[0].mxu0
    %2401 = vmatprep.mubr.bf16.mxu0 0
    %2402 = vmatmul.mubr.bf16.gmra.mrb[0].mxu0 %v2038
    %v2403 = vpop.f32.mrb[0].mxu0
    %v2404 = vadd.f32 %v2292, %v2403
    %v2405 = vpop.f32.mrb[0].mxu0
    %v2406 = vpop.f32.mrb[0].mxu0
    %v2407 = vadd.f32 %v2295, %v2406
    %v2408 = vpop.f32.mrb[0].mxu0
    %2409 = vmatprep.mubr.bf16.mxu0 0
    %2410 = vmatmul.mubr.bf16.gmra.mrb[0].mxu0 %v2039
    %v2411 = vpop.f32.mrb[0].mxu0
    %v2412 = vadd.f32 %v2300, %v2411
    %v2413 = vpop.f32.mrb[0].mxu0
    %v2414 = vpop.f32.mrb[0].mxu0
    %v2415 = vpop.f32.mrb[0].mxu0
    %2416 = vdwg.mxu0
    %vm2417 = vmand %vm1850, %vm1244
    %vm2418 = vmand %vm1851, %vm1246
    %vm2419 = vmand %vm1852, %vm1248
    %vm2420 = vmand %vm1853, %vm1250
    %vm2421 = vmand %vm1854, %vm1252
    %vm2422 = vmand %vm1855, %vm1254
    %vm2423 = vmand %vm1856, %vm1256
    %vm2424 = vcmp.eq.s32.totalorder %v1916, 1
    %vm2425 = vcmp.eq.s32.totalorder %v1917, 1
    %vm2426 = vcmp.eq.s32.totalorder %v1918, 1
    %vm2427 = vcmp.eq.s32.totalorder %v1919, 1
    %vm2428 = vcmp.eq.s32.totalorder %v1920, 1
    %vm2429 = vcmp.eq.s32.totalorder %v1921, 1
    %vm2430 = vcmp.eq.s32.totalorder %v1922, 1
    %vm2431 = vmand %vm1902, %vm2424
    %vm2432 = vmand %vm1903, %vm2425
    %vm2433 = vmand %vm1904, %vm2426
    %vm2434 = vmand %vm1905, %vm2427
    %vm2435 = vmand %vm1906, %vm2428
    %vm2436 = vmand %vm1907, %vm2429
    %vm2437 = vmand %vm1908, %vm2430
    %vm2438 = vmor %vm2417, %vm2431
    %vm2439 = vmor %vm2418, %vm2432
    %vm2440 = vmor %vm2419, %vm2433
    %vm2441 = vmor %vm2420, %vm2434
    %vm2442 = vmor %vm2421, %vm2435
    %vm2443 = vmor %vm2422, %vm2436
    %vm2444 = vmor %vm2423, %vm2437
    %v2445 = vsel %vm2438, 1.0, 0.0
    %v2446 = vsel %vm2439, 1.0, 0.0
    %v2447 = vsel %vm2440, 1.0, 0.0
    %v2448 = vsel %vm2441, 1.0, 0.0
    %v2449 = vsel %vm2442, 1.0, 0.0
    %v2450 = vsel %vm2443, 1.0, 0.0
    %v2451 = vsel %vm2444, 1.0, 0.0
    %v2452 = vpack.c.bf16 %v2446, %v2445
    %v2453 = vpack.c.bf16 %v2448, %v2447
    %v2454 = vpack.c.bf16 %v2450, %v2449
    %v2455 = vpack.c.bf16 %v2451, %v2451
    %v2457 = vsel %vm1955, %v2452, 0
    %v2460 = vsel %vm1955, %v2453, 0
    %v2463 = vsel %vm1955, %v2454, 0
    %v2466 = vsel %vm1955, %v2455, 0
    %2468 = vmatprep.subr.bf16.mxu0 0
    %2469 = vmatpush1.bf16.msra.mxu0 %v1821
    %2470 = vmatprep.subr.bf16.mxu0 0
    %2471 = vmatpush1.bf16.msra.mxu0 %v1822
    %2472 = vmatprep.subr.bf16.mxu0 0
    %2473 = vmatpush1.bf16.msra.mxu0 %v1823
    %2474 = vmatprep.subr.bf16.mxu0 0
    %2475 = vmatpush1.bf16.msra.mxu0 %v1824
    %2476 = vmatprep.subr.bf16.mxu0 0
    %2477 = vmatpush1.bf16.msra.mxu0 %v1825
    %2478 = vmatprep.subr.bf16.mxu0 0
    %2479 = vmatpush1.bf16.msra.mxu0 %v1826
    %2480 = vmatprep.subr.bf16.mxu0 0
    %2481 = vmatpush1.bf16.msra.mxu0 %v1970
    %2482 = vmatprep.subr.bf16.mxu0 0
    %2483 = vmatpush1.bf16.msra.mxu0 0
    %2484 = vmatprep.subr.bf16.mxu0 0
    %2485 = vmatpush1.bf16.msra.mxu0 0
    %2486 = vmatprep.subr.bf16.mxu0 0
    %2487 = vmatpush1.bf16.msra.mxu0 0
    %2488 = vmatprep.subr.bf16.mxu0 0
    %2489 = vmatpush1.bf16.msra.mxu0 0
    %2490 = vmatprep.subr.bf16.mxu0 0
    %2491 = vmatpush1.bf16.msra.mxu0 0
    %2492 = vmatprep.subr.bf16.mxu0 0
    %2493 = vmatpush1.bf16.msra.mxu0 0
    %2494 = vmatprep.subr.bf16.mxu0 0
    %2495 = vmatpush1.bf16.msra.mxu0 0
    %2496 = vmatprep.subr.bf16.mxu0 0
    %2497 = vmatpush1.bf16.msra.mxu0 0
    %2498 = vmatprep.subr.bf16.mxu0 0
    %2499 = vmatpush1.bf16.msra.mxu0 0
    %2500 = vmatprep.mubr.bf16.mxu0 0
    %2501 = vmatmul.mubr.bf16.gmra.mrb[0].mxu0 %v2457
    %v2502 = vpop.f32.mrb[0].mxu0
    %v2503 = vadd.f32 0.0, %v2502
    %v2504 = vpop.f32.mrb[0].mxu0
    %v2505 = vpop.f32.mrb[0].mxu0
    %v2506 = vadd.f32 0.0, %v2505
    %v2507 = vpop.f32.mrb[0].mxu0
    %2508 = vmatprep.mubr.bf16.mxu0 0
    %2509 = vmatmul.mubr.bf16.gmra.mrb[0].mxu0 %v2460
    %v2510 = vpop.f32.mrb[0].mxu0
    %v2511 = vadd.f32 0.0, %v2510
    %v2512 = vpop.f32.mrb[0].mxu0
    %v2513 = vpop.f32.mrb[0].mxu0
    %v2514 = vadd.f32 0.0, %v2513
    %v2515 = vpop.f32.mrb[0].mxu0
    %2516 = vmatprep.mubr.bf16.mxu0 0
    %2517 = vmatmul.mubr.bf16.gmra.mrb[0].mxu0 %v2463
    %v2518 = vpop.f32.mrb[0].mxu0
    %v2519 = vadd.f32 0.0, %v2518
    %v2520 = vpop.f32.mrb[0].mxu0
    %v2521 = vpop.f32.mrb[0].mxu0
    %v2522 = vadd.f32 0.0, %v2521
    %v2523 = vpop.f32.mrb[0].mxu0
    %2524 = vmatprep.mubr.bf16.mxu0 0
    %2525 = vmatmul.mubr.bf16.gmra.mrb[0].mxu0 %v2466
    %v2526 = vpop.f32.mrb[0].mxu0
    %v2527 = vadd.f32 0.0, %v2526
    %v2528 = vpop.f32.mrb[0].mxu0
    %v2529 = vpop.f32.mrb[0].mxu0
    %v2530 = vpop.f32.mrb[0].mxu0
    %2531 = vdwg.mxu0
    %v2532 = vpack.c.bf16 %v2506, %v2503
    %v2533 = vpack.c.bf16 %v2514, %v2511
    %v2534 = vpack.c.bf16 %v2522, %v2519
    %v2535 = vpack.c.bf16 %v2527, %v2527
    %s2536 = scalar_lea.vmem %s1, 320
    %v2537 = vld [vmem:[%s2536] sm:$0xf]
    %v2538 = vld [vmem:[%s2536 + $0x4] sm:$0xf]
    %v2539 = vld [vmem:[%s2536 + $0x8] sm:$0xf]
    %v2540 = vld [vmem:[%s2536 + $0xc] sm:$0xf]
    %v2541 = vld [vmem:[%s2536 + $0x10] sm:$0xf]
    %v2542 = vld [vmem:[%s2536 + $0x14] sm:$0xf]
    %v2543 = vld [vmem:[%s2536 + $0x18] sm:$0xf]
    %v2544 = vld [vmem:[%s2536 + $0x1c] sm:$0xf]
    %v2545 = vld [vmem:[%s2536 + $0x20] sm:$0xf]
    %v2546 = vld [vmem:[%s2536 + $0x24] sm:$0xf]
    %v2547 = vld [vmem:[%s2536 + $0x28] sm:$0xf]
    %v2548 = vld [vmem:[%s2536 + $0x2c] sm:$0xf]
    %v2549 = vld [vmem:[%s2536 + $0x30] sm:$0xf]
    %v2550 = vld [vmem:[%s2536 + $0x34] sm:$0xf]
    %v2551 = vld [vmem:[%s2536 + $0x38] sm:$0xf]
    %v2552 = vld [vmem:[%s2536 + $0x3c] sm:$0xf]
    %v2569 = vunpack.c.l.b16 %v2537
    %v2570 = vunpack.c.l.b16 %v2538
    %v2571 = vunpack.c.l.b16 %v2539
    %v2572 = vunpack.c.l.b16 %v2540
    %v2573 = vunpack.c.l.b16 %v2541
    %v2574 = vunpack.c.l.b16 %v2542
    %v2575 = vunpack.c.l.b16 %v2543
    %v2576 = vunpack.c.l.b16 %v2544
    %v2577 = vunpack.c.l.b16 %v2545
    %v2578 = vunpack.c.l.b16 %v2546
    %v2579 = vunpack.c.l.b16 %v2547
    %v2580 = vunpack.c.l.b16 %v2548
    %v2581 = vunpack.c.l.b16 %v2549
    %v2582 = vunpack.c.l.b16 %v2550
    %v2583 = vunpack.c.l.b16 %v2551
    %v2584 = vunpack.c.l.b16 %v2552
    %v2585 = vpack.c.b16 %v2570, %v2569
    %v2586 = vpack.c.b16 %v2572, %v2571
    %v2587 = vpack.c.b16 %v2574, %v2573
    %v2588 = vpack.c.b16 %v2576, %v2575
    %v2589 = vpack.c.b16 %v2578, %v2577
    %v2590 = vpack.c.b16 %v2580, %v2579
    %v2591 = vpack.c.b16 %v2582, %v2581
    %v2592 = vpack.c.b16 %v2584, %v2583
    %2601 = vmatprep.subr.bf16.mxu0 0
    %2602 = vmatpush1.bf16.msra.mxu0 %v2585
    %2603 = vmatprep.subr.bf16.mxu0 0
    %2604 = vmatpush1.bf16.msra.mxu0 %v2586
    %2605 = vmatprep.subr.bf16.mxu0 0
    %2606 = vmatpush1.bf16.msra.mxu0 %v2587
    %2607 = vmatprep.subr.bf16.mxu0 0
    %2608 = vmatpush1.bf16.msra.mxu0 %v2588
    %2609 = vmatprep.subr.bf16.mxu0 0
    %2610 = vmatpush1.bf16.msra.mxu0 %v2589
    %2611 = vmatprep.subr.bf16.mxu0 0
    %2612 = vmatpush1.bf16.msra.mxu0 %v2590
    %2613 = vmatprep.subr.bf16.mxu0 0
    %2614 = vmatpush1.bf16.msra.mxu0 %v2591
    %2615 = vmatprep.subr.bf16.mxu0 0
    %2616 = vmatpush1.bf16.msra.mxu0 %v2592
    %2617 = vmatprep.subr.bf16.mxu0 0
    %2618 = vmatpush1.bf16.msra.mxu0 0
    %2619 = vmatprep.subr.bf16.mxu0 0
    %2620 = vmatpush1.bf16.msra.mxu0 0
    %2621 = vmatprep.subr.bf16.mxu0 0
    %2622 = vmatpush1.bf16.msra.mxu0 0
    %2623 = vmatprep.subr.bf16.mxu0 0
    %2624 = vmatpush1.bf16.msra.mxu0 0
    %2625 = vmatprep.subr.bf16.mxu0 0
    %2626 = vmatpush1.bf16.msra.mxu0 0
    %2627 = vmatprep.subr.bf16.mxu0 0
    %2628 = vmatpush1.bf16.msra.mxu0 0
    %2629 = vmatprep.subr.bf16.mxu0 0
    %2630 = vmatpush1.bf16.msra.mxu0 0
    %2631 = vmatprep.subr.bf16.mxu0 0
    %2632 = vmatpush1.bf16.msra.mxu0 0
    %2633 = vmatprep.mubr.bf16.mxu0 0
    %2634 = vmatmul.mubr.bf16.gmra.mrb[0].mxu0 %v2532
    %v2635 = vpop.f32.mrb[0].mxu0
    %v2636 = vadd.f32 0.0, %v2635
    %v2637 = vpop.f32.mrb[0].mxu0
    %v2638 = vpop.f32.mrb[0].mxu0
    %v2639 = vadd.f32 0.0, %v2638
    %v2640 = vpop.f32.mrb[0].mxu0
    %2641 = vmatprep.mubr.bf16.mxu0 0
    %2642 = vmatmul.mubr.bf16.gmra.mrb[0].mxu0 %v2533
    %v2643 = vpop.f32.mrb[0].mxu0
    %v2644 = vadd.f32 0.0, %v2643
    %v2645 = vpop.f32.mrb[0].mxu0
    %v2646 = vpop.f32.mrb[0].mxu0
    %v2647 = vadd.f32 0.0, %v2646
    %v2648 = vpop.f32.mrb[0].mxu0
    %2649 = vmatprep.mubr.bf16.mxu0 0
    %2650 = vmatmul.mubr.bf16.gmra.mrb[0].mxu0 %v2534
    %v2651 = vpop.f32.mrb[0].mxu0
    %v2652 = vadd.f32 0.0, %v2651
    %v2653 = vpop.f32.mrb[0].mxu0
    %v2654 = vpop.f32.mrb[0].mxu0
    %v2655 = vadd.f32 0.0, %v2654
    %v2656 = vpop.f32.mrb[0].mxu0
    %2657 = vmatprep.mubr.bf16.mxu0 0
    %2658 = vmatmul.mubr.bf16.gmra.mrb[0].mxu0 %v2535
    %v2659 = vpop.f32.mrb[0].mxu0
    %v2660 = vadd.f32 0.0, %v2659
    %v2661 = vpop.f32.mrb[0].mxu0
    %v2662 = vpop.f32.mrb[0].mxu0
    %v2663 = vpop.f32.mrb[0].mxu0
    %2664 = vdwg.mxu0
    %v2665 = vadd.f32 %v2388, %v2636
    %v2666 = vadd.f32 %v2391, %v2639
    %v2667 = vadd.f32 %v2396, %v2644
    %v2668 = vadd.f32 %v2399, %v2647
    %v2669 = vadd.f32 %v2404, %v2652
    %v2670 = vadd.f32 %v2407, %v2655
    %v2671 = vadd.f32 %v2412, %v2660
    %v2672 = vadd.f32 %v2665, %v2666
    %v2673 = vadd.f32 %v2672, %v2667
    %v2674 = vadd.f32 %v2673, %v2668
    %v2675 = vadd.f32 %v2674, %v2669
    %v2676 = vadd.f32 %v2675, %v2670
    %v2677 = vsel %vm1968, %v2671, 0.0
    %v2678 = vadd.f32 %v2676, %v2677
    %v2679 = vrot.slane %v2678, 4
    %v2680 = vadd.f32 %v2678, %v2679
    %v2681 = vrot.slane %v2680, 2
    %v2682 = vadd.f32 %v2680, %v2681
    %v2683 = vrot.slane %v2682, 1
    %v2684 = vadd.f32 %v2682, %v2683
    %v2685 = vrcp.pop 50.0
    %v2686 = vmul.f32 %v2684, %v2685
    %v2687 = vsub.f32 %v2665, %v2686
    %v2688 = vsub.f32 %v2666, %v2686
    %v2689 = vsub.f32 %v2667, %v2686
    %v2690 = vsub.f32 %v2668, %v2686
    %v2691 = vsub.f32 %v2669, %v2686
    %v2692 = vsub.f32 %v2670, %v2686
    %v2693 = vsub.f32 %v2671, %v2686
    %v2694 = vmul.f32 %v2687, %v2687
    %v2695 = vmul.f32 %v2688, %v2688
    %v2696 = vmul.f32 %v2689, %v2689
    %v2697 = vmul.f32 %v2690, %v2690
    %v2698 = vmul.f32 %v2691, %v2691
    %v2699 = vmul.f32 %v2692, %v2692
    %v2700 = vmul.f32 %v2693, %v2693
    %v2701 = vadd.f32 %v2694, %v2695
    %v2702 = vadd.f32 %v2701, %v2696
    %v2703 = vadd.f32 %v2702, %v2697
    %v2704 = vadd.f32 %v2703, %v2698
    %v2705 = vadd.f32 %v2704, %v2699
    %v2706 = vsel %vm1968, %v2700, 0.0
    %v2707 = vadd.f32 %v2705, %v2706
    %v2708 = vrot.slane %v2707, 4
    %v2709 = vadd.f32 %v2707, %v2708
    %v2710 = vrot.slane %v2709, 2
    %v2711 = vadd.f32 %v2709, %v2710
    %v2712 = vrot.slane %v2711, 1
    %v2713 = vadd.f32 %v2711, %v2712
    %v2714 = vmul.f32 %v2713, %v2685
    %s2715 = scalar_lea.vmem %s3, 1
    %v2716 = vld [vmem:[%s2715] sm:$0x1]
    %v2717 = vadd.f32 %v2714, 1e-05
    %v2718 = vrsqrt.pop %v2717
    %v2719 = vmul.f32 %v2716, %v2718
    %v2721 = vlaneseq
    %v2722 = vshrl.u32 %v2721, 7
    %v2723 = vsub.s32 0, %v2722
    %v2724 = vrot.slane %v2719, %v2723
    %v2726 = vmul.f32 %v2665, %v2724
    %v2727 = vmul.f32 %v2666, %v2724
    %v2728 = vmul.f32 %v2667, %v2724
    %v2729 = vmul.f32 %v2668, %v2724
    %v2730 = vmul.f32 %v2669, %v2724
    %v2731 = vmul.f32 %v2670, %v2724
    %v2732 = vmul.f32 %v2671, %v2724
    %s2733 = scalar_lea.vmem %s4, 1
    %v2734 = vld [vmem:[%s2733] sm:$0x1]
    %v2735 = vmul.f32 %v2686, %v2719
    %v2736 = vsub.f32 %v2734, %v2735
    %v2738 = vlaneseq
    %v2739 = vshrl.u32 %v2738, 7
    %v2740 = vsub.s32 0, %v2739
    %v2741 = vrot.slane %v2736, %v2740
    %v2743 = vadd.f32 %v2726, %v2741
    %v2744 = vadd.f32 %v2727, %v2741
    %v2745 = vadd.f32 %v2728, %v2741
    %v2746 = vadd.f32 %v2729, %v2741
    %v2747 = vadd.f32 %v2730, %v2741
    %v2748 = vadd.f32 %v2731, %v2741
    %v2749 = vadd.f32 %v2732, %v2741
    %v2750 = vmax.f32 %v2743, 0.0
    %v2751 = vmax.f32 %v2744, 0.0
    %v2752 = vmax.f32 %v2745, 0.0
    %v2753 = vmax.f32 %v2746, 0.0
    %v2754 = vmax.f32 %v2747, 0.0
    %v2755 = vmax.f32 %v2748, 0.0
    %v2756 = vmax.f32 %v2749, 0.0
    %v2757 = vpack.c.bf16 %v2751, %v2750
    %v2758 = vpack.c.bf16 %v2753, %v2752
    %v2759 = vpack.c.bf16 %v2755, %v2754
    %v2760 = vpack.c.bf16 %v2756, %v2756
    %vm2761 = vcmp.lt.s32.totalorder %v63, 13
    %vm2762 = vcmp.lt.s32.totalorder %v64, 13
    %vm2763 = vcmp.lt.s32.totalorder %v65, 13
    %vm2764 = vcmp.lt.s32.totalorder %v66, 13
    %vm2765 = vmand %vm79, %vm2761
    %vm2766 = vmand %vm80, %vm2762
    %vm2767 = vmand %vm81, %vm2763
    %vm2768 = vmand %vm82, %vm2764
    %vm2769 = vmand %vm2765, %vm118
    %vm2770 = vmand %vm2766, %vm118
    %vm2771 = vmand %vm2767, %vm118
    %vm2772 = vmand %vm2768, %vm118
    %vm2773 = vcmp.lt.s32.totalorder %v77, 25
    %vm2774 = vmand %vm2769, %vm2773
    %vm2775 = vmand %vm2770, %vm2773
    %vm2776 = vmand %vm2771, %vm2773
    %vm2777 = vmand %vm2772, %vm2773
    %vm2778 = vmand %vm2774, %vm213
    %vm2779 = vmand %vm2775, %vm215
    %vm2780 = vmand %vm2776, %vm217
    %vm2781 = vmand %vm2777, %vm219
    %v2782 = vsub.s32 %v63, 13
    %v2783 = vsub.s32 %v64, 13
    %v2784 = vsub.s32 %v65, 13
    %v2785 = vsub.s32 %v66, 13
    %v2786 = vsub.s32 %v77, 25
    %vm2787 = vcmp.ge.s32.totalorder %v2782, 0
    %vm2788 = vcmp.ge.s32.totalorder %v2783, 0
    %vm2789 = vcmp.ge.s32.totalorder %v2784, 0
    %vm2790 = vcmp.ge.s32.totalorder %v2785, 0
    %vm2791 = vcmp.lt.s32.totalorder %v2782, 13
    %vm2792 = vcmp.lt.s32.totalorder %v2783, 13
    %vm2793 = vcmp.lt.s32.totalorder %v2784, 13
    %vm2794 = vcmp.lt.s32.totalorder %v2785, 13
    %vm2795 = vmand %vm2787, %vm2791
    %vm2796 = vmand %vm2788, %vm2792
    %vm2797 = vmand %vm2789, %vm2793
    %vm2798 = vmand %vm2790, %vm2794
    %vm2799 = vcmp.ge.s32.totalorder %v2786, 0
    %vm2800 = vmand %vm2795, %vm2799
    %vm2801 = vmand %vm2796, %vm2799
    %vm2802 = vmand %vm2797, %vm2799
    %vm2803 = vmand %vm2798, %vm2799
    %vm2804 = vcmp.lt.s32.totalorder %v2786, 25
    %vm2805 = vmand %vm2800, %vm2804
    %vm2806 = vmand %vm2801, %vm2804
    %vm2807 = vmand %vm2802, %vm2804
    %vm2808 = vmand %vm2803, %vm2804
    %v2809 = vmul.u32 %v2782, 4294967294
    %v2810 = vmul.u32 %v2783, 4294967294
    %v2811 = vmul.u32 %v2784, 4294967294
    %v2812 = vmul.u32 %v2785, 4294967294
    %v2813 = vadd.s32 %v2809, %v2786
    %v2814 = vadd.s32 %v2810, %v2786
    %v2815 = vadd.s32 %v2811, %v2786
    %v2816 = vadd.s32 %v2812, %v2786
    %vm2817 = vcmp.eq.s32.totalorder %v2813, 4294967295
    %vm2818 = vcmp.eq.s32.totalorder %v2814, 4294967295
    %vm2819 = vcmp.eq.s32.totalorder %v2815, 4294967295
    %vm2820 = vcmp.eq.s32.totalorder %v2816, 4294967295
    %vm2821 = vmand %vm2805, %vm2817
    %vm2822 = vmand %vm2806, %vm2818
    %vm2823 = vmand %vm2807, %vm2819
    %vm2824 = vmand %vm2808, %vm2820
    %vm2825 = vmor %vm2778, %vm2821
    %vm2826 = vmor %vm2779, %vm2822
    %vm2827 = vmor %vm2780, %vm2823
    %vm2828 = vmor %vm2781, %vm2824
    %v2829 = vsel %vm2825, 1.0, 0.0
    %v2830 = vsel %vm2826, 1.0, 0.0
    %v2831 = vsel %vm2827, 1.0, 0.0
    %v2832 = vsel %vm2828, 1.0, 0.0
    %v2833 = vpack.c.bf16 %v2830, %v2829
    %v2834 = vpack.c.bf16 %v2832, %v2831
    %vm2835 = vcmask 408576
    %v2837 = vsel %vm2835, %v2833, 0
    %v2840 = vsel %vm2835, %v2834, 0
    %vm2842 = vcmask 1040384
    %v2844 = vsel %vm2842, %v2760, 0
    %2846 = vmatprep.subr.bf16.mxu0 0
    %2847 = vmatpush1.bf16.msra.mxu0 %v2757
    %2848 = vmatprep.subr.bf16.mxu0 0
    %2849 = vmatpush1.bf16.msra.mxu0 %v2758
    %2850 = vmatprep.subr.bf16.mxu0 0
    %2851 = vmatpush1.bf16.msra.mxu0 %v2759
    %2852 = vmatprep.subr.bf16.mxu0 0
    %2853 = vmatpush1.bf16.msra.mxu0 %v2844
    %2854 = vmatprep.subr.bf16.mxu0 0
    %2855 = vmatpush1.bf16.msra.mxu0 0
    %2856 = vmatprep.subr.bf16.mxu0 0
    %2857 = vmatpush1.bf16.msra.mxu0 0
    %2858 = vmatprep.subr.bf16.mxu0 0
    %2859 = vmatpush1.bf16.msra.mxu0 0
    %2860 = vmatprep.subr.bf16.mxu0 0
    %2861 = vmatpush1.bf16.msra.mxu0 0
    %2862 = vmatprep.subr.bf16.mxu0 0
    %2863 = vmatpush1.bf16.msra.mxu0 0
    %2864 = vmatprep.subr.bf16.mxu0 0
    %2865 = vmatpush1.bf16.msra.mxu0 0
    %2866 = vmatprep.subr.bf16.mxu0 0
    %2867 = vmatpush1.bf16.msra.mxu0 0
    %2868 = vmatprep.subr.bf16.mxu0 0
    %2869 = vmatpush1.bf16.msra.mxu0 0
    %2870 = vmatprep.subr.bf16.mxu0 0
    %2871 = vmatpush1.bf16.msra.mxu0 0
    %2872 = vmatprep.subr.bf16.mxu0 0
    %2873 = vmatpush1.bf16.msra.mxu0 0
    %2874 = vmatprep.subr.bf16.mxu0 0
    %2875 = vmatpush1.bf16.msra.mxu0 0
    %2876 = vmatprep.subr.bf16.mxu0 0
    %2877 = vmatpush1.bf16.msra.mxu0 0
    %2878 = vmatprep.mubr.bf16.mxu0 0
    %2879 = vmatmul.mubr.bf16.gmra.mrb[0].mxu0 %v2837
    %v2880 = vpop.f32.mrb[0].mxu0
    %v2881 = vadd.f32 0.0, %v2880
    %v2882 = vpop.f32.mrb[0].mxu0
    %v2883 = vpop.f32.mrb[0].mxu0
    %v2884 = vadd.f32 0.0, %v2883
    %v2885 = vpop.f32.mrb[0].mxu0
    %2886 = vmatprep.mubr.bf16.mxu0 0
    %2887 = vmatmul.mubr.bf16.gmra.mrb[0].mxu0 %v2840
    %v2888 = vpop.f32.mrb[0].mxu0
    %v2889 = vadd.f32 0.0, %v2888
    %v2890 = vpop.f32.mrb[0].mxu0
    %v2891 = vpop.f32.mrb[0].mxu0
    %v2892 = vadd.f32 0.0, %v2891
    %v2893 = vpop.f32.mrb[0].mxu0
    %2894 = vdwg.mxu0
    %v2895 = vpack.c.bf16 %v2884, %v2881
    %v2896 = vpack.c.bf16 %v2892, %v2889
    %s2897 = scalar_lea.vmem %s1, 384
    %v2898 = vld [vmem:[%s2897] sm:$0xf]
    %v2899 = vld [vmem:[%s2897 + $0x4] sm:$0xf]
    %v2900 = vld [vmem:[%s2897 + $0x8] sm:$0xf]
    %v2901 = vld [vmem:[%s2897 + $0xc] sm:$0xf]
    %v2902 = vld [vmem:[%s2897 + $0x10] sm:$0xf]
    %v2903 = vld [vmem:[%s2897 + $0x14] sm:$0xf]
    %v2904 = vld [vmem:[%s2897 + $0x18] sm:$0xf]
    %v2905 = vld [vmem:[%s2897 + $0x1c] sm:$0xf]
    %v2906 = vld [vmem:[%s2897 + $0x20] sm:$0xf]
    %v2907 = vld [vmem:[%s2897 + $0x24] sm:$0xf]
    %v2908 = vld [vmem:[%s2897 + $0x28] sm:$0xf]
    %v2909 = vld [vmem:[%s2897 + $0x2c] sm:$0xf]
    %v2910 = vld [vmem:[%s2897 + $0x30] sm:$0xf]
    %v2911 = vld [vmem:[%s2897 + $0x34] sm:$0xf]
    %v2912 = vld [vmem:[%s2897 + $0x38] sm:$0xf]
    %v2913 = vld [vmem:[%s2897 + $0x3c] sm:$0xf]
    %vm2914 = vmand %vm2774, %vm669
    %vm2915 = vmand %vm2775, %vm671
    %vm2916 = vmand %vm2776, %vm673
    %vm2917 = vmand %vm2777, %vm675
    %vm2918 = vcmp.eq.s32.totalorder %v2813, 0
    %vm2919 = vcmp.eq.s32.totalorder %v2814, 0
    %vm2920 = vcmp.eq.s32.totalorder %v2815, 0
    %vm2921 = vcmp.eq.s32.totalorder %v2816, 0
    %vm2922 = vmand %vm2805, %vm2918
    %vm2923 = vmand %vm2806, %vm2919
    %vm2924 = vmand %vm2807, %vm2920
    %vm2925 = vmand %vm2808, %vm2921
    %vm2926 = vmor %vm2914, %vm2922
    %vm2927 = vmor %vm2915, %vm2923
    %vm2928 = vmor %vm2916, %vm2924
    %vm2929 = vmor %vm2917, %vm2925
    %v2930 = vsel %vm2926, 1.0, 0.0
    %v2931 = vsel %vm2927, 1.0, 0.0
    %v2932 = vsel %vm2928, 1.0, 0.0
    %v2933 = vsel %vm2929, 1.0, 0.0
    %v2934 = vpack.c.bf16 %v2931, %v2930
    %v2935 = vpack.c.bf16 %v2933, %v2932
    %v2937 = vsel %vm2835, %v2934, 0
    %v2940 = vsel %vm2835, %v2935, 0
    %2942 = vmatprep.subr.bf16.mxu0 0
    %2943 = vmatpush1.bf16.msra.mxu0 %v2757
    %2944 = vmatprep.subr.bf16.mxu0 0
    %2945 = vmatpush1.bf16.msra.mxu0 %v2758
    %2946 = vmatprep.subr.bf16.mxu0 0
    %2947 = vmatpush1.bf16.msra.mxu0 %v2759
    %2948 = vmatprep.subr.bf16.mxu0 0
    %2949 = vmatpush1.bf16.msra.mxu0 %v2844
    %2950 = vmatprep.subr.bf16.mxu0 0
    %2951 = vmatpush1.bf16.msra.mxu0 0
    %2952 = vmatprep.subr.bf16.mxu0 0
    %2953 = vmatpush1.bf16.msra.mxu0 0
    %2954 = vmatprep.subr.bf16.mxu0 0
    %2955 = vmatpush1.bf16.msra.mxu0 0
    %2956 = vmatprep.subr.bf16.mxu0 0
    %2957 = vmatpush1.bf16.msra.mxu0 0
    %2958 = vmatprep.subr.bf16.mxu0 0
    %2959 = vmatpush1.bf16.msra.mxu0 0
    %2960 = vmatprep.subr.bf16.mxu0 0
    %2961 = vmatpush1.bf16.msra.mxu0 0
    %2962 = vmatprep.subr.bf16.mxu0 0
    %2963 = vmatpush1.bf16.msra.mxu0 0
    %2964 = vmatprep.subr.bf16.mxu0 0
    %2965 = vmatpush1.bf16.msra.mxu0 0
    %2966 = vmatprep.subr.bf16.mxu0 0
    %2967 = vmatpush1.bf16.msra.mxu0 0
    %2968 = vmatprep.subr.bf16.mxu0 0
    %2969 = vmatpush1.bf16.msra.mxu0 0
    %2970 = vmatprep.subr.bf16.mxu0 0
    %2971 = vmatpush1.bf16.msra.mxu0 0
    %2972 = vmatprep.subr.bf16.mxu0 0
    %2973 = vmatpush1.bf16.msra.mxu0 0
    %2974 = vmatprep.mubr.bf16.mxu0 0
    %2975 = vmatmul.mubr.bf16.gmra.mrb[0].mxu0 %v2937
    %v2976 = vpop.f32.mrb[0].mxu0
    %v2977 = vadd.f32 0.0, %v2976
    %v2978 = vpop.f32.mrb[0].mxu0
    %v2979 = vpop.f32.mrb[0].mxu0
    %v2980 = vadd.f32 0.0, %v2979
    %v2981 = vpop.f32.mrb[0].mxu0
    %2982 = vmatprep.mubr.bf16.mxu0 0
    %2983 = vmatmul.mubr.bf16.gmra.mrb[0].mxu0 %v2940
    %v2984 = vpop.f32.mrb[0].mxu0
    %v2985 = vadd.f32 0.0, %v2984
    %v2986 = vpop.f32.mrb[0].mxu0
    %v2987 = vpop.f32.mrb[0].mxu0
    %v2988 = vadd.f32 0.0, %v2987
    %v2989 = vpop.f32.mrb[0].mxu0
    %2990 = vdwg.mxu0
    %v2991 = vpack.c.bf16 %v2980, %v2977
    %v2992 = vpack.c.bf16 %v2988, %v2985
    %s2993 = scalar_lea.vmem %s1, 448
    %v2994 = vld [vmem:[%s2993] sm:$0xf]
    %v2995 = vld [vmem:[%s2993 + $0x4] sm:$0xf]
    %v2996 = vld [vmem:[%s2993 + $0x8] sm:$0xf]
    %v2997 = vld [vmem:[%s2993 + $0xc] sm:$0xf]
    %v2998 = vld [vmem:[%s2993 + $0x10] sm:$0xf]
    %v2999 = vld [vmem:[%s2993 + $0x14] sm:$0xf]
    %v3000 = vld [vmem:[%s2993 + $0x18] sm:$0xf]
    %v3001 = vld [vmem:[%s2993 + $0x1c] sm:$0xf]
    %v3002 = vld [vmem:[%s2993 + $0x20] sm:$0xf]
    %v3003 = vld [vmem:[%s2993 + $0x24] sm:$0xf]
    %v3004 = vld [vmem:[%s2993 + $0x28] sm:$0xf]
    %v3005 = vld [vmem:[%s2993 + $0x2c] sm:$0xf]
    %v3006 = vld [vmem:[%s2993 + $0x30] sm:$0xf]
    %v3007 = vld [vmem:[%s2993 + $0x34] sm:$0xf]
    %v3008 = vld [vmem:[%s2993 + $0x38] sm:$0xf]
    %v3009 = vld [vmem:[%s2993 + $0x3c] sm:$0xf]
    %v3026 = vunpack.c.l.b16 %v2994
    %v3027 = vunpack.c.l.b16 %v2995
    %v3028 = vunpack.c.l.b16 %v2996
    %v3029 = vunpack.c.l.b16 %v2997
    %v3030 = vunpack.c.l.b16 %v2998
    %v3031 = vunpack.c.l.b16 %v2999
    %v3032 = vunpack.c.l.b16 %v3000
    %v3033 = vunpack.c.l.b16 %v3001
    %v3034 = vunpack.c.l.b16 %v3002
    %v3035 = vunpack.c.l.b16 %v3003
    %v3036 = vunpack.c.l.b16 %v3004
    %v3037 = vunpack.c.l.b16 %v3005
    %v3038 = vunpack.c.l.b16 %v3006
    %v3039 = vunpack.c.l.b16 %v3007
    %v3040 = vunpack.c.l.b16 %v3008
    %v3041 = vunpack.c.l.b16 %v3009
    %v3042 = vpack.c.b16 %v3027, %v3026
    %v3043 = vpack.c.b16 %v3029, %v3028
    %v3044 = vpack.c.b16 %v3031, %v3030
    %v3045 = vpack.c.b16 %v3033, %v3032
    %v3046 = vpack.c.b16 %v3035, %v3034
    %v3047 = vpack.c.b16 %v3037, %v3036
    %v3048 = vpack.c.b16 %v3039, %v3038
    %v3049 = vpack.c.b16 %v3041, %v3040
    %3058 = vmatprep.subr.bf16.mxu0 0
    %3059 = vmatpush1.bf16.msra.mxu0 %v3042
    %3060 = vmatprep.subr.bf16.mxu0 0
    %3061 = vmatpush1.bf16.msra.mxu0 %v3043
    %3062 = vmatprep.subr.bf16.mxu0 0
    %3063 = vmatpush1.bf16.msra.mxu0 %v3044
    %3064 = vmatprep.subr.bf16.mxu0 0
    %3065 = vmatpush1.bf16.msra.mxu0 %v3045
    %3066 = vmatprep.subr.bf16.mxu0 0
    %3067 = vmatpush1.bf16.msra.mxu0 %v3046
    %3068 = vmatprep.subr.bf16.mxu0 0
    %3069 = vmatpush1.bf16.msra.mxu0 %v3047
    %3070 = vmatprep.subr.bf16.mxu0 0
    %3071 = vmatpush1.bf16.msra.mxu0 %v3048
    %3072 = vmatprep.subr.bf16.mxu0 0
    %3073 = vmatpush1.bf16.msra.mxu0 %v3049
    %3074 = vmatprep.subr.bf16.mxu0 0
    %3075 = vmatpush1.bf16.msra.mxu0 0
    %3076 = vmatprep.subr.bf16.mxu0 0
    %3077 = vmatpush1.bf16.msra.mxu0 0
    %3078 = vmatprep.subr.bf16.mxu0 0
    %3079 = vmatpush1.bf16.msra.mxu0 0
    %3080 = vmatprep.subr.bf16.mxu0 0
    %3081 = vmatpush1.bf16.msra.mxu0 0
    %3082 = vmatprep.subr.bf16.mxu0 0
    %3083 = vmatpush1.bf16.msra.mxu0 0
    %3084 = vmatprep.subr.bf16.mxu0 0
    %3085 = vmatpush1.bf16.msra.mxu0 0
    %3086 = vmatprep.subr.bf16.mxu0 0
    %3087 = vmatpush1.bf16.msra.mxu0 0
    %3088 = vmatprep.subr.bf16.mxu0 0
    %3089 = vmatpush1.bf16.msra.mxu0 0
    %3090 = vmatprep.mubr.bf16.mxu0 0
    %3091 = vmatmul.mubr.bf16.gmra.mrb[0].mxu0 %v2991
    %v3092 = vpop.f32.mrb[0].mxu0
    %v3093 = vadd.f32 0.0, %v3092
    %v3094 = vpop.f32.mrb[0].mxu0
    %v3095 = vpop.f32.mrb[0].mxu0
    %v3096 = vadd.f32 0.0, %v3095
    %v3097 = vpop.f32.mrb[0].mxu0
    %3098 = vmatprep.mubr.bf16.mxu0 0
    %3099 = vmatmul.mubr.bf16.gmra.mrb[0].mxu0 %v2992
    %v3100 = vpop.f32.mrb[0].mxu0
    %v3101 = vadd.f32 0.0, %v3100
    %v3102 = vpop.f32.mrb[0].mxu0
    %v3103 = vpop.f32.mrb[0].mxu0
    %v3104 = vadd.f32 0.0, %v3103
    %v3105 = vpop.f32.mrb[0].mxu0
    %3106 = vdwg.mxu0
    %v3123 = vunpack.c.l.b16 %v2898
    %v3124 = vunpack.c.l.b16 %v2899
    %v3125 = vunpack.c.l.b16 %v2900
    %v3126 = vunpack.c.l.b16 %v2901
    %v3127 = vunpack.c.l.b16 %v2902
    %v3128 = vunpack.c.l.b16 %v2903
    %v3129 = vunpack.c.l.b16 %v2904
    %v3130 = vunpack.c.l.b16 %v2905
    %v3131 = vunpack.c.l.b16 %v2906
    %v3132 = vunpack.c.l.b16 %v2907
    %v3133 = vunpack.c.l.b16 %v2908
    %v3134 = vunpack.c.l.b16 %v2909
    %v3135 = vunpack.c.l.b16 %v2910
    %v3136 = vunpack.c.l.b16 %v2911
    %v3137 = vunpack.c.l.b16 %v2912
    %v3138 = vunpack.c.l.b16 %v2913
    %v3139 = vpack.c.b16 %v3124, %v3123
    %v3140 = vpack.c.b16 %v3126, %v3125
    %v3141 = vpack.c.b16 %v3128, %v3127
    %v3142 = vpack.c.b16 %v3130, %v3129
    %v3143 = vpack.c.b16 %v3132, %v3131
    %v3144 = vpack.c.b16 %v3134, %v3133
    %v3145 = vpack.c.b16 %v3136, %v3135
    %v3146 = vpack.c.b16 %v3138, %v3137
    %3155 = vmatprep.subr.bf16.mxu0 0
    %3156 = vmatpush1.bf16.msra.mxu0 %v3139
    %3157 = vmatprep.subr.bf16.mxu0 0
    %3158 = vmatpush1.bf16.msra.mxu0 %v3140
    %3159 = vmatprep.subr.bf16.mxu0 0
    %3160 = vmatpush1.bf16.msra.mxu0 %v3141
    %3161 = vmatprep.subr.bf16.mxu0 0
    %3162 = vmatpush1.bf16.msra.mxu0 %v3142
    %3163 = vmatprep.subr.bf16.mxu0 0
    %3164 = vmatpush1.bf16.msra.mxu0 %v3143
    %3165 = vmatprep.subr.bf16.mxu0 0
    %3166 = vmatpush1.bf16.msra.mxu0 %v3144
    %3167 = vmatprep.subr.bf16.mxu0 0
    %3168 = vmatpush1.bf16.msra.mxu0 %v3145
    %3169 = vmatprep.subr.bf16.mxu0 0
    %3170 = vmatpush1.bf16.msra.mxu0 %v3146
    %3171 = vmatprep.subr.bf16.mxu0 0
    %3172 = vmatpush1.bf16.msra.mxu0 0
    %3173 = vmatprep.subr.bf16.mxu0 0
    %3174 = vmatpush1.bf16.msra.mxu0 0
    %3175 = vmatprep.subr.bf16.mxu0 0
    %3176 = vmatpush1.bf16.msra.mxu0 0
    %3177 = vmatprep.subr.bf16.mxu0 0
    %3178 = vmatpush1.bf16.msra.mxu0 0
    %3179 = vmatprep.subr.bf16.mxu0 0
    %3180 = vmatpush1.bf16.msra.mxu0 0
    %3181 = vmatprep.subr.bf16.mxu0 0
    %3182 = vmatpush1.bf16.msra.mxu0 0
    %3183 = vmatprep.subr.bf16.mxu0 0
    %3184 = vmatpush1.bf16.msra.mxu0 0
    %3185 = vmatprep.subr.bf16.mxu0 0
    %3186 = vmatpush1.bf16.msra.mxu0 0
    %3187 = vmatprep.mubr.bf16.mxu0 0
    %3188 = vmatmul.mubr.bf16.gmra.mrb[0].mxu0 %v2895
    %v3189 = vpop.f32.mrb[0].mxu0
    %v3190 = vadd.f32 %v3093, %v3189
    %v3191 = vpop.f32.mrb[0].mxu0
    %v3192 = vpop.f32.mrb[0].mxu0
    %v3193 = vadd.f32 %v3096, %v3192
    %v3194 = vpop.f32.mrb[0].mxu0
    %3195 = vmatprep.mubr.bf16.mxu0 0
    %3196 = vmatmul.mubr.bf16.gmra.mrb[0].mxu0 %v2896
    %v3197 = vpop.f32.mrb[0].mxu0
    %v3198 = vadd.f32 %v3101, %v3197
    %v3199 = vpop.f32.mrb[0].mxu0
    %v3200 = vpop.f32.mrb[0].mxu0
    %v3201 = vadd.f32 %v3104, %v3200
    %v3202 = vpop.f32.mrb[0].mxu0
    %3203 = vdwg.mxu0
    %vm3204 = vmand %vm2774, %vm1244
    %vm3205 = vmand %vm2775, %vm1246
    %vm3206 = vmand %vm2776, %vm1248
    %vm3207 = vmand %vm2777, %vm1250
    %vm3208 = vcmp.eq.s32.totalorder %v2813, 1
    %vm3209 = vcmp.eq.s32.totalorder %v2814, 1
    %vm3210 = vcmp.eq.s32.totalorder %v2815, 1
    %vm3211 = vcmp.eq.s32.totalorder %v2816, 1
    %vm3212 = vmand %vm2805, %vm3208
    %vm3213 = vmand %vm2806, %vm3209
    %vm3214 = vmand %vm2807, %vm3210
    %vm3215 = vmand %vm2808, %vm3211
    %vm3216 = vmor %vm3204, %vm3212
    %vm3217 = vmor %vm3205, %vm3213
    %vm3218 = vmor %vm3206, %vm3214
    %vm3219 = vmor %vm3207, %vm3215
    %v3220 = vsel %vm3216, 1.0, 0.0
    %v3221 = vsel %vm3217, 1.0, 0.0
    %v3222 = vsel %vm3218, 1.0, 0.0
    %v3223 = vsel %vm3219, 1.0, 0.0
    %v3224 = vpack.c.bf16 %v3221, %v3220
    %v3225 = vpack.c.bf16 %v3223, %v3222
    %v3227 = vsel %vm2835, %v3224, 0
    %v3230 = vsel %vm2835, %v3225, 0
    %3232 = vmatprep.subr.bf16.mxu0 0
    %3233 = vmatpush1.bf16.msra.mxu0 %v2757
    %3234 = vmatprep.subr.bf16.mxu0 0
    %3235 = vmatpush1.bf16.msra.mxu0 %v2758
    %3236 = vmatprep.subr.bf16.mxu0 0
    %3237 = vmatpush1.bf16.msra.mxu0 %v2759
    %3238 = vmatprep.subr.bf16.mxu0 0
    %3239 = vmatpush1.bf16.msra.mxu0 %v2844
    %3240 = vmatprep.subr.bf16.mxu0 0
    %3241 = vmatpush1.bf16.msra.mxu0 0
    %3242 = vmatprep.subr.bf16.mxu0 0
    %3243 = vmatpush1.bf16.msra.mxu0 0
    %3244 = vmatprep.subr.bf16.mxu0 0
    %3245 = vmatpush1.bf16.msra.mxu0 0
    %3246 = vmatprep.subr.bf16.mxu0 0
    %3247 = vmatpush1.bf16.msra.mxu0 0
    %3248 = vmatprep.subr.bf16.mxu0 0
    %3249 = vmatpush1.bf16.msra.mxu0 0
    %3250 = vmatprep.subr.bf16.mxu0 0
    %3251 = vmatpush1.bf16.msra.mxu0 0
    %3252 = vmatprep.subr.bf16.mxu0 0
    %3253 = vmatpush1.bf16.msra.mxu0 0
    %3254 = vmatprep.subr.bf16.mxu0 0
    %3255 = vmatpush1.bf16.msra.mxu0 0
    %3256 = vmatprep.subr.bf16.mxu0 0
    %3257 = vmatpush1.bf16.msra.mxu0 0
    %3258 = vmatprep.subr.bf16.mxu0 0
    %3259 = vmatpush1.bf16.msra.mxu0 0
    %3260 = vmatprep.subr.bf16.mxu0 0
    %3261 = vmatpush1.bf16.msra.mxu0 0
    %3262 = vmatprep.subr.bf16.mxu0 0
    %3263 = vmatpush1.bf16.msra.mxu0 0
    %3264 = vmatprep.mubr.bf16.mxu0 0
    %3265 = vmatmul.mubr.bf16.gmra.mrb[0].mxu0 %v3227
    %v3266 = vpop.f32.mrb[0].mxu0
    %v3267 = vadd.f32 0.0, %v3266
    %v3268 = vpop.f32.mrb[0].mxu0
    %v3269 = vpop.f32.mrb[0].mxu0
    %v3270 = vadd.f32 0.0, %v3269
    %v3271 = vpop.f32.mrb[0].mxu0
    %3272 = vmatprep.mubr.bf16.mxu0 0
    %3273 = vmatmul.mubr.bf16.gmra.mrb[0].mxu0 %v3230
    %v3274 = vpop.f32.mrb[0].mxu0
    %v3275 = vadd.f32 0.0, %v3274
    %v3276 = vpop.f32.mrb[0].mxu0
    %v3277 = vpop.f32.mrb[0].mxu0
    %v3278 = vadd.f32 0.0, %v3277
    %v3279 = vpop.f32.mrb[0].mxu0
    %3280 = vdwg.mxu0
    %v3281 = vpack.c.bf16 %v3270, %v3267
    %v3282 = vpack.c.bf16 %v3278, %v3275
    %s3283 = scalar_lea.vmem %s1, 512
    %v3284 = vld [vmem:[%s3283] sm:$0xf]
    %v3285 = vld [vmem:[%s3283 + $0x4] sm:$0xf]
    %v3286 = vld [vmem:[%s3283 + $0x8] sm:$0xf]
    %v3287 = vld [vmem:[%s3283 + $0xc] sm:$0xf]
    %v3288 = vld [vmem:[%s3283 + $0x10] sm:$0xf]
    %v3289 = vld [vmem:[%s3283 + $0x14] sm:$0xf]
    %v3290 = vld [vmem:[%s3283 + $0x18] sm:$0xf]
    %v3291 = vld [vmem:[%s3283 + $0x1c] sm:$0xf]
    %v3292 = vld [vmem:[%s3283 + $0x20] sm:$0xf]
    %v3293 = vld [vmem:[%s3283 + $0x24] sm:$0xf]
    %v3294 = vld [vmem:[%s3283 + $0x28] sm:$0xf]
    %v3295 = vld [vmem:[%s3283 + $0x2c] sm:$0xf]
    %v3296 = vld [vmem:[%s3283 + $0x30] sm:$0xf]
    %v3297 = vld [vmem:[%s3283 + $0x34] sm:$0xf]
    %v3298 = vld [vmem:[%s3283 + $0x38] sm:$0xf]
    %v3299 = vld [vmem:[%s3283 + $0x3c] sm:$0xf]
    %v3316 = vunpack.c.l.b16 %v3284
    %v3317 = vunpack.c.l.b16 %v3285
    %v3318 = vunpack.c.l.b16 %v3286
    %v3319 = vunpack.c.l.b16 %v3287
    %v3320 = vunpack.c.l.b16 %v3288
    %v3321 = vunpack.c.l.b16 %v3289
    %v3322 = vunpack.c.l.b16 %v3290
    %v3323 = vunpack.c.l.b16 %v3291
    %v3324 = vunpack.c.l.b16 %v3292
    %v3325 = vunpack.c.l.b16 %v3293
    %v3326 = vunpack.c.l.b16 %v3294
    %v3327 = vunpack.c.l.b16 %v3295
    %v3328 = vunpack.c.l.b16 %v3296
    %v3329 = vunpack.c.l.b16 %v3297
    %v3330 = vunpack.c.l.b16 %v3298
    %v3331 = vunpack.c.l.b16 %v3299
    %v3332 = vpack.c.b16 %v3317, %v3316
    %v3333 = vpack.c.b16 %v3319, %v3318
    %v3334 = vpack.c.b16 %v3321, %v3320
    %v3335 = vpack.c.b16 %v3323, %v3322
    %v3336 = vpack.c.b16 %v3325, %v3324
    %v3337 = vpack.c.b16 %v3327, %v3326
    %v3338 = vpack.c.b16 %v3329, %v3328
    %v3339 = vpack.c.b16 %v3331, %v3330
    %3348 = vmatprep.subr.bf16.mxu0 0
    %3349 = vmatpush1.bf16.msra.mxu0 %v3332
    %3350 = vmatprep.subr.bf16.mxu0 0
    %3351 = vmatpush1.bf16.msra.mxu0 %v3333
    %3352 = vmatprep.subr.bf16.mxu0 0
    %3353 = vmatpush1.bf16.msra.mxu0 %v3334
    %3354 = vmatprep.subr.bf16.mxu0 0
    %3355 = vmatpush1.bf16.msra.mxu0 %v3335
    %3356 = vmatprep.subr.bf16.mxu0 0
    %3357 = vmatpush1.bf16.msra.mxu0 %v3336
    %3358 = vmatprep.subr.bf16.mxu0 0
    %3359 = vmatpush1.bf16.msra.mxu0 %v3337
    %3360 = vmatprep.subr.bf16.mxu0 0
    %3361 = vmatpush1.bf16.msra.mxu0 %v3338
    %3362 = vmatprep.subr.bf16.mxu0 0
    %3363 = vmatpush1.bf16.msra.mxu0 %v3339
    %3364 = vmatprep.subr.bf16.mxu0 0
    %3365 = vmatpush1.bf16.msra.mxu0 0
    %3366 = vmatprep.subr.bf16.mxu0 0
    %3367 = vmatpush1.bf16.msra.mxu0 0
    %3368 = vmatprep.subr.bf16.mxu0 0
    %3369 = vmatpush1.bf16.msra.mxu0 0
    %3370 = vmatprep.subr.bf16.mxu0 0
    %3371 = vmatpush1.bf16.msra.mxu0 0
    %3372 = vmatprep.subr.bf16.mxu0 0
    %3373 = vmatpush1.bf16.msra.mxu0 0
    %3374 = vmatprep.subr.bf16.mxu0 0
    %3375 = vmatpush1.bf16.msra.mxu0 0
    %3376 = vmatprep.subr.bf16.mxu0 0
    %3377 = vmatpush1.bf16.msra.mxu0 0
    %3378 = vmatprep.subr.bf16.mxu0 0
    %3379 = vmatpush1.bf16.msra.mxu0 0
    %3380 = vmatprep.mubr.bf16.mxu0 0
    %3381 = vmatmul.mubr.bf16.gmra.mrb[0].mxu0 %v3281
    %v3382 = vpop.f32.mrb[0].mxu0
    %v3383 = vadd.f32 0.0, %v3382
    %v3384 = vpop.f32.mrb[0].mxu0
    %v3385 = vpop.f32.mrb[0].mxu0
    %v3386 = vadd.f32 0.0, %v3385
    %v3387 = vpop.f32.mrb[0].mxu0
    %3388 = vmatprep.mubr.bf16.mxu0 0
    %3389 = vmatmul.mubr.bf16.gmra.mrb[0].mxu0 %v3282
    %v3390 = vpop.f32.mrb[0].mxu0
    %v3391 = vadd.f32 0.0, %v3390
    %v3392 = vpop.f32.mrb[0].mxu0
    %v3393 = vpop.f32.mrb[0].mxu0
    %v3394 = vadd.f32 0.0, %v3393
    %v3395 = vpop.f32.mrb[0].mxu0
    %3396 = vdwg.mxu0
    %v3397 = vadd.f32 %v3190, %v3383
    %v3398 = vadd.f32 %v3193, %v3386
    %v3399 = vadd.f32 %v3198, %v3391
    %v3400 = vadd.f32 %v3201, %v3394
    %s3401 = scalar_lea.vmem %s2, 2
    %v3402 = vld [vmem:[%s3401] sm:$0x1]
    %v3404 = vlaneseq
    %v3405 = vshrl.u32 %v3404, 7
    %v3406 = vsub.s32 0, %v3405
    %v3407 = vrot.slane %v3402, %v3406
    %v3409 = vadd.f32 %v3397, %v3407
    %v3410 = vadd.f32 %v3398, %v3407
    %v3411 = vadd.f32 %v3399, %v3407
    %v3412 = vadd.f32 %v3400, %v3407
    %v3413 = vmax.f32 %v3409, 0.0
    %v3414 = vmax.f32 %v3410, 0.0
    %v3415 = vmax.f32 %v3411, 0.0
    %v3416 = vmax.f32 %v3412, 0.0
    %v3417 = vpack.c.bf16 %v3414, %v3413
    %v3418 = vpack.c.bf16 %v3416, %v3415
    %vm3419 = vcmp.lt.s32.totalorder %v63, 7
    %vm3420 = vcmp.lt.s32.totalorder %v64, 7
    %vm3421 = vmand %vm79, %vm3419
    %vm3422 = vmand %vm80, %vm3420
    %vm3423 = vmand %vm3421, %vm118
    %vm3424 = vmand %vm3422, %vm118
    %vm3425 = vcmp.lt.s32.totalorder %v77, 13
    %vm3426 = vmand %vm3423, %vm3425
    %vm3427 = vmand %vm3424, %vm3425
    %vm3428 = vmand %vm3426, %vm213
    %vm3429 = vmand %vm3427, %vm215
    %v3430 = vsub.s32 %v63, 7
    %v3431 = vsub.s32 %v64, 7
    %v3432 = vsub.s32 %v77, 13
    %vm3433 = vcmp.ge.s32.totalorder %v3430, 0
    %vm3434 = vcmp.ge.s32.totalorder %v3431, 0
    %vm3435 = vcmp.lt.s32.totalorder %v3430, 7
    %vm3436 = vcmp.lt.s32.totalorder %v3431, 7
    %vm3437 = vmand %vm3433, %vm3435
    %vm3438 = vmand %vm3434, %vm3436
    %vm3439 = vcmp.ge.s32.totalorder %v3432, 0
    %vm3440 = vmand %vm3437, %vm3439
    %vm3441 = vmand %vm3438, %vm3439
    %vm3442 = vcmp.lt.s32.totalorder %v3432, 13
    %vm3443 = vmand %vm3440, %vm3442
    %vm3444 = vmand %vm3441, %vm3442
    %v3445 = vmul.u32 %v3430, 4294967294
    %v3446 = vmul.u32 %v3431, 4294967294
    %v3447 = vadd.s32 %v3445, %v3432
    %v3448 = vadd.s32 %v3446, %v3432
    %vm3449 = vcmp.eq.s32.totalorder %v3447, 4294967295
    %vm3450 = vcmp.eq.s32.totalorder %v3448, 4294967295
    %vm3451 = vmand %vm3443, %vm3449
    %vm3452 = vmand %vm3444, %vm3450
    %vm3453 = vmor %vm3428, %vm3451
    %vm3454 = vmor %vm3429, %vm3452
    %v3455 = vsel %vm3453, 1.0, 0.0
    %v3456 = vsel %vm3454, 1.0, 0.0
    %v3457 = vpack.c.bf16 %v3456, %v3455
    %vm3458 = vcmask 211968
    %v3460 = vsel %vm3458, %v3457, 0
    %vm3462 = vcmask 1044480
    %v3464 = vsel %vm3462, %v3418, 0
    %3466 = vmatprep.subr.bf16.mxu0 0
    %3467 = vmatpush1.bf16.msra.mxu0 %v3417
    %3468 = vmatprep.subr.bf16.mxu0 0
    %3469 = vmatpush1.bf16.msra.mxu0 %v3464
    %3470 = vmatprep.subr.bf16.mxu0 0
    %3471 = vmatpush1.bf16.msra.mxu0 0
    %3472 = vmatprep.subr.bf16.mxu0 0
    %3473 = vmatpush1.bf16.msra.mxu0 0
    %3474 = vmatprep.subr.bf16.mxu0 0
    %3475 = vmatpush1.bf16.msra.mxu0 0
    %3476 = vmatprep.subr.bf16.mxu0 0
    %3477 = vmatpush1.bf16.msra.mxu0 0
    %3478 = vmatprep.subr.bf16.mxu0 0
    %3479 = vmatpush1.bf16.msra.mxu0 0
    %3480 = vmatprep.subr.bf16.mxu0 0
    %3481 = vmatpush1.bf16.msra.mxu0 0
    %3482 = vmatprep.subr.bf16.mxu0 0
    %3483 = vmatpush1.bf16.msra.mxu0 0
    %3484 = vmatprep.subr.bf16.mxu0 0
    %3485 = vmatpush1.bf16.msra.mxu0 0
    %3486 = vmatprep.subr.bf16.mxu0 0
    %3487 = vmatpush1.bf16.msra.mxu0 0
    %3488 = vmatprep.subr.bf16.mxu0 0
    %3489 = vmatpush1.bf16.msra.mxu0 0
    %3490 = vmatprep.subr.bf16.mxu0 0
    %3491 = vmatpush1.bf16.msra.mxu0 0
    %3492 = vmatprep.subr.bf16.mxu0 0
    %3493 = vmatpush1.bf16.msra.mxu0 0
    %3494 = vmatprep.subr.bf16.mxu0 0
    %3495 = vmatpush1.bf16.msra.mxu0 0
    %3496 = vmatprep.subr.bf16.mxu0 0
    %3497 = vmatpush1.bf16.msra.mxu0 0
    %3498 = vmatprep.mubr.bf16.mxu0 0
    %3499 = vmatmul.mubr.bf16.gmra.mrb[0].mxu0 %v3460
    %v3500 = vpop.f32.mrb[0].mxu0
    %v3501 = vadd.f32 0.0, %v3500
    %v3502 = vpop.f32.mrb[0].mxu0
    %v3503 = vpop.f32.mrb[0].mxu0
    %v3504 = vadd.f32 0.0, %v3503
    %v3505 = vpop.f32.mrb[0].mxu0
    %3506 = vdwg.mxu0
    %v3507 = vpack.c.bf16 %v3504, %v3501
    %s3508 = scalar_lea.vmem %s1, 576
    %v3509 = vld [vmem:[%s3508] sm:$0xf]
    %v3510 = vld [vmem:[%s3508 + $0x4] sm:$0xf]
    %v3511 = vld [vmem:[%s3508 + $0x8] sm:$0xf]
    %v3512 = vld [vmem:[%s3508 + $0xc] sm:$0xf]
    %v3513 = vld [vmem:[%s3508 + $0x10] sm:$0xf]
    %v3514 = vld [vmem:[%s3508 + $0x14] sm:$0xf]
    %v3515 = vld [vmem:[%s3508 + $0x18] sm:$0xf]
    %v3516 = vld [vmem:[%s3508 + $0x1c] sm:$0xf]
    %v3517 = vld [vmem:[%s3508 + $0x20] sm:$0xf]
    %v3518 = vld [vmem:[%s3508 + $0x24] sm:$0xf]
    %v3519 = vld [vmem:[%s3508 + $0x28] sm:$0xf]
    %v3520 = vld [vmem:[%s3508 + $0x2c] sm:$0xf]
    %v3521 = vld [vmem:[%s3508 + $0x30] sm:$0xf]
    %v3522 = vld [vmem:[%s3508 + $0x34] sm:$0xf]
    %v3523 = vld [vmem:[%s3508 + $0x38] sm:$0xf]
    %v3524 = vld [vmem:[%s3508 + $0x3c] sm:$0xf]
    %vm3525 = vmand %vm3426, %vm669
    %vm3526 = vmand %vm3427, %vm671
    %vm3527 = vcmp.eq.s32.totalorder %v3447, 0
    %vm3528 = vcmp.eq.s32.totalorder %v3448, 0
    %vm3529 = vmand %vm3443, %vm3527
    %vm3530 = vmand %vm3444, %vm3528
    %vm3531 = vmor %vm3525, %vm3529
    %vm3532 = vmor %vm3526, %vm3530
    %v3533 = vsel %vm3531, 1.0, 0.0
    %v3534 = vsel %vm3532, 1.0, 0.0
    %v3535 = vpack.c.bf16 %v3534, %v3533
    %v3537 = vsel %vm3458, %v3535, 0
    %3539 = vmatprep.subr.bf16.mxu0 0
    %3540 = vmatpush1.bf16.msra.mxu0 %v3417
    %3541 = vmatprep.subr.bf16.mxu0 0
    %3542 = vmatpush1.bf16.msra.mxu0 %v3464
    %3543 = vmatprep.subr.bf16.mxu0 0
    %3544 = vmatpush1.bf16.msra.mxu0 0
    %3545 = vmatprep.subr.bf16.mxu0 0
    %3546 = vmatpush1.bf16.msra.mxu0 0
    %3547 = vmatprep.subr.bf16.mxu0 0
    %3548 = vmatpush1.bf16.msra.mxu0 0
    %3549 = vmatprep.subr.bf16.mxu0 0
    %3550 = vmatpush1.bf16.msra.mxu0 0
    %3551 = vmatprep.subr.bf16.mxu0 0
    %3552 = vmatpush1.bf16.msra.mxu0 0
    %3553 = vmatprep.subr.bf16.mxu0 0
    %3554 = vmatpush1.bf16.msra.mxu0 0
    %3555 = vmatprep.subr.bf16.mxu0 0
    %3556 = vmatpush1.bf16.msra.mxu0 0
    %3557 = vmatprep.subr.bf16.mxu0 0
    %3558 = vmatpush1.bf16.msra.mxu0 0
    %3559 = vmatprep.subr.bf16.mxu0 0
    %3560 = vmatpush1.bf16.msra.mxu0 0
    %3561 = vmatprep.subr.bf16.mxu0 0
    %3562 = vmatpush1.bf16.msra.mxu0 0
    %3563 = vmatprep.subr.bf16.mxu0 0
    %3564 = vmatpush1.bf16.msra.mxu0 0
    %3565 = vmatprep.subr.bf16.mxu0 0
    %3566 = vmatpush1.bf16.msra.mxu0 0
    %3567 = vmatprep.subr.bf16.mxu0 0
    %3568 = vmatpush1.bf16.msra.mxu0 0
    %3569 = vmatprep.subr.bf16.mxu0 0
    %3570 = vmatpush1.bf16.msra.mxu0 0
    %3571 = vmatprep.mubr.bf16.mxu0 0
    %3572 = vmatmul.mubr.bf16.gmra.mrb[0].mxu0 %v3537
    %v3573 = vpop.f32.mrb[0].mxu0
    %v3574 = vadd.f32 0.0, %v3573
    %v3575 = vpop.f32.mrb[0].mxu0
    %v3576 = vpop.f32.mrb[0].mxu0
    %v3577 = vadd.f32 0.0, %v3576
    %v3578 = vpop.f32.mrb[0].mxu0
    %3579 = vdwg.mxu0
    %v3580 = vpack.c.bf16 %v3577, %v3574
    %s3581 = scalar_lea.vmem %s1, 640
    %v3582 = vld [vmem:[%s3581] sm:$0xf]
    %v3583 = vld [vmem:[%s3581 + $0x4] sm:$0xf]
    %v3584 = vld [vmem:[%s3581 + $0x8] sm:$0xf]
    %v3585 = vld [vmem:[%s3581 + $0xc] sm:$0xf]
    %v3586 = vld [vmem:[%s3581 + $0x10] sm:$0xf]
    %v3587 = vld [vmem:[%s3581 + $0x14] sm:$0xf]
    %v3588 = vld [vmem:[%s3581 + $0x18] sm:$0xf]
    %v3589 = vld [vmem:[%s3581 + $0x1c] sm:$0xf]
    %v3590 = vld [vmem:[%s3581 + $0x20] sm:$0xf]
    %v3591 = vld [vmem:[%s3581 + $0x24] sm:$0xf]
    %v3592 = vld [vmem:[%s3581 + $0x28] sm:$0xf]
    %v3593 = vld [vmem:[%s3581 + $0x2c] sm:$0xf]
    %v3594 = vld [vmem:[%s3581 + $0x30] sm:$0xf]
    %v3595 = vld [vmem:[%s3581 + $0x34] sm:$0xf]
    %v3596 = vld [vmem:[%s3581 + $0x38] sm:$0xf]
    %v3597 = vld [vmem:[%s3581 + $0x3c] sm:$0xf]
    %v3614 = vunpack.c.l.b16 %v3582
    %v3615 = vunpack.c.l.b16 %v3583
    %v3616 = vunpack.c.l.b16 %v3584
    %v3617 = vunpack.c.l.b16 %v3585
    %v3618 = vunpack.c.l.b16 %v3586
    %v3619 = vunpack.c.l.b16 %v3587
    %v3620 = vunpack.c.l.b16 %v3588
    %v3621 = vunpack.c.l.b16 %v3589
    %v3622 = vunpack.c.l.b16 %v3590
    %v3623 = vunpack.c.l.b16 %v3591
    %v3624 = vunpack.c.l.b16 %v3592
    %v3625 = vunpack.c.l.b16 %v3593
    %v3626 = vunpack.c.l.b16 %v3594
    %v3627 = vunpack.c.l.b16 %v3595
    %v3628 = vunpack.c.l.b16 %v3596
    %v3629 = vunpack.c.l.b16 %v3597
    %v3630 = vpack.c.b16 %v3615, %v3614
    %v3631 = vpack.c.b16 %v3617, %v3616
    %v3632 = vpack.c.b16 %v3619, %v3618
    %v3633 = vpack.c.b16 %v3621, %v3620
    %v3634 = vpack.c.b16 %v3623, %v3622
    %v3635 = vpack.c.b16 %v3625, %v3624
    %v3636 = vpack.c.b16 %v3627, %v3626
    %v3637 = vpack.c.b16 %v3629, %v3628
    %3646 = vmatprep.subr.bf16.mxu0 0
    %3647 = vmatpush1.bf16.msra.mxu0 %v3630
    %3648 = vmatprep.subr.bf16.mxu0 0
    %3649 = vmatpush1.bf16.msra.mxu0 %v3631
    %3650 = vmatprep.subr.bf16.mxu0 0
    %3651 = vmatpush1.bf16.msra.mxu0 %v3632
    %3652 = vmatprep.subr.bf16.mxu0 0
    %3653 = vmatpush1.bf16.msra.mxu0 %v3633
    %3654 = vmatprep.subr.bf16.mxu0 0
    %3655 = vmatpush1.bf16.msra.mxu0 %v3634
    %3656 = vmatprep.subr.bf16.mxu0 0
    %3657 = vmatpush1.bf16.msra.mxu0 %v3635
    %3658 = vmatprep.subr.bf16.mxu0 0
    %3659 = vmatpush1.bf16.msra.mxu0 %v3636
    %3660 = vmatprep.subr.bf16.mxu0 0
    %3661 = vmatpush1.bf16.msra.mxu0 %v3637
    %3662 = vmatprep.subr.bf16.mxu0 0
    %3663 = vmatpush1.bf16.msra.mxu0 0
    %3664 = vmatprep.subr.bf16.mxu0 0
    %3665 = vmatpush1.bf16.msra.mxu0 0
    %3666 = vmatprep.subr.bf16.mxu0 0
    %3667 = vmatpush1.bf16.msra.mxu0 0
    %3668 = vmatprep.subr.bf16.mxu0 0
    %3669 = vmatpush1.bf16.msra.mxu0 0
    %3670 = vmatprep.subr.bf16.mxu0 0
    %3671 = vmatpush1.bf16.msra.mxu0 0
    %3672 = vmatprep.subr.bf16.mxu0 0
    %3673 = vmatpush1.bf16.msra.mxu0 0
    %3674 = vmatprep.subr.bf16.mxu0 0
    %3675 = vmatpush1.bf16.msra.mxu0 0
    %3676 = vmatprep.subr.bf16.mxu0 0
    %3677 = vmatpush1.bf16.msra.mxu0 0
    %3678 = vmatprep.mubr.bf16.mxu0 0
    %3679 = vmatmul.mubr.bf16.gmra.mrb[0].mxu0 %v3580
    %v3680 = vpop.f32.mrb[0].mxu0
    %v3681 = vadd.f32 0.0, %v3680
    %v3682 = vpop.f32.mrb[0].mxu0
    %v3683 = vpop.f32.mrb[0].mxu0
    %v3684 = vadd.f32 0.0, %v3683
    %v3685 = vpop.f32.mrb[0].mxu0
    %3686 = vdwg.mxu0
    %v3703 = vunpack.c.l.b16 %v3509
    %v3704 = vunpack.c.l.b16 %v3510
    %v3705 = vunpack.c.l.b16 %v3511
    %v3706 = vunpack.c.l.b16 %v3512
    %v3707 = vunpack.c.l.b16 %v3513
    %v3708 = vunpack.c.l.b16 %v3514
    %v3709 = vunpack.c.l.b16 %v3515
    %v3710 = vunpack.c.l.b16 %v3516
    %v3711 = vunpack.c.l.b16 %v3517
    %v3712 = vunpack.c.l.b16 %v3518
    %v3713 = vunpack.c.l.b16 %v3519
    %v3714 = vunpack.c.l.b16 %v3520
    %v3715 = vunpack.c.l.b16 %v3521
    %v3716 = vunpack.c.l.b16 %v3522
    %v3717 = vunpack.c.l.b16 %v3523
    %v3718 = vunpack.c.l.b16 %v3524
    %v3719 = vpack.c.b16 %v3704, %v3703
    %v3720 = vpack.c.b16 %v3706, %v3705
    %v3721 = vpack.c.b16 %v3708, %v3707
    %v3722 = vpack.c.b16 %v3710, %v3709
    %v3723 = vpack.c.b16 %v3712, %v3711
    %v3724 = vpack.c.b16 %v3714, %v3713
    %v3725 = vpack.c.b16 %v3716, %v3715
    %v3726 = vpack.c.b16 %v3718, %v3717
    %3735 = vmatprep.subr.bf16.mxu0 0
    %3736 = vmatpush1.bf16.msra.mxu0 %v3719
    %3737 = vmatprep.subr.bf16.mxu0 0
    %3738 = vmatpush1.bf16.msra.mxu0 %v3720
    %3739 = vmatprep.subr.bf16.mxu0 0
    %3740 = vmatpush1.bf16.msra.mxu0 %v3721
    %3741 = vmatprep.subr.bf16.mxu0 0
    %3742 = vmatpush1.bf16.msra.mxu0 %v3722
    %3743 = vmatprep.subr.bf16.mxu0 0
    %3744 = vmatpush1.bf16.msra.mxu0 %v3723
    %3745 = vmatprep.subr.bf16.mxu0 0
    %3746 = vmatpush1.bf16.msra.mxu0 %v3724
    %3747 = vmatprep.subr.bf16.mxu0 0
    %3748 = vmatpush1.bf16.msra.mxu0 %v3725
    %3749 = vmatprep.subr.bf16.mxu0 0
    %3750 = vmatpush1.bf16.msra.mxu0 %v3726
    %3751 = vmatprep.subr.bf16.mxu0 0
    %3752 = vmatpush1.bf16.msra.mxu0 0
    %3753 = vmatprep.subr.bf16.mxu0 0
    %3754 = vmatpush1.bf16.msra.mxu0 0
    %3755 = vmatprep.subr.bf16.mxu0 0
    %3756 = vmatpush1.bf16.msra.mxu0 0
    %3757 = vmatprep.subr.bf16.mxu0 0
    %3758 = vmatpush1.bf16.msra.mxu0 0
    %3759 = vmatprep.subr.bf16.mxu0 0
    %3760 = vmatpush1.bf16.msra.mxu0 0
    %3761 = vmatprep.subr.bf16.mxu0 0
    %3762 = vmatpush1.bf16.msra.mxu0 0
    %3763 = vmatprep.subr.bf16.mxu0 0
    %3764 = vmatpush1.bf16.msra.mxu0 0
    %3765 = vmatprep.subr.bf16.mxu0 0
    %3766 = vmatpush1.bf16.msra.mxu0 0
    %3767 = vmatprep.mubr.bf16.mxu0 0
    %3768 = vmatmul.mubr.bf16.gmra.mrb[0].mxu0 %v3507
    %v3769 = vpop.f32.mrb[0].mxu0
    %v3770 = vadd.f32 %v3681, %v3769
    %v3771 = vpop.f32.mrb[0].mxu0
    %v3772 = vpop.f32.mrb[0].mxu0
    %v3773 = vadd.f32 %v3684, %v3772
    %v3774 = vpop.f32.mrb[0].mxu0
    %3775 = vdwg.mxu0
    %vm3776 = vmand %vm3426, %vm1244
    %vm3777 = vmand %vm3427, %vm1246
    %vm3778 = vcmp.eq.s32.totalorder %v3447, 1
    %vm3779 = vcmp.eq.s32.totalorder %v3448, 1
    %vm3780 = vmand %vm3443, %vm3778
    %vm3781 = vmand %vm3444, %vm3779
    %vm3782 = vmor %vm3776, %vm3780
    %vm3783 = vmor %vm3777, %vm3781
    %v3784 = vsel %vm3782, 1.0, 0.0
    %v3785 = vsel %vm3783, 1.0, 0.0
    %v3786 = vpack.c.bf16 %v3785, %v3784
    %v3788 = vsel %vm3458, %v3786, 0
    %3790 = vmatprep.subr.bf16.mxu0 0
    %3791 = vmatpush1.bf16.msra.mxu0 %v3417
    %3792 = vmatprep.subr.bf16.mxu0 0
    %3793 = vmatpush1.bf16.msra.mxu0 %v3464
    %3794 = vmatprep.subr.bf16.mxu0 0
    %3795 = vmatpush1.bf16.msra.mxu0 0
    %3796 = vmatprep.subr.bf16.mxu0 0
    %3797 = vmatpush1.bf16.msra.mxu0 0
    %3798 = vmatprep.subr.bf16.mxu0 0
    %3799 = vmatpush1.bf16.msra.mxu0 0
    %3800 = vmatprep.subr.bf16.mxu0 0
    %3801 = vmatpush1.bf16.msra.mxu0 0
    %3802 = vmatprep.subr.bf16.mxu0 0
    %3803 = vmatpush1.bf16.msra.mxu0 0
    %3804 = vmatprep.subr.bf16.mxu0 0
    %3805 = vmatpush1.bf16.msra.mxu0 0
    %3806 = vmatprep.subr.bf16.mxu0 0
    %3807 = vmatpush1.bf16.msra.mxu0 0
    %3808 = vmatprep.subr.bf16.mxu0 0
    %3809 = vmatpush1.bf16.msra.mxu0 0
    %3810 = vmatprep.subr.bf16.mxu0 0
    %3811 = vmatpush1.bf16.msra.mxu0 0
    %3812 = vmatprep.subr.bf16.mxu0 0
    %3813 = vmatpush1.bf16.msra.mxu0 0
    %3814 = vmatprep.subr.bf16.mxu0 0
    %3815 = vmatpush1.bf16.msra.mxu0 0
    %3816 = vmatprep.subr.bf16.mxu0 0
    %3817 = vmatpush1.bf16.msra.mxu0 0
    %3818 = vmatprep.subr.bf16.mxu0 0
    %3819 = vmatpush1.bf16.msra.mxu0 0
    %3820 = vmatprep.subr.bf16.mxu0 0
    %3821 = vmatpush1.bf16.msra.mxu0 0
    %3822 = vmatprep.mubr.bf16.mxu0 0
    %3823 = vmatmul.mubr.bf16.gmra.mrb[0].mxu0 %v3788
    %v3824 = vpop.f32.mrb[0].mxu0
    %v3825 = vadd.f32 0.0, %v3824
    %v3826 = vpop.f32.mrb[0].mxu0
    %v3827 = vpop.f32.mrb[0].mxu0
    %v3828 = vadd.f32 0.0, %v3827
    %v3829 = vpop.f32.mrb[0].mxu0
    %3830 = vdwg.mxu0
    %v3831 = vpack.c.bf16 %v3828, %v3825
    %s3832 = scalar_lea.vmem %s1, 704
    %v3833 = vld [vmem:[%s3832] sm:$0xf]
    %v3834 = vld [vmem:[%s3832 + $0x4] sm:$0xf]
    %v3835 = vld [vmem:[%s3832 + $0x8] sm:$0xf]
    %v3836 = vld [vmem:[%s3832 + $0xc] sm:$0xf]
    %v3837 = vld [vmem:[%s3832 + $0x10] sm:$0xf]
    %v3838 = vld [vmem:[%s3832 + $0x14] sm:$0xf]
    %v3839 = vld [vmem:[%s3832 + $0x18] sm:$0xf]
    %v3840 = vld [vmem:[%s3832 + $0x1c] sm:$0xf]
    %v3841 = vld [vmem:[%s3832 + $0x20] sm:$0xf]
    %v3842 = vld [vmem:[%s3832 + $0x24] sm:$0xf]
    %v3843 = vld [vmem:[%s3832 + $0x28] sm:$0xf]
    %v3844 = vld [vmem:[%s3832 + $0x2c] sm:$0xf]
    %v3845 = vld [vmem:[%s3832 + $0x30] sm:$0xf]
    %v3846 = vld [vmem:[%s3832 + $0x34] sm:$0xf]
    %v3847 = vld [vmem:[%s3832 + $0x38] sm:$0xf]
    %v3848 = vld [vmem:[%s3832 + $0x3c] sm:$0xf]
    %v3865 = vunpack.c.l.b16 %v3833
    %v3866 = vunpack.c.l.b16 %v3834
    %v3867 = vunpack.c.l.b16 %v3835
    %v3868 = vunpack.c.l.b16 %v3836
    %v3869 = vunpack.c.l.b16 %v3837
    %v3870 = vunpack.c.l.b16 %v3838
    %v3871 = vunpack.c.l.b16 %v3839
    %v3872 = vunpack.c.l.b16 %v3840
    %v3873 = vunpack.c.l.b16 %v3841
    %v3874 = vunpack.c.l.b16 %v3842
    %v3875 = vunpack.c.l.b16 %v3843
    %v3876 = vunpack.c.l.b16 %v3844
    %v3877 = vunpack.c.l.b16 %v3845
    %v3878 = vunpack.c.l.b16 %v3846
    %v3879 = vunpack.c.l.b16 %v3847
    %v3880 = vunpack.c.l.b16 %v3848
    %v3881 = vpack.c.b16 %v3866, %v3865
    %v3882 = vpack.c.b16 %v3868, %v3867
    %v3883 = vpack.c.b16 %v3870, %v3869
    %v3884 = vpack.c.b16 %v3872, %v3871
    %v3885 = vpack.c.b16 %v3874, %v3873
    %v3886 = vpack.c.b16 %v3876, %v3875
    %v3887 = vpack.c.b16 %v3878, %v3877
    %v3888 = vpack.c.b16 %v3880, %v3879
    %3897 = vmatprep.subr.bf16.mxu0 0
    %3898 = vmatpush1.bf16.msra.mxu0 %v3881
    %3899 = vmatprep.subr.bf16.mxu0 0
    %3900 = vmatpush1.bf16.msra.mxu0 %v3882
    %3901 = vmatprep.subr.bf16.mxu0 0
    %3902 = vmatpush1.bf16.msra.mxu0 %v3883
    %3903 = vmatprep.subr.bf16.mxu0 0
    %3904 = vmatpush1.bf16.msra.mxu0 %v3884
    %3905 = vmatprep.subr.bf16.mxu0 0
    %3906 = vmatpush1.bf16.msra.mxu0 %v3885
    %3907 = vmatprep.subr.bf16.mxu0 0
    %3908 = vmatpush1.bf16.msra.mxu0 %v3886
    %3909 = vmatprep.subr.bf16.mxu0 0
    %3910 = vmatpush1.bf16.msra.mxu0 %v3887
    %3911 = vmatprep.subr.bf16.mxu0 0
    %3912 = vmatpush1.bf16.msra.mxu0 %v3888
    %3913 = vmatprep.subr.bf16.mxu0 0
    %3914 = vmatpush1.bf16.msra.mxu0 0
    %3915 = vmatprep.subr.bf16.mxu0 0
    %3916 = vmatpush1.bf16.msra.mxu0 0
    %3917 = vmatprep.subr.bf16.mxu0 0
    %3918 = vmatpush1.bf16.msra.mxu0 0
    %3919 = vmatprep.subr.bf16.mxu0 0
    %3920 = vmatpush1.bf16.msra.mxu0 0
    %3921 = vmatprep.subr.bf16.mxu0 0
    %3922 = vmatpush1.bf16.msra.mxu0 0
    %3923 = vmatprep.subr.bf16.mxu0 0
    %3924 = vmatpush1.bf16.msra.mxu0 0
    %3925 = vmatprep.subr.bf16.mxu0 0
    %3926 = vmatpush1.bf16.msra.mxu0 0
    %3927 = vmatprep.subr.bf16.mxu0 0
    %3928 = vmatpush1.bf16.msra.mxu0 0
    %3929 = vmatprep.mubr.bf16.mxu0 0
    %3930 = vmatmul.mubr.bf16.gmra.mrb[0].mxu0 %v3831
    %v3931 = vpop.f32.mrb[0].mxu0
    %v3932 = vadd.f32 0.0, %v3931
    %v3933 = vpop.f32.mrb[0].mxu0
    %v3934 = vpop.f32.mrb[0].mxu0
    %v3935 = vadd.f32 0.0, %v3934
    %v3936 = vpop.f32.mrb[0].mxu0
    %3937 = vdwg.mxu0
    %v3938 = vadd.f32 %v3770, %v3932
    %v3939 = vadd.f32 %v3773, %v3935
    %s3940 = scalar_lea.vmem %s2, 3
    %v3941 = vld [vmem:[%s3940] sm:$0x1]
    %v3943 = vlaneseq
    %v3944 = vshrl.u32 %v3943, 7
    %v3945 = vsub.s32 0, %v3944
    %v3946 = vrot.slane %v3941, %v3945
    %v3948 = vadd.f32 %v3938, %v3946
    %v3949 = vadd.f32 %v3939, %v3946
    %v3950 = vmax.f32 %v3948, 0.0
    %v3951 = vmax.f32 %v3949, 0.0
    %v3952 = vsel %vm3421, %v3950, -inf
    %v3953 = vsel %vm3422, %v3951, -inf
    %vm3954 = vcmask 1045504
    %v3955 = vsel %vm3954, %v3953, -inf
    %v3956 = vmax.f32 %v3952, %v3955
    %v3957 = vrot.slane %v3956, 4
    %v3958 = vmax.f32 %v3956, %v3957
    %v3959 = vrot.slane %v3958, 2
    %v3960 = vmax.f32 %v3958, %v3959
    %v3961 = vrot.slane %v3960, 1
    %v3962 = vmax.f32 %v3960, %v3961
    %vm3963 = vcmp.eq.f32.partialorder %v3952, %v3962
    %vm3964 = vcmp.eq.f32.partialorder %v3953, %v3962
    %v3965 = vsel %vm3963, %v63, 14
    %v3966 = vsel %vm3964, %v64, 14
    %v3967 = vsel %vm3954, %v3966, 2147483647
    %vm3968 = vcmp.lt.s32.totalorder %v3965, %v3967
    %v3969 = vsel %vm3968, %v3965, %v3967
    %v3970 = vrot.slane %v3969, 4
    %vm3971 = vcmp.lt.s32.totalorder %v3969, %v3970
    %v3972 = vsel %vm3971, %v3969, %v3970
    %v3973 = vrot.slane %v3972, 2
    %vm3974 = vcmp.lt.s32.totalorder %v3972, %v3973
    %v3975 = vsel %vm3974, %v3972, %v3973
    %v3976 = vrot.slane %v3975, 1
    %vm3977 = vcmp.lt.s32.totalorder %v3975, %v3976
    %v3978 = vsel %vm3977, %v3975, %v3976
    %vm3979 = vcmp.eq.s32.totalorder %v63, %v3978
    %vm3980 = vcmp.eq.s32.totalorder %v64, %v3978
    %v3981 = vsel %vm3979, %v3962, 0.0
    %v3982 = vsel %vm3980, %v3962, 0.0
    %v3983 = vadd.f32 %v3981, 0.0
    %v3984 = vadd.f32 %v3982, 0.0
    %vm3985 = vcmp.eq.s32.totalorder %v63, 0
    %v3986 = vsel %vm3985, %v3962, 0.0
    %v3987 = vadd.f32 %v3986, 0.0
    %vm3988 = vcmp.ge.s32.totalorder %v63, 7
    %vm3989 = vcmp.ge.s32.totalorder %v64, 7
    %vm3990 = vcmp.lt.s32.totalorder %v63, 14
    %vm3991 = vcmp.lt.s32.totalorder %v64, 14
    %vm3992 = vmand %vm3988, %vm3990
    %vm3993 = vmand %vm3989, %vm3991
    %v3994 = vsel %vm3992, %v3950, -inf
    %v3995 = vsel %vm3993, %v3951, -inf
    %v3996 = vsel %vm3954, %v3995, -inf
    %v3997 = vmax.f32 %v3994, %v3996
    %v3998 = vrot.slane %v3997, 4
    %v3999 = vmax.f32 %v3997, %v3998
    %v4000 = vrot.slane %v3999, 2
    %v4001 = vmax.f32 %v3999, %v4000
    %v4002 = vrot.slane %v4001, 1
    %v4003 = vmax.f32 %v4001, %v4002
    %vm4004 = vcmp.eq.f32.partialorder %v3994, %v4003
    %vm4005 = vcmp.eq.f32.partialorder %v3995, %v4003
    %v4006 = vsel %vm4004, %v63, 14
    %v4007 = vsel %vm4005, %v64, 14
    %v4008 = vsel %vm3954, %v4007, 2147483647
    %vm4009 = vcmp.lt.s32.totalorder %v4006, %v4008
    %v4010 = vsel %vm4009, %v4006, %v4008
    %v4011 = vrot.slane %v4010, 4
    %vm4012 = vcmp.lt.s32.totalorder %v4010, %v4011
    %v4013 = vsel %vm4012, %v4010, %v4011
    %v4014 = vrot.slane %v4013, 2
    %vm4015 = vcmp.lt.s32.totalorder %v4013, %v4014
    %v4016 = vsel %vm4015, %v4013, %v4014
    %v4017 = vrot.slane %v4016, 1
    %vm4018 = vcmp.lt.s32.totalorder %v4016, %v4017
    %v4019 = vsel %vm4018, %v4016, %v4017
    %vm4020 = vcmp.eq.s32.totalorder %v63, %v4019
    %vm4021 = vcmp.eq.s32.totalorder %v64, %v4019
    %v4022 = vsel %vm4020, %v4003, 0.0
    %v4023 = vsel %vm4021, %v4003, 0.0
    %v4024 = vadd.f32 %v3983, %v4022
    %v4025 = vadd.f32 %v3984, %v4023
    %vm4026 = vcmp.eq.s32.totalorder %v63, 1
    %v4027 = vsel %vm4026, %v4003, 0.0
    %v4028 = vadd.f32 %v3987, %v4027
    %4029 = vst [vmem:[#allocation2] sm:$0x3] %v4028
    %v4030 = vpack.c.bf16 %v4025, %v4024
    %vm4031 = vcmp.lt.s32.totalorder %v77, 7
    %vm4032 = vmand %vm2769, %vm4031
    %vm4033 = vmand %vm2770, %vm4031
    %vm4034 = vmand %vm2771, %vm4031
    %vm4035 = vmand %vm2772, %vm4031
    %v4036 = vmul.u32 %v77, 2
    %v4037 = vsub.s32 %v4036, %v63
    %v4038 = vsub.s32 %v4036, %v64
    %v4039 = vsub.s32 %v4036, %v65
    %v4040 = vsub.s32 %v4036, %v66
    %vm4041 = vcmp.eq.s32.totalorder %v4037, 1
    %vm4042 = vcmp.eq.s32.totalorder %v4038, 1
    %vm4043 = vcmp.eq.s32.totalorder %v4039, 1
    %vm4044 = vcmp.eq.s32.totalorder %v4040, 1
    %vm4045 = vmand %vm4032, %vm4041
    %vm4046 = vmand %vm4033, %vm4042
    %vm4047 = vmand %vm4034, %vm4043
    %vm4048 = vmand %vm4035, %vm4044
    %v4049 = vsub.s32 %v77, 7
    %vm4050 = vcmp.ge.s32.totalorder %v4049, 0
    %vm4051 = vmand %vm2795, %vm4050
    %vm4052 = vmand %vm2796, %vm4050
    %vm4053 = vmand %vm2797, %vm4050
    %vm4054 = vmand %vm2798, %vm4050
    %vm4055 = vcmp.lt.s32.totalorder %v4049, 7
    %vm4056 = vmand %vm4051, %vm4055
    %vm4057 = vmand %vm4052, %vm4055
    %vm4058 = vmand %vm4053, %vm4055
    %vm4059 = vmand %vm4054, %vm4055
    %v4060 = vmul.u32 %v4049, 2
    %v4061 = vsub.s32 %v4060, %v2782
    %v4062 = vsub.s32 %v4060, %v2783
    %v4063 = vsub.s32 %v4060, %v2784
    %v4064 = vsub.s32 %v4060, %v2785
    %vm4065 = vcmp.eq.s32.totalorder %v4061, 1
    %vm4066 = vcmp.eq.s32.totalorder %v4062, 1
    %vm4067 = vcmp.eq.s32.totalorder %v4063, 1
    %vm4068 = vcmp.eq.s32.totalorder %v4064, 1
    %vm4069 = vmand %vm4056, %vm4065
    %vm4070 = vmand %vm4057, %vm4066
    %vm4071 = vmand %vm4058, %vm4067
    %vm4072 = vmand %vm4059, %vm4068
    %vm4073 = vmor %vm4045, %vm4069
    %vm4074 = vmor %vm4046, %vm4070
    %vm4075 = vmor %vm4047, %vm4071
    %vm4076 = vmor %vm4048, %vm4072
    %v4077 = vsel %vm4073, 1.0, 0.0
    %v4078 = vsel %vm4074, 1.0, 0.0
    %v4079 = vsel %vm4075, 1.0, 0.0
    %v4080 = vsel %vm4076, 1.0, 0.0
    %v4081 = vpack.c.bf16 %v4078, %v4077
    %v4082 = vpack.c.bf16 %v4080, %v4079
    %vm4083 = vcmask 113664
    %v4085 = vsel %vm4083, %v4081, 0
    %v4088 = vsel %vm4083, %v4082, 0
    %vm4090 = vcmask 1046528
    %v4092 = vsel %vm4090, %v4030, 0
    %4094 = vmatprep.subr.bf16.mxu0 0
    %4095 = vmatpush1.bf16.msra.mxu0 %v4092
    %4096 = vmatprep.subr.bf16.mxu0 0
    %4097 = vmatpush1.bf16.msra.mxu0 0
    %4098 = vmatprep.subr.bf16.mxu0 0
    %4099 = vmatpush1.bf16.msra.mxu0 0
    %4100 = vmatprep.subr.bf16.mxu0 0
    %4101 = vmatpush1.bf16.msra.mxu0 0
    %4102 = vmatprep.subr.bf16.mxu0 0
    %4103 = vmatpush1.bf16.msra.mxu0 0
    %4104 = vmatprep.subr.bf16.mxu0 0
    %4105 = vmatpush1.bf16.msra.mxu0 0
    %4106 = vmatprep.subr.bf16.mxu0 0
    %4107 = vmatpush1.bf16.msra.mxu0 0
    %4108 = vmatprep.subr.bf16.mxu0 0
    %4109 = vmatpush1.bf16.msra.mxu0 0
    %4110 = vmatprep.subr.bf16.mxu0 0
    %4111 = vmatpush1.bf16.msra.mxu0 0
    %4112 = vmatprep.subr.bf16.mxu0 0
    %4113 = vmatpush1.bf16.msra.mxu0 0
    %4114 = vmatprep.subr.bf16.mxu0 0
    %4115 = vmatpush1.bf16.msra.mxu0 0
    %4116 = vmatprep.subr.bf16.mxu0 0
    %4117 = vmatpush1.bf16.msra.mxu0 0
    %4118 = vmatprep.subr.bf16.mxu0 0
    %4119 = vmatpush1.bf16.msra.mxu0 0
    %4120 = vmatprep.subr.bf16.mxu0 0
    %4121 = vmatpush1.bf16.msra.mxu0 0
    %4122 = vmatprep.subr.bf16.mxu0 0
    %4123 = vmatpush1.bf16.msra.mxu0 0
    %4124 = vmatprep.subr.bf16.mxu0 0
    %4125 = vmatpush1.bf16.msra.mxu0 0
    %4126 = vmatprep.mubr.bf16.mxu0 0
    %4127 = vmatmul.mubr.bf16.gmra.mrb[0].mxu0 %v4085
    %v4128 = vpop.f32.mrb[0].mxu0
    %v4129 = vadd.f32 0.0, %v4128
    %v4130 = vpop.f32.mrb[0].mxu0
    %v4131 = vpop.f32.mrb[0].mxu0
    %v4132 = vadd.f32 0.0, %v4131
    %v4133 = vpop.f32.mrb[0].mxu0
    %4134 = vmatprep.mubr.bf16.mxu0 0
    %4135 = vmatmul.mubr.bf16.gmra.mrb[0].mxu0 %v4088
    %v4136 = vpop.f32.mrb[0].mxu0
    %v4137 = vadd.f32 0.0, %v4136
    %v4138 = vpop.f32.mrb[0].mxu0
    %v4139 = vpop.f32.mrb[0].mxu0
    %v4140 = vadd.f32 0.0, %v4139
    %v4141 = vpop.f32.mrb[0].mxu0
    %4142 = vdwg.mxu0
    %v4143 = vpack.c.bf16 %v4132, %v4129
    %v4144 = vpack.c.bf16 %v4140, %v4137
    %s4145 = scalar_lea.vmem %s1, 768
    %v4146 = vld [vmem:[%s4145] sm:$0xf]
    %v4147 = vld [vmem:[%s4145 + $0x4] sm:$0xf]
    %v4148 = vld [vmem:[%s4145 + $0x8] sm:$0xf]
    %v4149 = vld [vmem:[%s4145 + $0xc] sm:$0xf]
    %v4150 = vld [vmem:[%s4145 + $0x10] sm:$0xf]
    %v4151 = vld [vmem:[%s4145 + $0x14] sm:$0xf]
    %v4152 = vld [vmem:[%s4145 + $0x18] sm:$0xf]
    %v4153 = vld [vmem:[%s4145 + $0x1c] sm:$0xf]
    %v4154 = vld [vmem:[%s4145 + $0x20] sm:$0xf]
    %v4155 = vld [vmem:[%s4145 + $0x24] sm:$0xf]
    %v4156 = vld [vmem:[%s4145 + $0x28] sm:$0xf]
    %v4157 = vld [vmem:[%s4145 + $0x2c] sm:$0xf]
    %v4158 = vld [vmem:[%s4145 + $0x30] sm:$0xf]
    %v4159 = vld [vmem:[%s4145 + $0x34] sm:$0xf]
    %v4160 = vld [vmem:[%s4145 + $0x38] sm:$0xf]
    %v4161 = vld [vmem:[%s4145 + $0x3c] sm:$0xf]
    %vm4162 = vcmp.eq.s32.totalorder %v4037, 0
    %vm4163 = vcmp.eq.s32.totalorder %v4038, 0
    %vm4164 = vcmp.eq.s32.totalorder %v4039, 0
    %vm4165 = vcmp.eq.s32.totalorder %v4040, 0
    %vm4166 = vmand %vm4032, %vm4162
    %vm4167 = vmand %vm4033, %vm4163
    %vm4168 = vmand %vm4034, %vm4164
    %vm4169 = vmand %vm4035, %vm4165
    %vm4170 = vcmp.eq.s32.totalorder %v4061, 0
    %vm4171 = vcmp.eq.s32.totalorder %v4062, 0
    %vm4172 = vcmp.eq.s32.totalorder %v4063, 0
    %vm4173 = vcmp.eq.s32.totalorder %v4064, 0
    %vm4174 = vmand %vm4056, %vm4170
    %vm4175 = vmand %vm4057, %vm4171
    %vm4176 = vmand %vm4058, %vm4172
    %vm4177 = vmand %vm4059, %vm4173
    %vm4178 = vmor %vm4166, %vm4174
    %vm4179 = vmor %vm4167, %vm4175
    %vm4180 = vmor %vm4168, %vm4176
    %vm4181 = vmor %vm4169, %vm4177
    %v4182 = vsel %vm4178, 1.0, 0.0
    %v4183 = vsel %vm4179, 1.0, 0.0
    %v4184 = vsel %vm4180, 1.0, 0.0
    %v4185 = vsel %vm4181, 1.0, 0.0
    %v4186 = vpack.c.bf16 %v4183, %v4182
    %v4187 = vpack.c.bf16 %v4185, %v4184
    %v4189 = vsel %vm4083, %v4186, 0
    %v4192 = vsel %vm4083, %v4187, 0
    %4194 = vmatprep.subr.bf16.mxu0 0
    %4195 = vmatpush1.bf16.msra.mxu0 %v4092
    %4196 = vmatprep.subr.bf16.mxu0 0
    %4197 = vmatpush1.bf16.msra.mxu0 0
    %4198 = vmatprep.subr.bf16.mxu0 0
    %4199 = vmatpush1.bf16.msra.mxu0 0
    %4200 = vmatprep.subr.bf16.mxu0 0
    %4201 = vmatpush1.bf16.msra.mxu0 0
    %4202 = vmatprep.subr.bf16.mxu0 0
    %4203 = vmatpush1.bf16.msra.mxu0 0
    %4204 = vmatprep.subr.bf16.mxu0 0
    %4205 = vmatpush1.bf16.msra.mxu0 0
    %4206 = vmatprep.subr.bf16.mxu0 0
    %4207 = vmatpush1.bf16.msra.mxu0 0
    %4208 = vmatprep.subr.bf16.mxu0 0
    %4209 = vmatpush1.bf16.msra.mxu0 0
    %4210 = vmatprep.subr.bf16.mxu0 0
    %4211 = vmatpush1.bf16.msra.mxu0 0
    %4212 = vmatprep.subr.bf16.mxu0 0
    %4213 = vmatpush1.bf16.msra.mxu0 0
    %4214 = vmatprep.subr.bf16.mxu0 0
    %4215 = vmatpush1.bf16.msra.mxu0 0
    %4216 = vmatprep.subr.bf16.mxu0 0
    %4217 = vmatpush1.bf16.msra.mxu0 0
    %4218 = vmatprep.subr.bf16.mxu0 0
    %4219 = vmatpush1.bf16.msra.mxu0 0
    %4220 = vmatprep.subr.bf16.mxu0 0
    %4221 = vmatpush1.bf16.msra.mxu0 0
    %4222 = vmatprep.subr.bf16.mxu0 0
    %4223 = vmatpush1.bf16.msra.mxu0 0
    %4224 = vmatprep.subr.bf16.mxu0 0
    %4225 = vmatpush1.bf16.msra.mxu0 0
    %4226 = vmatprep.mubr.bf16.mxu0 0
    %4227 = vmatmul.mubr.bf16.gmra.mrb[0].mxu0 %v4189
    %v4228 = vpop.f32.mrb[0].mxu0
    %v4229 = vadd.f32 0.0, %v4228
    %v4230 = vpop.f32.mrb[0].mxu0
    %v4231 = vpop.f32.mrb[0].mxu0
    %v4232 = vadd.f32 0.0, %v4231
    %v4233 = vpop.f32.mrb[0].mxu0
    %4234 = vmatprep.mubr.bf16.mxu0 0
    %4235 = vmatmul.mubr.bf16.gmra.mrb[0].mxu0 %v4192
    %v4236 = vpop.f32.mrb[0].mxu0
    %v4237 = vadd.f32 0.0, %v4236
    %v4238 = vpop.f32.mrb[0].mxu0
    %v4239 = vpop.f32.mrb[0].mxu0
    %v4240 = vadd.f32 0.0, %v4239
    %v4241 = vpop.f32.mrb[0].mxu0
    %4242 = vdwg.mxu0
    %v4243 = vpack.c.bf16 %v4232, %v4229
    %v4244 = vpack.c.bf16 %v4240, %v4237
    %s4245 = scalar_lea.vmem %s1, 832
    %v4246 = vld [vmem:[%s4245] sm:$0xf]
    %v4247 = vld [vmem:[%s4245 + $0x4] sm:$0xf]
    %v4248 = vld [vmem:[%s4245 + $0x8] sm:$0xf]
    %v4249 = vld [vmem:[%s4245 + $0xc] sm:$0xf]
    %v4250 = vld [vmem:[%s4245 + $0x10] sm:$0xf]
    %v4251 = vld [vmem:[%s4245 + $0x14] sm:$0xf]
    %v4252 = vld [vmem:[%s4245 + $0x18] sm:$0xf]
    %v4253 = vld [vmem:[%s4245 + $0x1c] sm:$0xf]
    %v4254 = vld [vmem:[%s4245 + $0x20] sm:$0xf]
    %v4255 = vld [vmem:[%s4245 + $0x24] sm:$0xf]
    %v4256 = vld [vmem:[%s4245 + $0x28] sm:$0xf]
    %v4257 = vld [vmem:[%s4245 + $0x2c] sm:$0xf]
    %v4258 = vld [vmem:[%s4245 + $0x30] sm:$0xf]
    %v4259 = vld [vmem:[%s4245 + $0x34] sm:$0xf]
    %v4260 = vld [vmem:[%s4245 + $0x38] sm:$0xf]
    %v4261 = vld [vmem:[%s4245 + $0x3c] sm:$0xf]
    %v4278 = vunpack.c.l.b16 %v4246
    %v4279 = vunpack.c.l.b16 %v4247
    %v4280 = vunpack.c.l.b16 %v4248
    %v4281 = vunpack.c.l.b16 %v4249
    %v4282 = vunpack.c.l.b16 %v4250
    %v4283 = vunpack.c.l.b16 %v4251
    %v4284 = vunpack.c.l.b16 %v4252
    %v4285 = vunpack.c.l.b16 %v4253
    %v4286 = vunpack.c.l.b16 %v4254
    %v4287 = vunpack.c.l.b16 %v4255
    %v4288 = vunpack.c.l.b16 %v4256
    %v4289 = vunpack.c.l.b16 %v4257
    %v4290 = vunpack.c.l.b16 %v4258
    %v4291 = vunpack.c.l.b16 %v4259
    %v4292 = vunpack.c.l.b16 %v4260
    %v4293 = vunpack.c.l.b16 %v4261
    %v4294 = vpack.c.b16 %v4279, %v4278
    %v4295 = vpack.c.b16 %v4281, %v4280
    %v4296 = vpack.c.b16 %v4283, %v4282
    %v4297 = vpack.c.b16 %v4285, %v4284
    %v4298 = vpack.c.b16 %v4287, %v4286
    %v4299 = vpack.c.b16 %v4289, %v4288
    %v4300 = vpack.c.b16 %v4291, %v4290
    %v4301 = vpack.c.b16 %v4293, %v4292
    %4310 = vmatprep.subr.bf16.mxu0 0
    %4311 = vmatpush1.bf16.msra.mxu0 %v4294
    %4312 = vmatprep.subr.bf16.mxu0 0
    %4313 = vmatpush1.bf16.msra.mxu0 %v4295
    %4314 = vmatprep.subr.bf16.mxu0 0
    %4315 = vmatpush1.bf16.msra.mxu0 %v4296
    %4316 = vmatprep.subr.bf16.mxu0 0
    %4317 = vmatpush1.bf16.msra.mxu0 %v4297
    %4318 = vmatprep.subr.bf16.mxu0 0
    %4319 = vmatpush1.bf16.msra.mxu0 %v4298
    %4320 = vmatprep.subr.bf16.mxu0 0
    %4321 = vmatpush1.bf16.msra.mxu0 %v4299
    %4322 = vmatprep.subr.bf16.mxu0 0
    %4323 = vmatpush1.bf16.msra.mxu0 %v4300
    %4324 = vmatprep.subr.bf16.mxu0 0
    %4325 = vmatpush1.bf16.msra.mxu0 %v4301
    %4326 = vmatprep.subr.bf16.mxu0 0
    %4327 = vmatpush1.bf16.msra.mxu0 0
    %4328 = vmatprep.subr.bf16.mxu0 0
    %4329 = vmatpush1.bf16.msra.mxu0 0
    %4330 = vmatprep.subr.bf16.mxu0 0
    %4331 = vmatpush1.bf16.msra.mxu0 0
    %4332 = vmatprep.subr.bf16.mxu0 0
    %4333 = vmatpush1.bf16.msra.mxu0 0
    %4334 = vmatprep.subr.bf16.mxu0 0
    %4335 = vmatpush1.bf16.msra.mxu0 0
    %4336 = vmatprep.subr.bf16.mxu0 0
    %4337 = vmatpush1.bf16.msra.mxu0 0
    %4338 = vmatprep.subr.bf16.mxu0 0
    %4339 = vmatpush1.bf16.msra.mxu0 0
    %4340 = vmatprep.subr.bf16.mxu0 0
    %4341 = vmatpush1.bf16.msra.mxu0 0
    %4342 = vmatprep.mubr.bf16.mxu0 0
    %4343 = vmatmul.mubr.bf16.gmra.mrb[0].mxu0 %v4243
    %v4344 = vpop.f32.mrb[0].mxu0
    %v4345 = vadd.f32 0.0, %v4344
    %v4346 = vpop.f32.mrb[0].mxu0
    %v4347 = vpop.f32.mrb[0].mxu0
    %v4348 = vadd.f32 0.0, %v4347
    %v4349 = vpop.f32.mrb[0].mxu0
    %4350 = vmatprep.mubr.bf16.mxu0 0
    %4351 = vmatmul.mubr.bf16.gmra.mrb[0].mxu0 %v4244
    %v4352 = vpop.f32.mrb[0].mxu0
    %v4353 = vadd.f32 0.0, %v4352
    %v4354 = vpop.f32.mrb[0].mxu0
    %v4355 = vpop.f32.mrb[0].mxu0
    %v4356 = vadd.f32 0.0, %v4355
    %v4357 = vpop.f32.mrb[0].mxu0
    %4358 = vdwg.mxu0
    %v4375 = vunpack.c.l.b16 %v4146
    %v4376 = vunpack.c.l.b16 %v4147
    %v4377 = vunpack.c.l.b16 %v4148
    %v4378 = vunpack.c.l.b16 %v4149
    %v4379 = vunpack.c.l.b16 %v4150
    %v4380 = vunpack.c.l.b16 %v4151
    %v4381 = vunpack.c.l.b16 %v4152
    %v4382 = vunpack.c.l.b16 %v4153
    %v4383 = vunpack.c.l.b16 %v4154
    %v4384 = vunpack.c.l.b16 %v4155
    %v4385 = vunpack.c.l.b16 %v4156
    %v4386 = vunpack.c.l.b16 %v4157
    %v4387 = vunpack.c.l.b16 %v4158
    %v4388 = vunpack.c.l.b16 %v4159
    %v4389 = vunpack.c.l.b16 %v4160
    %v4390 = vunpack.c.l.b16 %v4161
    %v4391 = vpack.c.b16 %v4376, %v4375
    %v4392 = vpack.c.b16 %v4378, %v4377
    %v4393 = vpack.c.b16 %v4380, %v4379
    %v4394 = vpack.c.b16 %v4382, %v4381
    %v4395 = vpack.c.b16 %v4384, %v4383
    %v4396 = vpack.c.b16 %v4386, %v4385
    %v4397 = vpack.c.b16 %v4388, %v4387
    %v4398 = vpack.c.b16 %v4390, %v4389
    %4407 = vmatprep.subr.bf16.mxu0 0
    %4408 = vmatpush1.bf16.msra.mxu0 %v4391
    %4409 = vmatprep.subr.bf16.mxu0 0
    %4410 = vmatpush1.bf16.msra.mxu0 %v4392
    %4411 = vmatprep.subr.bf16.mxu0 0
    %4412 = vmatpush1.bf16.msra.mxu0 %v4393
    %4413 = vmatprep.subr.bf16.mxu0 0
    %4414 = vmatpush1.bf16.msra.mxu0 %v4394
    %4415 = vmatprep.subr.bf16.mxu0 0
    %4416 = vmatpush1.bf16.msra.mxu0 %v4395
    %4417 = vmatprep.subr.bf16.mxu0 0
    %4418 = vmatpush1.bf16.msra.mxu0 %v4396
    %4419 = vmatprep.subr.bf16.mxu0 0
    %4420 = vmatpush1.bf16.msra.mxu0 %v4397
    %4421 = vmatprep.subr.bf16.mxu0 0
    %4422 = vmatpush1.bf16.msra.mxu0 %v4398
    %4423 = vmatprep.subr.bf16.mxu0 0
    %4424 = vmatpush1.bf16.msra.mxu0 0
    %4425 = vmatprep.subr.bf16.mxu0 0
    %4426 = vmatpush1.bf16.msra.mxu0 0
    %4427 = vmatprep.subr.bf16.mxu0 0
    %4428 = vmatpush1.bf16.msra.mxu0 0
    %4429 = vmatprep.subr.bf16.mxu0 0
    %4430 = vmatpush1.bf16.msra.mxu0 0
    %4431 = vmatprep.subr.bf16.mxu0 0
    %4432 = vmatpush1.bf16.msra.mxu0 0
    %4433 = vmatprep.subr.bf16.mxu0 0
    %4434 = vmatpush1.bf16.msra.mxu0 0
    %4435 = vmatprep.subr.bf16.mxu0 0
    %4436 = vmatpush1.bf16.msra.mxu0 0
    %4437 = vmatprep.subr.bf16.mxu0 0
    %4438 = vmatpush1.bf16.msra.mxu0 0
    %4439 = vmatprep.mubr.bf16.mxu0 0
    %4440 = vmatmul.mubr.bf16.gmra.mrb[0].mxu0 %v4143
    %v4441 = vpop.f32.mrb[0].mxu0
    %v4442 = vadd.f32 %v4345, %v4441
    %v4443 = vpop.f32.mrb[0].mxu0
    %v4444 = vpop.f32.mrb[0].mxu0
    %v4445 = vadd.f32 %v4348, %v4444
    %v4446 = vpop.f32.mrb[0].mxu0
    %4447 = vmatprep.mubr.bf16.mxu0 0
    %4448 = vmatmul.mubr.bf16.gmra.mrb[0].mxu0 %v4144
    %v4449 = vpop.f32.mrb[0].mxu0
    %v4450 = vadd.f32 %v4353, %v4449
    %v4451 = vpop.f32.mrb[0].mxu0
    %v4452 = vpop.f32.mrb[0].mxu0
    %v4453 = vadd.f32 %v4356, %v4452
    %v4454 = vpop.f32.mrb[0].mxu0
    %4455 = vdwg.mxu0
    %vm4456 = vcmp.eq.s32.totalorder %v4037, 4294967295
    %vm4457 = vcmp.eq.s32.totalorder %v4038, 4294967295
    %vm4458 = vcmp.eq.s32.totalorder %v4039, 4294967295
    %vm4459 = vcmp.eq.s32.totalorder %v4040, 4294967295
    %vm4460 = vmand %vm4032, %vm4456
    %vm4461 = vmand %vm4033, %vm4457
    %vm4462 = vmand %vm4034, %vm4458
    %vm4463 = vmand %vm4035, %vm4459
    %vm4464 = vcmp.eq.s32.totalorder %v4061, 4294967295
    %vm4465 = vcmp.eq.s32.totalorder %v4062, 4294967295
    %vm4466 = vcmp.eq.s32.totalorder %v4063, 4294967295
    %vm4467 = vcmp.eq.s32.totalorder %v4064, 4294967295
    %vm4468 = vmand %vm4056, %vm4464
    %vm4469 = vmand %vm4057, %vm4465
    %vm4470 = vmand %vm4058, %vm4466
    %vm4471 = vmand %vm4059, %vm4467
    %vm4472 = vmor %vm4460, %vm4468
    %vm4473 = vmor %vm4461, %vm4469
    %vm4474 = vmor %vm4462, %vm4470
    %vm4475 = vmor %vm4463, %vm4471
    %v4476 = vsel %vm4472, 1.0, 0.0
    %v4477 = vsel %vm4473, 1.0, 0.0
    %v4478 = vsel %vm4474, 1.0, 0.0
    %v4479 = vsel %vm4475, 1.0, 0.0
    %v4480 = vpack.c.bf16 %v4477, %v4476
    %v4481 = vpack.c.bf16 %v4479, %v4478
    %v4483 = vsel %vm4083, %v4480, 0
    %v4486 = vsel %vm4083, %v4481, 0
    %4488 = vmatprep.subr.bf16.mxu0 0
    %4489 = vmatpush1.bf16.msra.mxu0 %v4092
    %4490 = vmatprep.subr.bf16.mxu0 0
    %4491 = vmatpush1.bf16.msra.mxu0 0
    %4492 = vmatprep.subr.bf16.mxu0 0
    %4493 = vmatpush1.bf16.msra.mxu0 0
    %4494 = vmatprep.subr.bf16.mxu0 0
    %4495 = vmatpush1.bf16.msra.mxu0 0
    %4496 = vmatprep.subr.bf16.mxu0 0
    %4497 = vmatpush1.bf16.msra.mxu0 0
    %4498 = vmatprep.subr.bf16.mxu0 0
    %4499 = vmatpush1.bf16.msra.mxu0 0
    %4500 = vmatprep.subr.bf16.mxu0 0
    %4501 = vmatpush1.bf16.msra.mxu0 0
    %4502 = vmatprep.subr.bf16.mxu0 0
    %4503 = vmatpush1.bf16.msra.mxu0 0
    %4504 = vmatprep.subr.bf16.mxu0 0
    %4505 = vmatpush1.bf16.msra.mxu0 0
    %4506 = vmatprep.subr.bf16.mxu0 0
    %4507 = vmatpush1.bf16.msra.mxu0 0
    %4508 = vmatprep.subr.bf16.mxu0 0
    %4509 = vmatpush1.bf16.msra.mxu0 0
    %4510 = vmatprep.subr.bf16.mxu0 0
    %4511 = vmatpush1.bf16.msra.mxu0 0
    %4512 = vmatprep.subr.bf16.mxu0 0
    %4513 = vmatpush1.bf16.msra.mxu0 0
    %4514 = vmatprep.subr.bf16.mxu0 0
    %4515 = vmatpush1.bf16.msra.mxu0 0
    %4516 = vmatprep.subr.bf16.mxu0 0
    %4517 = vmatpush1.bf16.msra.mxu0 0
    %4518 = vmatprep.subr.bf16.mxu0 0
    %4519 = vmatpush1.bf16.msra.mxu0 0
    %4520 = vmatprep.mubr.bf16.mxu0 0
    %4521 = vmatmul.mubr.bf16.gmra.mrb[0].mxu0 %v4483
    %v4522 = vpop.f32.mrb[0].mxu0
    %v4523 = vadd.f32 0.0, %v4522
    %v4524 = vpop.f32.mrb[0].mxu0
    %v4525 = vpop.f32.mrb[0].mxu0
    %v4526 = vadd.f32 0.0, %v4525
    %v4527 = vpop.f32.mrb[0].mxu0
    %4528 = vmatprep.mubr.bf16.mxu0 0
    %4529 = vmatmul.mubr.bf16.gmra.mrb[0].mxu0 %v4486
    %v4530 = vpop.f32.mrb[0].mxu0
    %v4531 = vadd.f32 0.0, %v4530
    %v4532 = vpop.f32.mrb[0].mxu0
    %v4533 = vpop.f32.mrb[0].mxu0
    %v4534 = vadd.f32 0.0, %v4533
    %v4535 = vpop.f32.mrb[0].mxu0
    %4536 = vdwg.mxu0
    %v4537 = vpack.c.bf16 %v4526, %v4523
    %v4538 = vpack.c.bf16 %v4534, %v4531
    %s4539 = scalar_lea.vmem %s1, 896
    %v4540 = vld [vmem:[%s4539] sm:$0xf]
    %v4541 = vld [vmem:[%s4539 + $0x4] sm:$0xf]
    %v4542 = vld [vmem:[%s4539 + $0x8] sm:$0xf]
    %v4543 = vld [vmem:[%s4539 + $0xc] sm:$0xf]
    %v4544 = vld [vmem:[%s4539 + $0x10] sm:$0xf]
    %v4545 = vld [vmem:[%s4539 + $0x14] sm:$0xf]
    %v4546 = vld [vmem:[%s4539 + $0x18] sm:$0xf]
    %v4547 = vld [vmem:[%s4539 + $0x1c] sm:$0xf]
    %v4548 = vld [vmem:[%s4539 + $0x20] sm:$0xf]
    %v4549 = vld [vmem:[%s4539 + $0x24] sm:$0xf]
    %v4550 = vld [vmem:[%s4539 + $0x28] sm:$0xf]
    %v4551 = vld [vmem:[%s4539 + $0x2c] sm:$0xf]
    %v4552 = vld [vmem:[%s4539 + $0x30] sm:$0xf]
    %v4553 = vld [vmem:[%s4539 + $0x34] sm:$0xf]
    %v4554 = vld [vmem:[%s4539 + $0x38] sm:$0xf]
    %v4555 = vld [vmem:[%s4539 + $0x3c] sm:$0xf]
    %v4572 = vunpack.c.l.b16 %v4540
    %v4573 = vunpack.c.l.b16 %v4541
    %v4574 = vunpack.c.l.b16 %v4542
    %v4575 = vunpack.c.l.b16 %v4543
    %v4576 = vunpack.c.l.b16 %v4544
    %v4577 = vunpack.c.l.b16 %v4545
    %v4578 = vunpack.c.l.b16 %v4546
    %v4579 = vunpack.c.l.b16 %v4547
    %v4580 = vunpack.c.l.b16 %v4548
    %v4581 = vunpack.c.l.b16 %v4549
    %v4582 = vunpack.c.l.b16 %v4550
    %v4583 = vunpack.c.l.b16 %v4551
    %v4584 = vunpack.c.l.b16 %v4552
    %v4585 = vunpack.c.l.b16 %v4553
    %v4586 = vunpack.c.l.b16 %v4554
    %v4587 = vunpack.c.l.b16 %v4555
    %v4588 = vpack.c.b16 %v4573, %v4572
    %v4589 = vpack.c.b16 %v4575, %v4574
    %v4590 = vpack.c.b16 %v4577, %v4576
    %v4591 = vpack.c.b16 %v4579, %v4578
    %v4592 = vpack.c.b16 %v4581, %v4580
    %v4593 = vpack.c.b16 %v4583, %v4582
    %v4594 = vpack.c.b16 %v4585, %v4584
    %v4595 = vpack.c.b16 %v4587, %v4586
    %4604 = vmatprep.subr.bf16.mxu0 0
    %4605 = vmatpush1.bf16.msra.mxu0 %v4588
    %4606 = vmatprep.subr.bf16.mxu0 0
    %4607 = vmatpush1.bf16.msra.mxu0 %v4589
    %4608 = vmatprep.subr.bf16.mxu0 0
    %4609 = vmatpush1.bf16.msra.mxu0 %v4590
    %4610 = vmatprep.subr.bf16.mxu0 0
    %4611 = vmatpush1.bf16.msra.mxu0 %v4591
    %4612 = vmatprep.subr.bf16.mxu0 0
    %4613 = vmatpush1.bf16.msra.mxu0 %v4592
    %4614 = vmatprep.subr.bf16.mxu0 0
    %4615 = vmatpush1.bf16.msra.mxu0 %v4593
    %4616 = vmatprep.subr.bf16.mxu0 0
    %4617 = vmatpush1.bf16.msra.mxu0 %v4594
    %4618 = vmatprep.subr.bf16.mxu0 0
    %4619 = vmatpush1.bf16.msra.mxu0 %v4595
    %4620 = vmatprep.subr.bf16.mxu0 0
    %4621 = vmatpush1.bf16.msra.mxu0 0
    %4622 = vmatprep.subr.bf16.mxu0 0
    %4623 = vmatpush1.bf16.msra.mxu0 0
    %4624 = vmatprep.subr.bf16.mxu0 0
    %4625 = vmatpush1.bf16.msra.mxu0 0
    %4626 = vmatprep.subr.bf16.mxu0 0
    %4627 = vmatpush1.bf16.msra.mxu0 0
    %4628 = vmatprep.subr.bf16.mxu0 0
    %4629 = vmatpush1.bf16.msra.mxu0 0
    %4630 = vmatprep.subr.bf16.mxu0 0
    %4631 = vmatpush1.bf16.msra.mxu0 0
    %4632 = vmatprep.subr.bf16.mxu0 0
    %4633 = vmatpush1.bf16.msra.mxu0 0
    %4634 = vmatprep.subr.bf16.mxu0 0
    %4635 = vmatpush1.bf16.msra.mxu0 0
    %4636 = vmatprep.mubr.bf16.mxu0 0
    %4637 = vmatmul.mubr.bf16.gmra.mrb[0].mxu0 %v4537
    %v4638 = vpop.f32.mrb[0].mxu0
    %v4639 = vadd.f32 0.0, %v4638
    %v4640 = vpop.f32.mrb[0].mxu0
    %v4641 = vpop.f32.mrb[0].mxu0
    %v4642 = vadd.f32 0.0, %v4641
    %v4643 = vpop.f32.mrb[0].mxu0
    %4644 = vmatprep.mubr.bf16.mxu0 0
    %4645 = vmatmul.mubr.bf16.gmra.mrb[0].mxu0 %v4538
    %v4646 = vpop.f32.mrb[0].mxu0
    %v4647 = vadd.f32 0.0, %v4646
    %v4648 = vpop.f32.mrb[0].mxu0
    %v4649 = vpop.f32.mrb[0].mxu0
    %v4650 = vadd.f32 0.0, %v4649
    %v4651 = vpop.f32.mrb[0].mxu0
    %4652 = vdwg.mxu0
    %v4653 = vadd.f32 %v4442, %v4639
    %v4654 = vadd.f32 %v4445, %v4642
    %v4655 = vadd.f32 %v4450, %v4647
    %v4656 = vadd.f32 %v4453, %v4650
    %s4657 = scalar_lea.vmem %s2, 4
    %v4658 = vld [vmem:[%s4657] sm:$0x1]
    %v4660 = vlaneseq
    %v4661 = vshrl.u32 %v4660, 7
    %v4662 = vsub.s32 0, %v4661
    %v4663 = vrot.slane %v4658, %v4662
    %v4665 = vadd.f32 %v4653, %v4663
    %v4666 = vadd.f32 %v4654, %v4663
    %v4667 = vadd.f32 %v4655, %v4663
    %v4668 = vadd.f32 %v4656, %v4663
    %v4669 = vmax.f32 %v4665, 0.0
    %v4670 = vmax.f32 %v4666, 0.0
    %v4671 = vmax.f32 %v4667, 0.0
    %v4672 = vmax.f32 %v4668, 0.0
    %v4673 = vpack.c.bf16 %v4670, %v4669
    %v4674 = vpack.c.bf16 %v4672, %v4671
    %vm4675 = vmand %vm1842, %vm3425
    %vm4676 = vmand %vm1843, %vm3425
    %vm4677 = vmand %vm1844, %vm3425
    %vm4678 = vmand %vm1845, %vm3425
    %vm4679 = vmand %vm1846, %vm3425
    %vm4680 = vmand %vm1847, %vm3425
    %vm4681 = vmand %vm1848, %vm3425
    %v4682 = vsub.s32 %v4036, %v67
    %v4683 = vsub.s32 %v4036, %v68
    %v4684 = vsub.s32 %v4036, %v69
    %vm4685 = vcmp.eq.s32.totalorder %v4682, 1
    %vm4686 = vcmp.eq.s32.totalorder %v4683, 1
    %vm4687 = vcmp.eq.s32.totalorder %v4684, 1
    %vm4688 = vmand %vm4675, %vm4041
    %vm4689 = vmand %vm4676, %vm4042
    %vm4690 = vmand %vm4677, %vm4043
    %vm4691 = vmand %vm4678, %vm4044
    %vm4692 = vmand %vm4679, %vm4685
    %vm4693 = vmand %vm4680, %vm4686
    %vm4694 = vmand %vm4681, %vm4687
    %vm4695 = vmand %vm1886, %vm3439
    %vm4696 = vmand %vm1887, %vm3439
    %vm4697 = vmand %vm1888, %vm3439
    %vm4698 = vmand %vm1889, %vm3439
    %vm4699 = vmand %vm1890, %vm3439
    %vm4700 = vmand %vm1891, %vm3439
    %vm4701 = vmand %vm1892, %vm3439
    %vm4702 = vmand %vm4695, %vm3442
    %vm4703 = vmand %vm4696, %vm3442
    %vm4704 = vmand %vm4697, %vm3442
    %vm4705 = vmand %vm4698, %vm3442
    %vm4706 = vmand %vm4699, %vm3442
    %vm4707 = vmand %vm4700, %vm3442
    %vm4708 = vmand %vm4701, %vm3442
    %v4709 = vmul.u32 %v3432, 2
    %v4710 = vsub.s32 %v4709, %v1864
    %v4711 = vsub.s32 %v4709, %v1865
    %v4712 = vsub.s32 %v4709, %v1866
    %v4713 = vsub.s32 %v4709, %v1867
    %v4714 = vsub.s32 %v4709, %v1868
    %v4715 = vsub.s32 %v4709, %v1869
    %v4716 = vsub.s32 %v4709, %v1870
    %vm4717 = vcmp.eq.s32.totalorder %v4710, 1
    %vm4718 = vcmp.eq.s32.totalorder %v4711, 1
    %vm4719 = vcmp.eq.s32.totalorder %v4712, 1
    %vm4720 = vcmp.eq.s32.totalorder %v4713, 1
    %vm4721 = vcmp.eq.s32.totalorder %v4714, 1
    %vm4722 = vcmp.eq.s32.totalorder %v4715, 1
    %vm4723 = vcmp.eq.s32.totalorder %v4716, 1
    %vm4724 = vmand %vm4702, %vm4717
    %vm4725 = vmand %vm4703, %vm4718
    %vm4726 = vmand %vm4704, %vm4719
    %vm4727 = vmand %vm4705, %vm4720
    %vm4728 = vmand %vm4706, %vm4721
    %vm4729 = vmand %vm4707, %vm4722
    %vm4730 = vmand %vm4708, %vm4723
    %vm4731 = vmor %vm4688, %vm4724
    %vm4732 = vmor %vm4689, %vm4725
    %vm4733 = vmor %vm4690, %vm4726
    %vm4734 = vmor %vm4691, %vm4727
    %vm4735 = vmor %vm4692, %vm4728
    %vm4736 = vmor %vm4693, %vm4729
    %vm4737 = vmor %vm4694, %vm4730
    %v4738 = vsel %vm4731, 1.0, 0.0
    %v4739 = vsel %vm4732, 1.0, 0.0
    %v4740 = vsel %vm4733, 1.0, 0.0
    %v4741 = vsel %vm4734, 1.0, 0.0
    %v4742 = vsel %vm4735, 1.0, 0.0
    %v4743 = vsel %vm4736, 1.0, 0.0
    %v4744 = vsel %vm4737, 1.0, 0.0
    %v4745 = vpack.c.bf16 %v4739, %v4738
    %v4746 = vpack.c.bf16 %v4741, %v4740
    %v4747 = vpack.c.bf16 %v4743, %v4742
    %v4748 = vpack.c.bf16 %v4744, %v4744
    %v4750 = vsel %vm3458, %v4745, 0
    %v4753 = vsel %vm3458, %v4746, 0
    %v4756 = vsel %vm3458, %v4747, 0
    %v4759 = vsel %vm3458, %v4748, 0
    %v4762 = vsel %vm3462, %v4674, 0
    %4764 = vmatprep.subr.bf16.mxu0 0
    %4765 = vmatpush1.bf16.msra.mxu0 %v4673
    %4766 = vmatprep.subr.bf16.mxu0 0
    %4767 = vmatpush1.bf16.msra.mxu0 %v4762
    %4768 = vmatprep.subr.bf16.mxu0 0
    %4769 = vmatpush1.bf16.msra.mxu0 0
    %4770 = vmatprep.subr.bf16.mxu0 0
    %4771 = vmatpush1.bf16.msra.mxu0 0
    %4772 = vmatprep.subr.bf16.mxu0 0
    %4773 = vmatpush1.bf16.msra.mxu0 0
    %4774 = vmatprep.subr.bf16.mxu0 0
    %4775 = vmatpush1.bf16.msra.mxu0 0
    %4776 = vmatprep.subr.bf16.mxu0 0
    %4777 = vmatpush1.bf16.msra.mxu0 0
    %4778 = vmatprep.subr.bf16.mxu0 0
    %4779 = vmatpush1.bf16.msra.mxu0 0
    %4780 = vmatprep.subr.bf16.mxu0 0
    %4781 = vmatpush1.bf16.msra.mxu0 0
    %4782 = vmatprep.subr.bf16.mxu0 0
    %4783 = vmatpush1.bf16.msra.mxu0 0
    %4784 = vmatprep.subr.bf16.mxu0 0
    %4785 = vmatpush1.bf16.msra.mxu0 0
    %4786 = vmatprep.subr.bf16.mxu0 0
    %4787 = vmatpush1.bf16.msra.mxu0 0
    %4788 = vmatprep.subr.bf16.mxu0 0
    %4789 = vmatpush1.bf16.msra.mxu0 0
    %4790 = vmatprep.subr.bf16.mxu0 0
    %4791 = vmatpush1.bf16.msra.mxu0 0
    %4792 = vmatprep.subr.bf16.mxu0 0
    %4793 = vmatpush1.bf16.msra.mxu0 0
    %4794 = vmatprep.subr.bf16.mxu0 0
    %4795 = vmatpush1.bf16.msra.mxu0 0
    %4796 = vmatprep.mubr.bf16.mxu0 0
    %4797 = vmatmul.mubr.bf16.gmra.mrb[0].mxu0 %v4750
    %v4798 = vpop.f32.mrb[0].mxu0
    %v4799 = vadd.f32 0.0, %v4798
    %v4800 = vpop.f32.mrb[0].mxu0
    %v4801 = vpop.f32.mrb[0].mxu0
    %v4802 = vadd.f32 0.0, %v4801
    %v4803 = vpop.f32.mrb[0].mxu0
    %4804 = vmatprep.mubr.bf16.mxu0 0
    %4805 = vmatmul.mubr.bf16.gmra.mrb[0].mxu0 %v4753
    %v4806 = vpop.f32.mrb[0].mxu0
    %v4807 = vadd.f32 0.0, %v4806
    %v4808 = vpop.f32.mrb[0].mxu0
    %v4809 = vpop.f32.mrb[0].mxu0
    %v4810 = vadd.f32 0.0, %v4809
    %v4811 = vpop.f32.mrb[0].mxu0
    %4812 = vmatprep.mubr.bf16.mxu0 0
    %4813 = vmatmul.mubr.bf16.gmra.mrb[0].mxu0 %v4756
    %v4814 = vpop.f32.mrb[0].mxu0
    %v4815 = vadd.f32 0.0, %v4814
    %v4816 = vpop.f32.mrb[0].mxu0
    %v4817 = vpop.f32.mrb[0].mxu0
    %v4818 = vadd.f32 0.0, %v4817
    %v4819 = vpop.f32.mrb[0].mxu0
    %4820 = vmatprep.mubr.bf16.mxu0 0
    %4821 = vmatmul.mubr.bf16.gmra.mrb[0].mxu0 %v4759
    %v4822 = vpop.f32.mrb[0].mxu0
    %v4823 = vadd.f32 0.0, %v4822
    %v4824 = vpop.f32.mrb[0].mxu0
    %v4825 = vpop.f32.mrb[0].mxu0
    %v4826 = vpop.f32.mrb[0].mxu0
    %4827 = vdwg.mxu0
    %v4828 = vpack.c.bf16 %v4802, %v4799
    %v4829 = vpack.c.bf16 %v4810, %v4807
    %v4830 = vpack.c.bf16 %v4818, %v4815
    %v4831 = vpack.c.bf16 %v4823, %v4823
    %s4832 = scalar_lea.vmem %s1, 960
    %v4833 = vld [vmem:[%s4832] sm:$0xf]
    %v4834 = vld [vmem:[%s4832 + $0x4] sm:$0xf]
    %v4835 = vld [vmem:[%s4832 + $0x8] sm:$0xf]
    %v4836 = vld [vmem:[%s4832 + $0xc] sm:$0xf]
    %v4837 = vld [vmem:[%s4832 + $0x10] sm:$0xf]
    %v4838 = vld [vmem:[%s4832 + $0x14] sm:$0xf]
    %v4839 = vld [vmem:[%s4832 + $0x18] sm:$0xf]
    %v4840 = vld [vmem:[%s4832 + $0x1c] sm:$0xf]
    %v4841 = vld [vmem:[%s4832 + $0x20] sm:$0xf]
    %v4842 = vld [vmem:[%s4832 + $0x24] sm:$0xf]
    %v4843 = vld [vmem:[%s4832 + $0x28] sm:$0xf]
    %v4844 = vld [vmem:[%s4832 + $0x2c] sm:$0xf]
    %v4845 = vld [vmem:[%s4832 + $0x30] sm:$0xf]
    %v4846 = vld [vmem:[%s4832 + $0x34] sm:$0xf]
    %v4847 = vld [vmem:[%s4832 + $0x38] sm:$0xf]
    %v4848 = vld [vmem:[%s4832 + $0x3c] sm:$0xf]
    %vm4849 = vcmp.eq.s32.totalorder %v4682, 0
    %vm4850 = vcmp.eq.s32.totalorder %v4683, 0
    %vm4851 = vcmp.eq.s32.totalorder %v4684, 0
    %vm4852 = vmand %vm4675, %vm4162
    %vm4853 = vmand %vm4676, %vm4163
    %vm4854 = vmand %vm4677, %vm4164
    %vm4855 = vmand %vm4678, %vm4165
    %vm4856 = vmand %vm4679, %vm4849
    %vm4857 = vmand %vm4680, %vm4850
    %vm4858 = vmand %vm4681, %vm4851
    %vm4859 = vcmp.eq.s32.totalorder %v4710, 0
    %vm4860 = vcmp.eq.s32.totalorder %v4711, 0
    %vm4861 = vcmp.eq.s32.totalorder %v4712, 0
    %vm4862 = vcmp.eq.s32.totalorder %v4713, 0
    %vm4863 = vcmp.eq.s32.totalorder %v4714, 0
    %vm4864 = vcmp.eq.s32.totalorder %v4715, 0
    %vm4865 = vcmp.eq.s32.totalorder %v4716, 0
    %vm4866 = vmand %vm4702, %vm4859
    %vm4867 = vmand %vm4703, %vm4860
    %vm4868 = vmand %vm4704, %vm4861
    %vm4869 = vmand %vm4705, %vm4862
    %vm4870 = vmand %vm4706, %vm4863
    %vm4871 = vmand %vm4707, %vm4864
    %vm4872 = vmand %vm4708, %vm4865
    %vm4873 = vmor %vm4852, %vm4866
    %vm4874 = vmor %vm4853, %vm4867
    %vm4875 = vmor %vm4854, %vm4868
    %vm4876 = vmor %vm4855, %vm4869
    %vm4877 = vmor %vm4856, %vm4870
    %vm4878 = vmor %vm4857, %vm4871
    %vm4879 = vmor %vm4858, %vm4872
    %v4880 = vsel %vm4873, 1.0, 0.0
    %v4881 = vsel %vm4874, 1.0, 0.0
    %v4882 = vsel %vm4875, 1.0, 0.0
    %v4883 = vsel %vm4876, 1.0, 0.0
    %v4884 = vsel %vm4877, 1.0, 0.0
    %v4885 = vsel %vm4878, 1.0, 0.0
    %v4886 = vsel %vm4879, 1.0, 0.0
    %v4887 = vpack.c.bf16 %v4881, %v4880
    %v4888 = vpack.c.bf16 %v4883, %v4882
    %v4889 = vpack.c.bf16 %v4885, %v4884
    %v4890 = vpack.c.bf16 %v4886, %v4886
    %v4892 = vsel %vm3458, %v4887, 0
    %v4895 = vsel %vm3458, %v4888, 0
    %v4898 = vsel %vm3458, %v4889, 0
    %v4901 = vsel %vm3458, %v4890, 0
    %4903 = vmatprep.subr.bf16.mxu0 0
    %4904 = vmatpush1.bf16.msra.mxu0 %v4673
    %4905 = vmatprep.subr.bf16.mxu0 0
    %4906 = vmatpush1.bf16.msra.mxu0 %v4762
    %4907 = vmatprep.subr.bf16.mxu0 0
    %4908 = vmatpush1.bf16.msra.mxu0 0
    %4909 = vmatprep.subr.bf16.mxu0 0
    %4910 = vmatpush1.bf16.msra.mxu0 0
    %4911 = vmatprep.subr.bf16.mxu0 0
    %4912 = vmatpush1.bf16.msra.mxu0 0
    %4913 = vmatprep.subr.bf16.mxu0 0
    %4914 = vmatpush1.bf16.msra.mxu0 0
    %4915 = vmatprep.subr.bf16.mxu0 0
    %4916 = vmatpush1.bf16.msra.mxu0 0
    %4917 = vmatprep.subr.bf16.mxu0 0
    %4918 = vmatpush1.bf16.msra.mxu0 0
    %4919 = vmatprep.subr.bf16.mxu0 0
    %4920 = vmatpush1.bf16.msra.mxu0 0
    %4921 = vmatprep.subr.bf16.mxu0 0
    %4922 = vmatpush1.bf16.msra.mxu0 0
    %4923 = vmatprep.subr.bf16.mxu0 0
    %4924 = vmatpush1.bf16.msra.mxu0 0
    %4925 = vmatprep.subr.bf16.mxu0 0
    %4926 = vmatpush1.bf16.msra.mxu0 0
    %4927 = vmatprep.subr.bf16.mxu0 0
    %4928 = vmatpush1.bf16.msra.mxu0 0
    %4929 = vmatprep.subr.bf16.mxu0 0
    %4930 = vmatpush1.bf16.msra.mxu0 0
    %4931 = vmatprep.subr.bf16.mxu0 0
    %4932 = vmatpush1.bf16.msra.mxu0 0
    %4933 = vmatprep.subr.bf16.mxu0 0
    %4934 = vmatpush1.bf16.msra.mxu0 0
    %4935 = vmatprep.mubr.bf16.mxu0 0
    %4936 = vmatmul.mubr.bf16.gmra.mrb[0].mxu0 %v4892
    %v4937 = vpop.f32.mrb[0].mxu0
    %v4938 = vadd.f32 0.0, %v4937
    %v4939 = vpop.f32.mrb[0].mxu0
    %v4940 = vpop.f32.mrb[0].mxu0
    %v4941 = vadd.f32 0.0, %v4940
    %v4942 = vpop.f32.mrb[0].mxu0
    %4943 = vmatprep.mubr.bf16.mxu0 0
    %4944 = vmatmul.mubr.bf16.gmra.mrb[0].mxu0 %v4895
    %v4945 = vpop.f32.mrb[0].mxu0
    %v4946 = vadd.f32 0.0, %v4945
    %v4947 = vpop.f32.mrb[0].mxu0
    %v4948 = vpop.f32.mrb[0].mxu0
    %v4949 = vadd.f32 0.0, %v4948
    %v4950 = vpop.f32.mrb[0].mxu0
    %4951 = vmatprep.mubr.bf16.mxu0 0
    %4952 = vmatmul.mubr.bf16.gmra.mrb[0].mxu0 %v4898
    %v4953 = vpop.f32.mrb[0].mxu0
    %v4954 = vadd.f32 0.0, %v4953
    %v4955 = vpop.f32.mrb[0].mxu0
    %v4956 = vpop.f32.mrb[0].mxu0
    %v4957 = vadd.f32 0.0, %v4956
    %v4958 = vpop.f32.mrb[0].mxu0
    %4959 = vmatprep.mubr.bf16.mxu0 0
    %4960 = vmatmul.mubr.bf16.gmra.mrb[0].mxu0 %v4901
    %v4961 = vpop.f32.mrb[0].mxu0
    %v4962 = vadd.f32 0.0, %v4961
    %v4963 = vpop.f32.mrb[0].mxu0
    %v4964 = vpop.f32.mrb[0].mxu0
    %v4965 = vpop.f32.mrb[0].mxu0
    %4966 = vdwg.mxu0
    %v4967 = vpack.c.bf16 %v4941, %v4938
    %v4968 = vpack.c.bf16 %v4949, %v4946
    %v4969 = vpack.c.bf16 %v4957, %v4954
    %v4970 = vpack.c.bf16 %v4962, %v4962
    %s4971 = scalar_lea.vmem %s1, 1024
    %v4972 = vld [vmem:[%s4971] sm:$0xf]
    %v4973 = vld [vmem:[%s4971 + $0x4] sm:$0xf]
    %v4974 = vld [vmem:[%s4971 + $0x8] sm:$0xf]
    %v4975 = vld [vmem:[%s4971 + $0xc] sm:$0xf]
    %v4976 = vld [vmem:[%s4971 + $0x10] sm:$0xf]
    %v4977 = vld [vmem:[%s4971 + $0x14] sm:$0xf]
    %v4978 = vld [vmem:[%s4971 + $0x18] sm:$0xf]
    %v4979 = vld [vmem:[%s4971 + $0x1c] sm:$0xf]
    %v4980 = vld [vmem:[%s4971 + $0x20] sm:$0xf]
    %v4981 = vld [vmem:[%s4971 + $0x24] sm:$0xf]
    %v4982 = vld [vmem:[%s4971 + $0x28] sm:$0xf]
    %v4983 = vld [vmem:[%s4971 + $0x2c] sm:$0xf]
    %v4984 = vld [vmem:[%s4971 + $0x30] sm:$0xf]
    %v4985 = vld [vmem:[%s4971 + $0x34] sm:$0xf]
    %v4986 = vld [vmem:[%s4971 + $0x38] sm:$0xf]
    %v4987 = vld [vmem:[%s4971 + $0x3c] sm:$0xf]
    %v5004 = vunpack.c.l.b16 %v4972
    %v5005 = vunpack.c.l.b16 %v4973
    %v5006 = vunpack.c.l.b16 %v4974
    %v5007 = vunpack.c.l.b16 %v4975
    %v5008 = vunpack.c.l.b16 %v4976
    %v5009 = vunpack.c.l.b16 %v4977
    %v5010 = vunpack.c.l.b16 %v4978
    %v5011 = vunpack.c.l.b16 %v4979
    %v5012 = vunpack.c.l.b16 %v4980
    %v5013 = vunpack.c.l.b16 %v4981
    %v5014 = vunpack.c.l.b16 %v4982
    %v5015 = vunpack.c.l.b16 %v4983
    %v5016 = vunpack.c.l.b16 %v4984
    %v5017 = vunpack.c.l.b16 %v4985
    %v5018 = vunpack.c.l.b16 %v4986
    %v5019 = vunpack.c.l.b16 %v4987
    %v5020 = vpack.c.b16 %v5005, %v5004
    %v5021 = vpack.c.b16 %v5007, %v5006
    %v5022 = vpack.c.b16 %v5009, %v5008
    %v5023 = vpack.c.b16 %v5011, %v5010
    %v5024 = vpack.c.b16 %v5013, %v5012
    %v5025 = vpack.c.b16 %v5015, %v5014
    %v5026 = vpack.c.b16 %v5017, %v5016
    %v5027 = vpack.c.b16 %v5019, %v5018
    %5036 = vmatprep.subr.bf16.mxu0 0
    %5037 = vmatpush1.bf16.msra.mxu0 %v5020
    %5038 = vmatprep.subr.bf16.mxu0 0
    %5039 = vmatpush1.bf16.msra.mxu0 %v5021
    %5040 = vmatprep.subr.bf16.mxu0 0
    %5041 = vmatpush1.bf16.msra.mxu0 %v5022
    %5042 = vmatprep.subr.bf16.mxu0 0
    %5043 = vmatpush1.bf16.msra.mxu0 %v5023
    %5044 = vmatprep.subr.bf16.mxu0 0
    %5045 = vmatpush1.bf16.msra.mxu0 %v5024
    %5046 = vmatprep.subr.bf16.mxu0 0
    %5047 = vmatpush1.bf16.msra.mxu0 %v5025
    %5048 = vmatprep.subr.bf16.mxu0 0
    %5049 = vmatpush1.bf16.msra.mxu0 %v5026
    %5050 = vmatprep.subr.bf16.mxu0 0
    %5051 = vmatpush1.bf16.msra.mxu0 %v5027
    %5052 = vmatprep.subr.bf16.mxu0 0
    %5053 = vmatpush1.bf16.msra.mxu0 0
    %5054 = vmatprep.subr.bf16.mxu0 0
    %5055 = vmatpush1.bf16.msra.mxu0 0
    %5056 = vmatprep.subr.bf16.mxu0 0
    %5057 = vmatpush1.bf16.msra.mxu0 0
    %5058 = vmatprep.subr.bf16.mxu0 0
    %5059 = vmatpush1.bf16.msra.mxu0 0
    %5060 = vmatprep.subr.bf16.mxu0 0
    %5061 = vmatpush1.bf16.msra.mxu0 0
    %5062 = vmatprep.subr.bf16.mxu0 0
    %5063 = vmatpush1.bf16.msra.mxu0 0
    %5064 = vmatprep.subr.bf16.mxu0 0
    %5065 = vmatpush1.bf16.msra.mxu0 0
    %5066 = vmatprep.subr.bf16.mxu0 0
    %5067 = vmatpush1.bf16.msra.mxu0 0
    %5068 = vmatprep.mubr.bf16.mxu0 0
    %5069 = vmatmul.mubr.bf16.gmra.mrb[0].mxu0 %v4967
    %v5070 = vpop.f32.mrb[0].mxu0
    %v5071 = vadd.f32 0.0, %v5070
    %v5072 = vpop.f32.mrb[0].mxu0
    %v5073 = vpop.f32.mrb[0].mxu0
    %v5074 = vadd.f32 0.0, %v5073
    %v5075 = vpop.f32.mrb[0].mxu0
    %5076 = vmatprep.mubr.bf16.mxu0 0
    %5077 = vmatmul.mubr.bf16.gmra.mrb[0].mxu0 %v4968
    %v5078 = vpop.f32.mrb[0].mxu0
    %v5079 = vadd.f32 0.0, %v5078
    %v5080 = vpop.f32.mrb[0].mxu0
    %v5081 = vpop.f32.mrb[0].mxu0
    %v5082 = vadd.f32 0.0, %v5081
    %v5083 = vpop.f32.mrb[0].mxu0
    %5084 = vmatprep.mubr.bf16.mxu0 0
    %5085 = vmatmul.mubr.bf16.gmra.mrb[0].mxu0 %v4969
    %v5086 = vpop.f32.mrb[0].mxu0
    %v5087 = vadd.f32 0.0, %v5086
    %v5088 = vpop.f32.mrb[0].mxu0
    %v5089 = vpop.f32.mrb[0].mxu0
    %v5090 = vadd.f32 0.0, %v5089
    %v5091 = vpop.f32.mrb[0].mxu0
    %5092 = vmatprep.mubr.bf16.mxu0 0
    %5093 = vmatmul.mubr.bf16.gmra.mrb[0].mxu0 %v4970
    %v5094 = vpop.f32.mrb[0].mxu0
    %v5095 = vadd.f32 0.0, %v5094
    %v5096 = vpop.f32.mrb[0].mxu0
    %v5097 = vpop.f32.mrb[0].mxu0
    %v5098 = vpop.f32.mrb[0].mxu0
    %5099 = vdwg.mxu0
    %v5116 = vunpack.c.l.b16 %v4833
    %v5117 = vunpack.c.l.b16 %v4834
    %v5118 = vunpack.c.l.b16 %v4835
    %v5119 = vunpack.c.l.b16 %v4836
    %v5120 = vunpack.c.l.b16 %v4837
    %v5121 = vunpack.c.l.b16 %v4838
    %v5122 = vunpack.c.l.b16 %v4839
    %v5123 = vunpack.c.l.b16 %v4840
    %v5124 = vunpack.c.l.b16 %v4841
    %v5125 = vunpack.c.l.b16 %v4842
    %v5126 = vunpack.c.l.b16 %v4843
    %v5127 = vunpack.c.l.b16 %v4844
    %v5128 = vunpack.c.l.b16 %v4845
    %v5129 = vunpack.c.l.b16 %v4846
    %v5130 = vunpack.c.l.b16 %v4847
    %v5131 = vunpack.c.l.b16 %v4848
    %v5132 = vpack.c.b16 %v5117, %v5116
    %v5133 = vpack.c.b16 %v5119, %v5118
    %v5134 = vpack.c.b16 %v5121, %v5120
    %v5135 = vpack.c.b16 %v5123, %v5122
    %v5136 = vpack.c.b16 %v5125, %v5124
    %v5137 = vpack.c.b16 %v5127, %v5126
    %v5138 = vpack.c.b16 %v5129, %v5128
    %v5139 = vpack.c.b16 %v5131, %v5130
    %5148 = vmatprep.subr.bf16.mxu0 0
    %5149 = vmatpush1.bf16.msra.mxu0 %v5132
    %5150 = vmatprep.subr.bf16.mxu0 0
    %5151 = vmatpush1.bf16.msra.mxu0 %v5133
    %5152 = vmatprep.subr.bf16.mxu0 0
    %5153 = vmatpush1.bf16.msra.mxu0 %v5134
    %5154 = vmatprep.subr.bf16.mxu0 0
    %5155 = vmatpush1.bf16.msra.mxu0 %v5135
    %5156 = vmatprep.subr.bf16.mxu0 0
    %5157 = vmatpush1.bf16.msra.mxu0 %v5136
    %5158 = vmatprep.subr.bf16.mxu0 0
    %5159 = vmatpush1.bf16.msra.mxu0 %v5137
    %5160 = vmatprep.subr.bf16.mxu0 0
    %5161 = vmatpush1.bf16.msra.mxu0 %v5138
    %5162 = vmatprep.subr.bf16.mxu0 0
    %5163 = vmatpush1.bf16.msra.mxu0 %v5139
    %5164 = vmatprep.subr.bf16.mxu0 0
    %5165 = vmatpush1.bf16.msra.mxu0 0
    %5166 = vmatprep.subr.bf16.mxu0 0
    %5167 = vmatpush1.bf16.msra.mxu0 0
    %5168 = vmatprep.subr.bf16.mxu0 0
    %5169 = vmatpush1.bf16.msra.mxu0 0
    %5170 = vmatprep.subr.bf16.mxu0 0
    %5171 = vmatpush1.bf16.msra.mxu0 0
    %5172 = vmatprep.subr.bf16.mxu0 0
    %5173 = vmatpush1.bf16.msra.mxu0 0
    %5174 = vmatprep.subr.bf16.mxu0 0
    %5175 = vmatpush1.bf16.msra.mxu0 0
    %5176 = vmatprep.subr.bf16.mxu0 0
    %5177 = vmatpush1.bf16.msra.mxu0 0
    %5178 = vmatprep.subr.bf16.mxu0 0
    %5179 = vmatpush1.bf16.msra.mxu0 0
    %5180 = vmatprep.mubr.bf16.mxu0 0
    %5181 = vmatmul.mubr.bf16.gmra.mrb[0].mxu0 %v4828
    %v5182 = vpop.f32.mrb[0].mxu0
    %v5183 = vadd.f32 %v5071, %v5182
    %v5184 = vpop.f32.mrb[0].mxu0
    %v5185 = vpop.f32.mrb[0].mxu0
    %v5186 = vadd.f32 %v5074, %v5185
    %v5187 = vpop.f32.mrb[0].mxu0
    %5188 = vmatprep.mubr.bf16.mxu0 0
    %5189 = vmatmul.mubr.bf16.gmra.mrb[0].mxu0 %v4829
    %v5190 = vpop.f32.mrb[0].mxu0
    %v5191 = vadd.f32 %v5079, %v5190
    %v5192 = vpop.f32.mrb[0].mxu0
    %v5193 = vpop.f32.mrb[0].mxu0
    %v5194 = vadd.f32 %v5082, %v5193
    %v5195 = vpop.f32.mrb[0].mxu0
    %5196 = vmatprep.mubr.bf16.mxu0 0
    %5197 = vmatmul.mubr.bf16.gmra.mrb[0].mxu0 %v4830
    %v5198 = vpop.f32.mrb[0].mxu0
    %v5199 = vadd.f32 %v5087, %v5198
    %v5200 = vpop.f32.mrb[0].mxu0
    %v5201 = vpop.f32.mrb[0].mxu0
    %v5202 = vadd.f32 %v5090, %v5201
    %v5203 = vpop.f32.mrb[0].mxu0
    %5204 = vmatprep.mubr.bf16.mxu0 0
    %5205 = vmatmul.mubr.bf16.gmra.mrb[0].mxu0 %v4831
    %v5206 = vpop.f32.mrb[0].mxu0
    %v5207 = vadd.f32 %v5095, %v5206
    %v5208 = vpop.f32.mrb[0].mxu0
    %v5209 = vpop.f32.mrb[0].mxu0
    %v5210 = vpop.f32.mrb[0].mxu0
    %5211 = vdwg.mxu0
    %vm5212 = vcmp.eq.s32.totalorder %v4682, 4294967295
    %vm5213 = vcmp.eq.s32.totalorder %v4683, 4294967295
    %vm5214 = vcmp.eq.s32.totalorder %v4684, 4294967295
    %vm5215 = vmand %vm4675, %vm4456
    %vm5216 = vmand %vm4676, %vm4457
    %vm5217 = vmand %vm4677, %vm4458
    %vm5218 = vmand %vm4678, %vm4459
    %vm5219 = vmand %vm4679, %vm5212
    %vm5220 = vmand %vm4680, %vm5213
    %vm5221 = vmand %vm4681, %vm5214
    %vm5222 = vcmp.eq.s32.totalorder %v4710, 4294967295
    %vm5223 = vcmp.eq.s32.totalorder %v4711, 4294967295
    %vm5224 = vcmp.eq.s32.totalorder %v4712, 4294967295
    %vm5225 = vcmp.eq.s32.totalorder %v4713, 4294967295
    %vm5226 = vcmp.eq.s32.totalorder %v4714, 4294967295
    %vm5227 = vcmp.eq.s32.totalorder %v4715, 4294967295
    %vm5228 = vcmp.eq.s32.totalorder %v4716, 4294967295
    %vm5229 = vmand %vm4702, %vm5222
    %vm5230 = vmand %vm4703, %vm5223
    %vm5231 = vmand %vm4704, %vm5224
    %vm5232 = vmand %vm4705, %vm5225
    %vm5233 = vmand %vm4706, %vm5226
    %vm5234 = vmand %vm4707, %vm5227
    %vm5235 = vmand %vm4708, %vm5228
    %vm5236 = vmor %vm5215, %vm5229
    %vm5237 = vmor %vm5216, %vm5230
    %vm5238 = vmor %vm5217, %vm5231
    %vm5239 = vmor %vm5218, %vm5232
    %vm5240 = vmor %vm5219, %vm5233
    %vm5241 = vmor %vm5220, %vm5234
    %vm5242 = vmor %vm5221, %vm5235
    %v5243 = vsel %vm5236, 1.0, 0.0
    %v5244 = vsel %vm5237, 1.0, 0.0
    %v5245 = vsel %vm5238, 1.0, 0.0
    %v5246 = vsel %vm5239, 1.0, 0.0
    %v5247 = vsel %vm5240, 1.0, 0.0
    %v5248 = vsel %vm5241, 1.0, 0.0
    %v5249 = vsel %vm5242, 1.0, 0.0
    %v5250 = vpack.c.bf16 %v5244, %v5243
    %v5251 = vpack.c.bf16 %v5246, %v5245
    %v5252 = vpack.c.bf16 %v5248, %v5247
    %v5253 = vpack.c.bf16 %v5249, %v5249
    %v5255 = vsel %vm3458, %v5250, 0
    %v5258 = vsel %vm3458, %v5251, 0
    %v5261 = vsel %vm3458, %v5252, 0
    %v5264 = vsel %vm3458, %v5253, 0
    %5266 = vmatprep.subr.bf16.mxu0 0
    %5267 = vmatpush1.bf16.msra.mxu0 %v4673
    %5268 = vmatprep.subr.bf16.mxu0 0
    %5269 = vmatpush1.bf16.msra.mxu0 %v4762
    %5270 = vmatprep.subr.bf16.mxu0 0
    %5271 = vmatpush1.bf16.msra.mxu0 0
    %5272 = vmatprep.subr.bf16.mxu0 0
    %5273 = vmatpush1.bf16.msra.mxu0 0
    %5274 = vmatprep.subr.bf16.mxu0 0
    %5275 = vmatpush1.bf16.msra.mxu0 0
    %5276 = vmatprep.subr.bf16.mxu0 0
    %5277 = vmatpush1.bf16.msra.mxu0 0
    %5278 = vmatprep.subr.bf16.mxu0 0
    %5279 = vmatpush1.bf16.msra.mxu0 0
    %5280 = vmatprep.subr.bf16.mxu0 0
    %5281 = vmatpush1.bf16.msra.mxu0 0
    %5282 = vmatprep.subr.bf16.mxu0 0
    %5283 = vmatpush1.bf16.msra.mxu0 0
    %5284 = vmatprep.subr.bf16.mxu0 0
    %5285 = vmatpush1.bf16.msra.mxu0 0
    %5286 = vmatprep.subr.bf16.mxu0 0
    %5287 = vmatpush1.bf16.msra.mxu0 0
    %5288 = vmatprep.subr.bf16.mxu0 0
    %5289 = vmatpush1.bf16.msra.mxu0 0
    %5290 = vmatprep.subr.bf16.mxu0 0
    %5291 = vmatpush1.bf16.msra.mxu0 0
    %5292 = vmatprep.subr.bf16.mxu0 0
    %5293 = vmatpush1.bf16.msra.mxu0 0
    %5294 = vmatprep.subr.bf16.mxu0 0
    %5295 = vmatpush1.bf16.msra.mxu0 0
    %5296 = vmatprep.subr.bf16.mxu0 0
    %5297 = vmatpush1.bf16.msra.mxu0 0
    %5298 = vmatprep.mubr.bf16.mxu0 0
    %5299 = vmatmul.mubr.bf16.gmra.mrb[0].mxu0 %v5255
    %v5300 = vpop.f32.mrb[0].mxu0
    %v5301 = vadd.f32 0.0, %v5300
    %v5302 = vpop.f32.mrb[0].mxu0
    %v5303 = vpop.f32.mrb[0].mxu0
    %v5304 = vadd.f32 0.0, %v5303
    %v5305 = vpop.f32.mrb[0].mxu0
    %5306 = vmatprep.mubr.bf16.mxu0 0
    %5307 = vmatmul.mubr.bf16.gmra.mrb[0].mxu0 %v5258
    %v5308 = vpop.f32.mrb[0].mxu0
    %v5309 = vadd.f32 0.0, %v5308
    %v5310 = vpop.f32.mrb[0].mxu0
    %v5311 = vpop.f32.mrb[0].mxu0
    %v5312 = vadd.f32 0.0, %v5311
    %v5313 = vpop.f32.mrb[0].mxu0
    %5314 = vmatprep.mubr.bf16.mxu0 0
    %5315 = vmatmul.mubr.bf16.gmra.mrb[0].mxu0 %v5261
    %v5316 = vpop.f32.mrb[0].mxu0
    %v5317 = vadd.f32 0.0, %v5316
    %v5318 = vpop.f32.mrb[0].mxu0
    %v5319 = vpop.f32.mrb[0].mxu0
    %v5320 = vadd.f32 0.0, %v5319
    %v5321 = vpop.f32.mrb[0].mxu0
    %5322 = vmatprep.mubr.bf16.mxu0 0
    %5323 = vmatmul.mubr.bf16.gmra.mrb[0].mxu0 %v5264
    %v5324 = vpop.f32.mrb[0].mxu0
    %v5325 = vadd.f32 0.0, %v5324
    %v5326 = vpop.f32.mrb[0].mxu0
    %v5327 = vpop.f32.mrb[0].mxu0
    %v5328 = vpop.f32.mrb[0].mxu0
    %5329 = vdwg.mxu0
    %v5330 = vpack.c.bf16 %v5304, %v5301
    %v5331 = vpack.c.bf16 %v5312, %v5309
    %v5332 = vpack.c.bf16 %v5320, %v5317
    %v5333 = vpack.c.bf16 %v5325, %v5325
    %s5334 = scalar_lea.vmem %s1, 1088
    %v5335 = vld [vmem:[%s5334] sm:$0xf]
    %v5336 = vld [vmem:[%s5334 + $0x4] sm:$0xf]
    %v5337 = vld [vmem:[%s5334 + $0x8] sm:$0xf]
    %v5338 = vld [vmem:[%s5334 + $0xc] sm:$0xf]
    %v5339 = vld [vmem:[%s5334 + $0x10] sm:$0xf]
    %v5340 = vld [vmem:[%s5334 + $0x14] sm:$0xf]
    %v5341 = vld [vmem:[%s5334 + $0x18] sm:$0xf]
    %v5342 = vld [vmem:[%s5334 + $0x1c] sm:$0xf]
    %v5343 = vld [vmem:[%s5334 + $0x20] sm:$0xf]
    %v5344 = vld [vmem:[%s5334 + $0x24] sm:$0xf]
    %v5345 = vld [vmem:[%s5334 + $0x28] sm:$0xf]
    %v5346 = vld [vmem:[%s5334 + $0x2c] sm:$0xf]
    %v5347 = vld [vmem:[%s5334 + $0x30] sm:$0xf]
    %v5348 = vld [vmem:[%s5334 + $0x34] sm:$0xf]
    %v5349 = vld [vmem:[%s5334 + $0x38] sm:$0xf]
    %v5350 = vld [vmem:[%s5334 + $0x3c] sm:$0xf]
    %v5367 = vunpack.c.l.b16 %v5335
    %v5368 = vunpack.c.l.b16 %v5336
    %v5369 = vunpack.c.l.b16 %v5337
    %v5370 = vunpack.c.l.b16 %v5338
    %v5371 = vunpack.c.l.b16 %v5339
    %v5372 = vunpack.c.l.b16 %v5340
    %v5373 = vunpack.c.l.b16 %v5341
    %v5374 = vunpack.c.l.b16 %v5342
    %v5375 = vunpack.c.l.b16 %v5343
    %v5376 = vunpack.c.l.b16 %v5344
    %v5377 = vunpack.c.l.b16 %v5345
    %v5378 = vunpack.c.l.b16 %v5346
    %v5379 = vunpack.c.l.b16 %v5347
    %v5380 = vunpack.c.l.b16 %v5348
    %v5381 = vunpack.c.l.b16 %v5349
    %v5382 = vunpack.c.l.b16 %v5350
    %v5383 = vpack.c.b16 %v5368, %v5367
    %v5384 = vpack.c.b16 %v5370, %v5369
    %v5385 = vpack.c.b16 %v5372, %v5371
    %v5386 = vpack.c.b16 %v5374, %v5373
    %v5387 = vpack.c.b16 %v5376, %v5375
    %v5388 = vpack.c.b16 %v5378, %v5377
    %v5389 = vpack.c.b16 %v5380, %v5379
    %v5390 = vpack.c.b16 %v5382, %v5381
    %5399 = vmatprep.subr.bf16.mxu0 0
    %5400 = vmatpush1.bf16.msra.mxu0 %v5383
    %5401 = vmatprep.subr.bf16.mxu0 0
    %5402 = vmatpush1.bf16.msra.mxu0 %v5384
    %5403 = vmatprep.subr.bf16.mxu0 0
    %5404 = vmatpush1.bf16.msra.mxu0 %v5385
    %5405 = vmatprep.subr.bf16.mxu0 0
    %5406 = vmatpush1.bf16.msra.mxu0 %v5386
    %5407 = vmatprep.subr.bf16.mxu0 0
    %5408 = vmatpush1.bf16.msra.mxu0 %v5387
    %5409 = vmatprep.subr.bf16.mxu0 0
    %5410 = vmatpush1.bf16.msra.mxu0 %v5388
    %5411 = vmatprep.subr.bf16.mxu0 0
    %5412 = vmatpush1.bf16.msra.mxu0 %v5389
    %5413 = vmatprep.subr.bf16.mxu0 0
    %5414 = vmatpush1.bf16.msra.mxu0 %v5390
    %5415 = vmatprep.subr.bf16.mxu0 0
    %5416 = vmatpush1.bf16.msra.mxu0 0
    %5417 = vmatprep.subr.bf16.mxu0 0
    %5418 = vmatpush1.bf16.msra.mxu0 0
    %5419 = vmatprep.subr.bf16.mxu0 0
    %5420 = vmatpush1.bf16.msra.mxu0 0
    %5421 = vmatprep.subr.bf16.mxu0 0
    %5422 = vmatpush1.bf16.msra.mxu0 0
    %5423 = vmatprep.subr.bf16.mxu0 0
    %5424 = vmatpush1.bf16.msra.mxu0 0
    %5425 = vmatprep.subr.bf16.mxu0 0
    %5426 = vmatpush1.bf16.msra.mxu0 0
    %5427 = vmatprep.subr.bf16.mxu0 0
    %5428 = vmatpush1.bf16.msra.mxu0 0
    %5429 = vmatprep.subr.bf16.mxu0 0
    %5430 = vmatpush1.bf16.msra.mxu0 0
    %5431 = vmatprep.mubr.bf16.mxu0 0
    %5432 = vmatmul.mubr.bf16.gmra.mrb[0].mxu0 %v5330
    %v5433 = vpop.f32.mrb[0].mxu0
    %v5434 = vadd.f32 0.0, %v5433
    %v5435 = vpop.f32.mrb[0].mxu0
    %v5436 = vpop.f32.mrb[0].mxu0
    %v5437 = vadd.f32 0.0, %v5436
    %v5438 = vpop.f32.mrb[0].mxu0
    %5439 = vmatprep.mubr.bf16.mxu0 0
    %5440 = vmatmul.mubr.bf16.gmra.mrb[0].mxu0 %v5331
    %v5441 = vpop.f32.mrb[0].mxu0
    %v5442 = vadd.f32 0.0, %v5441
    %v5443 = vpop.f32.mrb[0].mxu0
    %v5444 = vpop.f32.mrb[0].mxu0
    %v5445 = vadd.f32 0.0, %v5444
    %v5446 = vpop.f32.mrb[0].mxu0
    %5447 = vmatprep.mubr.bf16.mxu0 0
    %5448 = vmatmul.mubr.bf16.gmra.mrb[0].mxu0 %v5332
    %v5449 = vpop.f32.mrb[0].mxu0
    %v5450 = vadd.f32 0.0, %v5449
    %v5451 = vpop.f32.mrb[0].mxu0
    %v5452 = vpop.f32.mrb[0].mxu0
    %v5453 = vadd.f32 0.0, %v5452
    %v5454 = vpop.f32.mrb[0].mxu0
    %5455 = vmatprep.mubr.bf16.mxu0 0
    %5456 = vmatmul.mubr.bf16.gmra.mrb[0].mxu0 %v5333
    %v5457 = vpop.f32.mrb[0].mxu0
    %v5458 = vadd.f32 0.0, %v5457
    %v5459 = vpop.f32.mrb[0].mxu0
    %v5460 = vpop.f32.mrb[0].mxu0
    %v5461 = vpop.f32.mrb[0].mxu0
    %5462 = vdwg.mxu0
    %v5463 = vadd.f32 %v5183, %v5434
    %v5464 = vadd.f32 %v5186, %v5437
    %v5465 = vadd.f32 %v5191, %v5442
    %v5466 = vadd.f32 %v5194, %v5445
    %v5467 = vadd.f32 %v5199, %v5450
    %v5468 = vadd.f32 %v5202, %v5453
    %v5469 = vadd.f32 %v5207, %v5458
    %s5470 = scalar_lea.vmem %s2, 5
    %v5471 = vld [vmem:[%s5470] sm:$0x1]
    %v5473 = vlaneseq
    %v5474 = vshrl.u32 %v5473, 7
    %v5475 = vsub.s32 0, %v5474
    %v5476 = vrot.slane %v5471, %v5475
    %v5478 = vadd.f32 %v5463, %v5476
    %v5479 = vadd.f32 %v5464, %v5476
    %v5480 = vadd.f32 %v5465, %v5476
    %v5481 = vadd.f32 %v5466, %v5476
    %v5482 = vadd.f32 %v5467, %v5476
    %v5483 = vadd.f32 %v5468, %v5476
    %v5484 = vadd.f32 %v5469, %v5476
    %v5485 = vmax.f32 %v5478, 0.0
    %v5486 = vmax.f32 %v5479, 0.0
    %v5487 = vmax.f32 %v5480, 0.0
    %v5488 = vmax.f32 %v5481, 0.0
    %v5489 = vmax.f32 %v5482, 0.0
    %v5490 = vmax.f32 %v5483, 0.0
    %v5491 = vmax.f32 %v5484, 0.0
    %v5492 = vadd.f32 %v5485, %v5486
    %v5493 = vadd.f32 %v5492, %v5487
    %v5494 = vadd.f32 %v5493, %v5488
    %v5495 = vadd.f32 %v5494, %v5489
    %v5496 = vadd.f32 %v5495, %v5490
    %v5497 = vsel %vm1968, %v5491, 0.0
    %v5498 = vadd.f32 %v5496, %v5497
    %v5499 = vrot.slane %v5498, 4
    %v5500 = vadd.f32 %v5498, %v5499
    %v5501 = vrot.slane %v5500, 2
    %v5502 = vadd.f32 %v5500, %v5501
    %v5503 = vrot.slane %v5502, 1
    %v5504 = vadd.f32 %v5502, %v5503
    %v5505 = vmul.f32 %v5504, %v2685
    %v5506 = vsub.f32 %v5485, %v5505
    %v5507 = vsub.f32 %v5486, %v5505
    %v5508 = vsub.f32 %v5487, %v5505
    %v5509 = vsub.f32 %v5488, %v5505
    %v5510 = vsub.f32 %v5489, %v5505
    %v5511 = vsub.f32 %v5490, %v5505
    %v5512 = vsub.f32 %v5491, %v5505
    %v5513 = vmul.f32 %v5506, %v5506
    %v5514 = vmul.f32 %v5507, %v5507
    %v5515 = vmul.f32 %v5508, %v5508
    %v5516 = vmul.f32 %v5509, %v5509
    %v5517 = vmul.f32 %v5510, %v5510
    %v5518 = vmul.f32 %v5511, %v5511
    %v5519 = vmul.f32 %v5512, %v5512
    %v5520 = vadd.f32 %v5513, %v5514
    %v5521 = vadd.f32 %v5520, %v5515
    %v5522 = vadd.f32 %v5521, %v5516
    %v5523 = vadd.f32 %v5522, %v5517
    %v5524 = vadd.f32 %v5523, %v5518
    %v5525 = vsel %vm1968, %v5519, 0.0
    %v5526 = vadd.f32 %v5524, %v5525
    %v5527 = vrot.slane %v5526, 4
    %v5528 = vadd.f32 %v5526, %v5527
    %v5529 = vrot.slane %v5528, 2
    %v5530 = vadd.f32 %v5528, %v5529
    %v5531 = vrot.slane %v5530, 1
    %v5532 = vadd.f32 %v5530, %v5531
    %v5533 = vmul.f32 %v5532, %v2685
    %s5534 = scalar_lea.vmem %s3, 2
    %v5535 = vld [vmem:[%s5534] sm:$0x1]
    %v5536 = vadd.f32 %v5533, 1e-05
    %v5537 = vrsqrt.pop %v5536
    %v5538 = vmul.f32 %v5535, %v5537
    %v5540 = vlaneseq
    %v5541 = vshrl.u32 %v5540, 7
    %v5542 = vsub.s32 0, %v5541
    %v5543 = vrot.slane %v5538, %v5542
    %v5545 = vmul.f32 %v5485, %v5543
    %v5546 = vmul.f32 %v5486, %v5543
    %v5547 = vmul.f32 %v5487, %v5543
    %v5548 = vmul.f32 %v5488, %v5543
    %v5549 = vmul.f32 %v5489, %v5543
    %v5550 = vmul.f32 %v5490, %v5543
    %v5551 = vmul.f32 %v5491, %v5543
    %s5552 = scalar_lea.vmem %s4, 2
    %v5553 = vld [vmem:[%s5552] sm:$0x1]
    %v5554 = vmul.f32 %v5505, %v5538
    %v5555 = vsub.f32 %v5553, %v5554
    %v5557 = vlaneseq
    %v5558 = vshrl.u32 %v5557, 7
    %v5559 = vsub.s32 0, %v5558
    %v5560 = vrot.slane %v5555, %v5559
    %v5562 = vadd.f32 %v5545, %v5560
    %v5563 = vadd.f32 %v5546, %v5560
    %v5564 = vadd.f32 %v5547, %v5560
    %v5565 = vadd.f32 %v5548, %v5560
    %v5566 = vadd.f32 %v5549, %v5560
    %v5567 = vadd.f32 %v5550, %v5560
    %v5568 = vadd.f32 %v5551, %v5560
    %v5569 = vpack.c.bf16 %v5563, %v5562
    %v5570 = vpack.c.bf16 %v5565, %v5564
    %v5571 = vpack.c.bf16 %v5567, %v5566
    %v5572 = vpack.c.bf16 %v5568, %v5568
    %vm5573 = vmand %vm120, %vm2773
    %vm5574 = vmand %vm122, %vm2773
    %vm5575 = vmand %vm124, %vm2773
    %vm5576 = vmand %vm126, %vm2773
    %vm5577 = vmand %vm128, %vm2773
    %vm5578 = vmand %vm130, %vm2773
    %vm5579 = vmand %vm132, %vm2773
    %vm5580 = vmand %vm134, %vm2773
    %vm5581 = vmand %vm136, %vm2773
    %vm5582 = vmand %vm138, %vm2773
    %vm5583 = vmand %vm140, %vm2773
    %vm5584 = vmand %vm142, %vm2773
    %vm5585 = vmand %vm144, %vm2773
    %v5586 = vsub.s32 %v4036, %v70
    %v5587 = vsub.s32 %v4036, %v71
    %v5588 = vsub.s32 %v4036, %v72
    %v5589 = vsub.s32 %v4036, %v73
    %v5590 = vsub.s32 %v4036, %v74
    %v5591 = vsub.s32 %v4036, %v75
    %vm5592 = vcmp.eq.s32.totalorder %v5586, 1
    %vm5593 = vcmp.eq.s32.totalorder %v5587, 1
    %vm5594 = vcmp.eq.s32.totalorder %v5588, 1
    %vm5595 = vcmp.eq.s32.totalorder %v5589, 1
    %vm5596 = vcmp.eq.s32.totalorder %v5590, 1
    %vm5597 = vcmp.eq.s32.totalorder %v5591, 1
    %vm5598 = vmand %vm5573, %vm4041
    %vm5599 = vmand %vm5574, %vm4042
    %vm5600 = vmand %vm5575, %vm4043
    %vm5601 = vmand %vm5576, %vm4044
    %vm5602 = vmand %vm5577, %vm4685
    %vm5603 = vmand %vm5578, %vm4686
    %vm5604 = vmand %vm5579, %vm4687
    %vm5605 = vmand %vm5580, %vm5592
    %vm5606 = vmand %vm5581, %vm5593
    %vm5607 = vmand %vm5582, %vm5594
    %vm5608 = vmand %vm5583, %vm5595
    %vm5609 = vmand %vm5584, %vm5596
    %vm5610 = vmand %vm5585, %vm5597
    %vm5611 = vmand %vm306, %vm2799
    %vm5612 = vmand %vm307, %vm2799
    %vm5613 = vmand %vm308, %vm2799
    %vm5614 = vmand %vm309, %vm2799
    %vm5615 = vmand %vm310, %vm2799
    %vm5616 = vmand %vm311, %vm2799
    %vm5617 = vmand %vm312, %vm2799
    %vm5618 = vmand %vm313, %vm2799
    %vm5619 = vmand %vm314, %vm2799
    %vm5620 = vmand %vm315, %vm2799
    %vm5621 = vmand %vm316, %vm2799
    %vm5622 = vmand %vm317, %vm2799
    %vm5623 = vmand %vm318, %vm2799
    %vm5624 = vmand %vm5611, %vm2804
    %vm5625 = vmand %vm5612, %vm2804
    %vm5626 = vmand %vm5613, %vm2804
    %vm5627 = vmand %vm5614, %vm2804
    %vm5628 = vmand %vm5615, %vm2804
    %vm5629 = vmand %vm5616, %vm2804
    %vm5630 = vmand %vm5617, %vm2804
    %vm5631 = vmand %vm5618, %vm2804
    %vm5632 = vmand %vm5619, %vm2804
    %vm5633 = vmand %vm5620, %vm2804
    %vm5634 = vmand %vm5621, %vm2804
    %vm5635 = vmand %vm5622, %vm2804
    %vm5636 = vmand %vm5623, %vm2804
    %v5637 = vmul.u32 %v2786, 2
    %v5638 = vsub.s32 %v5637, %v265
    %v5639 = vsub.s32 %v5637, %v266
    %v5640 = vsub.s32 %v5637, %v267
    %v5641 = vsub.s32 %v5637, %v268
    %v5642 = vsub.s32 %v5637, %v269
    %v5643 = vsub.s32 %v5637, %v270
    %v5644 = vsub.s32 %v5637, %v271
    %v5645 = vsub.s32 %v5637, %v272
    %v5646 = vsub.s32 %v5637, %v273
    %v5647 = vsub.s32 %v5637, %v274
    %v5648 = vsub.s32 %v5637, %v275
    %v5649 = vsub.s32 %v5637, %v276
    %v5650 = vsub.s32 %v5637, %v277
    %vm5651 = vcmp.eq.s32.totalorder %v5638, 1
    %vm5652 = vcmp.eq.s32.totalorder %v5639, 1
    %vm5653 = vcmp.eq.s32.totalorder %v5640, 1
    %vm5654 = vcmp.eq.s32.totalorder %v5641, 1
    %vm5655 = vcmp.eq.s32.totalorder %v5642, 1
    %vm5656 = vcmp.eq.s32.totalorder %v5643, 1
    %vm5657 = vcmp.eq.s32.totalorder %v5644, 1
    %vm5658 = vcmp.eq.s32.totalorder %v5645, 1
    %vm5659 = vcmp.eq.s32.totalorder %v5646, 1
    %vm5660 = vcmp.eq.s32.totalorder %v5647, 1
    %vm5661 = vcmp.eq.s32.totalorder %v5648, 1
    %vm5662 = vcmp.eq.s32.totalorder %v5649, 1
    %vm5663 = vcmp.eq.s32.totalorder %v5650, 1
    %vm5664 = vmand %vm5624, %vm5651
    %vm5665 = vmand %vm5625, %vm5652
    %vm5666 = vmand %vm5626, %vm5653
    %vm5667 = vmand %vm5627, %vm5654
    %vm5668 = vmand %vm5628, %vm5655
    %vm5669 = vmand %vm5629, %vm5656
    %vm5670 = vmand %vm5630, %vm5657
    %vm5671 = vmand %vm5631, %vm5658
    %vm5672 = vmand %vm5632, %vm5659
    %vm5673 = vmand %vm5633, %vm5660
    %vm5674 = vmand %vm5634, %vm5661
    %vm5675 = vmand %vm5635, %vm5662
    %vm5676 = vmand %vm5636, %vm5663
    %vm5677 = vmor %vm5598, %vm5664
    %vm5678 = vmor %vm5599, %vm5665
    %vm5679 = vmor %vm5600, %vm5666
    %vm5680 = vmor %vm5601, %vm5667
    %vm5681 = vmor %vm5602, %vm5668
    %vm5682 = vmor %vm5603, %vm5669
    %vm5683 = vmor %vm5604, %vm5670
    %vm5684 = vmor %vm5605, %vm5671
    %vm5685 = vmor %vm5606, %vm5672
    %vm5686 = vmor %vm5607, %vm5673
    %vm5687 = vmor %vm5608, %vm5674
    %vm5688 = vmor %vm5609, %vm5675
    %vm5689 = vmor %vm5610, %vm5676
    %v5690 = vsel %vm5677, 1.0, 0.0
    %v5691 = vsel %vm5678, 1.0, 0.0
    %v5692 = vsel %vm5679, 1.0, 0.0
    %v5693 = vsel %vm5680, 1.0, 0.0
    %v5694 = vsel %vm5681, 1.0, 0.0
    %v5695 = vsel %vm5682, 1.0, 0.0
    %v5696 = vsel %vm5683, 1.0, 0.0
    %v5697 = vsel %vm5684, 1.0, 0.0
    %v5698 = vsel %vm5685, 1.0, 0.0
    %v5699 = vsel %vm5686, 1.0, 0.0
    %v5700 = vsel %vm5687, 1.0, 0.0
    %v5701 = vsel %vm5688, 1.0, 0.0
    %v5702 = vsel %vm5689, 1.0, 0.0
    %v5703 = vpack.c.bf16 %v5691, %v5690
    %v5704 = vpack.c.bf16 %v5693, %v5692
    %v5705 = vpack.c.bf16 %v5695, %v5694
    %v5706 = vpack.c.bf16 %v5697, %v5696
    %v5707 = vpack.c.bf16 %v5699, %v5698
    %v5708 = vpack.c.bf16 %v5701, %v5700
    %v5709 = vpack.c.bf16 %v5702, %v5702
    %v5711 = vsel %vm2835, %v5703, 0
    %v5714 = vsel %vm2835, %v5704, 0
    %v5717 = vsel %vm2835, %v5705, 0
    %v5720 = vsel %vm2835, %v5706, 0
    %v5723 = vsel %vm2835, %v5707, 0
    %v5726 = vsel %vm2835, %v5708, 0
    %v5729 = vsel %vm2835, %v5709, 0
    %v5732 = vsel %vm2842, %v5572, 0
    %5734 = vmatprep.subr.bf16.mxu0 0
    %5735 = vmatpush1.bf16.msra.mxu0 %v5569
    %5736 = vmatprep.subr.bf16.mxu0 0
    %5737 = vmatpush1.bf16.msra.mxu0 %v5570
    %5738 = vmatprep.subr.bf16.mxu0 0
    %5739 = vmatpush1.bf16.msra.mxu0 %v5571
    %5740 = vmatprep.subr.bf16.mxu0 0
    %5741 = vmatpush1.bf16.msra.mxu0 %v5732
    %5742 = vmatprep.subr.bf16.mxu0 0
    %5743 = vmatpush1.bf16.msra.mxu0 0
    %5744 = vmatprep.subr.bf16.mxu0 0
    %5745 = vmatpush1.bf16.msra.mxu0 0
    %5746 = vmatprep.subr.bf16.mxu0 0
    %5747 = vmatpush1.bf16.msra.mxu0 0
    %5748 = vmatprep.subr.bf16.mxu0 0
    %5749 = vmatpush1.bf16.msra.mxu0 0
    %5750 = vmatprep.subr.bf16.mxu0 0
    %5751 = vmatpush1.bf16.msra.mxu0 0
    %5752 = vmatprep.subr.bf16.mxu0 0
    %5753 = vmatpush1.bf16.msra.mxu0 0
    %5754 = vmatprep.subr.bf16.mxu0 0
    %5755 = vmatpush1.bf16.msra.mxu0 0
    %5756 = vmatprep.subr.bf16.mxu0 0
    %5757 = vmatpush1.bf16.msra.mxu0 0
    %5758 = vmatprep.subr.bf16.mxu0 0
    %5759 = vmatpush1.bf16.msra.mxu0 0
    %5760 = vmatprep.subr.bf16.mxu0 0
    %5761 = vmatpush1.bf16.msra.mxu0 0
    %5762 = vmatprep.subr.bf16.mxu0 0
    %5763 = vmatpush1.bf16.msra.mxu0 0
    %5764 = vmatprep.subr.bf16.mxu0 0
    %5765 = vmatpush1.bf16.msra.mxu0 0
    %5766 = vmatprep.mubr.bf16.mxu0 0
    %5767 = vmatmul.mubr.bf16.gmra.mrb[0].mxu0 %v5711
    %v5768 = vpop.f32.mrb[0].mxu0
    %v5769 = vadd.f32 0.0, %v5768
    %v5770 = vpop.f32.mrb[0].mxu0
    %v5771 = vpop.f32.mrb[0].mxu0
    %v5772 = vadd.f32 0.0, %v5771
    %v5773 = vpop.f32.mrb[0].mxu0
    %5774 = vmatprep.mubr.bf16.mxu0 0
    %5775 = vmatmul.mubr.bf16.gmra.mrb[0].mxu0 %v5714
    %v5776 = vpop.f32.mrb[0].mxu0
    %v5777 = vadd.f32 0.0, %v5776
    %v5778 = vpop.f32.mrb[0].mxu0
    %v5779 = vpop.f32.mrb[0].mxu0
    %v5780 = vadd.f32 0.0, %v5779
    %v5781 = vpop.f32.mrb[0].mxu0
    %5782 = vmatprep.mubr.bf16.mxu0 0
    %5783 = vmatmul.mubr.bf16.gmra.mrb[0].mxu0 %v5717
    %v5784 = vpop.f32.mrb[0].mxu0
    %v5785 = vadd.f32 0.0, %v5784
    %v5786 = vpop.f32.mrb[0].mxu0
    %v5787 = vpop.f32.mrb[0].mxu0
    %v5788 = vadd.f32 0.0, %v5787
    %v5789 = vpop.f32.mrb[0].mxu0
    %5790 = vmatprep.mubr.bf16.mxu0 0
    %5791 = vmatmul.mubr.bf16.gmra.mrb[0].mxu0 %v5720
    %v5792 = vpop.f32.mrb[0].mxu0
    %v5793 = vadd.f32 0.0, %v5792
    %v5794 = vpop.f32.mrb[0].mxu0
    %v5795 = vpop.f32.mrb[0].mxu0
    %v5796 = vadd.f32 0.0, %v5795
    %v5797 = vpop.f32.mrb[0].mxu0
    %5798 = vmatprep.mubr.bf16.mxu0 0
    %5799 = vmatmul.mubr.bf16.gmra.mrb[0].mxu0 %v5723
    %v5800 = vpop.f32.mrb[0].mxu0
    %v5801 = vadd.f32 0.0, %v5800
    %v5802 = vpop.f32.mrb[0].mxu0
    %v5803 = vpop.f32.mrb[0].mxu0
    %v5804 = vadd.f32 0.0, %v5803
    %v5805 = vpop.f32.mrb[0].mxu0
    %5806 = vmatprep.mubr.bf16.mxu0 0
    %5807 = vmatmul.mubr.bf16.gmra.mrb[0].mxu0 %v5726
    %v5808 = vpop.f32.mrb[0].mxu0
    %v5809 = vadd.f32 0.0, %v5808
    %v5810 = vpop.f32.mrb[0].mxu0
    %v5811 = vpop.f32.mrb[0].mxu0
    %v5812 = vadd.f32 0.0, %v5811
    %v5813 = vpop.f32.mrb[0].mxu0
    %5814 = vmatprep.mubr.bf16.mxu0 0
    %5815 = vmatmul.mubr.bf16.gmra.mrb[0].mxu0 %v5729
    %v5816 = vpop.f32.mrb[0].mxu0
    %v5817 = vadd.f32 0.0, %v5816
    %v5818 = vpop.f32.mrb[0].mxu0
    %v5819 = vpop.f32.mrb[0].mxu0
    %v5820 = vpop.f32.mrb[0].mxu0
    %5821 = vdwg.mxu0
    %v5822 = vpack.c.bf16 %v5772, %v5769
    %v5823 = vpack.c.bf16 %v5780, %v5777
    %v5824 = vpack.c.bf16 %v5788, %v5785
    %v5825 = vpack.c.bf16 %v5796, %v5793
    %v5826 = vpack.c.bf16 %v5804, %v5801
    %v5827 = vpack.c.bf16 %v5812, %v5809
    %v5828 = vpack.c.bf16 %v5817, %v5817
    %s5829 = scalar_lea.vmem %s1, 1152
    %v5830 = vld [vmem:[%s5829] sm:$0xf]
    %v5831 = vld [vmem:[%s5829 + $0x4] sm:$0xf]
    %v5832 = vld [vmem:[%s5829 + $0x8] sm:$0xf]
    %v5833 = vld [vmem:[%s5829 + $0xc] sm:$0xf]
    %v5834 = vld [vmem:[%s5829 + $0x10] sm:$0xf]
    %v5835 = vld [vmem:[%s5829 + $0x14] sm:$0xf]
    %v5836 = vld [vmem:[%s5829 + $0x18] sm:$0xf]
    %v5837 = vld [vmem:[%s5829 + $0x1c] sm:$0xf]
    %v5838 = vld [vmem:[%s5829 + $0x20] sm:$0xf]
    %v5839 = vld [vmem:[%s5829 + $0x24] sm:$0xf]
    %v5840 = vld [vmem:[%s5829 + $0x28] sm:$0xf]
    %v5841 = vld [vmem:[%s5829 + $0x2c] sm:$0xf]
    %v5842 = vld [vmem:[%s5829 + $0x30] sm:$0xf]
    %v5843 = vld [vmem:[%s5829 + $0x34] sm:$0xf]
    %v5844 = vld [vmem:[%s5829 + $0x38] sm:$0xf]
    %v5845 = vld [vmem:[%s5829 + $0x3c] sm:$0xf]
    %vm5846 = vcmp.eq.s32.totalorder %v5586, 0
    %vm5847 = vcmp.eq.s32.totalorder %v5587, 0
    %vm5848 = vcmp.eq.s32.totalorder %v5588, 0
    %vm5849 = vcmp.eq.s32.totalorder %v5589, 0
    %vm5850 = vcmp.eq.s32.totalorder %v5590, 0
    %vm5851 = vcmp.eq.s32.totalorder %v5591, 0
    %vm5852 = vmand %vm5573, %vm4162
    %vm5853 = vmand %vm5574, %vm4163
    %vm5854 = vmand %vm5575, %vm4164
    %vm5855 = vmand %vm5576, %vm4165
    %vm5856 = vmand %vm5577, %vm4849
    %vm5857 = vmand %vm5578, %vm4850
    %vm5858 = vmand %vm5579, %vm4851
    %vm5859 = vmand %vm5580, %vm5846
    %vm5860 = vmand %vm5581, %vm5847
    %vm5861 = vmand %vm5582, %vm5848
    %vm5862 = vmand %vm5583, %vm5849
    %vm5863 = vmand %vm5584, %vm5850
    %vm5864 = vmand %vm5585, %vm5851
    %vm5865 = vcmp.eq.s32.totalorder %v5638, 0
    %vm5866 = vcmp.eq.s32.totalorder %v5639, 0
    %vm5867 = vcmp.eq.s32.totalorder %v5640, 0
    %vm5868 = vcmp.eq.s32.totalorder %v5641, 0
    %vm5869 = vcmp.eq.s32.totalorder %v5642, 0
    %vm5870 = vcmp.eq.s32.totalorder %v5643, 0
    %vm5871 = vcmp.eq.s32.totalorder %v5644, 0
    %vm5872 = vcmp.eq.s32.totalorder %v5645, 0
    %vm5873 = vcmp.eq.s32.totalorder %v5646, 0
    %vm5874 = vcmp.eq.s32.totalorder %v5647, 0
    %vm5875 = vcmp.eq.s32.totalorder %v5648, 0
    %vm5876 = vcmp.eq.s32.totalorder %v5649, 0
    %vm5877 = vcmp.eq.s32.totalorder %v5650, 0
    %vm5878 = vmand %vm5624, %vm5865
    %vm5879 = vmand %vm5625, %vm5866
    %vm5880 = vmand %vm5626, %vm5867
    %vm5881 = vmand %vm5627, %vm5868
    %vm5882 = vmand %vm5628, %vm5869
    %vm5883 = vmand %vm5629, %vm5870
    %vm5884 = vmand %vm5630, %vm5871
    %vm5885 = vmand %vm5631, %vm5872
    %vm5886 = vmand %vm5632, %vm5873
    %vm5887 = vmand %vm5633, %vm5874
    %vm5888 = vmand %vm5634, %vm5875
    %vm5889 = vmand %vm5635, %vm5876
    %vm5890 = vmand %vm5636, %vm5877
    %vm5891 = vmor %vm5852, %vm5878
    %vm5892 = vmor %vm5853, %vm5879
    %vm5893 = vmor %vm5854, %vm5880
    %vm5894 = vmor %vm5855, %vm5881
    %vm5895 = vmor %vm5856, %vm5882
    %vm5896 = vmor %vm5857, %vm5883
    %vm5897 = vmor %vm5858, %vm5884
    %vm5898 = vmor %vm5859, %vm5885
    %vm5899 = vmor %vm5860, %vm5886
    %vm5900 = vmor %vm5861, %vm5887
    %vm5901 = vmor %vm5862, %vm5888
    %vm5902 = vmor %vm5863, %vm5889
    %vm5903 = vmor %vm5864, %vm5890
    %v5904 = vsel %vm5891, 1.0, 0.0
    %v5905 = vsel %vm5892, 1.0, 0.0
    %v5906 = vsel %vm5893, 1.0, 0.0
    %v5907 = vsel %vm5894, 1.0, 0.0
    %v5908 = vsel %vm5895, 1.0, 0.0
    %v5909 = vsel %vm5896, 1.0, 0.0
    %v5910 = vsel %vm5897, 1.0, 0.0
    %v5911 = vsel %vm5898, 1.0, 0.0
    %v5912 = vsel %vm5899, 1.0, 0.0
    %v5913 = vsel %vm5900, 1.0, 0.0
    %v5914 = vsel %vm5901, 1.0, 0.0
    %v5915 = vsel %vm5902, 1.0, 0.0
    %v5916 = vsel %vm5903, 1.0, 0.0
    %v5917 = vpack.c.bf16 %v5905, %v5904
    %v5918 = vpack.c.bf16 %v5907, %v5906
    %v5919 = vpack.c.bf16 %v5909, %v5908
    %v5920 = vpack.c.bf16 %v5911, %v5910
    %v5921 = vpack.c.bf16 %v5913, %v5912
    %v5922 = vpack.c.bf16 %v5915, %v5914
    %v5923 = vpack.c.bf16 %v5916, %v5916
    %v5925 = vsel %vm2835, %v5917, 0
    %v5928 = vsel %vm2835, %v5918, 0
    %v5931 = vsel %vm2835, %v5919, 0
    %v5934 = vsel %vm2835, %v5920, 0
    %v5937 = vsel %vm2835, %v5921, 0
    %v5940 = vsel %vm2835, %v5922, 0
    %v5943 = vsel %vm2835, %v5923, 0
    %5945 = vmatprep.subr.bf16.mxu0 0
    %5946 = vmatpush1.bf16.msra.mxu0 %v5569
    %5947 = vmatprep.subr.bf16.mxu0 0
    %5948 = vmatpush1.bf16.msra.mxu0 %v5570
    %5949 = vmatprep.subr.bf16.mxu0 0
    %5950 = vmatpush1.bf16.msra.mxu0 %v5571
    %5951 = vmatprep.subr.bf16.mxu0 0
    %5952 = vmatpush1.bf16.msra.mxu0 %v5732
    %5953 = vmatprep.subr.bf16.mxu0 0
    %5954 = vmatpush1.bf16.msra.mxu0 0
    %5955 = vmatprep.subr.bf16.mxu0 0
    %5956 = vmatpush1.bf16.msra.mxu0 0
    %5957 = vmatprep.subr.bf16.mxu0 0
    %5958 = vmatpush1.bf16.msra.mxu0 0
    %5959 = vmatprep.subr.bf16.mxu0 0
    %5960 = vmatpush1.bf16.msra.mxu0 0
    %5961 = vmatprep.subr.bf16.mxu0 0
    %5962 = vmatpush1.bf16.msra.mxu0 0
    %5963 = vmatprep.subr.bf16.mxu0 0
    %5964 = vmatpush1.bf16.msra.mxu0 0
    %5965 = vmatprep.subr.bf16.mxu0 0
    %5966 = vmatpush1.bf16.msra.mxu0 0
    %5967 = vmatprep.subr.bf16.mxu0 0
    %5968 = vmatpush1.bf16.msra.mxu0 0
    %5969 = vmatprep.subr.bf16.mxu0 0
    %5970 = vmatpush1.bf16.msra.mxu0 0
    %5971 = vmatprep.subr.bf16.mxu0 0
    %5972 = vmatpush1.bf16.msra.mxu0 0
    %5973 = vmatprep.subr.bf16.mxu0 0
    %5974 = vmatpush1.bf16.msra.mxu0 0
    %5975 = vmatprep.subr.bf16.mxu0 0
    %5976 = vmatpush1.bf16.msra.mxu0 0
    %5977 = vmatprep.mubr.bf16.mxu0 0
    %5978 = vmatmul.mubr.bf16.gmra.mrb[0].mxu0 %v5925
    %v5979 = vpop.f32.mrb[0].mxu0
    %v5980 = vadd.f32 0.0, %v5979
    %v5981 = vpop.f32.mrb[0].mxu0
    %v5982 = vpop.f32.mrb[0].mxu0
    %v5983 = vadd.f32 0.0, %v5982
    %v5984 = vpop.f32.mrb[0].mxu0
    %5985 = vmatprep.mubr.bf16.mxu0 0
    %5986 = vmatmul.mubr.bf16.gmra.mrb[0].mxu0 %v5928
    %v5987 = vpop.f32.mrb[0].mxu0
    %v5988 = vadd.f32 0.0, %v5987
    %v5989 = vpop.f32.mrb[0].mxu0
    %v5990 = vpop.f32.mrb[0].mxu0
    %v5991 = vadd.f32 0.0, %v5990
    %v5992 = vpop.f32.mrb[0].mxu0
    %5993 = vmatprep.mubr.bf16.mxu0 0
    %5994 = vmatmul.mubr.bf16.gmra.mrb[0].mxu0 %v5931
    %v5995 = vpop.f32.mrb[0].mxu0
    %v5996 = vadd.f32 0.0, %v5995
    %v5997 = vpop.f32.mrb[0].mxu0
    %v5998 = vpop.f32.mrb[0].mxu0
    %v5999 = vadd.f32 0.0, %v5998
    %v6000 = vpop.f32.mrb[0].mxu0
    %6001 = vmatprep.mubr.bf16.mxu0 0
    %6002 = vmatmul.mubr.bf16.gmra.mrb[0].mxu0 %v5934
    %v6003 = vpop.f32.mrb[0].mxu0
    %v6004 = vadd.f32 0.0, %v6003
    %v6005 = vpop.f32.mrb[0].mxu0
    %v6006 = vpop.f32.mrb[0].mxu0
    %v6007 = vadd.f32 0.0, %v6006
    %v6008 = vpop.f32.mrb[0].mxu0
    %6009 = vmatprep.mubr.bf16.mxu0 0
    %6010 = vmatmul.mubr.bf16.gmra.mrb[0].mxu0 %v5937
    %v6011 = vpop.f32.mrb[0].mxu0
    %v6012 = vadd.f32 0.0, %v6011
    %v6013 = vpop.f32.mrb[0].mxu0
    %v6014 = vpop.f32.mrb[0].mxu0
    %v6015 = vadd.f32 0.0, %v6014
    %v6016 = vpop.f32.mrb[0].mxu0
    %6017 = vmatprep.mubr.bf16.mxu0 0
    %6018 = vmatmul.mubr.bf16.gmra.mrb[0].mxu0 %v5940
    %v6019 = vpop.f32.mrb[0].mxu0
    %v6020 = vadd.f32 0.0, %v6019
    %v6021 = vpop.f32.mrb[0].mxu0
    %v6022 = vpop.f32.mrb[0].mxu0
    %v6023 = vadd.f32 0.0, %v6022
    %v6024 = vpop.f32.mrb[0].mxu0
    %6025 = vmatprep.mubr.bf16.mxu0 0
    %6026 = vmatmul.mubr.bf16.gmra.mrb[0].mxu0 %v5943
    %v6027 = vpop.f32.mrb[0].mxu0
    %v6028 = vadd.f32 0.0, %v6027
    %v6029 = vpop.f32.mrb[0].mxu0
    %v6030 = vpop.f32.mrb[0].mxu0
    %v6031 = vpop.f32.mrb[0].mxu0
    %6032 = vdwg.mxu0
    %v6033 = vpack.c.bf16 %v5983, %v5980
    %v6034 = vpack.c.bf16 %v5991, %v5988
    %v6035 = vpack.c.bf16 %v5999, %v5996
    %v6036 = vpack.c.bf16 %v6007, %v6004
    %v6037 = vpack.c.bf16 %v6015, %v6012
    %v6038 = vpack.c.bf16 %v6023, %v6020
    %v6039 = vpack.c.bf16 %v6028, %v6028
    %s6040 = scalar_lea.vmem %s1, 1216
    %v6041 = vld [vmem:[%s6040] sm:$0xf]
    %v6042 = vld [vmem:[%s6040 + $0x4] sm:$0xf]
    %v6043 = vld [vmem:[%s6040 + $0x8] sm:$0xf]
    %v6044 = vld [vmem:[%s6040 + $0xc] sm:$0xf]
    %v6045 = vld [vmem:[%s6040 + $0x10] sm:$0xf]
    %v6046 = vld [vmem:[%s6040 + $0x14] sm:$0xf]
    %v6047 = vld [vmem:[%s6040 + $0x18] sm:$0xf]
    %v6048 = vld [vmem:[%s6040 + $0x1c] sm:$0xf]
    %v6049 = vld [vmem:[%s6040 + $0x20] sm:$0xf]
    %v6050 = vld [vmem:[%s6040 + $0x24] sm:$0xf]
    %v6051 = vld [vmem:[%s6040 + $0x28] sm:$0xf]
    %v6052 = vld [vmem:[%s6040 + $0x2c] sm:$0xf]
    %v6053 = vld [vmem:[%s6040 + $0x30] sm:$0xf]
    %v6054 = vld [vmem:[%s6040 + $0x34] sm:$0xf]
    %v6055 = vld [vmem:[%s6040 + $0x38] sm:$0xf]
    %v6056 = vld [vmem:[%s6040 + $0x3c] sm:$0xf]
    %v6073 = vunpack.c.l.b16 %v6041
    %v6074 = vunpack.c.l.b16 %v6042
    %v6075 = vunpack.c.l.b16 %v6043
    %v6076 = vunpack.c.l.b16 %v6044
    %v6077 = vunpack.c.l.b16 %v6045
    %v6078 = vunpack.c.l.b16 %v6046
    %v6079 = vunpack.c.l.b16 %v6047
    %v6080 = vunpack.c.l.b16 %v6048
    %v6081 = vunpack.c.l.b16 %v6049
    %v6082 = vunpack.c.l.b16 %v6050
    %v6083 = vunpack.c.l.b16 %v6051
    %v6084 = vunpack.c.l.b16 %v6052
    %v6085 = vunpack.c.l.b16 %v6053
    %v6086 = vunpack.c.l.b16 %v6054
    %v6087 = vunpack.c.l.b16 %v6055
    %v6088 = vunpack.c.l.b16 %v6056
    %v6089 = vpack.c.b16 %v6074, %v6073
    %v6090 = vpack.c.b16 %v6076, %v6075
    %v6091 = vpack.c.b16 %v6078, %v6077
    %v6092 = vpack.c.b16 %v6080, %v6079
    %v6093 = vpack.c.b16 %v6082, %v6081
    %v6094 = vpack.c.b16 %v6084, %v6083
    %v6095 = vpack.c.b16 %v6086, %v6085
    %v6096 = vpack.c.b16 %v6088, %v6087
    %6105 = vmatprep.subr.bf16.mxu0 0
    %6106 = vmatpush1.bf16.msra.mxu0 %v6089
    %6107 = vmatprep.subr.bf16.mxu0 0
    %6108 = vmatpush1.bf16.msra.mxu0 %v6090
    %6109 = vmatprep.subr.bf16.mxu0 0
    %6110 = vmatpush1.bf16.msra.mxu0 %v6091
    %6111 = vmatprep.subr.bf16.mxu0 0
    %6112 = vmatpush1.bf16.msra.mxu0 %v6092
    %6113 = vmatprep.subr.bf16.mxu0 0
    %6114 = vmatpush1.bf16.msra.mxu0 %v6093
    %6115 = vmatprep.subr.bf16.mxu0 0
    %6116 = vmatpush1.bf16.msra.mxu0 %v6094
    %6117 = vmatprep.subr.bf16.mxu0 0
    %6118 = vmatpush1.bf16.msra.mxu0 %v6095
    %6119 = vmatprep.subr.bf16.mxu0 0
    %6120 = vmatpush1.bf16.msra.mxu0 %v6096
    %6121 = vmatprep.subr.bf16.mxu0 0
    %6122 = vmatpush1.bf16.msra.mxu0 0
    %6123 = vmatprep.subr.bf16.mxu0 0
    %6124 = vmatpush1.bf16.msra.mxu0 0
    %6125 = vmatprep.subr.bf16.mxu0 0
    %6126 = vmatpush1.bf16.msra.mxu0 0
    %6127 = vmatprep.subr.bf16.mxu0 0
    %6128 = vmatpush1.bf16.msra.mxu0 0
    %6129 = vmatprep.subr.bf16.mxu0 0
    %6130 = vmatpush1.bf16.msra.mxu0 0
    %6131 = vmatprep.subr.bf16.mxu0 0
    %6132 = vmatpush1.bf16.msra.mxu0 0
    %6133 = vmatprep.subr.bf16.mxu0 0
    %6134 = vmatpush1.bf16.msra.mxu0 0
    %6135 = vmatprep.subr.bf16.mxu0 0
    %6136 = vmatpush1.bf16.msra.mxu0 0
    %6137 = vmatprep.mubr.bf16.mxu0 0
    %6138 = vmatmul.mubr.bf16.gmra.mrb[0].mxu0 %v6033
    %v6139 = vpop.f32.mrb[0].mxu0
    %v6140 = vadd.f32 0.0, %v6139
    %v6141 = vpop.f32.mrb[0].mxu0
    %v6142 = vpop.f32.mrb[0].mxu0
    %v6143 = vadd.f32 0.0, %v6142
    %v6144 = vpop.f32.mrb[0].mxu0
    %6145 = vmatprep.mubr.bf16.mxu0 0
    %6146 = vmatmul.mubr.bf16.gmra.mrb[0].mxu0 %v6034
    %v6147 = vpop.f32.mrb[0].mxu0
    %v6148 = vadd.f32 0.0, %v6147
    %v6149 = vpop.f32.mrb[0].mxu0
    %v6150 = vpop.f32.mrb[0].mxu0
    %v6151 = vadd.f32 0.0, %v6150
    %v6152 = vpop.f32.mrb[0].mxu0
    %6153 = vmatprep.mubr.bf16.mxu0 0
    %6154 = vmatmul.mubr.bf16.gmra.mrb[0].mxu0 %v6035
    %v6155 = vpop.f32.mrb[0].mxu0
    %v6156 = vadd.f32 0.0, %v6155
    %v6157 = vpop.f32.mrb[0].mxu0
    %v6158 = vpop.f32.mrb[0].mxu0
    %v6159 = vadd.f32 0.0, %v6158
    %v6160 = vpop.f32.mrb[0].mxu0
    %6161 = vmatprep.mubr.bf16.mxu0 0
    %6162 = vmatmul.mubr.bf16.gmra.mrb[0].mxu0 %v6036
    %v6163 = vpop.f32.mrb[0].mxu0
    %v6164 = vadd.f32 0.0, %v6163
    %v6165 = vpop.f32.mrb[0].mxu0
    %v6166 = vpop.f32.mrb[0].mxu0
    %v6167 = vadd.f32 0.0, %v6166
    %v6168 = vpop.f32.mrb[0].mxu0
    %6169 = vmatprep.mubr.bf16.mxu0 0
    %6170 = vmatmul.mubr.bf16.gmra.mrb[0].mxu0 %v6037
    %v6171 = vpop.f32.mrb[0].mxu0
    %v6172 = vadd.f32 0.0, %v6171
    %v6173 = vpop.f32.mrb[0].mxu0
    %v6174 = vpop.f32.mrb[0].mxu0
    %v6175 = vadd.f32 0.0, %v6174
    %v6176 = vpop.f32.mrb[0].mxu0
    %6177 = vmatprep.mubr.bf16.mxu0 0
    %6178 = vmatmul.mubr.bf16.gmra.mrb[0].mxu0 %v6038
    %v6179 = vpop.f32.mrb[0].mxu0
    %v6180 = vadd.f32 0.0, %v6179
    %v6181 = vpop.f32.mrb[0].mxu0
    %v6182 = vpop.f32.mrb[0].mxu0
    %v6183 = vadd.f32 0.0, %v6182
    %v6184 = vpop.f32.mrb[0].mxu0
    %6185 = vmatprep.mubr.bf16.mxu0 0
    %6186 = vmatmul.mubr.bf16.gmra.mrb[0].mxu0 %v6039
    %v6187 = vpop.f32.mrb[0].mxu0
    %v6188 = vadd.f32 0.0, %v6187
    %v6189 = vpop.f32.mrb[0].mxu0
    %v6190 = vpop.f32.mrb[0].mxu0
    %v6191 = vpop.f32.mrb[0].mxu0
    %6192 = vdwg.mxu0
    %v6209 = vunpack.c.l.b16 %v5830
    %v6210 = vunpack.c.l.b16 %v5831
    %v6211 = vunpack.c.l.b16 %v5832
    %v6212 = vunpack.c.l.b16 %v5833
    %v6213 = vunpack.c.l.b16 %v5834
    %v6214 = vunpack.c.l.b16 %v5835
    %v6215 = vunpack.c.l.b16 %v5836
    %v6216 = vunpack.c.l.b16 %v5837
    %v6217 = vunpack.c.l.b16 %v5838
    %v6218 = vunpack.c.l.b16 %v5839
    %v6219 = vunpack.c.l.b16 %v5840
    %v6220 = vunpack.c.l.b16 %v5841
    %v6221 = vunpack.c.l.b16 %v5842
    %v6222 = vunpack.c.l.b16 %v5843
    %v6223 = vunpack.c.l.b16 %v5844
    %v6224 = vunpack.c.l.b16 %v5845
    %v6225 = vpack.c.b16 %v6210, %v6209
    %v6226 = vpack.c.b16 %v6212, %v6211
    %v6227 = vpack.c.b16 %v6214, %v6213
    %v6228 = vpack.c.b16 %v6216, %v6215
    %v6229 = vpack.c.b16 %v6218, %v6217
    %v6230 = vpack.c.b16 %v6220, %v6219
    %v6231 = vpack.c.b16 %v6222, %v6221
    %v6232 = vpack.c.b16 %v6224, %v6223
    %6241 = vmatprep.subr.bf16.mxu0 0
    %6242 = vmatpush1.bf16.msra.mxu0 %v6225
    %6243 = vmatprep.subr.bf16.mxu0 0
    %6244 = vmatpush1.bf16.msra.mxu0 %v6226
    %6245 = vmatprep.subr.bf16.mxu0 0
    %6246 = vmatpush1.bf16.msra.mxu0 %v6227
    %6247 = vmatprep.subr.bf16.mxu0 0
    %6248 = vmatpush1.bf16.msra.mxu0 %v6228
    %6249 = vmatprep.subr.bf16.mxu0 0
    %6250 = vmatpush1.bf16.msra.mxu0 %v6229
    %6251 = vmatprep.subr.bf16.mxu0 0
    %6252 = vmatpush1.bf16.msra.mxu0 %v6230
    %6253 = vmatprep.subr.bf16.mxu0 0
    %6254 = vmatpush1.bf16.msra.mxu0 %v6231
    %6255 = vmatprep.subr.bf16.mxu0 0
    %6256 = vmatpush1.bf16.msra.mxu0 %v6232
    %6257 = vmatprep.subr.bf16.mxu0 0
    %6258 = vmatpush1.bf16.msra.mxu0 0
    %6259 = vmatprep.subr.bf16.mxu0 0
    %6260 = vmatpush1.bf16.msra.mxu0 0
    %6261 = vmatprep.subr.bf16.mxu0 0
    %6262 = vmatpush1.bf16.msra.mxu0 0
    %6263 = vmatprep.subr.bf16.mxu0 0
    %6264 = vmatpush1.bf16.msra.mxu0 0
    %6265 = vmatprep.subr.bf16.mxu0 0
    %6266 = vmatpush1.bf16.msra.mxu0 0
    %6267 = vmatprep.subr.bf16.mxu0 0
    %6268 = vmatpush1.bf16.msra.mxu0 0
    %6269 = vmatprep.subr.bf16.mxu0 0
    %6270 = vmatpush1.bf16.msra.mxu0 0
    %6271 = vmatprep.subr.bf16.mxu0 0
    %6272 = vmatpush1.bf16.msra.mxu0 0
    %6273 = vmatprep.mubr.bf16.mxu0 0
    %6274 = vmatmul.mubr.bf16.gmra.mrb[0].mxu0 %v5822
    %v6275 = vpop.f32.mrb[0].mxu0
    %v6276 = vadd.f32 %v6140, %v6275
    %v6277 = vpop.f32.mrb[0].mxu0
    %v6278 = vpop.f32.mrb[0].mxu0
    %v6279 = vadd.f32 %v6143, %v6278
    %v6280 = vpop.f32.mrb[0].mxu0
    %6281 = vmatprep.mubr.bf16.mxu0 0
    %6282 = vmatmul.mubr.bf16.gmra.mrb[0].mxu0 %v5823
    %v6283 = vpop.f32.mrb[0].mxu0
    %v6284 = vadd.f32 %v6148, %v6283
    %v6285 = vpop.f32.mrb[0].mxu0
    %v6286 = vpop.f32.mrb[0].mxu0
    %v6287 = vadd.f32 %v6151, %v6286
    %v6288 = vpop.f32.mrb[0].mxu0
    %6289 = vmatprep.mubr.bf16.mxu0 0
    %6290 = vmatmul.mubr.bf16.gmra.mrb[0].mxu0 %v5824
    %v6291 = vpop.f32.mrb[0].mxu0
    %v6292 = vadd.f32 %v6156, %v6291
    %v6293 = vpop.f32.mrb[0].mxu0
    %v6294 = vpop.f32.mrb[0].mxu0
    %v6295 = vadd.f32 %v6159, %v6294
    %v6296 = vpop.f32.mrb[0].mxu0
    %6297 = vmatprep.mubr.bf16.mxu0 0
    %6298 = vmatmul.mubr.bf16.gmra.mrb[0].mxu0 %v5825
    %v6299 = vpop.f32.mrb[0].mxu0
    %v6300 = vadd.f32 %v6164, %v6299
    %v6301 = vpop.f32.mrb[0].mxu0
    %v6302 = vpop.f32.mrb[0].mxu0
    %v6303 = vadd.f32 %v6167, %v6302
    %v6304 = vpop.f32.mrb[0].mxu0
    %6305 = vmatprep.mubr.bf16.mxu0 0
    %6306 = vmatmul.mubr.bf16.gmra.mrb[0].mxu0 %v5826
    %v6307 = vpop.f32.mrb[0].mxu0
    %v6308 = vadd.f32 %v6172, %v6307
    %v6309 = vpop.f32.mrb[0].mxu0
    %v6310 = vpop.f32.mrb[0].mxu0
    %v6311 = vadd.f32 %v6175, %v6310
    %v6312 = vpop.f32.mrb[0].mxu0
    %6313 = vmatprep.mubr.bf16.mxu0 0
    %6314 = vmatmul.mubr.bf16.gmra.mrb[0].mxu0 %v5827
    %v6315 = vpop.f32.mrb[0].mxu0
    %v6316 = vadd.f32 %v6180, %v6315
    %v6317 = vpop.f32.mrb[0].mxu0
    %v6318 = vpop.f32.mrb[0].mxu0
    %v6319 = vadd.f32 %v6183, %v6318
    %v6320 = vpop.f32.mrb[0].mxu0
    %6321 = vmatprep.mubr.bf16.mxu0 0
    %6322 = vmatmul.mubr.bf16.gmra.mrb[0].mxu0 %v5828
    %v6323 = vpop.f32.mrb[0].mxu0
    %v6324 = vadd.f32 %v6188, %v6323
    %v6325 = vpop.f32.mrb[0].mxu0
    %v6326 = vpop.f32.mrb[0].mxu0
    %v6327 = vpop.f32.mrb[0].mxu0
    %6328 = vdwg.mxu0
    %vm6329 = vcmp.eq.s32.totalorder %v5586, 4294967295
    %vm6330 = vcmp.eq.s32.totalorder %v5587, 4294967295
    %vm6331 = vcmp.eq.s32.totalorder %v5588, 4294967295
    %vm6332 = vcmp.eq.s32.totalorder %v5589, 4294967295
    %vm6333 = vcmp.eq.s32.totalorder %v5590, 4294967295
    %vm6334 = vcmp.eq.s32.totalorder %v5591, 4294967295
    %vm6335 = vmand %vm5573, %vm4456
    %vm6336 = vmand %vm5574, %vm4457
    %vm6337 = vmand %vm5575, %vm4458
    %vm6338 = vmand %vm5576, %vm4459
    %vm6339 = vmand %vm5577, %vm5212
    %vm6340 = vmand %vm5578, %vm5213
    %vm6341 = vmand %vm5579, %vm5214
    %vm6342 = vmand %vm5580, %vm6329
    %vm6343 = vmand %vm5581, %vm6330
    %vm6344 = vmand %vm5582, %vm6331
    %vm6345 = vmand %vm5583, %vm6332
    %vm6346 = vmand %vm5584, %vm6333
    %vm6347 = vmand %vm5585, %vm6334
    %vm6348 = vcmp.eq.s32.totalorder %v5638, 4294967295
    %vm6349 = vcmp.eq.s32.totalorder %v5639, 4294967295
    %vm6350 = vcmp.eq.s32.totalorder %v5640, 4294967295
    %vm6351 = vcmp.eq.s32.totalorder %v5641, 4294967295
    %vm6352 = vcmp.eq.s32.totalorder %v5642, 4294967295
    %vm6353 = vcmp.eq.s32.totalorder %v5643, 4294967295
    %vm6354 = vcmp.eq.s32.totalorder %v5644, 4294967295
    %vm6355 = vcmp.eq.s32.totalorder %v5645, 4294967295
    %vm6356 = vcmp.eq.s32.totalorder %v5646, 4294967295
    %vm6357 = vcmp.eq.s32.totalorder %v5647, 4294967295
    %vm6358 = vcmp.eq.s32.totalorder %v5648, 4294967295
    %vm6359 = vcmp.eq.s32.totalorder %v5649, 4294967295
    %vm6360 = vcmp.eq.s32.totalorder %v5650, 4294967295
    %vm6361 = vmand %vm5624, %vm6348
    %vm6362 = vmand %vm5625, %vm6349
    %vm6363 = vmand %vm5626, %vm6350
    %vm6364 = vmand %vm5627, %vm6351
    %vm6365 = vmand %vm5628, %vm6352
    %vm6366 = vmand %vm5629, %vm6353
    %vm6367 = vmand %vm5630, %vm6354
    %vm6368 = vmand %vm5631, %vm6355
    %vm6369 = vmand %vm5632, %vm6356
    %vm6370 = vmand %vm5633, %vm6357
    %vm6371 = vmand %vm5634, %vm6358
    %vm6372 = vmand %vm5635, %vm6359
    %vm6373 = vmand %vm5636, %vm6360
    %vm6374 = vmor %vm6335, %vm6361
    %vm6375 = vmor %vm6336, %vm6362
    %vm6376 = vmor %vm6337, %vm6363
    %vm6377 = vmor %vm6338, %vm6364
    %vm6378 = vmor %vm6339, %vm6365
    %vm6379 = vmor %vm6340, %vm6366
    %vm6380 = vmor %vm6341, %vm6367
    %vm6381 = vmor %vm6342, %vm6368
    %vm6382 = vmor %vm6343, %vm6369
    %vm6383 = vmor %vm6344, %vm6370
    %vm6384 = vmor %vm6345, %vm6371
    %vm6385 = vmor %vm6346, %vm6372
    %vm6386 = vmor %vm6347, %vm6373
    %v6387 = vsel %vm6374, 1.0, 0.0
    %v6388 = vsel %vm6375, 1.0, 0.0
    %v6389 = vsel %vm6376, 1.0, 0.0
    %v6390 = vsel %vm6377, 1.0, 0.0
    %v6391 = vsel %vm6378, 1.0, 0.0
    %v6392 = vsel %vm6379, 1.0, 0.0
    %v6393 = vsel %vm6380, 1.0, 0.0
    %v6394 = vsel %vm6381, 1.0, 0.0
    %v6395 = vsel %vm6382, 1.0, 0.0
    %v6396 = vsel %vm6383, 1.0, 0.0
    %v6397 = vsel %vm6384, 1.0, 0.0
    %v6398 = vsel %vm6385, 1.0, 0.0
    %v6399 = vsel %vm6386, 1.0, 0.0
    %v6400 = vpack.c.bf16 %v6388, %v6387
    %v6401 = vpack.c.bf16 %v6390, %v6389
    %v6402 = vpack.c.bf16 %v6392, %v6391
    %v6403 = vpack.c.bf16 %v6394, %v6393
    %v6404 = vpack.c.bf16 %v6396, %v6395
    %v6405 = vpack.c.bf16 %v6398, %v6397
    %v6406 = vpack.c.bf16 %v6399, %v6399
    %v6408 = vsel %vm2835, %v6400, 0
    %v6411 = vsel %vm2835, %v6401, 0
    %v6414 = vsel %vm2835, %v6402, 0
    %v6417 = vsel %vm2835, %v6403, 0
    %v6420 = vsel %vm2835, %v6404, 0
    %v6423 = vsel %vm2835, %v6405, 0
    %v6426 = vsel %vm2835, %v6406, 0
    %6428 = vmatprep.subr.bf16.mxu0 0
    %6429 = vmatpush1.bf16.msra.mxu0 %v5569
    %6430 = vmatprep.subr.bf16.mxu0 0
    %6431 = vmatpush1.bf16.msra.mxu0 %v5570
    %6432 = vmatprep.subr.bf16.mxu0 0
    %6433 = vmatpush1.bf16.msra.mxu0 %v5571
    %6434 = vmatprep.subr.bf16.mxu0 0
    %6435 = vmatpush1.bf16.msra.mxu0 %v5732
    %6436 = vmatprep.subr.bf16.mxu0 0
    %6437 = vmatpush1.bf16.msra.mxu0 0
    %6438 = vmatprep.subr.bf16.mxu0 0
    %6439 = vmatpush1.bf16.msra.mxu0 0
    %6440 = vmatprep.subr.bf16.mxu0 0
    %6441 = vmatpush1.bf16.msra.mxu0 0
    %6442 = vmatprep.subr.bf16.mxu0 0
    %6443 = vmatpush1.bf16.msra.mxu0 0
    %6444 = vmatprep.subr.bf16.mxu0 0
    %6445 = vmatpush1.bf16.msra.mxu0 0
    %6446 = vmatprep.subr.bf16.mxu0 0
    %6447 = vmatpush1.bf16.msra.mxu0 0
    %6448 = vmatprep.subr.bf16.mxu0 0
    %6449 = vmatpush1.bf16.msra.mxu0 0
    %6450 = vmatprep.subr.bf16.mxu0 0
    %6451 = vmatpush1.bf16.msra.mxu0 0
    %6452 = vmatprep.subr.bf16.mxu0 0
    %6453 = vmatpush1.bf16.msra.mxu0 0
    %6454 = vmatprep.subr.bf16.mxu0 0
    %6455 = vmatpush1.bf16.msra.mxu0 0
    %6456 = vmatprep.subr.bf16.mxu0 0
    %6457 = vmatpush1.bf16.msra.mxu0 0
    %6458 = vmatprep.subr.bf16.mxu0 0
    %6459 = vmatpush1.bf16.msra.mxu0 0
    %6460 = vmatprep.mubr.bf16.mxu0 0
    %6461 = vmatmul.mubr.bf16.gmra.mrb[0].mxu0 %v6408
    %v6462 = vpop.f32.mrb[0].mxu0
    %v6463 = vadd.f32 0.0, %v6462
    %v6464 = vpop.f32.mrb[0].mxu0
    %v6465 = vpop.f32.mrb[0].mxu0
    %v6466 = vadd.f32 0.0, %v6465
    %v6467 = vpop.f32.mrb[0].mxu0
    %6468 = vmatprep.mubr.bf16.mxu0 0
    %6469 = vmatmul.mubr.bf16.gmra.mrb[0].mxu0 %v6411
    %v6470 = vpop.f32.mrb[0].mxu0
    %v6471 = vadd.f32 0.0, %v6470
    %v6472 = vpop.f32.mrb[0].mxu0
    %v6473 = vpop.f32.mrb[0].mxu0
    %v6474 = vadd.f32 0.0, %v6473
    %v6475 = vpop.f32.mrb[0].mxu0
    %6476 = vmatprep.mubr.bf16.mxu0 0
    %6477 = vmatmul.mubr.bf16.gmra.mrb[0].mxu0 %v6414
    %v6478 = vpop.f32.mrb[0].mxu0
    %v6479 = vadd.f32 0.0, %v6478
    %v6480 = vpop.f32.mrb[0].mxu0
    %v6481 = vpop.f32.mrb[0].mxu0
    %v6482 = vadd.f32 0.0, %v6481
    %v6483 = vpop.f32.mrb[0].mxu0
    %6484 = vmatprep.mubr.bf16.mxu0 0
    %6485 = vmatmul.mubr.bf16.gmra.mrb[0].mxu0 %v6417
    %v6486 = vpop.f32.mrb[0].mxu0
    %v6487 = vadd.f32 0.0, %v6486
    %v6488 = vpop.f32.mrb[0].mxu0
    %v6489 = vpop.f32.mrb[0].mxu0
    %v6490 = vadd.f32 0.0, %v6489
    %v6491 = vpop.f32.mrb[0].mxu0
    %6492 = vmatprep.mubr.bf16.mxu0 0
    %6493 = vmatmul.mubr.bf16.gmra.mrb[0].mxu0 %v6420
    %v6494 = vpop.f32.mrb[0].mxu0
    %v6495 = vadd.f32 0.0, %v6494
    %v6496 = vpop.f32.mrb[0].mxu0
    %v6497 = vpop.f32.mrb[0].mxu0
    %v6498 = vadd.f32 0.0, %v6497
    %v6499 = vpop.f32.mrb[0].mxu0
    %6500 = vmatprep.mubr.bf16.mxu0 0
    %6501 = vmatmul.mubr.bf16.gmra.mrb[0].mxu0 %v6423
    %v6502 = vpop.f32.mrb[0].mxu0
    %v6503 = vadd.f32 0.0, %v6502
    %v6504 = vpop.f32.mrb[0].mxu0
    %v6505 = vpop.f32.mrb[0].mxu0
    %v6506 = vadd.f32 0.0, %v6505
    %v6507 = vpop.f32.mrb[0].mxu0
    %6508 = vmatprep.mubr.bf16.mxu0 0
    %6509 = vmatmul.mubr.bf16.gmra.mrb[0].mxu0 %v6426
    %v6510 = vpop.f32.mrb[0].mxu0
    %v6511 = vadd.f32 0.0, %v6510
    %v6512 = vpop.f32.mrb[0].mxu0
    %v6513 = vpop.f32.mrb[0].mxu0
    %v6514 = vpop.f32.mrb[0].mxu0
    %6515 = vdwg.mxu0
    %v6516 = vpack.c.bf16 %v6466, %v6463
    %v6517 = vpack.c.bf16 %v6474, %v6471
    %v6518 = vpack.c.bf16 %v6482, %v6479
    %v6519 = vpack.c.bf16 %v6490, %v6487
    %v6520 = vpack.c.bf16 %v6498, %v6495
    %v6521 = vpack.c.bf16 %v6506, %v6503
    %v6522 = vpack.c.bf16 %v6511, %v6511
    %s6523 = scalar_lea.vmem %s1, 1280
    %v6524 = vld [vmem:[%s6523] sm:$0xf]
    %v6525 = vld [vmem:[%s6523 + $0x4] sm:$0xf]
    %v6526 = vld [vmem:[%s6523 + $0x8] sm:$0xf]
    %v6527 = vld [vmem:[%s6523 + $0xc] sm:$0xf]
    %v6528 = vld [vmem:[%s6523 + $0x10] sm:$0xf]
    %v6529 = vld [vmem:[%s6523 + $0x14] sm:$0xf]
    %v6530 = vld [vmem:[%s6523 + $0x18] sm:$0xf]
    %v6531 = vld [vmem:[%s6523 + $0x1c] sm:$0xf]
    %v6532 = vld [vmem:[%s6523 + $0x20] sm:$0xf]
    %v6533 = vld [vmem:[%s6523 + $0x24] sm:$0xf]
    %v6534 = vld [vmem:[%s6523 + $0x28] sm:$0xf]
    %v6535 = vld [vmem:[%s6523 + $0x2c] sm:$0xf]
    %v6536 = vld [vmem:[%s6523 + $0x30] sm:$0xf]
    %v6537 = vld [vmem:[%s6523 + $0x34] sm:$0xf]
    %v6538 = vld [vmem:[%s6523 + $0x38] sm:$0xf]
    %v6539 = vld [vmem:[%s6523 + $0x3c] sm:$0xf]
    %v6556 = vunpack.c.l.b16 %v6524
    %v6557 = vunpack.c.l.b16 %v6525
    %v6558 = vunpack.c.l.b16 %v6526
    %v6559 = vunpack.c.l.b16 %v6527
    %v6560 = vunpack.c.l.b16 %v6528
    %v6561 = vunpack.c.l.b16 %v6529
    %v6562 = vunpack.c.l.b16 %v6530
    %v6563 = vunpack.c.l.b16 %v6531
    %v6564 = vunpack.c.l.b16 %v6532
    %v6565 = vunpack.c.l.b16 %v6533
    %v6566 = vunpack.c.l.b16 %v6534
    %v6567 = vunpack.c.l.b16 %v6535
    %v6568 = vunpack.c.l.b16 %v6536
    %v6569 = vunpack.c.l.b16 %v6537
    %v6570 = vunpack.c.l.b16 %v6538
    %v6571 = vunpack.c.l.b16 %v6539
    %v6572 = vpack.c.b16 %v6557, %v6556
    %v6573 = vpack.c.b16 %v6559, %v6558
    %v6574 = vpack.c.b16 %v6561, %v6560
    %v6575 = vpack.c.b16 %v6563, %v6562
    %v6576 = vpack.c.b16 %v6565, %v6564
    %v6577 = vpack.c.b16 %v6567, %v6566
    %v6578 = vpack.c.b16 %v6569, %v6568
    %v6579 = vpack.c.b16 %v6571, %v6570
    %6588 = vmatprep.subr.bf16.mxu0 0
    %6589 = vmatpush1.bf16.msra.mxu0 %v6572
    %6590 = vmatprep.subr.bf16.mxu0 0
    %6591 = vmatpush1.bf16.msra.mxu0 %v6573
    %6592 = vmatprep.subr.bf16.mxu0 0
    %6593 = vmatpush1.bf16.msra.mxu0 %v6574
    %6594 = vmatprep.subr.bf16.mxu0 0
    %6595 = vmatpush1.bf16.msra.mxu0 %v6575
    %6596 = vmatprep.subr.bf16.mxu0 0
    %6597 = vmatpush1.bf16.msra.mxu0 %v6576
    %6598 = vmatprep.subr.bf16.mxu0 0
    %6599 = vmatpush1.bf16.msra.mxu0 %v6577
    %6600 = vmatprep.subr.bf16.mxu0 0
    %6601 = vmatpush1.bf16.msra.mxu0 %v6578
    %6602 = vmatprep.subr.bf16.mxu0 0
    %6603 = vmatpush1.bf16.msra.mxu0 %v6579
    %6604 = vmatprep.subr.bf16.mxu0 0
    %6605 = vmatpush1.bf16.msra.mxu0 0
    %6606 = vmatprep.subr.bf16.mxu0 0
    %6607 = vmatpush1.bf16.msra.mxu0 0
    %6608 = vmatprep.subr.bf16.mxu0 0
    %6609 = vmatpush1.bf16.msra.mxu0 0
    %6610 = vmatprep.subr.bf16.mxu0 0
    %6611 = vmatpush1.bf16.msra.mxu0 0
    %6612 = vmatprep.subr.bf16.mxu0 0
    %6613 = vmatpush1.bf16.msra.mxu0 0
    %6614 = vmatprep.subr.bf16.mxu0 0
    %6615 = vmatpush1.bf16.msra.mxu0 0
    %6616 = vmatprep.subr.bf16.mxu0 0
    %6617 = vmatpush1.bf16.msra.mxu0 0
    %6618 = vmatprep.subr.bf16.mxu0 0
    %6619 = vmatpush1.bf16.msra.mxu0 0
    %6620 = vmatprep.mubr.bf16.mxu0 0
    %6621 = vmatmul.mubr.bf16.gmra.mrb[0].mxu0 %v6516
    %v6622 = vpop.f32.mrb[0].mxu0
    %v6623 = vadd.f32 0.0, %v6622
    %v6624 = vpop.f32.mrb[0].mxu0
    %v6625 = vpop.f32.mrb[0].mxu0
    %v6626 = vadd.f32 0.0, %v6625
    %v6627 = vpop.f32.mrb[0].mxu0
    %6628 = vmatprep.mubr.bf16.mxu0 0
    %6629 = vmatmul.mubr.bf16.gmra.mrb[0].mxu0 %v6517
    %v6630 = vpop.f32.mrb[0].mxu0
    %v6631 = vadd.f32 0.0, %v6630
    %v6632 = vpop.f32.mrb[0].mxu0
    %v6633 = vpop.f32.mrb[0].mxu0
    %v6634 = vadd.f32 0.0, %v6633
    %v6635 = vpop.f32.mrb[0].mxu0
    %6636 = vmatprep.mubr.bf16.mxu0 0
    %6637 = vmatmul.mubr.bf16.gmra.mrb[0].mxu0 %v6518
    %v6638 = vpop.f32.mrb[0].mxu0
    %v6639 = vadd.f32 0.0, %v6638
    %v6640 = vpop.f32.mrb[0].mxu0
    %v6641 = vpop.f32.mrb[0].mxu0
    %v6642 = vadd.f32 0.0, %v6641
    %v6643 = vpop.f32.mrb[0].mxu0
    %6644 = vmatprep.mubr.bf16.mxu0 0
    %6645 = vmatmul.mubr.bf16.gmra.mrb[0].mxu0 %v6519
    %v6646 = vpop.f32.mrb[0].mxu0
    %v6647 = vadd.f32 0.0, %v6646
    %v6648 = vpop.f32.mrb[0].mxu0
    %v6649 = vpop.f32.mrb[0].mxu0
    %v6650 = vadd.f32 0.0, %v6649
    %v6651 = vpop.f32.mrb[0].mxu0
    %6652 = vmatprep.mubr.bf16.mxu0 0
    %6653 = vmatmul.mubr.bf16.gmra.mrb[0].mxu0 %v6520
    %v6654 = vpop.f32.mrb[0].mxu0
    %v6655 = vadd.f32 0.0, %v6654
    %v6656 = vpop.f32.mrb[0].mxu0
    %v6657 = vpop.f32.mrb[0].mxu0
    %v6658 = vadd.f32 0.0, %v6657
    %v6659 = vpop.f32.mrb[0].mxu0
    %6660 = vmatprep.mubr.bf16.mxu0 0
    %6661 = vmatmul.mubr.bf16.gmra.mrb[0].mxu0 %v6521
    %v6662 = vpop.f32.mrb[0].mxu0
    %v6663 = vadd.f32 0.0, %v6662
    %v6664 = vpop.f32.mrb[0].mxu0
    %v6665 = vpop.f32.mrb[0].mxu0
    %v6666 = vadd.f32 0.0, %v6665
    %v6667 = vpop.f32.mrb[0].mxu0
    %6668 = vmatprep.mubr.bf16.mxu0 0
    %6669 = vmatmul.mubr.bf16.gmra.mrb[0].mxu0 %v6522
    %v6670 = vpop.f32.mrb[0].mxu0
    %v6671 = vadd.f32 0.0, %v6670
    %v6672 = vpop.f32.mrb[0].mxu0
    %v6673 = vpop.f32.mrb[0].mxu0
    %v6674 = vpop.f32.mrb[0].mxu0
    %6675 = vdwg.mxu0
    %v6676 = vadd.f32 %v6276, %v6623
    %v6677 = vadd.f32 %v6279, %v6626
    %v6678 = vadd.f32 %v6284, %v6631
    %v6679 = vadd.f32 %v6287, %v6634
    %v6680 = vadd.f32 %v6292, %v6639
    %v6681 = vadd.f32 %v6295, %v6642
    %v6682 = vadd.f32 %v6300, %v6647
    %v6683 = vadd.f32 %v6303, %v6650
    %v6684 = vadd.f32 %v6308, %v6655
    %v6685 = vadd.f32 %v6311, %v6658
    %v6686 = vadd.f32 %v6316, %v6663
    %v6687 = vadd.f32 %v6319, %v6666
    %v6688 = vadd.f32 %v6324, %v6671
    %s6689 = scalar_lea.vmem %s2, 6
    %v6690 = vld [vmem:[%s6689] sm:$0x1]
    %v6692 = vlaneseq
    %v6693 = vshrl.u32 %v6692, 7
    %v6694 = vsub.s32 0, %v6693
    %v6695 = vrot.slane %v6690, %v6694
    %v6697 = vadd.f32 %v6676, %v6695
    %v6698 = vadd.f32 %v6677, %v6695
    %v6699 = vadd.f32 %v6678, %v6695
    %v6700 = vadd.f32 %v6679, %v6695
    %v6701 = vadd.f32 %v6680, %v6695
    %v6702 = vadd.f32 %v6681, %v6695
    %v6703 = vadd.f32 %v6682, %v6695
    %v6704 = vadd.f32 %v6683, %v6695
    %v6705 = vadd.f32 %v6684, %v6695
    %v6706 = vadd.f32 %v6685, %v6695
    %v6707 = vadd.f32 %v6686, %v6695
    %v6708 = vadd.f32 %v6687, %v6695
    %v6709 = vadd.f32 %v6688, %v6695
    %v6710 = vmax.f32 %v6697, 0.0
    %v6711 = vmax.f32 %v6698, 0.0
    %v6712 = vmax.f32 %v6699, 0.0
    %v6713 = vmax.f32 %v6700, 0.0
    %v6714 = vmax.f32 %v6701, 0.0
    %v6715 = vmax.f32 %v6702, 0.0
    %v6716 = vmax.f32 %v6703, 0.0
    %v6717 = vmax.f32 %v6704, 0.0
    %v6718 = vmax.f32 %v6705, 0.0
    %v6719 = vmax.f32 %v6706, 0.0
    %v6720 = vmax.f32 %v6707, 0.0
    %v6721 = vmax.f32 %v6708, 0.0
    %v6722 = vmax.f32 %v6709, 0.0
    %v6723 = vadd.f32 %v6710, %v6711
    %v6724 = vadd.f32 %v6723, %v6712
    %v6725 = vadd.f32 %v6724, %v6713
    %v6726 = vadd.f32 %v6725, %v6714
    %v6727 = vadd.f32 %v6726, %v6715
    %v6728 = vadd.f32 %v6727, %v6716
    %v6729 = vadd.f32 %v6728, %v6717
    %v6730 = vadd.f32 %v6729, %v6718
    %v6731 = vadd.f32 %v6730, %v6719
    %v6732 = vadd.f32 %v6731, %v6720
    %v6733 = vadd.f32 %v6732, %v6721
    %v6734 = vsel %vm554, %v6722, 0.0
    %v6735 = vadd.f32 %v6733, %v6734
    %v6736 = vrot.slane %v6735, 4
    %v6737 = vadd.f32 %v6735, %v6736
    %v6738 = vrot.slane %v6737, 2
    %v6739 = vadd.f32 %v6737, %v6738
    %v6740 = vrot.slane %v6739, 1
    %v6741 = vadd.f32 %v6739, %v6740
    %v6742 = vmul.f32 %v6741, %v1715
    %v6743 = vsub.f32 %v6710, %v6742
    %v6744 = vsub.f32 %v6711, %v6742
    %v6745 = vsub.f32 %v6712, %v6742
    %v6746 = vsub.f32 %v6713, %v6742
    %v6747 = vsub.f32 %v6714, %v6742
    %v6748 = vsub.f32 %v6715, %v6742
    %v6749 = vsub.f32 %v6716, %v6742
    %v6750 = vsub.f32 %v6717, %v6742
    %v6751 = vsub.f32 %v6718, %v6742
    %v6752 = vsub.f32 %v6719, %v6742
    %v6753 = vsub.f32 %v6720, %v6742
    %v6754 = vsub.f32 %v6721, %v6742
    %v6755 = vsub.f32 %v6722, %v6742
    %v6756 = vmul.f32 %v6743, %v6743
    %v6757 = vmul.f32 %v6744, %v6744
    %v6758 = vmul.f32 %v6745, %v6745
    %v6759 = vmul.f32 %v6746, %v6746
    %v6760 = vmul.f32 %v6747, %v6747
    %v6761 = vmul.f32 %v6748, %v6748
    %v6762 = vmul.f32 %v6749, %v6749
    %v6763 = vmul.f32 %v6750, %v6750
    %v6764 = vmul.f32 %v6751, %v6751
    %v6765 = vmul.f32 %v6752, %v6752
    %v6766 = vmul.f32 %v6753, %v6753
    %v6767 = vmul.f32 %v6754, %v6754
    %v6768 = vmul.f32 %v6755, %v6755
    %v6769 = vadd.f32 %v6756, %v6757
    %v6770 = vadd.f32 %v6769, %v6758
    %v6771 = vadd.f32 %v6770, %v6759
    %v6772 = vadd.f32 %v6771, %v6760
    %v6773 = vadd.f32 %v6772, %v6761
    %v6774 = vadd.f32 %v6773, %v6762
    %v6775 = vadd.f32 %v6774, %v6763
    %v6776 = vadd.f32 %v6775, %v6764
    %v6777 = vadd.f32 %v6776, %v6765
    %v6778 = vadd.f32 %v6777, %v6766
    %v6779 = vadd.f32 %v6778, %v6767
    %v6780 = vsel %vm554, %v6768, 0.0
    %v6781 = vadd.f32 %v6779, %v6780
    %v6782 = vrot.slane %v6781, 4
    %v6783 = vadd.f32 %v6781, %v6782
    %v6784 = vrot.slane %v6783, 2
    %v6785 = vadd.f32 %v6783, %v6784
    %v6786 = vrot.slane %v6785, 1
    %v6787 = vadd.f32 %v6785, %v6786
    %v6788 = vmul.f32 %v6787, %v1715
    %s6789 = scalar_lea.vmem %s3, 3
    %v6790 = vld [vmem:[%s6789] sm:$0x1]
    %v6791 = vadd.f32 %v6788, 1e-05
    %v6792 = vrsqrt.pop %v6791
    %v6793 = vmul.f32 %v6790, %v6792
    %v6795 = vlaneseq
    %v6796 = vshrl.u32 %v6795, 7
    %v6797 = vsub.s32 0, %v6796
    %v6798 = vrot.slane %v6793, %v6797
    %v6800 = vmul.f32 %v6710, %v6798
    %v6801 = vmul.f32 %v6711, %v6798
    %v6802 = vmul.f32 %v6712, %v6798
    %v6803 = vmul.f32 %v6713, %v6798
    %v6804 = vmul.f32 %v6714, %v6798
    %v6805 = vmul.f32 %v6715, %v6798
    %v6806 = vmul.f32 %v6716, %v6798
    %v6807 = vmul.f32 %v6717, %v6798
    %v6808 = vmul.f32 %v6718, %v6798
    %v6809 = vmul.f32 %v6719, %v6798
    %v6810 = vmul.f32 %v6720, %v6798
    %v6811 = vmul.f32 %v6721, %v6798
    %v6812 = vmul.f32 %v6722, %v6798
    %s6813 = scalar_lea.vmem %s4, 3
    %v6814 = vld [vmem:[%s6813] sm:$0x1]
    %v6815 = vmul.f32 %v6742, %v6793
    %v6816 = vsub.f32 %v6814, %v6815
    %v6818 = vlaneseq
    %v6819 = vshrl.u32 %v6818, 7
    %v6820 = vsub.s32 0, %v6819
    %v6821 = vrot.slane %v6816, %v6820
    %v6823 = vadd.f32 %v6800, %v6821
    %v6824 = vadd.f32 %v6801, %v6821
    %v6825 = vadd.f32 %v6802, %v6821
    %v6826 = vadd.f32 %v6803, %v6821
    %v6827 = vadd.f32 %v6804, %v6821
    %v6828 = vadd.f32 %v6805, %v6821
    %v6829 = vadd.f32 %v6806, %v6821
    %v6830 = vadd.f32 %v6807, %v6821
    %v6831 = vadd.f32 %v6808, %v6821
    %v6832 = vadd.f32 %v6809, %v6821
    %v6833 = vadd.f32 %v6810, %v6821
    %v6834 = vadd.f32 %v6811, %v6821
    %v6835 = vadd.f32 %v6812, %v6821
    %v6836 = vpack.c.bf16 %v6824, %v6823
    %v6837 = vpack.c.bf16 %v6826, %v6825
    %v6838 = vpack.c.bf16 %v6828, %v6827
    %v6839 = vpack.c.bf16 %v6830, %v6829
    %v6840 = vpack.c.bf16 %v6832, %v6831
    %v6841 = vpack.c.bf16 %v6834, %v6833
    %v6842 = vpack.c.bf16 %v6835, %v6835
    %v6843 = vadd.s32 %v63, 104
    %v6844 = vadd.s32 %v63, 112
    %v6845 = vadd.s32 %v63, 120
    %v6846 = vadd.s32 %v63, 128
    %v6847 = vadd.s32 %v63, 136
    %v6848 = vadd.s32 %v63, 144
    %v6849 = vadd.s32 %v63, 152
    %v6850 = vadd.s32 %v63, 160
    %v6851 = vadd.s32 %v63, 168
    %v6852 = vadd.s32 %v63, 176
    %v6853 = vadd.s32 %v63, 184
    %v6854 = vadd.s32 %v63, 192
    %vm6855 = vcmp.ge.s32.totalorder %v6843, 0
    %vm6856 = vcmp.ge.s32.totalorder %v6844, 0
    %vm6857 = vcmp.ge.s32.totalorder %v6845, 0
    %vm6858 = vcmp.ge.s32.totalorder %v6846, 0
    %vm6859 = vcmp.ge.s32.totalorder %v6847, 0
    %vm6860 = vcmp.ge.s32.totalorder %v6848, 0
    %vm6861 = vcmp.ge.s32.totalorder %v6849, 0
    %vm6862 = vcmp.ge.s32.totalorder %v6850, 0
    %vm6863 = vcmp.ge.s32.totalorder %v6851, 0
    %vm6864 = vcmp.ge.s32.totalorder %v6852, 0
    %vm6865 = vcmp.ge.s32.totalorder %v6853, 0
    %vm6866 = vcmp.ge.s32.totalorder %v6854, 0
    %vm6867 = vcmp.lt.s32.totalorder %v63, 100
    %vm6868 = vcmp.lt.s32.totalorder %v64, 100
    %vm6869 = vcmp.lt.s32.totalorder %v65, 100
    %vm6870 = vcmp.lt.s32.totalorder %v66, 100
    %vm6871 = vcmp.lt.s32.totalorder %v67, 100
    %vm6872 = vcmp.lt.s32.totalorder %v68, 100
    %vm6873 = vcmp.lt.s32.totalorder %v69, 100
    %vm6874 = vcmp.lt.s32.totalorder %v70, 100
    %vm6875 = vcmp.lt.s32.totalorder %v71, 100
    %vm6876 = vcmp.lt.s32.totalorder %v72, 100
    %vm6877 = vcmp.lt.s32.totalorder %v73, 100
    %vm6878 = vcmp.lt.s32.totalorder %v74, 100
    %vm6879 = vcmp.lt.s32.totalorder %v75, 100
    %vm6880 = vcmp.lt.s32.totalorder %v6843, 100
    %vm6881 = vcmp.lt.s32.totalorder %v6844, 100
    %vm6882 = vcmp.lt.s32.totalorder %v6845, 100
    %vm6883 = vcmp.lt.s32.totalorder %v6846, 100
    %vm6884 = vcmp.lt.s32.totalorder %v6847, 100
    %vm6885 = vcmp.lt.s32.totalorder %v6848, 100
    %vm6886 = vcmp.lt.s32.totalorder %v6849, 100
    %vm6887 = vcmp.lt.s32.totalorder %v6850, 100
    %vm6888 = vcmp.lt.s32.totalorder %v6851, 100
    %vm6889 = vcmp.lt.s32.totalorder %v6852, 100
    %vm6890 = vcmp.lt.s32.totalorder %v6853, 100
    %vm6891 = vcmp.lt.s32.totalorder %v6854, 100
    %vm6892 = vmand %vm79, %vm6867
    %vm6893 = vmand %vm80, %vm6868
    %vm6894 = vmand %vm81, %vm6869
    %vm6895 = vmand %vm82, %vm6870
    %vm6896 = vmand %vm83, %vm6871
    %vm6897 = vmand %vm84, %vm6872
    %vm6898 = vmand %vm85, %vm6873
    %vm6899 = vmand %vm86, %vm6874
    %vm6900 = vmand %vm87, %vm6875
    %vm6901 = vmand %vm88, %vm6876
    %vm6902 = vmand %vm89, %vm6877
    %vm6903 = vmand %vm90, %vm6878
    %vm6904 = vmand %vm91, %vm6879
    %vm6905 = vmand %vm6855, %vm6880
    %vm6906 = vmand %vm6856, %vm6881
    %vm6907 = vmand %vm6857, %vm6882
    %vm6908 = vmand %vm6858, %vm6883
    %vm6909 = vmand %vm6859, %vm6884
    %vm6910 = vmand %vm6860, %vm6885
    %vm6911 = vmand %vm6861, %vm6886
    %vm6912 = vmand %vm6862, %vm6887
    %vm6913 = vmand %vm6863, %vm6888
    %vm6914 = vmand %vm6864, %vm6889
    %vm6915 = vmand %vm6865, %vm6890
    %vm6916 = vmand %vm6866, %vm6891
    %vm6917 = vmand %vm6892, %vm118
    %vm6918 = vmand %vm6893, %vm118
    %vm6919 = vmand %vm6894, %vm118
    %vm6920 = vmand %vm6895, %vm118
    %vm6921 = vmand %vm6896, %vm118
    %vm6922 = vmand %vm6897, %vm118
    %vm6923 = vmand %vm6898, %vm118
    %vm6924 = vmand %vm6899, %vm118
    %vm6925 = vmand %vm6900, %vm118
    %vm6926 = vmand %vm6901, %vm118
    %vm6927 = vmand %vm6902, %vm118
    %vm6928 = vmand %vm6903, %vm118
    %vm6929 = vmand %vm6904, %vm118
    %vm6930 = vmand %vm6905, %vm118
    %vm6931 = vmand %vm6906, %vm118
    %vm6932 = vmand %vm6907, %vm118
    %vm6933 = vmand %vm6908, %vm118
    %vm6934 = vmand %vm6909, %vm118
    %vm6935 = vmand %vm6910, %vm118
    %vm6936 = vmand %vm6911, %vm118
    %vm6937 = vmand %vm6912, %vm118
    %vm6938 = vmand %vm6913, %vm118
    %vm6939 = vmand %vm6914, %vm118
    %vm6940 = vmand %vm6915, %vm118
    %vm6941 = vmand %vm6916, %vm118
    %vm6942 = vmand %vm6917, %vm1849
    %vm6943 = vmand %vm6918, %vm1849
    %vm6944 = vmand %vm6919, %vm1849
    %vm6945 = vmand %vm6920, %vm1849
    %vm6946 = vmand %vm6921, %vm1849
    %vm6947 = vmand %vm6922, %vm1849
    %vm6948 = vmand %vm6923, %vm1849
    %vm6949 = vmand %vm6924, %vm1849
    %vm6950 = vmand %vm6925, %vm1849
    %vm6951 = vmand %vm6926, %vm1849
    %vm6952 = vmand %vm6927, %vm1849
    %vm6953 = vmand %vm6928, %vm1849
    %vm6954 = vmand %vm6929, %vm1849
    %vm6955 = vmand %vm6930, %vm1849
    %vm6956 = vmand %vm6931, %vm1849
    %vm6957 = vmand %vm6932, %vm1849
    %vm6958 = vmand %vm6933, %vm1849
    %vm6959 = vmand %vm6934, %vm1849
    %vm6960 = vmand %vm6935, %vm1849
    %vm6961 = vmand %vm6936, %vm1849
    %vm6962 = vmand %vm6937, %vm1849
    %vm6963 = vmand %vm6938, %vm1849
    %vm6964 = vmand %vm6939, %vm1849
    %vm6965 = vmand %vm6940, %vm1849
    %vm6966 = vmand %vm6941, %vm1849
    %v6967 = vsub.s32 %v4036, %v6843
    %v6968 = vsub.s32 %v4036, %v6844
    %v6969 = vsub.s32 %v4036, %v6845
    %v6970 = vsub.s32 %v4036, %v6846
    %v6971 = vsub.s32 %v4036, %v6847
    %v6972 = vsub.s32 %v4036, %v6848
    %v6973 = vsub.s32 %v4036, %v6849
    %v6974 = vsub.s32 %v4036, %v6850
    %v6975 = vsub.s32 %v4036, %v6851
    %v6976 = vsub.s32 %v4036, %v6852
    %v6977 = vsub.s32 %v4036, %v6853
    %v6978 = vsub.s32 %v4036, %v6854
    %vm6979 = vcmp.eq.s32.totalorder %v6967, 1
    %vm6980 = vcmp.eq.s32.totalorder %v6968, 1
    %vm6981 = vcmp.eq.s32.totalorder %v6969, 1
    %vm6982 = vcmp.eq.s32.totalorder %v6970, 1
    %vm6983 = vcmp.eq.s32.totalorder %v6971, 1
    %vm6984 = vcmp.eq.s32.totalorder %v6972, 1
    %vm6985 = vcmp.eq.s32.totalorder %v6973, 1
    %vm6986 = vcmp.eq.s32.totalorder %v6974, 1
    %vm6987 = vcmp.eq.s32.totalorder %v6975, 1
    %vm6988 = vcmp.eq.s32.totalorder %v6976, 1
    %vm6989 = vcmp.eq.s32.totalorder %v6977, 1
    %vm6990 = vcmp.eq.s32.totalorder %v6978, 1
    %vm6991 = vmand %vm6942, %vm4041
    %vm6992 = vmand %vm6943, %vm4042
    %vm6993 = vmand %vm6944, %vm4043
    %vm6994 = vmand %vm6945, %vm4044
    %vm6995 = vmand %vm6946, %vm4685
    %vm6996 = vmand %vm6947, %vm4686
    %vm6997 = vmand %vm6948, %vm4687
    %vm6998 = vmand %vm6949, %vm5592
    %vm6999 = vmand %vm6950, %vm5593
    %vm7000 = vmand %vm6951, %vm5594
    %vm7001 = vmand %vm6952, %vm5595
    %vm7002 = vmand %vm6953, %vm5596
    %vm7003 = vmand %vm6954, %vm5597
    %vm7004 = vmand %vm6955, %vm6979
    %vm7005 = vmand %vm6956, %vm6980
    %vm7006 = vmand %vm6957, %vm6981
    %vm7007 = vmand %vm6958, %vm6982
    %vm7008 = vmand %vm6959, %vm6983
    %vm7009 = vmand %vm6960, %vm6984
    %vm7010 = vmand %vm6961, %vm6985
    %vm7011 = vmand %vm6962, %vm6986
    %vm7012 = vmand %vm6963, %vm6987
    %vm7013 = vmand %vm6964, %vm6988
    %vm7014 = vmand %vm6965, %vm6989
    %vm7015 = vmand %vm6966, %vm6990
    %v7016 = vsub.s32 %v63, 100
    %v7017 = vsub.s32 %v64, 100
    %v7018 = vsub.s32 %v65, 100
    %v7019 = vsub.s32 %v66, 100
    %v7020 = vsub.s32 %v67, 100
    %v7021 = vsub.s32 %v68, 100
    %v7022 = vsub.s32 %v69, 100
    %v7023 = vsub.s32 %v70, 100
    %v7024 = vsub.s32 %v71, 100
    %v7025 = vsub.s32 %v72, 100
    %v7026 = vsub.s32 %v73, 100
    %v7027 = vsub.s32 %v74, 100
    %v7028 = vsub.s32 %v75, 100
    %v7029 = vsub.s32 %v6843, 100
    %v7030 = vsub.s32 %v6844, 100
    %v7031 = vsub.s32 %v6845, 100
    %v7032 = vsub.s32 %v6846, 100
    %v7033 = vsub.s32 %v6847, 100
    %v7034 = vsub.s32 %v6848, 100
    %v7035 = vsub.s32 %v6849, 100
    %v7036 = vsub.s32 %v6850, 100
    %v7037 = vsub.s32 %v6851, 100
    %v7038 = vsub.s32 %v6852, 100
    %v7039 = vsub.s32 %v6853, 100
    %v7040 = vsub.s32 %v6854, 100
    %vm7041 = vcmp.ge.s32.totalorder %v7016, 0
    %vm7042 = vcmp.ge.s32.totalorder %v7017, 0
    %vm7043 = vcmp.ge.s32.totalorder %v7018, 0
    %vm7044 = vcmp.ge.s32.totalorder %v7019, 0
    %vm7045 = vcmp.ge.s32.totalorder %v7020, 0
    %vm7046 = vcmp.ge.s32.totalorder %v7021, 0
    %vm7047 = vcmp.ge.s32.totalorder %v7022, 0
    %vm7048 = vcmp.ge.s32.totalorder %v7023, 0
    %vm7049 = vcmp.ge.s32.totalorder %v7024, 0
    %vm7050 = vcmp.ge.s32.totalorder %v7025, 0
    %vm7051 = vcmp.ge.s32.totalorder %v7026, 0
    %vm7052 = vcmp.ge.s32.totalorder %v7027, 0
    %vm7053 = vcmp.ge.s32.totalorder %v7028, 0
    %vm7054 = vcmp.ge.s32.totalorder %v7029, 0
    %vm7055 = vcmp.ge.s32.totalorder %v7030, 0
    %vm7056 = vcmp.ge.s32.totalorder %v7031, 0
    %vm7057 = vcmp.ge.s32.totalorder %v7032, 0
    %vm7058 = vcmp.ge.s32.totalorder %v7033, 0
    %vm7059 = vcmp.ge.s32.totalorder %v7034, 0
    %vm7060 = vcmp.ge.s32.totalorder %v7035, 0
    %vm7061 = vcmp.ge.s32.totalorder %v7036, 0
    %vm7062 = vcmp.ge.s32.totalorder %v7037, 0
    %vm7063 = vcmp.ge.s32.totalorder %v7038, 0
    %vm7064 = vcmp.ge.s32.totalorder %v7039, 0
    %vm7065 = vcmp.ge.s32.totalorder %v7040, 0
    %vm7066 = vcmp.lt.s32.totalorder %v7016, 100
    %vm7067 = vcmp.lt.s32.totalorder %v7017, 100
    %vm7068 = vcmp.lt.s32.totalorder %v7018, 100
    %vm7069 = vcmp.lt.s32.totalorder %v7019, 100
    %vm7070 = vcmp.lt.s32.totalorder %v7020, 100
    %vm7071 = vcmp.lt.s32.totalorder %v7021, 100
    %vm7072 = vcmp.lt.s32.totalorder %v7022, 100
    %vm7073 = vcmp.lt.s32.totalorder %v7023, 100
    %vm7074 = vcmp.lt.s32.totalorder %v7024, 100
    %vm7075 = vcmp.lt.s32.totalorder %v7025, 100
    %vm7076 = vcmp.lt.s32.totalorder %v7026, 100
    %vm7077 = vcmp.lt.s32.totalorder %v7027, 100
    %vm7078 = vcmp.lt.s32.totalorder %v7028, 100
    %vm7079 = vcmp.lt.s32.totalorder %v7029, 100
    %vm7080 = vcmp.lt.s32.totalorder %v7030, 100
    %vm7081 = vcmp.lt.s32.totalorder %v7031, 100
    %vm7082 = vcmp.lt.s32.totalorder %v7032, 100
    %vm7083 = vcmp.lt.s32.totalorder %v7033, 100
    %vm7084 = vcmp.lt.s32.totalorder %v7034, 100
    %vm7085 = vcmp.lt.s32.totalorder %v7035, 100
    %vm7086 = vcmp.lt.s32.totalorder %v7036, 100
    %vm7087 = vcmp.lt.s32.totalorder %v7037, 100
    %vm7088 = vcmp.lt.s32.totalorder %v7038, 100
    %vm7089 = vcmp.lt.s32.totalorder %v7039, 100
    %vm7090 = vcmp.lt.s32.totalorder %v7040, 100
    %vm7091 = vmand %vm7041, %vm7066
    %vm7092 = vmand %vm7042, %vm7067
    %vm7093 = vmand %vm7043, %vm7068
    %vm7094 = vmand %vm7044, %vm7069
    %vm7095 = vmand %vm7045, %vm7070
    %vm7096 = vmand %vm7046, %vm7071
    %vm7097 = vmand %vm7047, %vm7072
    %vm7098 = vmand %vm7048, %vm7073
    %vm7099 = vmand %vm7049, %vm7074
    %vm7100 = vmand %vm7050, %vm7075
    %vm7101 = vmand %vm7051, %vm7076
    %vm7102 = vmand %vm7052, %vm7077
    %vm7103 = vmand %vm7053, %vm7078
    %vm7104 = vmand %vm7054, %vm7079
    %vm7105 = vmand %vm7055, %vm7080
    %vm7106 = vmand %vm7056, %vm7081
    %vm7107 = vmand %vm7057, %vm7082
    %vm7108 = vmand %vm7058, %vm7083
    %vm7109 = vmand %vm7059, %vm7084
    %vm7110 = vmand %vm7060, %vm7085
    %vm7111 = vmand %vm7061, %vm7086
    %vm7112 = vmand %vm7062, %vm7087
    %vm7113 = vmand %vm7063, %vm7088
    %vm7114 = vmand %vm7064, %vm7089
    %vm7115 = vmand %vm7065, %vm7090
    %vm7116 = vmand %vm7091, %vm1893
    %vm7117 = vmand %vm7092, %vm1893
    %vm7118 = vmand %vm7093, %vm1893
    %vm7119 = vmand %vm7094, %vm1893
    %vm7120 = vmand %vm7095, %vm1893
    %vm7121 = vmand %vm7096, %vm1893
    %vm7122 = vmand %vm7097, %vm1893
    %vm7123 = vmand %vm7098, %vm1893
    %vm7124 = vmand %vm7099, %vm1893
    %vm7125 = vmand %vm7100, %vm1893
    %vm7126 = vmand %vm7101, %vm1893
    %vm7127 = vmand %vm7102, %vm1893
    %vm7128 = vmand %vm7103, %vm1893
    %vm7129 = vmand %vm7104, %vm1893
    %vm7130 = vmand %vm7105, %vm1893
    %vm7131 = vmand %vm7106, %vm1893
    %vm7132 = vmand %vm7107, %vm1893
    %vm7133 = vmand %vm7108, %vm1893
    %vm7134 = vmand %vm7109, %vm1893
    %vm7135 = vmand %vm7110, %vm1893
    %vm7136 = vmand %vm7111, %vm1893
    %vm7137 = vmand %vm7112, %vm1893
    %vm7138 = vmand %vm7113, %vm1893
    %vm7139 = vmand %vm7114, %vm1893
    %vm7140 = vmand %vm7115, %vm1893
    %vm7141 = vmand %vm7116, %vm1901
    %vm7142 = vmand %vm7117, %vm1901
    %vm7143 = vmand %vm7118, %vm1901
    %vm7144 = vmand %vm7119, %vm1901
    %vm7145 = vmand %vm7120, %vm1901
    %vm7146 = vmand %vm7121, %vm1901
    %vm7147 = vmand %vm7122, %vm1901
    %vm7148 = vmand %vm7123, %vm1901
    %vm7149 = vmand %vm7124, %vm1901
    %vm7150 = vmand %vm7125, %vm1901
    %vm7151 = vmand %vm7126, %vm1901
    %vm7152 = vmand %vm7127, %vm1901
    %vm7153 = vmand %vm7128, %vm1901
    %vm7154 = vmand %vm7129, %vm1901
    %vm7155 = vmand %vm7130, %vm1901
    %vm7156 = vmand %vm7131, %vm1901
    %vm7157 = vmand %vm7132, %vm1901
    %vm7158 = vmand %vm7133, %vm1901
    %vm7159 = vmand %vm7134, %vm1901
    %vm7160 = vmand %vm7135, %vm1901
    %vm7161 = vmand %vm7136, %vm1901
    %vm7162 = vmand %vm7137, %vm1901
    %vm7163 = vmand %vm7138, %vm1901
    %vm7164 = vmand %vm7139, %vm1901
    %vm7165 = vmand %vm7140, %vm1901
    %v7166 = vmul.u32 %v1871, 2
    %v7167 = vsub.s32 %v7166, %v7016
    %v7168 = vsub.s32 %v7166, %v7017
    %v7169 = vsub.s32 %v7166, %v7018
    %v7170 = vsub.s32 %v7166, %v7019
    %v7171 = vsub.s32 %v7166, %v7020
    %v7172 = vsub.s32 %v7166, %v7021
    %v7173 = vsub.s32 %v7166, %v7022
    %v7174 = vsub.s32 %v7166, %v7023
    %v7175 = vsub.s32 %v7166, %v7024
    %v7176 = vsub.s32 %v7166, %v7025
    %v7177 = vsub.s32 %v7166, %v7026
    %v7178 = vsub.s32 %v7166, %v7027
    %v7179 = vsub.s32 %v7166, %v7028
    %v7180 = vsub.s32 %v7166, %v7029
    %v7181 = vsub.s32 %v7166, %v7030
    %v7182 = vsub.s32 %v7166, %v7031
    %v7183 = vsub.s32 %v7166, %v7032
    %v7184 = vsub.s32 %v7166, %v7033
    %v7185 = vsub.s32 %v7166, %v7034
    %v7186 = vsub.s32 %v7166, %v7035
    %v7187 = vsub.s32 %v7166, %v7036
    %v7188 = vsub.s32 %v7166, %v7037
    %v7189 = vsub.s32 %v7166, %v7038
    %v7190 = vsub.s32 %v7166, %v7039
    %v7191 = vsub.s32 %v7166, %v7040
    %vm7192 = vcmp.eq.s32.totalorder %v7167, 1
    %vm7193 = vcmp.eq.s32.totalorder %v7168, 1
    %vm7194 = vcmp.eq.s32.totalorder %v7169, 1
    %vm7195 = vcmp.eq.s32.totalorder %v7170, 1
    %vm7196 = vcmp.eq.s32.totalorder %v7171, 1
    %vm7197 = vcmp.eq.s32.totalorder %v7172, 1
    %vm7198 = vcmp.eq.s32.totalorder %v7173, 1
    %vm7199 = vcmp.eq.s32.totalorder %v7174, 1
    %vm7200 = vcmp.eq.s32.totalorder %v7175, 1
    %vm7201 = vcmp.eq.s32.totalorder %v7176, 1
    %vm7202 = vcmp.eq.s32.totalorder %v7177, 1
    %vm7203 = vcmp.eq.s32.totalorder %v7178, 1
    %vm7204 = vcmp.eq.s32.totalorder %v7179, 1
    %vm7205 = vcmp.eq.s32.totalorder %v7180, 1
    %vm7206 = vcmp.eq.s32.totalorder %v7181, 1
    %vm7207 = vcmp.eq.s32.totalorder %v7182, 1
    %vm7208 = vcmp.eq.s32.totalorder %v7183, 1
    %vm7209 = vcmp.eq.s32.totalorder %v7184, 1
    %vm7210 = vcmp.eq.s32.totalorder %v7185, 1
    %vm7211 = vcmp.eq.s32.totalorder %v7186, 1
    %vm7212 = vcmp.eq.s32.totalorder %v7187, 1
    %vm7213 = vcmp.eq.s32.totalorder %v7188, 1
    %vm7214 = vcmp.eq.s32.totalorder %v7189, 1
    %vm7215 = vcmp.eq.s32.totalorder %v7190, 1
    %vm7216 = vcmp.eq.s32.totalorder %v7191, 1
    %vm7217 = vmand %vm7141, %vm7192
    %vm7218 = vmand %vm7142, %vm7193
    %vm7219 = vmand %vm7143, %vm7194
    %vm7220 = vmand %vm7144, %vm7195
    %vm7221 = vmand %vm7145, %vm7196
    %vm7222 = vmand %vm7146, %vm7197
    %vm7223 = vmand %vm7147, %vm7198
    %vm7224 = vmand %vm7148, %vm7199
    %vm7225 = vmand %vm7149, %vm7200
    %vm7226 = vmand %vm7150, %vm7201
    %vm7227 = vmand %vm7151, %vm7202
    %vm7228 = vmand %vm7152, %vm7203
    %vm7229 = vmand %vm7153, %vm7204
    %vm7230 = vmand %vm7154, %vm7205
    %vm7231 = vmand %vm7155, %vm7206
    %vm7232 = vmand %vm7156, %vm7207
    %vm7233 = vmand %vm7157, %vm7208
    %vm7234 = vmand %vm7158, %vm7209
    %vm7235 = vmand %vm7159, %vm7210
    %vm7236 = vmand %vm7160, %vm7211
    %vm7237 = vmand %vm7161, %vm7212
    %vm7238 = vmand %vm7162, %vm7213
    %vm7239 = vmand %vm7163, %vm7214
    %vm7240 = vmand %vm7164, %vm7215
    %vm7241 = vmand %vm7165, %vm7216
    %vm7242 = vmor %vm6991, %vm7217
    %vm7243 = vmor %vm6992, %vm7218
    %vm7244 = vmor %vm6993, %vm7219
    %vm7245 = vmor %vm6994, %vm7220
    %vm7246 = vmor %vm6995, %vm7221
    %vm7247 = vmor %vm6996, %vm7222
    %vm7248 = vmor %vm6997, %vm7223
    %vm7249 = vmor %vm6998, %vm7224
    %vm7250 = vmor %vm6999, %vm7225
    %vm7251 = vmor %vm7000, %vm7226
    %vm7252 = vmor %vm7001, %vm7227
    %vm7253 = vmor %vm7002, %vm7228
    %vm7254 = vmor %vm7003, %vm7229
    %vm7255 = vmor %vm7004, %vm7230
    %vm7256 = vmor %vm7005, %vm7231
    %vm7257 = vmor %vm7006, %vm7232
    %vm7258 = vmor %vm7007, %vm7233
    %vm7259 = vmor %vm7008, %vm7234
    %vm7260 = vmor %vm7009, %vm7235
    %vm7261 = vmor %vm7010, %vm7236
    %vm7262 = vmor %vm7011, %vm7237
    %vm7263 = vmor %vm7012, %vm7238
    %vm7264 = vmor %vm7013, %vm7239
    %vm7265 = vmor %vm7014, %vm7240
    %vm7266 = vmor %vm7015, %vm7241
    %v7267 = vsel %vm7242, 1.0, 0.0
    %v7268 = vsel %vm7243, 1.0, 0.0
    %v7269 = vsel %vm7244, 1.0, 0.0
    %v7270 = vsel %vm7245, 1.0, 0.0
    %v7271 = vsel %vm7246, 1.0, 0.0
    %v7272 = vsel %vm7247, 1.0, 0.0
    %v7273 = vsel %vm7248, 1.0, 0.0
    %v7274 = vsel %vm7249, 1.0, 0.0
    %v7275 = vsel %vm7250, 1.0, 0.0
    %v7276 = vsel %vm7251, 1.0, 0.0
    %v7277 = vsel %vm7252, 1.0, 0.0
    %v7278 = vsel %vm7253, 1.0, 0.0
    %v7279 = vsel %vm7254, 1.0, 0.0
    %v7280 = vsel %vm7255, 1.0, 0.0
    %v7281 = vsel %vm7256, 1.0, 0.0
    %v7282 = vsel %vm7257, 1.0, 0.0
    %v7283 = vsel %vm7258, 1.0, 0.0
    %v7284 = vsel %vm7259, 1.0, 0.0
    %v7285 = vsel %vm7260, 1.0, 0.0
    %v7286 = vsel %vm7261, 1.0, 0.0
    %v7287 = vsel %vm7262, 1.0, 0.0
    %v7288 = vsel %vm7263, 1.0, 0.0
    %v7289 = vsel %vm7264, 1.0, 0.0
    %v7290 = vsel %vm7265, 1.0, 0.0
    %v7291 = vsel %vm7266, 1.0, 0.0
    %v7292 = vpack.c.bf16 %v7268, %v7267
    %v7293 = vpack.c.bf16 %v7270, %v7269
    %v7294 = vpack.c.bf16 %v7272, %v7271
    %v7295 = vpack.c.bf16 %v7274, %v7273
    %v7296 = vpack.c.bf16 %v7276, %v7275
    %v7297 = vpack.c.bf16 %v7278, %v7277
    %v7298 = vpack.c.bf16 %v7280, %v7279
    %v7299 = vpack.c.bf16 %v7282, %v7281
    %v7300 = vpack.c.bf16 %v7284, %v7283
    %v7301 = vpack.c.bf16 %v7286, %v7285
    %v7302 = vpack.c.bf16 %v7288, %v7287
    %v7303 = vpack.c.bf16 %v7290, %v7289
    %v7304 = vpack.c.bf16 %v7291, %v7291
    %v7306 = vsel %vm1955, %v7292, 0
    %v7309 = vsel %vm1955, %v7293, 0
    %v7312 = vsel %vm1955, %v7294, 0
    %v7315 = vsel %vm1955, %v7295, 0
    %v7318 = vsel %vm1955, %v7296, 0
    %v7321 = vsel %vm1955, %v7297, 0
    %v7324 = vsel %vm1955, %v7298, 0
    %v7327 = vsel %vm1955, %v7299, 0
    %v7330 = vsel %vm1955, %v7300, 0
    %v7333 = vsel %vm1955, %v7301, 0
    %v7336 = vsel %vm1955, %v7302, 0
    %v7339 = vsel %vm1955, %v7303, 0
    %v7342 = vsel %vm1955, %v7304, 0
    %v7345 = vsel %vm1968, %v6842, 0
    %7347 = vmatprep.subr.bf16.mxu0 0
    %7348 = vmatpush1.bf16.msra.mxu0 %v6836
    %7349 = vmatprep.subr.bf16.mxu0 0
    %7350 = vmatpush1.bf16.msra.mxu0 %v6837
    %7351 = vmatprep.subr.bf16.mxu0 0
    %7352 = vmatpush1.bf16.msra.mxu0 %v6838
    %7353 = vmatprep.subr.bf16.mxu0 0
    %7354 = vmatpush1.bf16.msra.mxu0 %v6839
    %7355 = vmatprep.subr.bf16.mxu0 0
    %7356 = vmatpush1.bf16.msra.mxu0 %v6840
    %7357 = vmatprep.subr.bf16.mxu0 0
    %7358 = vmatpush1.bf16.msra.mxu0 %v6841
    %7359 = vmatprep.subr.bf16.mxu0 0
    %7360 = vmatpush1.bf16.msra.mxu0 %v7345
    %7361 = vmatprep.subr.bf16.mxu0 0
    %7362 = vmatpush1.bf16.msra.mxu0 0
    %7363 = vmatprep.subr.bf16.mxu0 0
    %7364 = vmatpush1.bf16.msra.mxu0 0
    %7365 = vmatprep.subr.bf16.mxu0 0
    %7366 = vmatpush1.bf16.msra.mxu0 0
    %7367 = vmatprep.subr.bf16.mxu0 0
    %7368 = vmatpush1.bf16.msra.mxu0 0
    %7369 = vmatprep.subr.bf16.mxu0 0
    %7370 = vmatpush1.bf16.msra.mxu0 0
    %7371 = vmatprep.subr.bf16.mxu0 0
    %7372 = vmatpush1.bf16.msra.mxu0 0
    %7373 = vmatprep.subr.bf16.mxu0 0
    %7374 = vmatpush1.bf16.msra.mxu0 0
    %7375 = vmatprep.subr.bf16.mxu0 0
    %7376 = vmatpush1.bf16.msra.mxu0 0
    %7377 = vmatprep.subr.bf16.mxu0 0
    %7378 = vmatpush1.bf16.msra.mxu0 0
    %7379 = vmatprep.mubr.bf16.mxu0 0
    %7380 = vmatmul.mubr.bf16.gmra.mrb[0].mxu0 %v7306
    %v7381 = vpop.f32.mrb[0].mxu0
    %v7382 = vadd.f32 0.0, %v7381
    %v7383 = vpop.f32.mrb[0].mxu0
    %v7384 = vpop.f32.mrb[0].mxu0
    %v7385 = vadd.f32 0.0, %v7384
    %v7386 = vpop.f32.mrb[0].mxu0
    %7387 = vmatprep.mubr.bf16.mxu0 0
    %7388 = vmatmul.mubr.bf16.gmra.mrb[0].mxu0 %v7309
    %v7389 = vpop.f32.mrb[0].mxu0
    %v7390 = vadd.f32 0.0, %v7389
    %v7391 = vpop.f32.mrb[0].mxu0
    %v7392 = vpop.f32.mrb[0].mxu0
    %v7393 = vadd.f32 0.0, %v7392
    %v7394 = vpop.f32.mrb[0].mxu0
    %7395 = vmatprep.mubr.bf16.mxu0 0
    %7396 = vmatmul.mubr.bf16.gmra.mrb[0].mxu0 %v7312
    %v7397 = vpop.f32.mrb[0].mxu0
    %v7398 = vadd.f32 0.0, %v7397
    %v7399 = vpop.f32.mrb[0].mxu0
    %v7400 = vpop.f32.mrb[0].mxu0
    %v7401 = vadd.f32 0.0, %v7400
    %v7402 = vpop.f32.mrb[0].mxu0
    %7403 = vmatprep.mubr.bf16.mxu0 0
    %7404 = vmatmul.mubr.bf16.gmra.mrb[0].mxu0 %v7315
    %v7405 = vpop.f32.mrb[0].mxu0
    %v7406 = vadd.f32 0.0, %v7405
    %v7407 = vpop.f32.mrb[0].mxu0
    %v7408 = vpop.f32.mrb[0].mxu0
    %v7409 = vadd.f32 0.0, %v7408
    %v7410 = vpop.f32.mrb[0].mxu0
    %7411 = vmatprep.mubr.bf16.mxu0 0
    %7412 = vmatmul.mubr.bf16.gmra.mrb[0].mxu0 %v7318
    %v7413 = vpop.f32.mrb[0].mxu0
    %v7414 = vadd.f32 0.0, %v7413
    %v7415 = vpop.f32.mrb[0].mxu0
    %v7416 = vpop.f32.mrb[0].mxu0
    %v7417 = vadd.f32 0.0, %v7416
    %v7418 = vpop.f32.mrb[0].mxu0
    %7419 = vmatprep.mubr.bf16.mxu0 0
    %7420 = vmatmul.mubr.bf16.gmra.mrb[0].mxu0 %v7321
    %v7421 = vpop.f32.mrb[0].mxu0
    %v7422 = vadd.f32 0.0, %v7421
    %v7423 = vpop.f32.mrb[0].mxu0
    %v7424 = vpop.f32.mrb[0].mxu0
    %v7425 = vadd.f32 0.0, %v7424
    %v7426 = vpop.f32.mrb[0].mxu0
    %7427 = vmatprep.mubr.bf16.mxu0 0
    %7428 = vmatmul.mubr.bf16.gmra.mrb[0].mxu0 %v7324
    %v7429 = vpop.f32.mrb[0].mxu0
    %v7430 = vadd.f32 0.0, %v7429
    %v7431 = vpop.f32.mrb[0].mxu0
    %v7432 = vpop.f32.mrb[0].mxu0
    %v7433 = vadd.f32 0.0, %v7432
    %v7434 = vpop.f32.mrb[0].mxu0
    %7435 = vmatprep.mubr.bf16.mxu0 0
    %7436 = vmatmul.mubr.bf16.gmra.mrb[0].mxu0 %v7327
    %v7437 = vpop.f32.mrb[0].mxu0
    %v7438 = vadd.f32 0.0, %v7437
    %v7439 = vpop.f32.mrb[0].mxu0
    %v7440 = vpop.f32.mrb[0].mxu0
    %v7441 = vadd.f32 0.0, %v7440
    %v7442 = vpop.f32.mrb[0].mxu0
    %7443 = vmatprep.mubr.bf16.mxu0 0
    %7444 = vmatmul.mubr.bf16.gmra.mrb[0].mxu0 %v7330
    %v7445 = vpop.f32.mrb[0].mxu0
    %v7446 = vadd.f32 0.0, %v7445
    %v7447 = vpop.f32.mrb[0].mxu0
    %v7448 = vpop.f32.mrb[0].mxu0
    %v7449 = vadd.f32 0.0, %v7448
    %v7450 = vpop.f32.mrb[0].mxu0
    %7451 = vmatprep.mubr.bf16.mxu0 0
    %7452 = vmatmul.mubr.bf16.gmra.mrb[0].mxu0 %v7333
    %v7453 = vpop.f32.mrb[0].mxu0
    %v7454 = vadd.f32 0.0, %v7453
    %v7455 = vpop.f32.mrb[0].mxu0
    %v7456 = vpop.f32.mrb[0].mxu0
    %v7457 = vadd.f32 0.0, %v7456
    %v7458 = vpop.f32.mrb[0].mxu0
    %7459 = vmatprep.mubr.bf16.mxu0 0
    %7460 = vmatmul.mubr.bf16.gmra.mrb[0].mxu0 %v7336
    %v7461 = vpop.f32.mrb[0].mxu0
    %v7462 = vadd.f32 0.0, %v7461
    %v7463 = vpop.f32.mrb[0].mxu0
    %v7464 = vpop.f32.mrb[0].mxu0
    %v7465 = vadd.f32 0.0, %v7464
    %v7466 = vpop.f32.mrb[0].mxu0
    %7467 = vmatprep.mubr.bf16.mxu0 0
    %7468 = vmatmul.mubr.bf16.gmra.mrb[0].mxu0 %v7339
    %v7469 = vpop.f32.mrb[0].mxu0
    %v7470 = vadd.f32 0.0, %v7469
    %v7471 = vpop.f32.mrb[0].mxu0
    %v7472 = vpop.f32.mrb[0].mxu0
    %v7473 = vadd.f32 0.0, %v7472
    %v7474 = vpop.f32.mrb[0].mxu0
    %7475 = vmatprep.mubr.bf16.mxu0 0
    %7476 = vmatmul.mubr.bf16.gmra.mrb[0].mxu0 %v7342
    %v7477 = vpop.f32.mrb[0].mxu0
    %v7478 = vadd.f32 0.0, %v7477
    %v7479 = vpop.f32.mrb[0].mxu0
    %v7480 = vpop.f32.mrb[0].mxu0
    %v7481 = vpop.f32.mrb[0].mxu0
    %7482 = vdwg.mxu0
    %v7483 = vpack.c.bf16 %v7385, %v7382
    %v7484 = vpack.c.bf16 %v7393, %v7390
    %v7485 = vpack.c.bf16 %v7401, %v7398
    %v7486 = vpack.c.bf16 %v7409, %v7406
    %v7487 = vpack.c.bf16 %v7417, %v7414
    %v7488 = vpack.c.bf16 %v7425, %v7422
    %v7489 = vpack.c.bf16 %v7433, %v7430
    %v7490 = vpack.c.bf16 %v7441, %v7438
    %v7491 = vpack.c.bf16 %v7449, %v7446
    %v7492 = vpack.c.bf16 %v7457, %v7454
    %v7493 = vpack.c.bf16 %v7465, %v7462
    %v7494 = vpack.c.bf16 %v7473, %v7470
    %v7495 = vpack.c.bf16 %v7478, %v7478
    %s7496 = scalar_lea.vmem %s1, 1344
    %v7497 = vld [vmem:[%s7496] sm:$0xf]
    %v7498 = vld [vmem:[%s7496 + $0x4] sm:$0xf]
    %v7499 = vld [vmem:[%s7496 + $0x8] sm:$0xf]
    %v7500 = vld [vmem:[%s7496 + $0xc] sm:$0xf]
    %v7501 = vld [vmem:[%s7496 + $0x10] sm:$0xf]
    %v7502 = vld [vmem:[%s7496 + $0x14] sm:$0xf]
    %v7503 = vld [vmem:[%s7496 + $0x18] sm:$0xf]
    %v7504 = vld [vmem:[%s7496 + $0x1c] sm:$0xf]
    %v7505 = vld [vmem:[%s7496 + $0x20] sm:$0xf]
    %v7506 = vld [vmem:[%s7496 + $0x24] sm:$0xf]
    %v7507 = vld [vmem:[%s7496 + $0x28] sm:$0xf]
    %v7508 = vld [vmem:[%s7496 + $0x2c] sm:$0xf]
    %v7509 = vld [vmem:[%s7496 + $0x30] sm:$0xf]
    %v7510 = vld [vmem:[%s7496 + $0x34] sm:$0xf]
    %v7511 = vld [vmem:[%s7496 + $0x38] sm:$0xf]
    %v7512 = vld [vmem:[%s7496 + $0x3c] sm:$0xf]
    %vm7513 = vcmp.eq.s32.totalorder %v6967, 0
    %vm7514 = vcmp.eq.s32.totalorder %v6968, 0
    %vm7515 = vcmp.eq.s32.totalorder %v6969, 0
    %vm7516 = vcmp.eq.s32.totalorder %v6970, 0
    %vm7517 = vcmp.eq.s32.totalorder %v6971, 0
    %vm7518 = vcmp.eq.s32.totalorder %v6972, 0
    %vm7519 = vcmp.eq.s32.totalorder %v6973, 0
    %vm7520 = vcmp.eq.s32.totalorder %v6974, 0
    %vm7521 = vcmp.eq.s32.totalorder %v6975, 0
    %vm7522 = vcmp.eq.s32.totalorder %v6976, 0
    %vm7523 = vcmp.eq.s32.totalorder %v6977, 0
    %vm7524 = vcmp.eq.s32.totalorder %v6978, 0
    %vm7525 = vmand %vm6942, %vm4162
    %vm7526 = vmand %vm6943, %vm4163
    %vm7527 = vmand %vm6944, %vm4164
    %vm7528 = vmand %vm6945, %vm4165
    %vm7529 = vmand %vm6946, %vm4849
    %vm7530 = vmand %vm6947, %vm4850
    %vm7531 = vmand %vm6948, %vm4851
    %vm7532 = vmand %vm6949, %vm5846
    %vm7533 = vmand %vm6950, %vm5847
    %vm7534 = vmand %vm6951, %vm5848
    %vm7535 = vmand %vm6952, %vm5849
    %vm7536 = vmand %vm6953, %vm5850
    %vm7537 = vmand %vm6954, %vm5851
    %vm7538 = vmand %vm6955, %vm7513
    %vm7539 = vmand %vm6956, %vm7514
    %vm7540 = vmand %vm6957, %vm7515
    %vm7541 = vmand %vm6958, %vm7516
    %vm7542 = vmand %vm6959, %vm7517
    %vm7543 = vmand %vm6960, %vm7518
    %vm7544 = vmand %vm6961, %vm7519
    %vm7545 = vmand %vm6962, %vm7520
    %vm7546 = vmand %vm6963, %vm7521
    %vm7547 = vmand %vm6964, %vm7522
    %vm7548 = vmand %vm6965, %vm7523
    %vm7549 = vmand %vm6966, %vm7524
    %vm7550 = vcmp.eq.s32.totalorder %v7167, 0
    %vm7551 = vcmp.eq.s32.totalorder %v7168, 0
    %vm7552 = vcmp.eq.s32.totalorder %v7169, 0
    %vm7553 = vcmp.eq.s32.totalorder %v7170, 0
    %vm7554 = vcmp.eq.s32.totalorder %v7171, 0
    %vm7555 = vcmp.eq.s32.totalorder %v7172, 0
    %vm7556 = vcmp.eq.s32.totalorder %v7173, 0
    %vm7557 = vcmp.eq.s32.totalorder %v7174, 0
    %vm7558 = vcmp.eq.s32.totalorder %v7175, 0
    %vm7559 = vcmp.eq.s32.totalorder %v7176, 0
    %vm7560 = vcmp.eq.s32.totalorder %v7177, 0
    %vm7561 = vcmp.eq.s32.totalorder %v7178, 0
    %vm7562 = vcmp.eq.s32.totalorder %v7179, 0
    %vm7563 = vcmp.eq.s32.totalorder %v7180, 0
    %vm7564 = vcmp.eq.s32.totalorder %v7181, 0
    %vm7565 = vcmp.eq.s32.totalorder %v7182, 0
    %vm7566 = vcmp.eq.s32.totalorder %v7183, 0
    %vm7567 = vcmp.eq.s32.totalorder %v7184, 0
    %vm7568 = vcmp.eq.s32.totalorder %v7185, 0
    %vm7569 = vcmp.eq.s32.totalorder %v7186, 0
    %vm7570 = vcmp.eq.s32.totalorder %v7187, 0
    %vm7571 = vcmp.eq.s32.totalorder %v7188, 0
    %vm7572 = vcmp.eq.s32.totalorder %v7189, 0
    %vm7573 = vcmp.eq.s32.totalorder %v7190, 0
    %vm7574 = vcmp.eq.s32.totalorder %v7191, 0
    %vm7575 = vmand %vm7141, %vm7550
    %vm7576 = vmand %vm7142, %vm7551
    %vm7577 = vmand %vm7143, %vm7552
    %vm7578 = vmand %vm7144, %vm7553
    %vm7579 = vmand %vm7145, %vm7554
    %vm7580 = vmand %vm7146, %vm7555
    %vm7581 = vmand %vm7147, %vm7556
    %vm7582 = vmand %vm7148, %vm7557
    %vm7583 = vmand %vm7149, %vm7558
    %vm7584 = vmand %vm7150, %vm7559
    %vm7585 = vmand %vm7151, %vm7560
    %vm7586 = vmand %vm7152, %vm7561
    %vm7587 = vmand %vm7153, %vm7562
    %vm7588 = vmand %vm7154, %vm7563
    %vm7589 = vmand %vm7155, %vm7564
    %vm7590 = vmand %vm7156, %vm7565
    %vm7591 = vmand %vm7157, %vm7566
    %vm7592 = vmand %vm7158, %vm7567
    %vm7593 = vmand %vm7159, %vm7568
    %vm7594 = vmand %vm7160, %vm7569
    %vm7595 = vmand %vm7161, %vm7570
    %vm7596 = vmand %vm7162, %vm7571
    %vm7597 = vmand %vm7163, %vm7572
    %vm7598 = vmand %vm7164, %vm7573
    %vm7599 = vmand %vm7165, %vm7574
    %vm7600 = vmor %vm7525, %vm7575
    %vm7601 = vmor %vm7526, %vm7576
    %vm7602 = vmor %vm7527, %vm7577
    %vm7603 = vmor %vm7528, %vm7578
    %vm7604 = vmor %vm7529, %vm7579
    %vm7605 = vmor %vm7530, %vm7580
    %vm7606 = vmor %vm7531, %vm7581
    %vm7607 = vmor %vm7532, %vm7582
    %vm7608 = vmor %vm7533, %vm7583
    %vm7609 = vmor %vm7534, %vm7584
    %vm7610 = vmor %vm7535, %vm7585
    %vm7611 = vmor %vm7536, %vm7586
    %vm7612 = vmor %vm7537, %vm7587
    %vm7613 = vmor %vm7538, %vm7588
    %vm7614 = vmor %vm7539, %vm7589
    %vm7615 = vmor %vm7540, %vm7590
    %vm7616 = vmor %vm7541, %vm7591
    %vm7617 = vmor %vm7542, %vm7592
    %vm7618 = vmor %vm7543, %vm7593
    %vm7619 = vmor %vm7544, %vm7594
    %vm7620 = vmor %vm7545, %vm7595
    %vm7621 = vmor %vm7546, %vm7596
    %vm7622 = vmor %vm7547, %vm7597
    %vm7623 = vmor %vm7548, %vm7598
    %vm7624 = vmor %vm7549, %vm7599
    %v7625 = vsel %vm7600, 1.0, 0.0
    %v7626 = vsel %vm7601, 1.0, 0.0
    %v7627 = vsel %vm7602, 1.0, 0.0
    %v7628 = vsel %vm7603, 1.0, 0.0
    %v7629 = vsel %vm7604, 1.0, 0.0
    %v7630 = vsel %vm7605, 1.0, 0.0
    %v7631 = vsel %vm7606, 1.0, 0.0
    %v7632 = vsel %vm7607, 1.0, 0.0
    %v7633 = vsel %vm7608, 1.0, 0.0
    %v7634 = vsel %vm7609, 1.0, 0.0
    %v7635 = vsel %vm7610, 1.0, 0.0
    %v7636 = vsel %vm7611, 1.0, 0.0
    %v7637 = vsel %vm7612, 1.0, 0.0
    %v7638 = vsel %vm7613, 1.0, 0.0
    %v7639 = vsel %vm7614, 1.0, 0.0
    %v7640 = vsel %vm7615, 1.0, 0.0
    %v7641 = vsel %vm7616, 1.0, 0.0
    %v7642 = vsel %vm7617, 1.0, 0.0
    %v7643 = vsel %vm7618, 1.0, 0.0
    %v7644 = vsel %vm7619, 1.0, 0.0
    %v7645 = vsel %vm7620, 1.0, 0.0
    %v7646 = vsel %vm7621, 1.0, 0.0
    %v7647 = vsel %vm7622, 1.0, 0.0
    %v7648 = vsel %vm7623, 1.0, 0.0
    %v7649 = vsel %vm7624, 1.0, 0.0
    %v7650 = vpack.c.bf16 %v7626, %v7625
    %v7651 = vpack.c.bf16 %v7628, %v7627
    %v7652 = vpack.c.bf16 %v7630, %v7629
    %v7653 = vpack.c.bf16 %v7632, %v7631
    %v7654 = vpack.c.bf16 %v7634, %v7633
    %v7655 = vpack.c.bf16 %v7636, %v7635
    %v7656 = vpack.c.bf16 %v7638, %v7637
    %v7657 = vpack.c.bf16 %v7640, %v7639
    %v7658 = vpack.c.bf16 %v7642, %v7641
    %v7659 = vpack.c.bf16 %v7644, %v7643
    %v7660 = vpack.c.bf16 %v7646, %v7645
    %v7661 = vpack.c.bf16 %v7648, %v7647
    %v7662 = vpack.c.bf16 %v7649, %v7649
    %v7664 = vsel %vm1955, %v7650, 0
    %v7667 = vsel %vm1955, %v7651, 0
    %v7670 = vsel %vm1955, %v7652, 0
    %v7673 = vsel %vm1955, %v7653, 0
    %v7676 = vsel %vm1955, %v7654, 0
    %v7679 = vsel %vm1955, %v7655, 0
    %v7682 = vsel %vm1955, %v7656, 0
    %v7685 = vsel %vm1955, %v7657, 0
    %v7688 = vsel %vm1955, %v7658, 0
    %v7691 = vsel %vm1955, %v7659, 0
    %v7694 = vsel %vm1955, %v7660, 0
    %v7697 = vsel %vm1955, %v7661, 0
    %v7700 = vsel %vm1955, %v7662, 0
    %7702 = vmatprep.subr.bf16.mxu0 0
    %7703 = vmatpush1.bf16.msra.mxu0 %v6836
    %7704 = vmatprep.subr.bf16.mxu0 0
    %7705 = vmatpush1.bf16.msra.mxu0 %v6837
    %7706 = vmatprep.subr.bf16.mxu0 0
    %7707 = vmatpush1.bf16.msra.mxu0 %v6838
    %7708 = vmatprep.subr.bf16.mxu0 0
    %7709 = vmatpush1.bf16.msra.mxu0 %v6839
    %7710 = vmatprep.subr.bf16.mxu0 0
    %7711 = vmatpush1.bf16.msra.mxu0 %v6840
    %7712 = vmatprep.subr.bf16.mxu0 0
    %7713 = vmatpush1.bf16.msra.mxu0 %v6841
    %7714 = vmatprep.subr.bf16.mxu0 0
    %7715 = vmatpush1.bf16.msra.mxu0 %v7345
    %7716 = vmatprep.subr.bf16.mxu0 0
    %7717 = vmatpush1.bf16.msra.mxu0 0
    %7718 = vmatprep.subr.bf16.mxu0 0
    %7719 = vmatpush1.bf16.msra.mxu0 0
    %7720 = vmatprep.subr.bf16.mxu0 0
    %7721 = vmatpush1.bf16.msra.mxu0 0
    %7722 = vmatprep.subr.bf16.mxu0 0
    %7723 = vmatpush1.bf16.msra.mxu0 0
    %7724 = vmatprep.subr.bf16.mxu0 0
    %7725 = vmatpush1.bf16.msra.mxu0 0
    %7726 = vmatprep.subr.bf16.mxu0 0
    %7727 = vmatpush1.bf16.msra.mxu0 0
    %7728 = vmatprep.subr.bf16.mxu0 0
    %7729 = vmatpush1.bf16.msra.mxu0 0
    %7730 = vmatprep.subr.bf16.mxu0 0
    %7731 = vmatpush1.bf16.msra.mxu0 0
    %7732 = vmatprep.subr.bf16.mxu0 0
    %7733 = vmatpush1.bf16.msra.mxu0 0
    %7734 = vmatprep.mubr.bf16.mxu0 0
    %7735 = vmatmul.mubr.bf16.gmra.mrb[0].mxu0 %v7664
    %v7736 = vpop.f32.mrb[0].mxu0
    %v7737 = vadd.f32 0.0, %v7736
    %v7738 = vpop.f32.mrb[0].mxu0
    %v7739 = vpop.f32.mrb[0].mxu0
    %v7740 = vadd.f32 0.0, %v7739
    %v7741 = vpop.f32.mrb[0].mxu0
    %7742 = vmatprep.mubr.bf16.mxu0 0
    %7743 = vmatmul.mubr.bf16.gmra.mrb[0].mxu0 %v7667
    %v7744 = vpop.f32.mrb[0].mxu0
    %v7745 = vadd.f32 0.0, %v7744
    %v7746 = vpop.f32.mrb[0].mxu0
    %v7747 = vpop.f32.mrb[0].mxu0
    %v7748 = vadd.f32 0.0, %v7747
    %v7749 = vpop.f32.mrb[0].mxu0
    %7750 = vmatprep.mubr.bf16.mxu0 0
    %7751 = vmatmul.mubr.bf16.gmra.mrb[0].mxu0 %v7670
    %v7752 = vpop.f32.mrb[0].mxu0
    %v7753 = vadd.f32 0.0, %v7752
    %v7754 = vpop.f32.mrb[0].mxu0
    %v7755 = vpop.f32.mrb[0].mxu0
    %v7756 = vadd.f32 0.0, %v7755
    %v7757 = vpop.f32.mrb[0].mxu0
    %7758 = vmatprep.mubr.bf16.mxu0 0
    %7759 = vmatmul.mubr.bf16.gmra.mrb[0].mxu0 %v7673
    %v7760 = vpop.f32.mrb[0].mxu0
    %v7761 = vadd.f32 0.0, %v7760
    %v7762 = vpop.f32.mrb[0].mxu0
    %v7763 = vpop.f32.mrb[0].mxu0
    %v7764 = vadd.f32 0.0, %v7763
    %v7765 = vpop.f32.mrb[0].mxu0
    %7766 = vmatprep.mubr.bf16.mxu0 0
    %7767 = vmatmul.mubr.bf16.gmra.mrb[0].mxu0 %v7676
    %v7768 = vpop.f32.mrb[0].mxu0
    %v7769 = vadd.f32 0.0, %v7768
    %v7770 = vpop.f32.mrb[0].mxu0
    %v7771 = vpop.f32.mrb[0].mxu0
    %v7772 = vadd.f32 0.0, %v7771
    %v7773 = vpop.f32.mrb[0].mxu0
    %7774 = vmatprep.mubr.bf16.mxu0 0
    %7775 = vmatmul.mubr.bf16.gmra.mrb[0].mxu0 %v7679
    %v7776 = vpop.f32.mrb[0].mxu0
    %v7777 = vadd.f32 0.0, %v7776
    %v7778 = vpop.f32.mrb[0].mxu0
    %v7779 = vpop.f32.mrb[0].mxu0
    %v7780 = vadd.f32 0.0, %v7779
    %v7781 = vpop.f32.mrb[0].mxu0
    %7782 = vmatprep.mubr.bf16.mxu0 0
    %7783 = vmatmul.mubr.bf16.gmra.mrb[0].mxu0 %v7682
    %v7784 = vpop.f32.mrb[0].mxu0
    %v7785 = vadd.f32 0.0, %v7784
    %v7786 = vpop.f32.mrb[0].mxu0
    %v7787 = vpop.f32.mrb[0].mxu0
    %v7788 = vadd.f32 0.0, %v7787
    %v7789 = vpop.f32.mrb[0].mxu0
    %7790 = vmatprep.mubr.bf16.mxu0 0
    %7791 = vmatmul.mubr.bf16.gmra.mrb[0].mxu0 %v7685
    %v7792 = vpop.f32.mrb[0].mxu0
    %v7793 = vadd.f32 0.0, %v7792
    %v7794 = vpop.f32.mrb[0].mxu0
    %v7795 = vpop.f32.mrb[0].mxu0
    %v7796 = vadd.f32 0.0, %v7795
    %v7797 = vpop.f32.mrb[0].mxu0
    %7798 = vmatprep.mubr.bf16.mxu0 0
    %7799 = vmatmul.mubr.bf16.gmra.mrb[0].mxu0 %v7688
    %v7800 = vpop.f32.mrb[0].mxu0
    %v7801 = vadd.f32 0.0, %v7800
    %v7802 = vpop.f32.mrb[0].mxu0
    %v7803 = vpop.f32.mrb[0].mxu0
    %v7804 = vadd.f32 0.0, %v7803
    %v7805 = vpop.f32.mrb[0].mxu0
    %7806 = vmatprep.mubr.bf16.mxu0 0
    %7807 = vmatmul.mubr.bf16.gmra.mrb[0].mxu0 %v7691
    %v7808 = vpop.f32.mrb[0].mxu0
    %v7809 = vadd.f32 0.0, %v7808
    %v7810 = vpop.f32.mrb[0].mxu0
    %v7811 = vpop.f32.mrb[0].mxu0
    %v7812 = vadd.f32 0.0, %v7811
    %v7813 = vpop.f32.mrb[0].mxu0
    %7814 = vmatprep.mubr.bf16.mxu0 0
    %7815 = vmatmul.mubr.bf16.gmra.mrb[0].mxu0 %v7694
    %v7816 = vpop.f32.mrb[0].mxu0
    %v7817 = vadd.f32 0.0, %v7816
    %v7818 = vpop.f32.mrb[0].mxu0
    %v7819 = vpop.f32.mrb[0].mxu0
    %v7820 = vadd.f32 0.0, %v7819
    %v7821 = vpop.f32.mrb[0].mxu0
    %7822 = vmatprep.mubr.bf16.mxu0 0
    %7823 = vmatmul.mubr.bf16.gmra.mrb[0].mxu0 %v7697
    %v7824 = vpop.f32.mrb[0].mxu0
    %v7825 = vadd.f32 0.0, %v7824
    %v7826 = vpop.f32.mrb[0].mxu0
    %v7827 = vpop.f32.mrb[0].mxu0
    %v7828 = vadd.f32 0.0, %v7827
    %v7829 = vpop.f32.mrb[0].mxu0
    %7830 = vmatprep.mubr.bf16.mxu0 0
    %7831 = vmatmul.mubr.bf16.gmra.mrb[0].mxu0 %v7700
    %v7832 = vpop.f32.mrb[0].mxu0
    %v7833 = vadd.f32 0.0, %v7832
    %v7834 = vpop.f32.mrb[0].mxu0
    %v7835 = vpop.f32.mrb[0].mxu0
    %v7836 = vpop.f32.mrb[0].mxu0
    %7837 = vdwg.mxu0
    %v7838 = vpack.c.bf16 %v7740, %v7737
    %v7839 = vpack.c.bf16 %v7748, %v7745
    %v7840 = vpack.c.bf16 %v7756, %v7753
    %v7841 = vpack.c.bf16 %v7764, %v7761
    %v7842 = vpack.c.bf16 %v7772, %v7769
    %v7843 = vpack.c.bf16 %v7780, %v7777
    %v7844 = vpack.c.bf16 %v7788, %v7785
    %v7845 = vpack.c.bf16 %v7796, %v7793
    %v7846 = vpack.c.bf16 %v7804, %v7801
    %v7847 = vpack.c.bf16 %v7812, %v7809
    %v7848 = vpack.c.bf16 %v7820, %v7817
    %v7849 = vpack.c.bf16 %v7828, %v7825
    %v7850 = vpack.c.bf16 %v7833, %v7833
    %s7851 = scalar_lea.vmem %s1, 1408
    %v7852 = vld [vmem:[%s7851] sm:$0xf]
    %v7853 = vld [vmem:[%s7851 + $0x4] sm:$0xf]
    %v7854 = vld [vmem:[%s7851 + $0x8] sm:$0xf]
    %v7855 = vld [vmem:[%s7851 + $0xc] sm:$0xf]
    %v7856 = vld [vmem:[%s7851 + $0x10] sm:$0xf]
    %v7857 = vld [vmem:[%s7851 + $0x14] sm:$0xf]
    %v7858 = vld [vmem:[%s7851 + $0x18] sm:$0xf]
    %v7859 = vld [vmem:[%s7851 + $0x1c] sm:$0xf]
    %v7860 = vld [vmem:[%s7851 + $0x20] sm:$0xf]
    %v7861 = vld [vmem:[%s7851 + $0x24] sm:$0xf]
    %v7862 = vld [vmem:[%s7851 + $0x28] sm:$0xf]
    %v7863 = vld [vmem:[%s7851 + $0x2c] sm:$0xf]
    %v7864 = vld [vmem:[%s7851 + $0x30] sm:$0xf]
    %v7865 = vld [vmem:[%s7851 + $0x34] sm:$0xf]
    %v7866 = vld [vmem:[%s7851 + $0x38] sm:$0xf]
    %v7867 = vld [vmem:[%s7851 + $0x3c] sm:$0xf]
    %v7884 = vunpack.c.l.b16 %v7852
    %v7885 = vunpack.c.l.b16 %v7853
    %v7886 = vunpack.c.l.b16 %v7854
    %v7887 = vunpack.c.l.b16 %v7855
    %v7888 = vunpack.c.l.b16 %v7856
    %v7889 = vunpack.c.l.b16 %v7857
    %v7890 = vunpack.c.l.b16 %v7858
    %v7891 = vunpack.c.l.b16 %v7859
    %v7892 = vunpack.c.l.b16 %v7860
    %v7893 = vunpack.c.l.b16 %v7861
    %v7894 = vunpack.c.l.b16 %v7862
    %v7895 = vunpack.c.l.b16 %v7863
    %v7896 = vunpack.c.l.b16 %v7864
    %v7897 = vunpack.c.l.b16 %v7865
    %v7898 = vunpack.c.l.b16 %v7866
    %v7899 = vunpack.c.l.b16 %v7867
    %v7900 = vpack.c.b16 %v7885, %v7884
    %v7901 = vpack.c.b16 %v7887, %v7886
    %v7902 = vpack.c.b16 %v7889, %v7888
    %v7903 = vpack.c.b16 %v7891, %v7890
    %v7904 = vpack.c.b16 %v7893, %v7892
    %v7905 = vpack.c.b16 %v7895, %v7894
    %v7906 = vpack.c.b16 %v7897, %v7896
    %v7907 = vpack.c.b16 %v7899, %v7898
    %7916 = vmatprep.subr.bf16.mxu0 0
    %7917 = vmatpush1.bf16.msra.mxu0 %v7900
    %7918 = vmatprep.subr.bf16.mxu0 0
    %7919 = vmatpush1.bf16.msra.mxu0 %v7901
    %7920 = vmatprep.subr.bf16.mxu0 0
    %7921 = vmatpush1.bf16.msra.mxu0 %v7902
    %7922 = vmatprep.subr.bf16.mxu0 0
    %7923 = vmatpush1.bf16.msra.mxu0 %v7903
    %7924 = vmatprep.subr.bf16.mxu0 0
    %7925 = vmatpush1.bf16.msra.mxu0 %v7904
    %7926 = vmatprep.subr.bf16.mxu0 0
    %7927 = vmatpush1.bf16.msra.mxu0 %v7905
    %7928 = vmatprep.subr.bf16.mxu0 0
    %7929 = vmatpush1.bf16.msra.mxu0 %v7906
    %7930 = vmatprep.subr.bf16.mxu0 0
    %7931 = vmatpush1.bf16.msra.mxu0 %v7907
    %7932 = vmatprep.subr.bf16.mxu0 0
    %7933 = vmatpush1.bf16.msra.mxu0 0
    %7934 = vmatprep.subr.bf16.mxu0 0
    %7935 = vmatpush1.bf16.msra.mxu0 0
    %7936 = vmatprep.subr.bf16.mxu0 0
    %7937 = vmatpush1.bf16.msra.mxu0 0
    %7938 = vmatprep.subr.bf16.mxu0 0
    %7939 = vmatpush1.bf16.msra.mxu0 0
    %7940 = vmatprep.subr.bf16.mxu0 0
    %7941 = vmatpush1.bf16.msra.mxu0 0
    %7942 = vmatprep.subr.bf16.mxu0 0
    %7943 = vmatpush1.bf16.msra.mxu0 0
    %7944 = vmatprep.subr.bf16.mxu0 0
    %7945 = vmatpush1.bf16.msra.mxu0 0
    %7946 = vmatprep.subr.bf16.mxu0 0
    %7947 = vmatpush1.bf16.msra.mxu0 0
    %7948 = vmatprep.mubr.bf16.mxu0 0
    %7949 = vmatmul.mubr.bf16.gmra.mrb[0].mxu0 %v7838
    %v7950 = vpop.f32.mrb[0].mxu0
    %v7951 = vadd.f32 0.0, %v7950
    %v7952 = vpop.f32.mrb[0].mxu0
    %v7953 = vpop.f32.mrb[0].mxu0
    %v7954 = vadd.f32 0.0, %v7953
    %v7955 = vpop.f32.mrb[0].mxu0
    %7956 = vmatprep.mubr.bf16.mxu0 0
    %7957 = vmatmul.mubr.bf16.gmra.mrb[0].mxu0 %v7839
    %v7958 = vpop.f32.mrb[0].mxu0
    %v7959 = vadd.f32 0.0, %v7958
    %v7960 = vpop.f32.mrb[0].mxu0
    %v7961 = vpop.f32.mrb[0].mxu0
    %v7962 = vadd.f32 0.0, %v7961
    %v7963 = vpop.f32.mrb[0].mxu0
    %7964 = vmatprep.mubr.bf16.mxu0 0
    %7965 = vmatmul.mubr.bf16.gmra.mrb[0].mxu0 %v7840
    %v7966 = vpop.f32.mrb[0].mxu0
    %v7967 = vadd.f32 0.0, %v7966
    %v7968 = vpop.f32.mrb[0].mxu0
    %v7969 = vpop.f32.mrb[0].mxu0
    %v7970 = vadd.f32 0.0, %v7969
    %v7971 = vpop.f32.mrb[0].mxu0
    %7972 = vmatprep.mubr.bf16.mxu0 0
    %7973 = vmatmul.mubr.bf16.gmra.mrb[0].mxu0 %v7841
    %v7974 = vpop.f32.mrb[0].mxu0
    %v7975 = vadd.f32 0.0, %v7974
    %v7976 = vpop.f32.mrb[0].mxu0
    %v7977 = vpop.f32.mrb[0].mxu0
    %v7978 = vadd.f32 0.0, %v7977
    %v7979 = vpop.f32.mrb[0].mxu0
    %7980 = vmatprep.mubr.bf16.mxu0 0
    %7981 = vmatmul.mubr.bf16.gmra.mrb[0].mxu0 %v7842
    %v7982 = vpop.f32.mrb[0].mxu0
    %v7983 = vadd.f32 0.0, %v7982
    %v7984 = vpop.f32.mrb[0].mxu0
    %v7985 = vpop.f32.mrb[0].mxu0
    %v7986 = vadd.f32 0.0, %v7985
    %v7987 = vpop.f32.mrb[0].mxu0
    %7988 = vmatprep.mubr.bf16.mxu0 0
    %7989 = vmatmul.mubr.bf16.gmra.mrb[0].mxu0 %v7843
    %v7990 = vpop.f32.mrb[0].mxu0
    %v7991 = vadd.f32 0.0, %v7990
    %v7992 = vpop.f32.mrb[0].mxu0
    %v7993 = vpop.f32.mrb[0].mxu0
    %v7994 = vadd.f32 0.0, %v7993
    %v7995 = vpop.f32.mrb[0].mxu0
    %7996 = vmatprep.mubr.bf16.mxu0 0
    %7997 = vmatmul.mubr.bf16.gmra.mrb[0].mxu0 %v7844
    %v7998 = vpop.f32.mrb[0].mxu0
    %v7999 = vadd.f32 0.0, %v7998
    %v8000 = vpop.f32.mrb[0].mxu0
    %v8001 = vpop.f32.mrb[0].mxu0
    %v8002 = vadd.f32 0.0, %v8001
    %v8003 = vpop.f32.mrb[0].mxu0
    %8004 = vmatprep.mubr.bf16.mxu0 0
    %8005 = vmatmul.mubr.bf16.gmra.mrb[0].mxu0 %v7845
    %v8006 = vpop.f32.mrb[0].mxu0
    %v8007 = vadd.f32 0.0, %v8006
    %v8008 = vpop.f32.mrb[0].mxu0
    %v8009 = vpop.f32.mrb[0].mxu0
    %v8010 = vadd.f32 0.0, %v8009
    %v8011 = vpop.f32.mrb[0].mxu0
    %8012 = vmatprep.mubr.bf16.mxu0 0
    %8013 = vmatmul.mubr.bf16.gmra.mrb[0].mxu0 %v7846
    %v8014 = vpop.f32.mrb[0].mxu0
    %v8015 = vadd.f32 0.0, %v8014
    %v8016 = vpop.f32.mrb[0].mxu0
    %v8017 = vpop.f32.mrb[0].mxu0
    %v8018 = vadd.f32 0.0, %v8017
    %v8019 = vpop.f32.mrb[0].mxu0
    %8020 = vmatprep.mubr.bf16.mxu0 0
    %8021 = vmatmul.mubr.bf16.gmra.mrb[0].mxu0 %v7847
    %v8022 = vpop.f32.mrb[0].mxu0
    %v8023 = vadd.f32 0.0, %v8022
    %v8024 = vpop.f32.mrb[0].mxu0
    %v8025 = vpop.f32.mrb[0].mxu0
    %v8026 = vadd.f32 0.0, %v8025
    %v8027 = vpop.f32.mrb[0].mxu0
    %8028 = vmatprep.mubr.bf16.mxu0 0
    %8029 = vmatmul.mubr.bf16.gmra.mrb[0].mxu0 %v7848
    %v8030 = vpop.f32.mrb[0].mxu0
    %v8031 = vadd.f32 0.0, %v8030
    %v8032 = vpop.f32.mrb[0].mxu0
    %v8033 = vpop.f32.mrb[0].mxu0
    %v8034 = vadd.f32 0.0, %v8033
    %v8035 = vpop.f32.mrb[0].mxu0
    %8036 = vmatprep.mubr.bf16.mxu0 0
    %8037 = vmatmul.mubr.bf16.gmra.mrb[0].mxu0 %v7849
    %v8038 = vpop.f32.mrb[0].mxu0
    %v8039 = vadd.f32 0.0, %v8038
    %v8040 = vpop.f32.mrb[0].mxu0
    %v8041 = vpop.f32.mrb[0].mxu0
    %v8042 = vadd.f32 0.0, %v8041
    %v8043 = vpop.f32.mrb[0].mxu0
    %8044 = vmatprep.mubr.bf16.mxu0 0
    %8045 = vmatmul.mubr.bf16.gmra.mrb[0].mxu0 %v7850
    %v8046 = vpop.f32.mrb[0].mxu0
    %v8047 = vadd.f32 0.0, %v8046
    %v8048 = vpop.f32.mrb[0].mxu0
    %v8049 = vpop.f32.mrb[0].mxu0
    %v8050 = vpop.f32.mrb[0].mxu0
    %8051 = vdwg.mxu0
    %v8068 = vunpack.c.l.b16 %v7497
    %v8069 = vunpack.c.l.b16 %v7498
    %v8070 = vunpack.c.l.b16 %v7499
    %v8071 = vunpack.c.l.b16 %v7500
    %v8072 = vunpack.c.l.b16 %v7501
    %v8073 = vunpack.c.l.b16 %v7502
    %v8074 = vunpack.c.l.b16 %v7503
    %v8075 = vunpack.c.l.b16 %v7504
    %v8076 = vunpack.c.l.b16 %v7505
    %v8077 = vunpack.c.l.b16 %v7506
    %v8078 = vunpack.c.l.b16 %v7507
    %v8079 = vunpack.c.l.b16 %v7508
    %v8080 = vunpack.c.l.b16 %v7509
    %v8081 = vunpack.c.l.b16 %v7510
    %v8082 = vunpack.c.l.b16 %v7511
    %v8083 = vunpack.c.l.b16 %v7512
    %v8084 = vpack.c.b16 %v8069, %v8068
    %v8085 = vpack.c.b16 %v8071, %v8070
    %v8086 = vpack.c.b16 %v8073, %v8072
    %v8087 = vpack.c.b16 %v8075, %v8074
    %v8088 = vpack.c.b16 %v8077, %v8076
    %v8089 = vpack.c.b16 %v8079, %v8078
    %v8090 = vpack.c.b16 %v8081, %v8080
    %v8091 = vpack.c.b16 %v8083, %v8082
    %8100 = vmatprep.subr.bf16.mxu0 0
    %8101 = vmatpush1.bf16.msra.mxu0 %v8084
    %8102 = vmatprep.subr.bf16.mxu0 0
    %8103 = vmatpush1.bf16.msra.mxu0 %v8085
    %8104 = vmatprep.subr.bf16.mxu0 0
    %8105 = vmatpush1.bf16.msra.mxu0 %v8086
    %8106 = vmatprep.subr.bf16.mxu0 0
    %8107 = vmatpush1.bf16.msra.mxu0 %v8087
    %8108 = vmatprep.subr.bf16.mxu0 0
    %8109 = vmatpush1.bf16.msra.mxu0 %v8088
    %8110 = vmatprep.subr.bf16.mxu0 0
    %8111 = vmatpush1.bf16.msra.mxu0 %v8089
    %8112 = vmatprep.subr.bf16.mxu0 0
    %8113 = vmatpush1.bf16.msra.mxu0 %v8090
    %8114 = vmatprep.subr.bf16.mxu0 0
    %8115 = vmatpush1.bf16.msra.mxu0 %v8091
    %8116 = vmatprep.subr.bf16.mxu0 0
    %8117 = vmatpush1.bf16.msra.mxu0 0
    %8118 = vmatprep.subr.bf16.mxu0 0
    %8119 = vmatpush1.bf16.msra.mxu0 0
    %8120 = vmatprep.subr.bf16.mxu0 0
    %8121 = vmatpush1.bf16.msra.mxu0 0
    %8122 = vmatprep.subr.bf16.mxu0 0
    %8123 = vmatpush1.bf16.msra.mxu0 0
    %8124 = vmatprep.subr.bf16.mxu0 0
    %8125 = vmatpush1.bf16.msra.mxu0 0
    %8126 = vmatprep.subr.bf16.mxu0 0
    %8127 = vmatpush1.bf16.msra.mxu0 0
    %8128 = vmatprep.subr.bf16.mxu0 0
    %8129 = vmatpush1.bf16.msra.mxu0 0
    %8130 = vmatprep.subr.bf16.mxu0 0
    %8131 = vmatpush1.bf16.msra.mxu0 0
    %8132 = vmatprep.mubr.bf16.mxu0 0
    %8133 = vmatmul.mubr.bf16.gmra.mrb[0].mxu0 %v7483
    %v8134 = vpop.f32.mrb[0].mxu0
    %v8135 = vadd.f32 %v7951, %v8134
    %v8136 = vpop.f32.mrb[0].mxu0
    %v8137 = vpop.f32.mrb[0].mxu0
    %v8138 = vadd.f32 %v7954, %v8137
    %v8139 = vpop.f32.mrb[0].mxu0
    %8140 = vmatprep.mubr.bf16.mxu0 0
    %8141 = vmatmul.mubr.bf16.gmra.mrb[0].mxu0 %v7484
    %v8142 = vpop.f32.mrb[0].mxu0
    %v8143 = vadd.f32 %v7959, %v8142
    %v8144 = vpop.f32.mrb[0].mxu0
    %v8145 = vpop.f32.mrb[0].mxu0
    %v8146 = vadd.f32 %v7962, %v8145
    %v8147 = vpop.f32.mrb[0].mxu0
    %8148 = vmatprep.mubr.bf16.mxu0 0
    %8149 = vmatmul.mubr.bf16.gmra.mrb[0].mxu0 %v7485
    %v8150 = vpop.f32.mrb[0].mxu0
    %v8151 = vadd.f32 %v7967, %v8150
    %v8152 = vpop.f32.mrb[0].mxu0
    %v8153 = vpop.f32.mrb[0].mxu0
    %v8154 = vadd.f32 %v7970, %v8153
    %v8155 = vpop.f32.mrb[0].mxu0
    %8156 = vmatprep.mubr.bf16.mxu0 0
    %8157 = vmatmul.mubr.bf16.gmra.mrb[0].mxu0 %v7486
    %v8158 = vpop.f32.mrb[0].mxu0
    %v8159 = vadd.f32 %v7975, %v8158
    %v8160 = vpop.f32.mrb[0].mxu0
    %v8161 = vpop.f32.mrb[0].mxu0
    %v8162 = vadd.f32 %v7978, %v8161
    %v8163 = vpop.f32.mrb[0].mxu0
    %8164 = vmatprep.mubr.bf16.mxu0 0
    %8165 = vmatmul.mubr.bf16.gmra.mrb[0].mxu0 %v7487
    %v8166 = vpop.f32.mrb[0].mxu0
    %v8167 = vadd.f32 %v7983, %v8166
    %v8168 = vpop.f32.mrb[0].mxu0
    %v8169 = vpop.f32.mrb[0].mxu0
    %v8170 = vadd.f32 %v7986, %v8169
    %v8171 = vpop.f32.mrb[0].mxu0
    %8172 = vmatprep.mubr.bf16.mxu0 0
    %8173 = vmatmul.mubr.bf16.gmra.mrb[0].mxu0 %v7488
    %v8174 = vpop.f32.mrb[0].mxu0
    %v8175 = vadd.f32 %v7991, %v8174
    %v8176 = vpop.f32.mrb[0].mxu0
    %v8177 = vpop.f32.mrb[0].mxu0
    %v8178 = vadd.f32 %v7994, %v8177
    %v8179 = vpop.f32.mrb[0].mxu0
    %8180 = vmatprep.mubr.bf16.mxu0 0
    %8181 = vmatmul.mubr.bf16.gmra.mrb[0].mxu0 %v7489
    %v8182 = vpop.f32.mrb[0].mxu0
    %v8183 = vadd.f32 %v7999, %v8182
    %v8184 = vpop.f32.mrb[0].mxu0
    %v8185 = vpop.f32.mrb[0].mxu0
    %v8186 = vadd.f32 %v8002, %v8185
    %v8187 = vpop.f32.mrb[0].mxu0
    %8188 = vmatprep.mubr.bf16.mxu0 0
    %8189 = vmatmul.mubr.bf16.gmra.mrb[0].mxu0 %v7490
    %v8190 = vpop.f32.mrb[0].mxu0
    %v8191 = vadd.f32 %v8007, %v8190
    %v8192 = vpop.f32.mrb[0].mxu0
    %v8193 = vpop.f32.mrb[0].mxu0
    %v8194 = vadd.f32 %v8010, %v8193
    %v8195 = vpop.f32.mrb[0].mxu0
    %8196 = vmatprep.mubr.bf16.mxu0 0
    %8197 = vmatmul.mubr.bf16.gmra.mrb[0].mxu0 %v7491
    %v8198 = vpop.f32.mrb[0].mxu0
    %v8199 = vadd.f32 %v8015, %v8198
    %v8200 = vpop.f32.mrb[0].mxu0
    %v8201 = vpop.f32.mrb[0].mxu0
    %v8202 = vadd.f32 %v8018, %v8201
    %v8203 = vpop.f32.mrb[0].mxu0
    %8204 = vmatprep.mubr.bf16.mxu0 0
    %8205 = vmatmul.mubr.bf16.gmra.mrb[0].mxu0 %v7492
    %v8206 = vpop.f32.mrb[0].mxu0
    %v8207 = vadd.f32 %v8023, %v8206
    %v8208 = vpop.f32.mrb[0].mxu0
    %v8209 = vpop.f32.mrb[0].mxu0
    %v8210 = vadd.f32 %v8026, %v8209
    %v8211 = vpop.f32.mrb[0].mxu0
    %8212 = vmatprep.mubr.bf16.mxu0 0
    %8213 = vmatmul.mubr.bf16.gmra.mrb[0].mxu0 %v7493
    %v8214 = vpop.f32.mrb[0].mxu0
    %v8215 = vadd.f32 %v8031, %v8214
    %v8216 = vpop.f32.mrb[0].mxu0
    %v8217 = vpop.f32.mrb[0].mxu0
    %v8218 = vadd.f32 %v8034, %v8217
    %v8219 = vpop.f32.mrb[0].mxu0
    %8220 = vmatprep.mubr.bf16.mxu0 0
    %8221 = vmatmul.mubr.bf16.gmra.mrb[0].mxu0 %v7494
    %v8222 = vpop.f32.mrb[0].mxu0
    %v8223 = vadd.f32 %v8039, %v8222
    %v8224 = vpop.f32.mrb[0].mxu0
    %v8225 = vpop.f32.mrb[0].mxu0
    %v8226 = vadd.f32 %v8042, %v8225
    %v8227 = vpop.f32.mrb[0].mxu0
    %8228 = vmatprep.mubr.bf16.mxu0 0
    %8229 = vmatmul.mubr.bf16.gmra.mrb[0].mxu0 %v7495
    %v8230 = vpop.f32.mrb[0].mxu0
    %v8231 = vadd.f32 %v8047, %v8230
    %v8232 = vpop.f32.mrb[0].mxu0
    %v8233 = vpop.f32.mrb[0].mxu0
    %v8234 = vpop.f32.mrb[0].mxu0
    %8235 = vdwg.mxu0
    %vm8236 = vcmp.eq.s32.totalorder %v6967, 4294967295
    %vm8237 = vcmp.eq.s32.totalorder %v6968, 4294967295
    %vm8238 = vcmp.eq.s32.totalorder %v6969, 4294967295
    %vm8239 = vcmp.eq.s32.totalorder %v6970, 4294967295
    %vm8240 = vcmp.eq.s32.totalorder %v6971, 4294967295
    %vm8241 = vcmp.eq.s32.totalorder %v6972, 4294967295
    %vm8242 = vcmp.eq.s32.totalorder %v6973, 4294967295
    %vm8243 = vcmp.eq.s32.totalorder %v6974, 4294967295
    %vm8244 = vcmp.eq.s32.totalorder %v6975, 4294967295
    %vm8245 = vcmp.eq.s32.totalorder %v6976, 4294967295
    %vm8246 = vcmp.eq.s32.totalorder %v6977, 4294967295
    %vm8247 = vcmp.eq.s32.totalorder %v6978, 4294967295
    %vm8248 = vmand %vm6942, %vm4456
    %vm8249 = vmand %vm6943, %vm4457
    %vm8250 = vmand %vm6944, %vm4458
    %vm8251 = vmand %vm6945, %vm4459
    %vm8252 = vmand %vm6946, %vm5212
    %vm8253 = vmand %vm6947, %vm5213
    %vm8254 = vmand %vm6948, %vm5214
    %vm8255 = vmand %vm6949, %vm6329
    %vm8256 = vmand %vm6950, %vm6330
    %vm8257 = vmand %vm6951, %vm6331
    %vm8258 = vmand %vm6952, %vm6332
    %vm8259 = vmand %vm6953, %vm6333
    %vm8260 = vmand %vm6954, %vm6334
    %vm8261 = vmand %vm6955, %vm8236
    %vm8262 = vmand %vm6956, %vm8237
    %vm8263 = vmand %vm6957, %vm8238
    %vm8264 = vmand %vm6958, %vm8239
    %vm8265 = vmand %vm6959, %vm8240
    %vm8266 = vmand %vm6960, %vm8241
    %vm8267 = vmand %vm6961, %vm8242
    %vm8268 = vmand %vm6962, %vm8243
    %vm8269 = vmand %vm6963, %vm8244
    %vm8270 = vmand %vm6964, %vm8245
    %vm8271 = vmand %vm6965, %vm8246
    %vm8272 = vmand %vm6966, %vm8247
    %vm8273 = vcmp.eq.s32.totalorder %v7167, 4294967295
    %vm8274 = vcmp.eq.s32.totalorder %v7168, 4294967295
    %vm8275 = vcmp.eq.s32.totalorder %v7169, 4294967295
    %vm8276 = vcmp.eq.s32.totalorder %v7170, 4294967295
    %vm8277 = vcmp.eq.s32.totalorder %v7171, 4294967295
    %vm8278 = vcmp.eq.s32.totalorder %v7172, 4294967295
    %vm8279 = vcmp.eq.s32.totalorder %v7173, 4294967295
    %vm8280 = vcmp.eq.s32.totalorder %v7174, 4294967295
    %vm8281 = vcmp.eq.s32.totalorder %v7175, 4294967295
    %vm8282 = vcmp.eq.s32.totalorder %v7176, 4294967295
    %vm8283 = vcmp.eq.s32.totalorder %v7177, 4294967295
    %vm8284 = vcmp.eq.s32.totalorder %v7178, 4294967295
    %vm8285 = vcmp.eq.s32.totalorder %v7179, 4294967295
    %vm8286 = vcmp.eq.s32.totalorder %v7180, 4294967295
    %vm8287 = vcmp.eq.s32.totalorder %v7181, 4294967295
    %vm8288 = vcmp.eq.s32.totalorder %v7182, 4294967295
    %vm8289 = vcmp.eq.s32.totalorder %v7183, 4294967295
    %vm8290 = vcmp.eq.s32.totalorder %v7184, 4294967295
    %vm8291 = vcmp.eq.s32.totalorder %v7185, 4294967295
    %vm8292 = vcmp.eq.s32.totalorder %v7186, 4294967295
    %vm8293 = vcmp.eq.s32.totalorder %v7187, 4294967295
    %vm8294 = vcmp.eq.s32.totalorder %v7188, 4294967295
    %vm8295 = vcmp.eq.s32.totalorder %v7189, 4294967295
    %vm8296 = vcmp.eq.s32.totalorder %v7190, 4294967295
    %vm8297 = vcmp.eq.s32.totalorder %v7191, 4294967295
    %vm8298 = vmand %vm7141, %vm8273
    %vm8299 = vmand %vm7142, %vm8274
    %vm8300 = vmand %vm7143, %vm8275
    %vm8301 = vmand %vm7144, %vm8276
    %vm8302 = vmand %vm7145, %vm8277
    %vm8303 = vmand %vm7146, %vm8278
    %vm8304 = vmand %vm7147, %vm8279
    %vm8305 = vmand %vm7148, %vm8280
    %vm8306 = vmand %vm7149, %vm8281
    %vm8307 = vmand %vm7150, %vm8282
    %vm8308 = vmand %vm7151, %vm8283
    %vm8309 = vmand %vm7152, %vm8284
    %vm8310 = vmand %vm7153, %vm8285
    %vm8311 = vmand %vm7154, %vm8286
    %vm8312 = vmand %vm7155, %vm8287
    %vm8313 = vmand %vm7156, %vm8288
    %vm8314 = vmand %vm7157, %vm8289
    %vm8315 = vmand %vm7158, %vm8290
    %vm8316 = vmand %vm7159, %vm8291
    %vm8317 = vmand %vm7160, %vm8292
    %vm8318 = vmand %vm7161, %vm8293
    %vm8319 = vmand %vm7162, %vm8294
    %vm8320 = vmand %vm7163, %vm8295
    %vm8321 = vmand %vm7164, %vm8296
    %vm8322 = vmand %vm7165, %vm8297
    %vm8323 = vmor %vm8248, %vm8298
    %vm8324 = vmor %vm8249, %vm8299
    %vm8325 = vmor %vm8250, %vm8300
    %vm8326 = vmor %vm8251, %vm8301
    %vm8327 = vmor %vm8252, %vm8302
    %vm8328 = vmor %vm8253, %vm8303
    %vm8329 = vmor %vm8254, %vm8304
    %vm8330 = vmor %vm8255, %vm8305
    %vm8331 = vmor %vm8256, %vm8306
    %vm8332 = vmor %vm8257, %vm8307
    %vm8333 = vmor %vm8258, %vm8308
    %vm8334 = vmor %vm8259, %vm8309
    %vm8335 = vmor %vm8260, %vm8310
    %vm8336 = vmor %vm8261, %vm8311
    %vm8337 = vmor %vm8262, %vm8312
    %vm8338 = vmor %vm8263, %vm8313
    %vm8339 = vmor %vm8264, %vm8314
    %vm8340 = vmor %vm8265, %vm8315
    %vm8341 = vmor %vm8266, %vm8316
    %vm8342 = vmor %vm8267, %vm8317
    %vm8343 = vmor %vm8268, %vm8318
    %vm8344 = vmor %vm8269, %vm8319
    %vm8345 = vmor %vm8270, %vm8320
    %vm8346 = vmor %vm8271, %vm8321
    %vm8347 = vmor %vm8272, %vm8322
    %v8348 = vsel %vm8323, 1.0, 0.0
    %v8349 = vsel %vm8324, 1.0, 0.0
    %v8350 = vsel %vm8325, 1.0, 0.0
    %v8351 = vsel %vm8326, 1.0, 0.0
    %v8352 = vsel %vm8327, 1.0, 0.0
    %v8353 = vsel %vm8328, 1.0, 0.0
    %v8354 = vsel %vm8329, 1.0, 0.0
    %v8355 = vsel %vm8330, 1.0, 0.0
    %v8356 = vsel %vm8331, 1.0, 0.0
    %v8357 = vsel %vm8332, 1.0, 0.0
    %v8358 = vsel %vm8333, 1.0, 0.0
    %v8359 = vsel %vm8334, 1.0, 0.0
    %v8360 = vsel %vm8335, 1.0, 0.0
    %v8361 = vsel %vm8336, 1.0, 0.0
    %v8362 = vsel %vm8337, 1.0, 0.0
    %v8363 = vsel %vm8338, 1.0, 0.0
    %v8364 = vsel %vm8339, 1.0, 0.0
    %v8365 = vsel %vm8340, 1.0, 0.0
    %v8366 = vsel %vm8341, 1.0, 0.0
    %v8367 = vsel %vm8342, 1.0, 0.0
    %v8368 = vsel %vm8343, 1.0, 0.0
    %v8369 = vsel %vm8344, 1.0, 0.0
    %v8370 = vsel %vm8345, 1.0, 0.0
    %v8371 = vsel %vm8346, 1.0, 0.0
    %v8372 = vsel %vm8347, 1.0, 0.0
    %v8373 = vpack.c.bf16 %v8349, %v8348
    %v8374 = vpack.c.bf16 %v8351, %v8350
    %v8375 = vpack.c.bf16 %v8353, %v8352
    %v8376 = vpack.c.bf16 %v8355, %v8354
    %v8377 = vpack.c.bf16 %v8357, %v8356
    %v8378 = vpack.c.bf16 %v8359, %v8358
    %v8379 = vpack.c.bf16 %v8361, %v8360
    %v8380 = vpack.c.bf16 %v8363, %v8362
    %v8381 = vpack.c.bf16 %v8365, %v8364
    %v8382 = vpack.c.bf16 %v8367, %v8366
    %v8383 = vpack.c.bf16 %v8369, %v8368
    %v8384 = vpack.c.bf16 %v8371, %v8370
    %v8385 = vpack.c.bf16 %v8372, %v8372
    %v8387 = vsel %vm1955, %v8373, 0
    %v8390 = vsel %vm1955, %v8374, 0
    %v8393 = vsel %vm1955, %v8375, 0
    %v8396 = vsel %vm1955, %v8376, 0
    %v8399 = vsel %vm1955, %v8377, 0
    %v8402 = vsel %vm1955, %v8378, 0
    %v8405 = vsel %vm1955, %v8379, 0
    %v8408 = vsel %vm1955, %v8380, 0
    %v8411 = vsel %vm1955, %v8381, 0
    %v8414 = vsel %vm1955, %v8382, 0
    %v8417 = vsel %vm1955, %v8383, 0
    %v8420 = vsel %vm1955, %v8384, 0
    %v8423 = vsel %vm1955, %v8385, 0
    %8425 = vmatprep.subr.bf16.mxu0 0
    %8426 = vmatpush1.bf16.msra.mxu0 %v6836
    %8427 = vmatprep.subr.bf16.mxu0 0
    %8428 = vmatpush1.bf16.msra.mxu0 %v6837
    %8429 = vmatprep.subr.bf16.mxu0 0
    %8430 = vmatpush1.bf16.msra.mxu0 %v6838
    %8431 = vmatprep.subr.bf16.mxu0 0
    %8432 = vmatpush1.bf16.msra.mxu0 %v6839
    %8433 = vmatprep.subr.bf16.mxu0 0
    %8434 = vmatpush1.bf16.msra.mxu0 %v6840
    %8435 = vmatprep.subr.bf16.mxu0 0
    %8436 = vmatpush1.bf16.msra.mxu0 %v6841
    %8437 = vmatprep.subr.bf16.mxu0 0
    %8438 = vmatpush1.bf16.msra.mxu0 %v7345
    %8439 = vmatprep.subr.bf16.mxu0 0
    %8440 = vmatpush1.bf16.msra.mxu0 0
    %8441 = vmatprep.subr.bf16.mxu0 0
    %8442 = vmatpush1.bf16.msra.mxu0 0
    %8443 = vmatprep.subr.bf16.mxu0 0
    %8444 = vmatpush1.bf16.msra.mxu0 0
    %8445 = vmatprep.subr.bf16.mxu0 0
    %8446 = vmatpush1.bf16.msra.mxu0 0
    %8447 = vmatprep.subr.bf16.mxu0 0
    %8448 = vmatpush1.bf16.msra.mxu0 0
    %8449 = vmatprep.subr.bf16.mxu0 0
    %8450 = vmatpush1.bf16.msra.mxu0 0
    %8451 = vmatprep.subr.bf16.mxu0 0
    %8452 = vmatpush1.bf16.msra.mxu0 0
    %8453 = vmatprep.subr.bf16.mxu0 0
    %8454 = vmatpush1.bf16.msra.mxu0 0
    %8455 = vmatprep.subr.bf16.mxu0 0
    %8456 = vmatpush1.bf16.msra.mxu0 0
    %8457 = vmatprep.mubr.bf16.mxu0 0
    %8458 = vmatmul.mubr.bf16.gmra.mrb[0].mxu0 %v8387
    %v8459 = vpop.f32.mrb[0].mxu0
    %v8460 = vadd.f32 0.0, %v8459
    %v8461 = vpop.f32.mrb[0].mxu0
    %v8462 = vpop.f32.mrb[0].mxu0
    %v8463 = vadd.f32 0.0, %v8462
    %v8464 = vpop.f32.mrb[0].mxu0
    %8465 = vmatprep.mubr.bf16.mxu0 0
    %8466 = vmatmul.mubr.bf16.gmra.mrb[0].mxu0 %v8390
    %v8467 = vpop.f32.mrb[0].mxu0
    %v8468 = vadd.f32 0.0, %v8467
    %v8469 = vpop.f32.mrb[0].mxu0
    %v8470 = vpop.f32.mrb[0].mxu0
    %v8471 = vadd.f32 0.0, %v8470
    %v8472 = vpop.f32.mrb[0].mxu0
    %8473 = vmatprep.mubr.bf16.mxu0 0
    %8474 = vmatmul.mubr.bf16.gmra.mrb[0].mxu0 %v8393
    %v8475 = vpop.f32.mrb[0].mxu0
    %v8476 = vadd.f32 0.0, %v8475
    %v8477 = vpop.f32.mrb[0].mxu0
    %v8478 = vpop.f32.mrb[0].mxu0
    %v8479 = vadd.f32 0.0, %v8478
    %v8480 = vpop.f32.mrb[0].mxu0
    %8481 = vmatprep.mubr.bf16.mxu0 0
    %8482 = vmatmul.mubr.bf16.gmra.mrb[0].mxu0 %v8396
    %v8483 = vpop.f32.mrb[0].mxu0
    %v8484 = vadd.f32 0.0, %v8483
    %v8485 = vpop.f32.mrb[0].mxu0
    %v8486 = vpop.f32.mrb[0].mxu0
    %v8487 = vadd.f32 0.0, %v8486
    %v8488 = vpop.f32.mrb[0].mxu0
    %8489 = vmatprep.mubr.bf16.mxu0 0
    %8490 = vmatmul.mubr.bf16.gmra.mrb[0].mxu0 %v8399
    %v8491 = vpop.f32.mrb[0].mxu0
    %v8492 = vadd.f32 0.0, %v8491
    %v8493 = vpop.f32.mrb[0].mxu0
    %v8494 = vpop.f32.mrb[0].mxu0
    %v8495 = vadd.f32 0.0, %v8494
    %v8496 = vpop.f32.mrb[0].mxu0
    %8497 = vmatprep.mubr.bf16.mxu0 0
    %8498 = vmatmul.mubr.bf16.gmra.mrb[0].mxu0 %v8402
    %v8499 = vpop.f32.mrb[0].mxu0
    %v8500 = vadd.f32 0.0, %v8499
    %v8501 = vpop.f32.mrb[0].mxu0
    %v8502 = vpop.f32.mrb[0].mxu0
    %v8503 = vadd.f32 0.0, %v8502
    %v8504 = vpop.f32.mrb[0].mxu0
    %8505 = vmatprep.mubr.bf16.mxu0 0
    %8506 = vmatmul.mubr.bf16.gmra.mrb[0].mxu0 %v8405
    %v8507 = vpop.f32.mrb[0].mxu0
    %v8508 = vadd.f32 0.0, %v8507
    %v8509 = vpop.f32.mrb[0].mxu0
    %v8510 = vpop.f32.mrb[0].mxu0
    %v8511 = vadd.f32 0.0, %v8510
    %v8512 = vpop.f32.mrb[0].mxu0
    %8513 = vmatprep.mubr.bf16.mxu0 0
    %8514 = vmatmul.mubr.bf16.gmra.mrb[0].mxu0 %v8408
    %v8515 = vpop.f32.mrb[0].mxu0
    %v8516 = vadd.f32 0.0, %v8515
    %v8517 = vpop.f32.mrb[0].mxu0
    %v8518 = vpop.f32.mrb[0].mxu0
    %v8519 = vadd.f32 0.0, %v8518
    %v8520 = vpop.f32.mrb[0].mxu0
    %8521 = vmatprep.mubr.bf16.mxu0 0
    %8522 = vmatmul.mubr.bf16.gmra.mrb[0].mxu0 %v8411
    %v8523 = vpop.f32.mrb[0].mxu0
    %v8524 = vadd.f32 0.0, %v8523
    %v8525 = vpop.f32.mrb[0].mxu0
    %v8526 = vpop.f32.mrb[0].mxu0
    %v8527 = vadd.f32 0.0, %v8526
    %v8528 = vpop.f32.mrb[0].mxu0
    %8529 = vmatprep.mubr.bf16.mxu0 0
    %8530 = vmatmul.mubr.bf16.gmra.mrb[0].mxu0 %v8414
    %v8531 = vpop.f32.mrb[0].mxu0
    %v8532 = vadd.f32 0.0, %v8531
    %v8533 = vpop.f32.mrb[0].mxu0
    %v8534 = vpop.f32.mrb[0].mxu0
    %v8535 = vadd.f32 0.0, %v8534
    %v8536 = vpop.f32.mrb[0].mxu0
    %8537 = vmatprep.mubr.bf16.mxu0 0
    %8538 = vmatmul.mubr.bf16.gmra.mrb[0].mxu0 %v8417
    %v8539 = vpop.f32.mrb[0].mxu0
    %v8540 = vadd.f32 0.0, %v8539
    %v8541 = vpop.f32.mrb[0].mxu0
    %v8542 = vpop.f32.mrb[0].mxu0
    %v8543 = vadd.f32 0.0, %v8542
    %v8544 = vpop.f32.mrb[0].mxu0
    %8545 = vmatprep.mubr.bf16.mxu0 0
    %8546 = vmatmul.mubr.bf16.gmra.mrb[0].mxu0 %v8420
    %v8547 = vpop.f32.mrb[0].mxu0
    %v8548 = vadd.f32 0.0, %v8547
    %v8549 = vpop.f32.mrb[0].mxu0
    %v8550 = vpop.f32.mrb[0].mxu0
    %v8551 = vadd.f32 0.0, %v8550
    %v8552 = vpop.f32.mrb[0].mxu0
    %8553 = vmatprep.mubr.bf16.mxu0 0
    %8554 = vmatmul.mubr.bf16.gmra.mrb[0].mxu0 %v8423
    %v8555 = vpop.f32.mrb[0].mxu0
    %v8556 = vadd.f32 0.0, %v8555
    %v8557 = vpop.f32.mrb[0].mxu0
    %v8558 = vpop.f32.mrb[0].mxu0
    %v8559 = vpop.f32.mrb[0].mxu0
    %8560 = vdwg.mxu0
    %v8561 = vpack.c.bf16 %v8463, %v8460
    %v8562 = vpack.c.bf16 %v8471, %v8468
    %v8563 = vpack.c.bf16 %v8479, %v8476
    %v8564 = vpack.c.bf16 %v8487, %v8484
    %v8565 = vpack.c.bf16 %v8495, %v8492
    %v8566 = vpack.c.bf16 %v8503, %v8500
    %v8567 = vpack.c.bf16 %v8511, %v8508
    %v8568 = vpack.c.bf16 %v8519, %v8516
    %v8569 = vpack.c.bf16 %v8527, %v8524
    %v8570 = vpack.c.bf16 %v8535, %v8532
    %v8571 = vpack.c.bf16 %v8543, %v8540
    %v8572 = vpack.c.bf16 %v8551, %v8548
    %v8573 = vpack.c.bf16 %v8556, %v8556
    %s8574 = scalar_lea.vmem %s1, 1472
    %v8575 = vld [vmem:[%s8574] sm:$0xf]
    %v8576 = vld [vmem:[%s8574 + $0x4] sm:$0xf]
    %v8577 = vld [vmem:[%s8574 + $0x8] sm:$0xf]
    %v8578 = vld [vmem:[%s8574 + $0xc] sm:$0xf]
    %v8579 = vld [vmem:[%s8574 + $0x10] sm:$0xf]
    %v8580 = vld [vmem:[%s8574 + $0x14] sm:$0xf]
    %v8581 = vld [vmem:[%s8574 + $0x18] sm:$0xf]
    %v8582 = vld [vmem:[%s8574 + $0x1c] sm:$0xf]
    %v8583 = vld [vmem:[%s8574 + $0x20] sm:$0xf]
    %v8584 = vld [vmem:[%s8574 + $0x24] sm:$0xf]
    %v8585 = vld [vmem:[%s8574 + $0x28] sm:$0xf]
    %v8586 = vld [vmem:[%s8574 + $0x2c] sm:$0xf]
    %v8587 = vld [vmem:[%s8574 + $0x30] sm:$0xf]
    %v8588 = vld [vmem:[%s8574 + $0x34] sm:$0xf]
    %v8589 = vld [vmem:[%s8574 + $0x38] sm:$0xf]
    %v8590 = vld [vmem:[%s8574 + $0x3c] sm:$0xf]
    %v8607 = vunpack.c.l.b16 %v8575
    %v8608 = vunpack.c.l.b16 %v8576
    %v8609 = vunpack.c.l.b16 %v8577
    %v8610 = vunpack.c.l.b16 %v8578
    %v8611 = vunpack.c.l.b16 %v8579
    %v8612 = vunpack.c.l.b16 %v8580
    %v8613 = vunpack.c.l.b16 %v8581
    %v8614 = vunpack.c.l.b16 %v8582
    %v8615 = vunpack.c.l.b16 %v8583
    %v8616 = vunpack.c.l.b16 %v8584
    %v8617 = vunpack.c.l.b16 %v8585
    %v8618 = vunpack.c.l.b16 %v8586
    %v8619 = vunpack.c.l.b16 %v8587
    %v8620 = vunpack.c.l.b16 %v8588
    %v8621 = vunpack.c.l.b16 %v8589
    %v8622 = vunpack.c.l.b16 %v8590
    %v8623 = vpack.c.b16 %v8608, %v8607
    %v8624 = vpack.c.b16 %v8610, %v8609
    %v8625 = vpack.c.b16 %v8612, %v8611
    %v8626 = vpack.c.b16 %v8614, %v8613
    %v8627 = vpack.c.b16 %v8616, %v8615
    %v8628 = vpack.c.b16 %v8618, %v8617
    %v8629 = vpack.c.b16 %v8620, %v8619
    %v8630 = vpack.c.b16 %v8622, %v8621
    %8639 = vmatprep.subr.bf16.mxu0 0
    %8640 = vmatpush1.bf16.msra.mxu0 %v8623
    %8641 = vmatprep.subr.bf16.mxu0 0
    %8642 = vmatpush1.bf16.msra.mxu0 %v8624
    %8643 = vmatprep.subr.bf16.mxu0 0
    %8644 = vmatpush1.bf16.msra.mxu0 %v8625
    %8645 = vmatprep.subr.bf16.mxu0 0
    %8646 = vmatpush1.bf16.msra.mxu0 %v8626
    %8647 = vmatprep.subr.bf16.mxu0 0
    %8648 = vmatpush1.bf16.msra.mxu0 %v8627
    %8649 = vmatprep.subr.bf16.mxu0 0
    %8650 = vmatpush1.bf16.msra.mxu0 %v8628
    %8651 = vmatprep.subr.bf16.mxu0 0
    %8652 = vmatpush1.bf16.msra.mxu0 %v8629
    %8653 = vmatprep.subr.bf16.mxu0 0
    %8654 = vmatpush1.bf16.msra.mxu0 %v8630
    %8655 = vmatprep.subr.bf16.mxu0 0
    %8656 = vmatpush1.bf16.msra.mxu0 0
    %8657 = vmatprep.subr.bf16.mxu0 0
    %8658 = vmatpush1.bf16.msra.mxu0 0
    %8659 = vmatprep.subr.bf16.mxu0 0
    %8660 = vmatpush1.bf16.msra.mxu0 0
    %8661 = vmatprep.subr.bf16.mxu0 0
    %8662 = vmatpush1.bf16.msra.mxu0 0
    %8663 = vmatprep.subr.bf16.mxu0 0
    %8664 = vmatpush1.bf16.msra.mxu0 0
    %8665 = vmatprep.subr.bf16.mxu0 0
    %8666 = vmatpush1.bf16.msra.mxu0 0
    %8667 = vmatprep.subr.bf16.mxu0 0
    %8668 = vmatpush1.bf16.msra.mxu0 0
    %8669 = vmatprep.subr.bf16.mxu0 0
    %8670 = vmatpush1.bf16.msra.mxu0 0
    %8671 = vmatprep.mubr.bf16.mxu0 0
    %8672 = vmatmul.mubr.bf16.gmra.mrb[0].mxu0 %v8561
    %v8673 = vpop.f32.mrb[0].mxu0
    %v8674 = vadd.f32 0.0, %v8673
    %v8675 = vpop.f32.mrb[0].mxu0
    %v8676 = vpop.f32.mrb[0].mxu0
    %v8677 = vadd.f32 0.0, %v8676
    %v8678 = vpop.f32.mrb[0].mxu0
    %8679 = vmatprep.mubr.bf16.mxu0 0
    %8680 = vmatmul.mubr.bf16.gmra.mrb[0].mxu0 %v8562
    %v8681 = vpop.f32.mrb[0].mxu0
    %v8682 = vadd.f32 0.0, %v8681
    %v8683 = vpop.f32.mrb[0].mxu0
    %v8684 = vpop.f32.mrb[0].mxu0
    %v8685 = vadd.f32 0.0, %v8684
    %v8686 = vpop.f32.mrb[0].mxu0
    %8687 = vmatprep.mubr.bf16.mxu0 0
    %8688 = vmatmul.mubr.bf16.gmra.mrb[0].mxu0 %v8563
    %v8689 = vpop.f32.mrb[0].mxu0
    %v8690 = vadd.f32 0.0, %v8689
    %v8691 = vpop.f32.mrb[0].mxu0
    %v8692 = vpop.f32.mrb[0].mxu0
    %v8693 = vadd.f32 0.0, %v8692
    %v8694 = vpop.f32.mrb[0].mxu0
    %8695 = vmatprep.mubr.bf16.mxu0 0
    %8696 = vmatmul.mubr.bf16.gmra.mrb[0].mxu0 %v8564
    %v8697 = vpop.f32.mrb[0].mxu0
    %v8698 = vadd.f32 0.0, %v8697
    %v8699 = vpop.f32.mrb[0].mxu0
    %v8700 = vpop.f32.mrb[0].mxu0
    %v8701 = vadd.f32 0.0, %v8700
    %v8702 = vpop.f32.mrb[0].mxu0
    %8703 = vmatprep.mubr.bf16.mxu0 0
    %8704 = vmatmul.mubr.bf16.gmra.mrb[0].mxu0 %v8565
    %v8705 = vpop.f32.mrb[0].mxu0
    %v8706 = vadd.f32 0.0, %v8705
    %v8707 = vpop.f32.mrb[0].mxu0
    %v8708 = vpop.f32.mrb[0].mxu0
    %v8709 = vadd.f32 0.0, %v8708
    %v8710 = vpop.f32.mrb[0].mxu0
    %8711 = vmatprep.mubr.bf16.mxu0 0
    %8712 = vmatmul.mubr.bf16.gmra.mrb[0].mxu0 %v8566
    %v8713 = vpop.f32.mrb[0].mxu0
    %v8714 = vadd.f32 0.0, %v8713
    %v8715 = vpop.f32.mrb[0].mxu0
    %v8716 = vpop.f32.mrb[0].mxu0
    %v8717 = vadd.f32 0.0, %v8716
    %v8718 = vpop.f32.mrb[0].mxu0
    %8719 = vmatprep.mubr.bf16.mxu0 0
    %8720 = vmatmul.mubr.bf16.gmra.mrb[0].mxu0 %v8567
    %v8721 = vpop.f32.mrb[0].mxu0
    %v8722 = vadd.f32 0.0, %v8721
    %v8723 = vpop.f32.mrb[0].mxu0
    %v8724 = vpop.f32.mrb[0].mxu0
    %v8725 = vadd.f32 0.0, %v8724
    %v8726 = vpop.f32.mrb[0].mxu0
    %8727 = vmatprep.mubr.bf16.mxu0 0
    %8728 = vmatmul.mubr.bf16.gmra.mrb[0].mxu0 %v8568
    %v8729 = vpop.f32.mrb[0].mxu0
    %v8730 = vadd.f32 0.0, %v8729
    %v8731 = vpop.f32.mrb[0].mxu0
    %v8732 = vpop.f32.mrb[0].mxu0
    %v8733 = vadd.f32 0.0, %v8732
    %v8734 = vpop.f32.mrb[0].mxu0
    %8735 = vmatprep.mubr.bf16.mxu0 0
    %8736 = vmatmul.mubr.bf16.gmra.mrb[0].mxu0 %v8569
    %v8737 = vpop.f32.mrb[0].mxu0
    %v8738 = vadd.f32 0.0, %v8737
    %v8739 = vpop.f32.mrb[0].mxu0
    %v8740 = vpop.f32.mrb[0].mxu0
    %v8741 = vadd.f32 0.0, %v8740
    %v8742 = vpop.f32.mrb[0].mxu0
    %8743 = vmatprep.mubr.bf16.mxu0 0
    %8744 = vmatmul.mubr.bf16.gmra.mrb[0].mxu0 %v8570
    %v8745 = vpop.f32.mrb[0].mxu0
    %v8746 = vadd.f32 0.0, %v8745
    %v8747 = vpop.f32.mrb[0].mxu0
    %v8748 = vpop.f32.mrb[0].mxu0
    %v8749 = vadd.f32 0.0, %v8748
    %v8750 = vpop.f32.mrb[0].mxu0
    %8751 = vmatprep.mubr.bf16.mxu0 0
    %8752 = vmatmul.mubr.bf16.gmra.mrb[0].mxu0 %v8571
    %v8753 = vpop.f32.mrb[0].mxu0
    %v8754 = vadd.f32 0.0, %v8753
    %v8755 = vpop.f32.mrb[0].mxu0
    %v8756 = vpop.f32.mrb[0].mxu0
    %v8757 = vadd.f32 0.0, %v8756
    %v8758 = vpop.f32.mrb[0].mxu0
    %8759 = vmatprep.mubr.bf16.mxu0 0
    %8760 = vmatmul.mubr.bf16.gmra.mrb[0].mxu0 %v8572
    %v8761 = vpop.f32.mrb[0].mxu0
    %v8762 = vadd.f32 0.0, %v8761
    %v8763 = vpop.f32.mrb[0].mxu0
    %v8764 = vpop.f32.mrb[0].mxu0
    %v8765 = vadd.f32 0.0, %v8764
    %v8766 = vpop.f32.mrb[0].mxu0
    %8767 = vmatprep.mubr.bf16.mxu0 0
    %8768 = vmatmul.mubr.bf16.gmra.mrb[0].mxu0 %v8573
    %v8769 = vpop.f32.mrb[0].mxu0
    %v8770 = vadd.f32 0.0, %v8769
    %v8771 = vpop.f32.mrb[0].mxu0
    %v8772 = vpop.f32.mrb[0].mxu0
    %v8773 = vpop.f32.mrb[0].mxu0
    %8774 = vdwg.mxu0
    %v8775 = vadd.f32 %v8135, %v8674
    %v8776 = vadd.f32 %v8138, %v8677
    %v8777 = vadd.f32 %v8143, %v8682
    %v8778 = vadd.f32 %v8146, %v8685
    %v8779 = vadd.f32 %v8151, %v8690
    %v8780 = vadd.f32 %v8154, %v8693
    %v8781 = vadd.f32 %v8159, %v8698
    %v8782 = vadd.f32 %v8162, %v8701
    %v8783 = vadd.f32 %v8167, %v8706
    %v8784 = vadd.f32 %v8170, %v8709
    %v8785 = vadd.f32 %v8175, %v8714
    %v8786 = vadd.f32 %v8178, %v8717
    %v8787 = vadd.f32 %v8183, %v8722
    %v8788 = vadd.f32 %v8186, %v8725
    %v8789 = vadd.f32 %v8191, %v8730
    %v8790 = vadd.f32 %v8194, %v8733
    %v8791 = vadd.f32 %v8199, %v8738
    %v8792 = vadd.f32 %v8202, %v8741
    %v8793 = vadd.f32 %v8207, %v8746
    %v8794 = vadd.f32 %v8210, %v8749
    %v8795 = vadd.f32 %v8215, %v8754
    %v8796 = vadd.f32 %v8218, %v8757
    %v8797 = vadd.f32 %v8223, %v8762
    %v8798 = vadd.f32 %v8226, %v8765
    %v8799 = vadd.f32 %v8231, %v8770
    %s8800 = scalar_lea.vmem %s2, 7
    %v8801 = vld [vmem:[%s8800] sm:$0x1]
    %v8803 = vlaneseq
    %v8804 = vshrl.u32 %v8803, 7
    %v8805 = vsub.s32 0, %v8804
    %v8806 = vrot.slane %v8801, %v8805
    %v8808 = vadd.f32 %v8775, %v8806
    %v8809 = vadd.f32 %v8776, %v8806
    %v8810 = vadd.f32 %v8777, %v8806
    %v8811 = vadd.f32 %v8778, %v8806
    %v8812 = vadd.f32 %v8779, %v8806
    %v8813 = vadd.f32 %v8780, %v8806
    %v8814 = vadd.f32 %v8781, %v8806
    %v8815 = vadd.f32 %v8782, %v8806
    %v8816 = vadd.f32 %v8783, %v8806
    %v8817 = vadd.f32 %v8784, %v8806
    %v8818 = vadd.f32 %v8785, %v8806
    %v8819 = vadd.f32 %v8786, %v8806
    %v8820 = vadd.f32 %v8787, %v8806
    %v8821 = vadd.f32 %v8788, %v8806
    %v8822 = vadd.f32 %v8789, %v8806
    %v8823 = vadd.f32 %v8790, %v8806
    %v8824 = vadd.f32 %v8791, %v8806
    %v8825 = vadd.f32 %v8792, %v8806
    %v8826 = vadd.f32 %v8793, %v8806
    %v8827 = vadd.f32 %v8794, %v8806
    %v8828 = vadd.f32 %v8795, %v8806
    %v8829 = vadd.f32 %v8796, %v8806
    %v8830 = vadd.f32 %v8797, %v8806
    %v8831 = vadd.f32 %v8798, %v8806
    %v8832 = vadd.f32 %v8799, %v8806
    %v8833 = vtanh.pop %v8808
    %v8834 = vtanh.pop %v8809
    %v8835 = vtanh.pop %v8810
    %v8836 = vtanh.pop %v8811
    %v8837 = vtanh.pop %v8812
    %v8838 = vtanh.pop %v8813
    %v8839 = vtanh.pop %v8814
    %v8840 = vtanh.pop %v8815
    %v8841 = vtanh.pop %v8816
    %v8842 = vtanh.pop %v8817
    %v8843 = vtanh.pop %v8818
    %v8844 = vtanh.pop %v8819
    %v8845 = vtanh.pop %v8820
    %v8846 = vtanh.pop %v8821
    %v8847 = vtanh.pop %v8822
    %v8848 = vtanh.pop %v8823
    %v8849 = vtanh.pop %v8824
    %v8850 = vtanh.pop %v8825
    %v8851 = vtanh.pop %v8826
    %v8852 = vtanh.pop %v8827
    %v8853 = vtanh.pop %v8828
    %v8854 = vtanh.pop %v8829
    %v8855 = vtanh.pop %v8830
    %v8856 = vtanh.pop %v8831
    %v8857 = vtanh.pop %v8832
    %8858 = vst [vmem:[%s6] sm:$0xff] %v8833
    %8859 = vst [vmem:[%s6 + $0x8] sm:$0xff] %v8834
    %8860 = vst [vmem:[%s6 + $0x10] sm:$0xff] %v8835
    %8861 = vst [vmem:[%s6 + $0x18] sm:$0xff] %v8836
    %8862 = vst [vmem:[%s6 + $0x20] sm:$0xff] %v8837
    %8863 = vst [vmem:[%s6 + $0x28] sm:$0xff] %v8838
    %8864 = vst [vmem:[%s6 + $0x30] sm:$0xff] %v8839
    %8865 = vst [vmem:[%s6 + $0x38] sm:$0xff] %v8840
    %8866 = vst [vmem:[%s6 + $0x40] sm:$0xff] %v8841
    %8867 = vst [vmem:[%s6 + $0x48] sm:$0xff] %v8842
    %8868 = vst [vmem:[%s6 + $0x50] sm:$0xff] %v8843
    %8869 = vst [vmem:[%s6 + $0x58] sm:$0xff] %v8844
    %8870 = vst [vmem:[%s6 + $0x60] sm:$0xff] %v8845
    %8871 = vst [vmem:[%s6 + $0x68] sm:$0xff] %v8846
    %8872 = vst [vmem:[%s6 + $0x70] sm:$0xff] %v8847
    %8873 = vst [vmem:[%s6 + $0x78] sm:$0xff] %v8848
    %8874 = vst [vmem:[%s6 + $0x80] sm:$0xff] %v8849
    %8875 = vst [vmem:[%s6 + $0x88] sm:$0xff] %v8850
    %8876 = vst [vmem:[%s6 + $0x90] sm:$0xff] %v8851
    %8877 = vst [vmem:[%s6 + $0x98] sm:$0xff] %v8852
    %8878 = vst [vmem:[%s6 + $0xa0] sm:$0xff] %v8853
    %8879 = vst [vmem:[%s6 + $0xa8] sm:$0xff] %v8854
    %8880 = vst [vmem:[%s6 + $0xb0] sm:$0xff] %v8855
    %8881 = vst [vmem:[%s6 + $0xb8] sm:$0xff] %v8856
    %8882 = vst [vmem:[%s6 + $0xc0] sm:$0xff] %v8857
    // Predicated region
    $region22: #{autoencoder_forward.1} parent=1 // pred_check
      _
    $region23: #{autoencoder_forward.1} parent=1 // pred_check_branch
      %8884 = sbr.rel (0) target = $region25
    $region24: #{autoencoder_forward.1} parent=1 // pred_region
      %s8886 = ssub.s32 32, 32
      %8887 = vsyncadd [#allocation3], %s8886
      %s8889 = sshll.u32 [#allocation2], 4
      %s8890 = int_to_ptr.vmem [resolvable:$true] %s8889
      %8892 = dma.vmem_to_hbm [thread:$0]  %s8890, 32, %s5, [#allocation3]
    $region25: #{autoencoder_forward.1} parent=1 // pred_fallthru
      _
    // Predicated region
    $region26: #{autoencoder_forward.1} parent=1 // pred_check
      _
    $region27: #{autoencoder_forward.1} parent=1 // pred_check_branch
      %8894 = sbr.rel (0) target = $region29
    $region28: #{autoencoder_forward.1} parent=1 // pred_region
      _
    $region29: #{autoencoder_forward.1} parent=1 // pred_fallthru
      _
    // Predicated region
    $region30: #{autoencoder_forward.1} parent=1 // pred_check
      _
    $region31: #{autoencoder_forward.1} parent=1 // pred_check_branch
      %8896 = sbr.rel (0) target = $region33
    $region32: #{autoencoder_forward.1} parent=1 // pred_region
      %8897 = dma.done [#allocation3], 32
    $region33: #{autoencoder_forward.1} parent=1 // pred_fallthru
      _
    // Predicated region
    $region34: #{autoencoder_forward.1} parent=1 // pred_check
      _
    $region35: #{autoencoder_forward.1} parent=1 // pred_check_branch
      %8899 = sbr.rel (0) target = $region37
    $region36: #{autoencoder_forward.1} parent=1 // pred_region
      _
    $region37: #{autoencoder_forward.1} parent=1 // pred_fallthru
      _
    %8900 = vsyncpa [#allocation3], 1

</llo_original>
